<compile_context>
chip_gen: v7x
topology: tpu7x:2x2x1
jax: 0.10.0
libtpu: 0.0.40
codegen_flags: <defaults>
</compile_context>

<pallas_src>
import functools
from dataclasses import dataclass

import jax
import jax.numpy as jnp
from jax.experimental import pallas as pl
from jax.experimental.pallas import tpu as pltpu


# ----------------------------------------------------------------------------
# Config (small, deterministic; MHA, no attention bias, consistent with Olmo2)
# ----------------------------------------------------------------------------
@dataclass
class Olmo2Config:
    vocab_size: int = 512
    hidden_size: int = 256
    intermediate_size: int = 512
    num_hidden_layers: int = 2
    num_attention_heads: int = 2          # head_dim = 128 (lane aligned)
    num_key_value_heads: int = 2          # sglang code chunks qkv in 3 => MHA
    max_position_embeddings: int = 128
    rope_theta: float = 10000.0
    rms_norm_eps: float = 1e-5
    attention_bias: bool = False
    tie_word_embeddings: bool = False


# ----------------------------------------------------------------------------
# Kernel helpers
# ----------------------------------------------------------------------------
def _rms(x, w, eps):
    # x: [T, D] f32, w: [1, D] f32
    var = jnp.mean(x * x, axis=-1, keepdims=True)
    return x * jax.lax.rsqrt(var + eps) * w


# ----------------------------------------------------------------------------
# Pallas kernels
# ----------------------------------------------------------------------------
def _attn_block_kernel(h_ref, qkv_w_ref, qn_ref, kn_ref, cos_ref, sin_ref,
                       bias_ref, o_w_ref, post_ref, o_ref,
                       *, num_heads, head_dim, eps, scale):
    """Fused: qkv proj + q/k RMSNorm + RoPE + causal attention (all heads) +
    o_proj + post_attention RMSNorm + residual add."""
    hb = h_ref[...]                                   # bf16 [T, HD]
    hf = hb.astype(jnp.float32)
    T, HD = hf.shape
    half = head_dim // 2

    # qkv projection: single bf16 x bf16 -> f32 MXU matmul.
    qkv = jnp.dot(hb, qkv_w_ref[...], preferred_element_type=jnp.float32)
    q = qkv[:, :HD]
    k = qkv[:, HD:2 * HD]
    v = qkv[:, 2 * HD:]

    # q_norm / k_norm over the full projected width (Olmo2 semantics).
    q = _rms(q, qn_ref[...], eps)
    k = _rms(k, kn_ref[...], eps)

    cos = cos_ref[...]        # [T, head_dim]
    sinr = sin_ref[...]       # sign-folded sin: rotate_half(x) == roll(x, half) * sign
    bias = bias_ref[...]      # [T, T] additive block-diagonal causal mask

    acc = jnp.zeros((T, HD), jnp.float32)
    # Heads stay packed on the lane axis; per-head slices are 128-lane aligned
    # (head_dim == 128).  o_proj is decomposed per head and accumulated, so no
    # concatenate is needed and each head's [T,T] score/prob matrices are
    # consumed within its own iteration (bounded live ranges).
    # TODO(synk): at realistic head counts, make heads a grid axis / batched
    # dot_general instead of a Python-unrolled loop.
    for hh in range(num_heads):
        s0 = hh * head_dim
        qh = q[:, s0:s0 + head_dim]                   # [T, hd]
        kh = k[:, s0:s0 + head_dim]
        vh = v[:, s0:s0 + head_dim]

        # Neox RoPE via an XLU lane roll (no MXU rotation matrix, no HD^2 op).
        qh = qh * cos + pltpu.roll(qh, shift=half, axis=1) * sinr
        kh = kh * cos + pltpu.roll(kh, shift=half, axis=1) * sinr

        qh = qh * scale                               # fold softmax scale once

        scores = jax.lax.dot_general(                 # q @ k^T, no k relayout
            qh, kh, (((1,), (1,)), ((), ())),
            preferred_element_type=jnp.float32) + bias
        m = jnp.max(scores, axis=-1, keepdims=True)
        p = jnp.exp(scores - m)
        denom = jnp.sum(p, axis=-1, keepdims=True)
        oh = jnp.dot(p, vh, preferred_element_type=jnp.float32) / denom

        # o_proj decomposed per head: accumulate oh @ o_w[head rows, :].
        acc = acc + jnp.dot(oh.astype(jnp.bfloat16),
                            o_w_ref[s0:s0 + head_dim, :],
                            preferred_element_type=jnp.float32)

    y = _rms(acc, post_ref[...], eps)                 # post_attention_layernorm
    o_ref[...] = (y + hf).astype(o_ref.dtype)         # residual add


def _mlp_block_kernel(h_ref, gate_w_ref, up_w_ref, down_w_ref, post_ref,
                      o_ref, acc_ref, *, eps):
    """Fused: gate/up proj + SiluAndMul + down proj + post_ffn RMSNorm +
    residual, with a reduction grid over intermediate tiles (weight streaming
    is handled by the BlockSpec pipeline; acc_ref holds the f32 partial)."""
    j = pl.program_id(0)

    @pl.when(j == 0)
    def _():
        acc_ref[...] = jnp.zeros_like(acc_ref)

    hb = h_ref[...]                                   # bf16 [T, HD]
    g = jnp.dot(hb, gate_w_ref[...], preferred_element_type=jnp.float32)
    u = jnp.dot(hb, up_w_ref[...], preferred_element_type=jnp.float32)
    act = g * jax.nn.sigmoid(g) * u                   # SiluAndMul (f32 epilogue)
    acc_ref[...] += jnp.dot(act.astype(jnp.bfloat16), down_w_ref[...],
                            preferred_element_type=jnp.float32)

    @pl.when(j == pl.num_programs(0) - 1)
    def _():
        y = _rms(acc_ref[...], post_ref[...], eps)    # post_feedforward_layernorm
        o_ref[...] = (y + hb.astype(jnp.float32)).astype(o_ref.dtype)


def _final_norm_kernel(h_ref, w_ref, o_ref, *, eps):
    """Final RMSNorm, computed once (hoisted out of the vocab-tile loop)."""
    x = _rms(h_ref[...].astype(jnp.float32), w_ref[...], eps)
    o_ref[...] = x.astype(o_ref.dtype)


def _lmhead_kernel(x_ref, w_ref, o_ref):
    """lm_head matmul, one 256-wide vocab tile per grid step ("parallel")."""
    # TODO(synk): at large hidden sizes add a K grid axis with a f32 VMEM
    # accumulator (pl.when init/finalize).
    o_ref[...] = jnp.dot(x_ref[...], w_ref[...],
                         preferred_element_type=jnp.float32).astype(o_ref.dtype)


# ----------------------------------------------------------------------------
# pallas_call wrappers
# ----------------------------------------------------------------------------
def attn_block(cfg, lp, h, cos, sin, bias):
    T, HD = h.shape
    nH = cfg.num_attention_heads
    hd = HD // nH
    kern = functools.partial(_attn_block_kernel, num_heads=nH, head_dim=hd,
                             eps=cfg.rms_norm_eps, scale=hd ** -0.5)
    full = lambda shape: pl.BlockSpec(shape, lambda i: (0, 0))
    return pl.pallas_call(
        kern,
        out_shape=jax.ShapeDtypeStruct((T, HD), h.dtype),
        grid=(1,),
        in_specs=[
            full((T, HD)),            # h (also the residual)
            full((HD, 3 * HD)),       # qkv_w   (bf16, [in, out])
            full((1, HD)),            # q_norm
            full((1, HD)),            # k_norm
            full((T, hd)),            # cos     ([T, head_dim], not tiled)
            full((T, hd)),            # signed sin
            full((T, T)),             # block-diagonal causal bias
            full((HD, HD)),           # o_w
            full((1, HD)),            # post_attn_norm
        ],
        out_specs=full((T, HD)),
        compiler_params=pltpu.CompilerParams(
            dimension_semantics=("arbitrary",)),
    )(h, lp["qkv_w"], lp["q_norm"], lp["k_norm"], cos, sin, bias,
      lp["o_w"], lp["post_attn_norm"])


def mlp_block(cfg, lp, h):
    T, HD = h.shape
    I = cfg.intermediate_size
    TI = 256 if I % 256 == 0 else (128 if I % 128 == 0 else I)
    kern = functools.partial(_mlp_block_kernel, eps=cfg.rms_norm_eps)
    return pl.pallas_call(
        kern,
        out_shape=jax.ShapeDtypeStruct((T, HD), h.dtype),
        grid=(I // TI,),                              # reduction over intermediate
        in_specs=[
            pl.BlockSpec((T, HD), lambda j: (0, 0)),  # h (resident, residual)
            pl.BlockSpec((HD, TI), lambda j: (0, j)), # gate_w tile
            pl.BlockSpec((HD, TI), lambda j: (0, j)), # up_w tile
            pl.BlockSpec((TI, HD), lambda j: (j, 0)), # down_w tile
            pl.BlockSpec((1, HD), lambda j: (0, 0)),  # post_ffn_norm
        ],
        out_specs=pl.BlockSpec((T, HD), lambda j: (0, 0)),
        scratch_shapes=[pltpu.VMEM((T, HD), jnp.float32)],
        compiler_params=pltpu.CompilerParams(
            dimension_semantics=("arbitrary",)),
    )(h, lp["gate_w"], lp["up_w"], lp["down_w"], lp["post_ffn_norm"])


def final_norm(cfg, h, w):
    T, HD = h.shape
    kern = functools.partial(_final_norm_kernel, eps=cfg.rms_norm_eps)
    return pl.pallas_call(
        kern,
        out_shape=jax.ShapeDtypeStruct((T, HD), h.dtype),
        grid=(1,),
        in_specs=[pl.BlockSpec((T, HD), lambda i: (0, 0)),
                  pl.BlockSpec((1, HD), lambda i: (0, 0))],
        out_specs=pl.BlockSpec((T, HD), lambda i: (0, 0)),
    )(h, w)


def lm_head(cfg, x, w):
    T, HD = x.shape
    V = w.shape[1]
    TN = 256 if V % 256 == 0 else (128 if V % 128 == 0 else V)
    return pl.pallas_call(
        _lmhead_kernel,
        out_shape=jax.ShapeDtypeStruct((T, V), jnp.float32),
        grid=(V // TN,),
        in_specs=[pl.BlockSpec((T, HD), lambda j: (0, 0)),
                  pl.BlockSpec((HD, TN), lambda j: (0, j))],  # vocab-tiled weight
        out_specs=pl.BlockSpec((T, TN), lambda j: (0, j)),
        compiler_params=pltpu.CompilerParams(
            dimension_semantics=("parallel",)),
    )(x, w)


# ----------------------------------------------------------------------------
# Parameter init (deterministic, synthetic) — bf16 weights, pre-transposed
# ----------------------------------------------------------------------------
def rope_tables(cfg, positions):
    """Per-head-dim RoPE tables [S, head_dim].  The sin table is sign-folded so
    that rotate_half(x) == pltpu.roll(x, head_dim//2) * sign."""
    hd = cfg.hidden_size // cfg.num_attention_heads
    inv_freq = 1.0 / (
        cfg.rope_theta ** (jnp.arange(0, hd, 2, dtype=jnp.float32) / hd))
    freqs = positions.astype(jnp.float32)[:, None] * inv_freq[None, :]  # [S, hd/2]
    cos = jnp.concatenate([jnp.cos(freqs), jnp.cos(freqs)], axis=-1)    # [S, hd]
    sin = jnp.sin(freqs)
    sin_signed = jnp.concatenate([-sin, sin], axis=-1)                  # [S, hd]
    return cos, sin_signed


def init_params(cfg: Olmo2Config, key):
    H = cfg.hidden_size
    I = cfg.intermediate_size
    V = cfg.vocab_size
    wdt = jnp.bfloat16

    def dense(k, shape, scale=0.02):
        return (jax.random.normal(k, shape, dtype=jnp.float32) * scale).astype(wdt)

    keys = jax.random.split(key, 2 + cfg.num_hidden_layers)
    embed = dense(keys[0], (V, H))
    # lm_head pre-transposed to [H, V] at init (no .T in the forward pass).
    lm_head_w = embed.T if cfg.tie_word_embeddings else dense(keys[1], (H, V))
    params = {
        "embed": embed,
        "final_norm": jnp.ones((1, H), jnp.float32),
        "lm_head_w": lm_head_w,
        "layers": [],
    }
    for l in range(cfg.num_hidden_layers):
        lk = jax.random.split(keys[2 + l], 5)
        params["layers"].append(
            {
                # all stored transposed: [in, out], bf16
                "qkv_w": dense(lk[0], (H, 3 * H)),
                "o_w": dense(lk[1], (H, H)),
                "gate_w": dense(lk[2], (H, I)),
                "up_w": dense(lk[3], (H, I)),
                "down_w": dense(lk[4], (I, H)),
                "q_norm": jnp.ones((1, H), jnp.float32),
                "k_norm": jnp.ones((1, H), jnp.float32),
                "post_attn_norm": jnp.ones((1, H), jnp.float32),
                "post_ffn_norm": jnp.ones((1, H), jnp.float32),
            }
        )
    return params


# ----------------------------------------------------------------------------
# Forward pass
# ----------------------------------------------------------------------------
def olmo2_forward(cfg, params, input_ids, positions):
    """input_ids: [B, S] int32, positions: [S] int32 -> logits [B*S, vocab]."""
    B, S = input_ids.shape
    T = B * S
    tokens = input_ids.reshape(-1)                    # flatten like sglang
    h = params["embed"][tokens]                       # embedding gather (glue)

    cos, sin = rope_tables(cfg, positions)            # [S, hd] each
    if B > 1:
        cos = jnp.tile(cos, (B, 1))
        sin = jnp.tile(sin, (B, 1))

    # Block-diagonal causal mask over the flattened B*S tokens, so each
    # sequence only attends to its own prefix (correct for B > 1).
    tok = jnp.arange(T, dtype=jnp.int32)
    seq_id = tok // S
    pos = jnp.tile(positions, (B,)) if B > 1 else positions
    allowed = (seq_id[:, None] == seq_id[None, :]) & (pos[None, :] <= pos[:, None])
    bias = jnp.where(allowed, 0.0, -1e30).astype(jnp.float32)

    # TODO(synk): no KV cache / RadixAttention batching from ForwardBatch; all
    # tokens are treated as contiguous prefill.  TODO(synk): cross-call weight
    # prefetch (or merging attn+mlp per layer) would hide inter-layer HBM
    # latency at realistic sizes.
    for lp in params["layers"]:
        h = attn_block(cfg, lp, h, cos, sin, bias)
        h = mlp_block(cfg, lp, h)

    x = final_norm(cfg, h, params["final_norm"])      # hoisted out of vocab loop
    logits = lm_head(cfg, x, params["lm_head_w"])
    # TODO(synk): LogitsProcessor in sglang slices last-token logits per
    # request; here full-sequence logits are returned.
    return logits


# ----------------------------------------------------------------------------
# Main
# ----------------------------------------------------------------------------
if __name__ == "__main__":
    cfg = Olmo2Config()
    key = jax.random.PRNGKey(0)
    pkey, ikey = jax.random.split(key)
    params = init_params(cfg, pkey)

    B, S = 2, 8
    input_ids = jax.random.randint(ikey, (B, S), 0, cfg.vocab_size,
                                   dtype=jnp.int32)
    positions = jnp.arange(S, dtype=jnp.int32)

    fwd = jax.jit(functools.partial(olmo2_forward, cfg))
    logits = fwd(params, input_ids, positions)
    logits = jax.block_until_ready(logits)

    assert logits.shape == (B * S, cfg.vocab_size)
    assert bool(jnp.all(jnp.isfinite(logits)))
    print("KERNEL_OK")
</pallas_src>

<mosaic_0001>
module attributes {stable_mosaic.version = 11 : i64} {
  func.func @_attn_block_kernel(%arg0: i32, %arg1: memref<16x256xbf16, #tpu.memory_space<vmem>>, %arg2: memref<256x768xbf16, #tpu.memory_space<vmem>>, %arg3: memref<1x256xf32, #tpu.memory_space<vmem>>, %arg4: memref<1x256xf32, #tpu.memory_space<vmem>>, %arg5: memref<16x128xf32, #tpu.memory_space<vmem>>, %arg6: memref<16x128xf32, #tpu.memory_space<vmem>>, %arg7: memref<16x16xf32, #tpu.memory_space<vmem>>, %arg8: memref<256x256xbf16, #tpu.memory_space<vmem>>, %arg9: memref<1x256xf32, #tpu.memory_space<vmem>>, %arg10: memref<16x256xbf16, #tpu.memory_space<vmem>>) attributes {dimension_semantics = [#tpu.dimension_semantics<arbitrary>], iteration_bounds = array<i64: 1>, scalar_prefetch = 0 : i64, scratch_operands = 0 : i64, tpu.core_type = #tpu.core_type<tc>, window_params = [{pipeline_mode = #tpu.pipeline_mode<synchronous>, transform_indices = @transform_0, window_bounds = array<i64: 16, 256>}, {pipeline_mode = #tpu.pipeline_mode<synchronous>, transform_indices = @transform_1, window_bounds = array<i64: 256, 768>}, {pipeline_mode = #tpu.pipeline_mode<synchronous>, transform_indices = @transform_2, window_bounds = array<i64: 1, 256>}, {pipeline_mode = #tpu.pipeline_mode<synchronous>, transform_indices = @transform_3, window_bounds = array<i64: 1, 256>}, {pipeline_mode = #tpu.pipeline_mode<synchronous>, transform_indices = @transform_4, window_bounds = array<i64: 16, 128>}, {pipeline_mode = #tpu.pipeline_mode<synchronous>, transform_indices = @transform_5, window_bounds = array<i64: 16, 128>}, {pipeline_mode = #tpu.pipeline_mode<synchronous>, transform_indices = @transform_6, window_bounds = array<i64: 16, 16>}, {pipeline_mode = #tpu.pipeline_mode<synchronous>, transform_indices = @transform_7, window_bounds = array<i64: 256, 256>}, {pipeline_mode = #tpu.pipeline_mode<synchronous>, transform_indices = @transform_8, window_bounds = array<i64: 1, 256>}, {pipeline_mode = #tpu.pipeline_mode<synchronous>, transform_indices = @transform_9, window_bounds = array<i64: 16, 256>}]} {
    %c0 = arith.constant 0 : index
    %c0_0 = arith.constant 0 : index
    %0 = vector.load %arg1[%c0, %c0_0] : memref<16x256xbf16, #tpu.memory_space<vmem>>, vector<16x256xbf16>
    %1 = arith.extf %0 : vector<16x256xbf16> to vector<16x256xf32>
    %c0_1 = arith.constant 0 : index
    %c0_2 = arith.constant 0 : index
    %2 = vector.load %arg2[%c0_1, %c0_2] : memref<256x768xbf16, #tpu.memory_space<vmem>>, vector<256x768xbf16>
    %cst = arith.constant dense<0.000000e+00> : vector<16x768xf32>
    %3 = tpu.matmul %0, %2, %cst {dimension_numbers = #tpu.dot_dimension_numbers<[1], [0], [0], [1], [0, 0, 1, 1], [], []>} : vector<16x256xbf16>, vector<256x768xbf16>, vector<16x768xf32> -> vector<16x768xf32>
    %4 = vector.extract_strided_slice %3 {offsets = [0, 0], sizes = [16, 256], strides = [1, 1]} : vector<16x768xf32> to vector<16x256xf32>
    %5 = vector.extract_strided_slice %3 {offsets = [0, 256], sizes = [16, 256], strides = [1, 1]} : vector<16x768xf32> to vector<16x256xf32>
    %6 = vector.extract_strided_slice %3 {offsets = [0, 512], sizes = [16, 256], strides = [1, 1]} : vector<16x768xf32> to vector<16x256xf32>
    %c0_3 = arith.constant 0 : index
    %c0_4 = arith.constant 0 : index
    %7 = vector.load %arg3[%c0_3, %c0_4] : memref<1x256xf32, #tpu.memory_space<vmem>>, vector<1x256xf32>
    %8 = arith.mulf %4, %4 : vector<16x256xf32>
    %cst_5 = arith.constant dense<0.000000e+00> : vector<16xf32>
    %9 = vector.multi_reduction <add>, %8, %cst_5 [1] : vector<16x256xf32> to vector<16xf32>
    %10 = vector.shape_cast %9 : vector<16xf32> to vector<16x1xf32>
    %cst_6 = arith.constant 2.560000e+02 : f32
    %11 = vector.broadcast %cst_6 : f32 to vector<16x1xf32>
    %12 = arith.divf %10, %11 : vector<16x1xf32>
    %cst_7 = arith.constant 9.99999974E-6 : f32
    %13 = vector.broadcast %cst_7 : f32 to vector<16x1xf32>
    %14 = arith.addf %12, %13 : vector<16x1xf32>
    %15 = math.rsqrt %14 : vector<16x1xf32>
    %16 = vector.broadcast %15 : vector<16x1xf32> to vector<16x256xf32>
    %17 = arith.mulf %4, %16 : vector<16x256xf32>
    %18 = vector.broadcast %7 : vector<1x256xf32> to vector<16x256xf32>
    %19 = arith.mulf %17, %18 : vector<16x256xf32>
    %c0_8 = arith.constant 0 : index
    %c0_9 = arith.constant 0 : index
    %20 = vector.load %arg4[%c0_8, %c0_9] : memref<1x256xf32, #tpu.memory_space<vmem>>, vector<1x256xf32>
    %21 = arith.mulf %5, %5 : vector<16x256xf32>
    %cst_10 = arith.constant dense<0.000000e+00> : vector<16xf32>
    %22 = vector.multi_reduction <add>, %21, %cst_10 [1] : vector<16x256xf32> to vector<16xf32>
    %23 = vector.shape_cast %22 : vector<16xf32> to vector<16x1xf32>
    %cst_11 = arith.constant 2.560000e+02 : f32
    %24 = vector.broadcast %cst_11 : f32 to vector<16x1xf32>
    %25 = arith.divf %23, %24 : vector<16x1xf32>
    %cst_12 = arith.constant 9.99999974E-6 : f32
    %26 = vector.broadcast %cst_12 : f32 to vector<16x1xf32>
    %27 = arith.addf %25, %26 : vector<16x1xf32>
    %28 = math.rsqrt %27 : vector<16x1xf32>
    %29 = vector.broadcast %28 : vector<16x1xf32> to vector<16x256xf32>
    %30 = arith.mulf %5, %29 : vector<16x256xf32>
    %31 = vector.broadcast %20 : vector<1x256xf32> to vector<16x256xf32>
    %32 = arith.mulf %30, %31 : vector<16x256xf32>
    %c0_13 = arith.constant 0 : index
    %c0_14 = arith.constant 0 : index
    %33 = vector.load %arg5[%c0_13, %c0_14] : memref<16x128xf32, #tpu.memory_space<vmem>>, vector<16x128xf32>
    %c0_15 = arith.constant 0 : index
    %c0_16 = arith.constant 0 : index
    %34 = vector.load %arg6[%c0_15, %c0_16] : memref<16x128xf32, #tpu.memory_space<vmem>>, vector<16x128xf32>
    %c0_17 = arith.constant 0 : index
    %c0_18 = arith.constant 0 : index
    %35 = vector.load %arg7[%c0_17, %c0_18] : memref<16x16xf32, #tpu.memory_space<vmem>>, vector<16x16xf32>
    %cst_19 = arith.constant 0.000000e+00 : f32
    %36 = vector.broadcast %cst_19 : f32 to vector<16x256xf32>
    %37 = vector.extract_strided_slice %19 {offsets = [0, 0], sizes = [16, 128], strides = [1, 1]} : vector<16x256xf32> to vector<16x128xf32>
    %38 = vector.extract_strided_slice %32 {offsets = [0, 0], sizes = [16, 128], strides = [1, 1]} : vector<16x256xf32> to vector<16x128xf32>
    %39 = vector.extract_strided_slice %6 {offsets = [0, 0], sizes = [16, 128], strides = [1, 1]} : vector<16x256xf32> to vector<16x128xf32>
    %40 = arith.mulf %37, %33 : vector<16x128xf32>
    %c64_i32 = arith.constant 64 : i32
    %41 = tpu.dynamic_rotate %37 by %c64_i32 dim 1 : vector<16x128xf32>, i32 -> vector<16x128xf32>
    %42 = arith.mulf %41, %34 : vector<16x128xf32>
    %43 = arith.addf %40, %42 : vector<16x128xf32>
    %44 = arith.mulf %38, %33 : vector<16x128xf32>
    %c64_i32_20 = arith.constant 64 : i32
    %45 = tpu.dynamic_rotate %38 by %c64_i32_20 dim 1 : vector<16x128xf32>, i32 -> vector<16x128xf32>
    %46 = arith.mulf %45, %34 : vector<16x128xf32>
    %47 = arith.addf %44, %46 : vector<16x128xf32>
    %cst_21 = arith.constant 0.0883883461 : f32
    %48 = vector.broadcast %cst_21 : f32 to vector<16x128xf32>
    %49 = arith.mulf %43, %48 : vector<16x128xf32>
    %cst_22 = arith.constant dense<0.000000e+00> : vector<16x16xf32>
    %50 = tpu.matmul %49, %47, %cst_22 {dimension_numbers = #tpu.dot_dimension_numbers<[1], [1], [0], [0], [0, 0, 1, 0], [], []>} : vector<16x128xf32>, vector<16x128xf32>, vector<16x16xf32> -> vector<16x16xf32>
    %51 = arith.addf %50, %35 : vector<16x16xf32>
    %cst_23 = arith.constant dense<0xFF800000> : vector<16xf32>
    %52 = vector.multi_reduction <maximumf>, %51, %cst_23 [1] : vector<16x16xf32> to vector<16xf32>
    %53 = vector.shape_cast %52 : vector<16xf32> to vector<16x1xf32>
    %54 = vector.broadcast %53 : vector<16x1xf32> to vector<16x16xf32>
    %55 = arith.subf %51, %54 : vector<16x16xf32>
    %56 = math.exp %55 : vector<16x16xf32>
    %cst_24 = arith.constant dense<0.000000e+00> : vector<16xf32>
    %57 = vector.multi_reduction <add>, %56, %cst_24 [1] : vector<16x16xf32> to vector<16xf32>
    %58 = vector.shape_cast %57 : vector<16xf32> to vector<16x1xf32>
    %cst_25 = arith.constant dense<0.000000e+00> : vector<16x128xf32>
    %59 = tpu.matmul %56, %39, %cst_25 {dimension_numbers = #tpu.dot_dimension_numbers<[1], [0], [0], [1], [0, 0, 1, 1], [], []>} : vector<16x16xf32>, vector<16x128xf32>, vector<16x128xf32> -> vector<16x128xf32>
    %60 = vector.broadcast %58 : vector<16x1xf32> to vector<16x128xf32>
    %61 = arith.divf %59, %60 : vector<16x128xf32>
    %62 = arith.truncf %61 : vector<16x128xf32> to vector<16x128xbf16>
    %c0_26 = arith.constant 0 : index
    %c0_27 = arith.constant 0 : index
    %63 = vector.load %arg8[%c0_26, %c0_27] : memref<256x256xbf16, #tpu.memory_space<vmem>>, vector<128x256xbf16>
    %cst_28 = arith.constant dense<0.000000e+00> : vector<16x256xf32>
    %64 = tpu.matmul %62, %63, %cst_28 {dimension_numbers = #tpu.dot_dimension_numbers<[1], [0], [0], [1], [0, 0, 1, 1], [], []>} : vector<16x128xbf16>, vector<128x256xbf16>, vector<16x256xf32> -> vector<16x256xf32>
    %65 = arith.addf %36, %64 : vector<16x256xf32>
    %66 = vector.extract_strided_slice %19 {offsets = [0, 128], sizes = [16, 128], strides = [1, 1]} : vector<16x256xf32> to vector<16x128xf32>
    %67 = vector.extract_strided_slice %32 {offsets = [0, 128], sizes = [16, 128], strides = [1, 1]} : vector<16x256xf32> to vector<16x128xf32>
    %68 = vector.extract_strided_slice %6 {offsets = [0, 128], sizes = [16, 128], strides = [1, 1]} : vector<16x256xf32> to vector<16x128xf32>
    %69 = arith.mulf %66, %33 : vector<16x128xf32>
    %c64_i32_29 = arith.constant 64 : i32
    %70 = tpu.dynamic_rotate %66 by %c64_i32_29 dim 1 : vector<16x128xf32>, i32 -> vector<16x128xf32>
    %71 = arith.mulf %70, %34 : vector<16x128xf32>
    %72 = arith.addf %69, %71 : vector<16x128xf32>
    %73 = arith.mulf %67, %33 : vector<16x128xf32>
    %c64_i32_30 = arith.constant 64 : i32
    %74 = tpu.dynamic_rotate %67 by %c64_i32_30 dim 1 : vector<16x128xf32>, i32 -> vector<16x128xf32>
    %75 = arith.mulf %74, %34 : vector<16x128xf32>
    %76 = arith.addf %73, %75 : vector<16x128xf32>
    %cst_31 = arith.constant 0.0883883461 : f32
    %77 = vector.broadcast %cst_31 : f32 to vector<16x128xf32>
    %78 = arith.mulf %72, %77 : vector<16x128xf32>
    %cst_32 = arith.constant dense<0.000000e+00> : vector<16x16xf32>
    %79 = tpu.matmul %78, %76, %cst_32 {dimension_numbers = #tpu.dot_dimension_numbers<[1], [1], [0], [0], [0, 0, 1, 0], [], []>} : vector<16x128xf32>, vector<16x128xf32>, vector<16x16xf32> -> vector<16x16xf32>
    %80 = arith.addf %79, %35 : vector<16x16xf32>
    %cst_33 = arith.constant dense<0xFF800000> : vector<16xf32>
    %81 = vector.multi_reduction <maximumf>, %80, %cst_33 [1] : vector<16x16xf32> to vector<16xf32>
    %82 = vector.shape_cast %81 : vector<16xf32> to vector<16x1xf32>
    %83 = vector.broadcast %82 : vector<16x1xf32> to vector<16x16xf32>
    %84 = arith.subf %80, %83 : vector<16x16xf32>
    %85 = math.exp %84 : vector<16x16xf32>
    %cst_34 = arith.constant dense<0.000000e+00> : vector<16xf32>
    %86 = vector.multi_reduction <add>, %85, %cst_34 [1] : vector<16x16xf32> to vector<16xf32>
    %87 = vector.shape_cast %86 : vector<16xf32> to vector<16x1xf32>
    %cst_35 = arith.constant dense<0.000000e+00> : vector<16x128xf32>
    %88 = tpu.matmul %85, %68, %cst_35 {dimension_numbers = #tpu.dot_dimension_numbers<[1], [0], [0], [1], [0, 0, 1, 1], [], []>} : vector<16x16xf32>, vector<16x128xf32>, vector<16x128xf32> -> vector<16x128xf32>
    %89 = vector.broadcast %87 : vector<16x1xf32> to vector<16x128xf32>
    %90 = arith.divf %88, %89 : vector<16x128xf32>
    %91 = arith.truncf %90 : vector<16x128xf32> to vector<16x128xbf16>
    %c128 = arith.constant 128 : index
    %c0_36 = arith.constant 0 : index
    %92 = vector.load %arg8[%c128, %c0_36] : memref<256x256xbf16, #tpu.memory_space<vmem>>, vector<128x256xbf16>
    %cst_37 = arith.constant dense<0.000000e+00> : vector<16x256xf32>
    %93 = tpu.matmul %91, %92, %cst_37 {dimension_numbers = #tpu.dot_dimension_numbers<[1], [0], [0], [1], [0, 0, 1, 1], [], []>} : vector<16x128xbf16>, vector<128x256xbf16>, vector<16x256xf32> -> vector<16x256xf32>
    %94 = arith.addf %65, %93 : vector<16x256xf32>
    %c0_38 = arith.constant 0 : index
    %c0_39 = arith.constant 0 : index
    %95 = vector.load %arg9[%c0_38, %c0_39] : memref<1x256xf32, #tpu.memory_space<vmem>>, vector<1x256xf32>
    %96 = arith.mulf %94, %94 : vector<16x256xf32>
    %cst_40 = arith.constant dense<0.000000e+00> : vector<16xf32>
    %97 = vector.multi_reduction <add>, %96, %cst_40 [1] : vector<16x256xf32> to vector<16xf32>
    %98 = vector.shape_cast %97 : vector<16xf32> to vector<16x1xf32>
    %cst_41 = arith.constant 2.560000e+02 : f32
    %99 = vector.broadcast %cst_41 : f32 to vector<16x1xf32>
    %100 = arith.divf %98, %99 : vector<16x1xf32>
    %cst_42 = arith.constant 9.99999974E-6 : f32
    %101 = vector.broadcast %cst_42 : f32 to vector<16x1xf32>
    %102 = arith.addf %100, %101 : vector<16x1xf32>
    %103 = math.rsqrt %102 : vector<16x1xf32>
    %104 = vector.broadcast %103 : vector<16x1xf32> to vector<16x256xf32>
    %105 = arith.mulf %94, %104 : vector<16x256xf32>
    %106 = vector.broadcast %95 : vector<1x256xf32> to vector<16x256xf32>
    %107 = arith.mulf %105, %106 : vector<16x256xf32>
    %108 = arith.addf %107, %1 : vector<16x256xf32>
    %109 = arith.truncf %108 : vector<16x256xf32> to vector<16x256xbf16>
    %c0_43 = arith.constant 0 : index
    %c0_44 = arith.constant 0 : index
    %110 = vector.load %arg10[%c0_43, %c0_44] : memref<16x256xbf16, #tpu.memory_space<vmem>>, vector<16x256xbf16>
    tpu.vector_store %arg10[%c0_43, %c0_44], %109 {strides = array<i32>} : memref<16x256xbf16, #tpu.memory_space<vmem>>, vector<16x256xbf16>,
    return
  }
  func.func @transform_0(%arg0: i32) -> (i32, i32) {
    %c0_i32 = arith.constant 0 : i32
    %c0_i32_0 = arith.constant 0 : i32
    %c0_i32_1 = arith.constant 0 : i32
    return %c0_i32, %c0_i32_0 : i32, i32
  }
  func.func @transform_1(%arg0: i32) -> (i32, i32) {
    %c0_i32 = arith.constant 0 : i32
    %c0_i32_0 = arith.constant 0 : i32
    %c0_i32_1 = arith.constant 0 : i32
    return %c0_i32, %c0_i32_0 : i32, i32
  }
  func.func @transform_2(%arg0: i32) -> (i32, i32) {
    %c0_i32 = arith.constant 0 : i32
    %c0_i32_0 = arith.constant 0 : i32
    %c0_i32_1 = arith.constant 0 : i32
    return %c0_i32, %c0_i32_0 : i32, i32
  }
  func.func @transform_3(%arg0: i32) -> (i32, i32) {
    %c0_i32 = arith.constant 0 : i32
    %c0_i32_0 = arith.constant 0 : i32
    %c0_i32_1 = arith.constant 0 : i32
    return %c0_i32, %c0_i32_0 : i32, i32
  }
  func.func @transform_4(%arg0: i32) -> (i32, i32) {
    %c0_i32 = arith.constant 0 : i32
    %c0_i32_0 = arith.constant 0 : i32
    %c0_i32_1 = arith.constant 0 : i32
    return %c0_i32, %c0_i32_0 : i32, i32
  }
  func.func @transform_5(%arg0: i32) -> (i32, i32) {
    %c0_i32 = arith.constant 0 : i32
    %c0_i32_0 = arith.constant 0 : i32
    %c0_i32_1 = arith.constant 0 : i32
    return %c0_i32, %c0_i32_0 : i32, i32
  }
  func.func @transform_6(%arg0: i32) -> (i32, i32) {
    %c0_i32 = arith.constant 0 : i32
    %c0_i32_0 = arith.constant 0 : i32
    %c0_i32_1 = arith.constant 0 : i32
    return %c0_i32, %c0_i32_0 : i32, i32
  }
  func.func @transform_7(%arg0: i32) -> (i32, i32) {
    %c0_i32 = arith.constant 0 : i32
    %c0_i32_0 = arith.constant 0 : i32
    %c0_i32_1 = arith.constant 0 : i32
    return %c0_i32, %c0_i32_0 : i32, i32
  }
  func.func @transform_8(%arg0: i32) -> (i32, i32) {
    %c0_i32 = arith.constant 0 : i32
    %c0_i32_0 = arith.constant 0 : i32
    %c0_i32_1 = arith.constant 0 : i32
    return %c0_i32, %c0_i32_0 : i32, i32
  }
  func.func @transform_9(%arg0: i32) -> (i32, i32) {
    %c0_i32 = arith.constant 0 : i32
    %c0_i32_0 = arith.constant 0 : i32
    %c0_i32_1 = arith.constant 0 : i32
    return %c0_i32, %c0_i32_0 : i32, i32
  }
}

module attributes {stable_mosaic.version = 11 : i64} {
  func.func @_attn_block_kernel(%arg0: i32, %arg1: memref<16x256xbf16, #tpu.memory_space<vmem>>, %arg2: memref<256x768xbf16, #tpu.memory_space<vmem>>, %arg3: memref<1x256xf32, #tpu.memory_space<vmem>>, %arg4: memref<1x256xf32, #tpu.memory_space<vmem>>, %arg5: memref<16x128xf32, #tpu.memory_space<vmem>>, %arg6: memref<16x128xf32, #tpu.memory_space<vmem>>, %arg7: memref<16x16xf32, #tpu.memory_space<vmem>>, %arg8: memref<256x256xbf16, #tpu.memory_space<vmem>>, %arg9: memref<1x256xf32, #tpu.memory_space<vmem>>, %arg10: memref<16x256xbf16, #tpu.memory_space<vmem>>) attributes {dimension_semantics = [#tpu.dimension_semantics<arbitrary>], iteration_bounds = array<i64: 1>, scalar_prefetch = 0 : i64, scratch_operands = 0 : i64, tpu.core_type = #tpu.core_type<tc>, window_params = [{pipeline_mode = #tpu.pipeline_mode<synchronous>, transform_indices = @transform_0, window_bounds = array<i64: 16, 256>}, {pipeline_mode = #tpu.pipeline_mode<synchronous>, transform_indices = @transform_1, window_bounds = array<i64: 256, 768>}, {pipeline_mode = #tpu.pipeline_mode<synchronous>, transform_indices = @transform_2, window_bounds = array<i64: 1, 256>}, {pipeline_mode = #tpu.pipeline_mode<synchronous>, transform_indices = @transform_3, window_bounds = array<i64: 1, 256>}, {pipeline_mode = #tpu.pipeline_mode<synchronous>, transform_indices = @transform_4, window_bounds = array<i64: 16, 128>}, {pipeline_mode = #tpu.pipeline_mode<synchronous>, transform_indices = @transform_5, window_bounds = array<i64: 16, 128>}, {pipeline_mode = #tpu.pipeline_mode<synchronous>, transform_indices = @transform_6, window_bounds = array<i64: 16, 16>}, {pipeline_mode = #tpu.pipeline_mode<synchronous>, transform_indices = @transform_7, window_bounds = array<i64: 256, 256>}, {pipeline_mode = #tpu.pipeline_mode<synchronous>, transform_indices = @transform_8, window_bounds = array<i64: 1, 256>}, {pipeline_mode = #tpu.pipeline_mode<synchronous>, transform_indices = @transform_9, window_bounds = array<i64: 16, 256>}]} {
    %c0 = arith.constant 0 : index
    %c0_0 = arith.constant 0 : index
    %0 = vector.load %arg1[%c0, %c0_0] : memref<16x256xbf16, #tpu.memory_space<vmem>>, vector<16x256xbf16>
    %1 = arith.extf %0 : vector<16x256xbf16> to vector<16x256xf32>
    %c0_1 = arith.constant 0 : index
    %c0_2 = arith.constant 0 : index
    %2 = vector.load %arg2[%c0_1, %c0_2] : memref<256x768xbf16, #tpu.memory_space<vmem>>, vector<256x768xbf16>
    %cst = arith.constant dense<0.000000e+00> : vector<16x768xf32>
    %3 = tpu.matmul %0, %2, %cst {dimension_numbers = #tpu.dot_dimension_numbers<[1], [0], [0], [1], [0, 0, 1, 1], [], []>} : vector<16x256xbf16>, vector<256x768xbf16>, vector<16x768xf32> -> vector<16x768xf32>
    %4 = vector.extract_strided_slice %3 {offsets = [0, 0], sizes = [16, 256], strides = [1, 1]} : vector<16x768xf32> to vector<16x256xf32>
    %5 = vector.extract_strided_slice %3 {offsets = [0, 256], sizes = [16, 256], strides = [1, 1]} : vector<16x768xf32> to vector<16x256xf32>
    %6 = vector.extract_strided_slice %3 {offsets = [0, 512], sizes = [16, 256], strides = [1, 1]} : vector<16x768xf32> to vector<16x256xf32>
    %c0_3 = arith.constant 0 : index
    %c0_4 = arith.constant 0 : index
    %7 = vector.load %arg3[%c0_3, %c0_4] : memref<1x256xf32, #tpu.memory_space<vmem>>, vector<1x256xf32>
    %8 = arith.mulf %4, %4 : vector<16x256xf32>
    %cst_5 = arith.constant dense<0.000000e+00> : vector<16xf32>
    %9 = vector.multi_reduction <add>, %8, %cst_5 [1] : vector<16x256xf32> to vector<16xf32>
    %10 = vector.shape_cast %9 : vector<16xf32> to vector<16x1xf32>
    %cst_6 = arith.constant 2.560000e+02 : f32
    %11 = vector.broadcast %cst_6 : f32 to vector<16x1xf32>
    %12 = arith.divf %10, %11 : vector<16x1xf32>
    %cst_7 = arith.constant 9.99999974E-6 : f32
    %13 = vector.broadcast %cst_7 : f32 to vector<16x1xf32>
    %14 = arith.addf %12, %13 : vector<16x1xf32>
    %15 = math.rsqrt %14 : vector<16x1xf32>
    %16 = vector.broadcast %15 : vector<16x1xf32> to vector<16x256xf32>
    %17 = arith.mulf %4, %16 : vector<16x256xf32>
    %18 = vector.broadcast %7 : vector<1x256xf32> to vector<16x256xf32>
    %19 = arith.mulf %17, %18 : vector<16x256xf32>
    %c0_8 = arith.constant 0 : index
    %c0_9 = arith.constant 0 : index
    %20 = vector.load %arg4[%c0_8, %c0_9] : memref<1x256xf32, #tpu.memory_space<vmem>>, vector<1x256xf32>
    %21 = arith.mulf %5, %5 : vector<16x256xf32>
    %cst_10 = arith.constant dense<0.000000e+00> : vector<16xf32>
    %22 = vector.multi_reduction <add>, %21, %cst_10 [1] : vector<16x256xf32> to vector<16xf32>
    %23 = vector.shape_cast %22 : vector<16xf32> to vector<16x1xf32>
    %cst_11 = arith.constant 2.560000e+02 : f32
    %24 = vector.broadcast %cst_11 : f32 to vector<16x1xf32>
    %25 = arith.divf %23, %24 : vector<16x1xf32>
    %cst_12 = arith.constant 9.99999974E-6 : f32
    %26 = vector.broadcast %cst_12 : f32 to vector<16x1xf32>
    %27 = arith.addf %25, %26 : vector<16x1xf32>
    %28 = math.rsqrt %27 : vector<16x1xf32>
    %29 = vector.broadcast %28 : vector<16x1xf32> to vector<16x256xf32>
    %30 = arith.mulf %5, %29 : vector<16x256xf32>
    %31 = vector.broadcast %20 : vector<1x256xf32> to vector<16x256xf32>
    %32 = arith.mulf %30, %31 : vector<16x256xf32>
    %c0_13 = arith.constant 0 : index
    %c0_14 = arith.constant 0 : index
    %33 = vector.load %arg5[%c0_13, %c0_14] : memref<16x128xf32, #tpu.memory_space<vmem>>, vector<16x128xf32>
    %c0_15 = arith.constant 0 : index
    %c0_16 = arith.constant 0 : index
    %34 = vector.load %arg6[%c0_15, %c0_16] : memref<16x128xf32, #tpu.memory_space<vmem>>, vector<16x128xf32>
    %c0_17 = arith.constant 0 : index
    %c0_18 = arith.constant 0 : index
    %35 = vector.load %arg7[%c0_17, %c0_18] : memref<16x16xf32, #tpu.memory_space<vmem>>, vector<16x16xf32>
    %cst_19 = arith.constant 0.000000e+00 : f32
    %36 = vector.broadcast %cst_19 : f32 to vector<16x256xf32>
    %37 = vector.extract_strided_slice %19 {offsets = [0, 0], sizes = [16, 128], strides = [1, 1]} : vector<16x256xf32> to vector<16x128xf32>
    %38 = vector.extract_strided_slice %32 {offsets = [0, 0], sizes = [16, 128], strides = [1, 1]} : vector<16x256xf32> to vector<16x128xf32>
    %39 = vector.extract_strided_slice %6 {offsets = [0, 0], sizes = [16, 128], strides = [1, 1]} : vector<16x256xf32> to vector<16x128xf32>
    %40 = arith.mulf %37, %33 : vector<16x128xf32>
    %c64_i32 = arith.constant 64 : i32
    %41 = tpu.dynamic_rotate %37 by %c64_i32 dim 1 : vector<16x128xf32>, i32 -> vector<16x128xf32>
    %42 = arith.mulf %41, %34 : vector<16x128xf32>
    %43 = arith.addf %40, %42 : vector<16x128xf32>
    %44 = arith.mulf %38, %33 : vector<16x128xf32>
    %c64_i32_20 = arith.constant 64 : i32
    %45 = tpu.dynamic_rotate %38 by %c64_i32_20 dim 1 : vector<16x128xf32>, i32 -> vector<16x128xf32>
    %46 = arith.mulf %45, %34 : vector<16x128xf32>
    %47 = arith.addf %44, %46 : vector<16x128xf32>
    %cst_21 = arith.constant 0.0883883461 : f32
    %48 = vector.broadcast %cst_21 : f32 to vector<16x128xf32>
    %49 = arith.mulf %43, %48 : vector<16x128xf32>
    %cst_22 = arith.constant dense<0.000000e+00> : vector<16x16xf32>
    %50 = tpu.matmul %49, %47, %cst_22 {dimension_numbers = #tpu.dot_dimension_numbers<[1], [1], [0], [0], [0, 0, 1, 0], [], []>} : vector<16x128xf32>, vector<16x128xf32>, vector<16x16xf32> -> vector<16x16xf32>
    %51 = arith.addf %50, %35 : vector<16x16xf32>
    %cst_23 = arith.constant dense<0xFF800000> : vector<16xf32>
    %52 = vector.multi_reduction <maximumf>, %51, %cst_23 [1] : vector<16x16xf32> to vector<16xf32>
    %53 = vector.shape_cast %52 : vector<16xf32> to vector<16x1xf32>
    %54 = vector.broadcast %53 : vector<16x1xf32> to vector<16x16xf32>
    %55 = arith.subf %51, %54 : vector<16x16xf32>
    %56 = math.exp %55 : vector<16x16xf32>
    %cst_24 = arith.constant dense<0.000000e+00> : vector<16xf32>
    %57 = vector.multi_reduction <add>, %56, %cst_24 [1] : vector<16x16xf32> to vector<16xf32>
    %58 = vector.shape_cast %57 : vector<16xf32> to vector<16x1xf32>
    %cst_25 = arith.constant dense<0.000000e+00> : vector<16x128xf32>
    %59 = tpu.matmul %56, %39, %cst_25 {dimension_numbers = #tpu.dot_dimension_numbers<[1], [0], [0], [1], [0, 0, 1, 1], [], []>} : vector<16x16xf32>, vector<16x128xf32>, vector<16x128xf32> -> vector<16x128xf32>
    %60 = vector.broadcast %58 : vector<16x1xf32> to vector<16x128xf32>
    %61 = arith.divf %59, %60 : vector<16x128xf32>
    %62 = arith.truncf %61 : vector<16x128xf32> to vector<16x128xbf16>
    %c0_26 = arith.constant 0 : index
    %c0_27 = arith.constant 0 : index
    %63 = vector.load %arg8[%c0_26, %c0_27] : memref<256x256xbf16, #tpu.memory_space<vmem>>, vector<128x256xbf16>
    %cst_28 = arith.constant dense<0.000000e+00> : vector<16x256xf32>
    %64 = tpu.matmul %62, %63, %cst_28 {dimension_numbers = #tpu.dot_dimension_numbers<[1], [0], [0], [1], [0, 0, 1, 1], [], []>} : vector<16x128xbf16>, vector<128x256xbf16>, vector<16x256xf32> -> vector<16x256xf32>
    %65 = arith.addf %36, %64 : vector<16x256xf32>
    %66 = vector.extract_strided_slice %19 {offsets = [0, 128], sizes = [16, 128], strides = [1, 1]} : vector<16x256xf32> to vector<16x128xf32>
    %67 = vector.extract_strided_slice %32 {offsets = [0, 128], sizes = [16, 128], strides = [1, 1]} : vector<16x256xf32> to vector<16x128xf32>
    %68 = vector.extract_strided_slice %6 {offsets = [0, 128], sizes = [16, 128], strides = [1, 1]} : vector<16x256xf32> to vector<16x128xf32>
    %69 = arith.mulf %66, %33 : vector<16x128xf32>
    %c64_i32_29 = arith.constant 64 : i32
    %70 = tpu.dynamic_rotate %66 by %c64_i32_29 dim 1 : vector<16x128xf32>, i32 -> vector<16x128xf32>
    %71 = arith.mulf %70, %34 : vector<16x128xf32>
    %72 = arith.addf %69, %71 : vector<16x128xf32>
    %73 = arith.mulf %67, %33 : vector<16x128xf32>
    %c64_i32_30 = arith.constant 64 : i32
    %74 = tpu.dynamic_rotate %67 by %c64_i32_30 dim 1 : vector<16x128xf32>, i32 -> vector<16x128xf32>
    %75 = arith.mulf %74, %34 : vector<16x128xf32>
    %76 = arith.addf %73, %75 : vector<16x128xf32>
    %cst_31 = arith.constant 0.0883883461 : f32
    %77 = vector.broadcast %cst_31 : f32 to vector<16x128xf32>
    %78 = arith.mulf %72, %77 : vector<16x128xf32>
    %cst_32 = arith.constant dense<0.000000e+00> : vector<16x16xf32>
    %79 = tpu.matmul %78, %76, %cst_32 {dimension_numbers = #tpu.dot_dimension_numbers<[1], [1], [0], [0], [0, 0, 1, 0], [], []>} : vector<16x128xf32>, vector<16x128xf32>, vector<16x16xf32> -> vector<16x16xf32>
    %80 = arith.addf %79, %35 : vector<16x16xf32>
    %cst_33 = arith.constant dense<0xFF800000> : vector<16xf32>
    %81 = vector.multi_reduction <maximumf>, %80, %cst_33 [1] : vector<16x16xf32> to vector<16xf32>
    %82 = vector.shape_cast %81 : vector<16xf32> to vector<16x1xf32>
    %83 = vector.broadcast %82 : vector<16x1xf32> to vector<16x16xf32>
    %84 = arith.subf %80, %83 : vector<16x16xf32>
    %85 = math.exp %84 : vector<16x16xf32>
    %cst_34 = arith.constant dense<0.000000e+00> : vector<16xf32>
    %86 = vector.multi_reduction <add>, %85, %cst_34 [1] : vector<16x16xf32> to vector<16xf32>
    %87 = vector.shape_cast %86 : vector<16xf32> to vector<16x1xf32>
    %cst_35 = arith.constant dense<0.000000e+00> : vector<16x128xf32>
    %88 = tpu.matmul %85, %68, %cst_35 {dimension_numbers = #tpu.dot_dimension_numbers<[1], [0], [0], [1], [0, 0, 1, 1], [], []>} : vector<16x16xf32>, vector<16x128xf32>, vector<16x128xf32> -> vector<16x128xf32>
    %89 = vector.broadcast %87 : vector<16x1xf32> to vector<16x128xf32>
    %90 = arith.divf %88, %89 : vector<16x128xf32>
    %91 = arith.truncf %90 : vector<16x128xf32> to vector<16x128xbf16>
    %c128 = arith.constant 128 : index
    %c0_36 = arith.constant 0 : index
    %92 = vector.load %arg8[%c128, %c0_36] : memref<256x256xbf16, #tpu.memory_space<vmem>>, vector<128x256xbf16>
    %cst_37 = arith.constant dense<0.000000e+00> : vector<16x256xf32>
    %93 = tpu.matmul %91, %92, %cst_37 {dimension_numbers = #tpu.dot_dimension_numbers<[1], [0], [0], [1], [0, 0, 1, 1], [], []>} : vector<16x128xbf16>, vector<128x256xbf16>, vector<16x256xf32> -> vector<16x256xf32>
    %94 = arith.addf %65, %93 : vector<16x256xf32>
    %c0_38 = arith.constant 0 : index
    %c0_39 = arith.constant 0 : index
    %95 = vector.load %arg9[%c0_38, %c0_39] : memref<1x256xf32, #tpu.memory_space<vmem>>, vector<1x256xf32>
    %96 = arith.mulf %94, %94 : vector<16x256xf32>
    %cst_40 = arith.constant dense<0.000000e+00> : vector<16xf32>
    %97 = vector.multi_reduction <add>, %96, %cst_40 [1] : vector<16x256xf32> to vector<16xf32>
    %98 = vector.shape_cast %97 : vector<16xf32> to vector<16x1xf32>
    %cst_41 = arith.constant 2.560000e+02 : f32
    %99 = vector.broadcast %cst_41 : f32 to vector<16x1xf32>
    %100 = arith.divf %98, %99 : vector<16x1xf32>
    %cst_42 = arith.constant 9.99999974E-6 : f32
    %101 = vector.broadcast %cst_42 : f32 to vector<16x1xf32>
    %102 = arith.addf %100, %101 : vector<16x1xf32>
    %103 = math.rsqrt %102 : vector<16x1xf32>
    %104 = vector.broadcast %103 : vector<16x1xf32> to vector<16x256xf32>
    %105 = arith.mulf %94, %104 : vector<16x256xf32>
    %106 = vector.broadcast %95 : vector<1x256xf32> to vector<16x256xf32>
    %107 = arith.mulf %105, %106 : vector<16x256xf32>
    %108 = arith.addf %107, %1 : vector<16x256xf32>
    %109 = arith.truncf %108 : vector<16x256xf32> to vector<16x256xbf16>
    %c0_43 = arith.constant 0 : index
    %c0_44 = arith.constant 0 : index
    %110 = vector.load %arg10[%c0_43, %c0_44] : memref<16x256xbf16, #tpu.memory_space<vmem>>, vector<16x256xbf16>
    tpu.vector_store %arg10[%c0_43, %c0_44], %109 {strides = array<i32>} : memref<16x256xbf16, #tpu.memory_space<vmem>>, vector<16x256xbf16>,
    return
  }
  func.func @transform_0(%arg0: i32) -> (i32, i32) {
    %c0_i32 = arith.constant 0 : i32
    %c0_i32_0 = arith.constant 0 : i32
    %c0_i32_1 = arith.constant 0 : i32
    return %c0_i32, %c0_i32_0 : i32, i32
  }
  func.func @transform_1(%arg0: i32) -> (i32, i32) {
    %c0_i32 = arith.constant 0 : i32
    %c0_i32_0 = arith.constant 0 : i32
    %c0_i32_1 = arith.constant 0 : i32
    return %c0_i32, %c0_i32_0 : i32, i32
  }
  func.func @transform_2(%arg0: i32) -> (i32, i32) {
    %c0_i32 = arith.constant 0 : i32
    %c0_i32_0 = arith.constant 0 : i32
    %c0_i32_1 = arith.constant 0 : i32
    return %c0_i32, %c0_i32_0 : i32, i32
  }
  func.func @transform_3(%arg0: i32) -> (i32, i32) {
    %c0_i32 = arith.constant 0 : i32
    %c0_i32_0 = arith.constant 0 : i32
    %c0_i32_1 = arith.constant 0 : i32
    return %c0_i32, %c0_i32_0 : i32, i32
  }
  func.func @transform_4(%arg0: i32) -> (i32, i32) {
    %c0_i32 = arith.constant 0 : i32
    %c0_i32_0 = arith.constant 0 : i32
    %c0_i32_1 = arith.constant 0 : i32
    return %c0_i32, %c0_i32_0 : i32, i32
  }
  func.func @transform_5(%arg0: i32) -> (i32, i32) {
    %c0_i32 = arith.constant 0 : i32
    %c0_i32_0 = arith.constant 0 : i32
    %c0_i32_1 = arith.constant 0 : i32
    return %c0_i32, %c0_i32_0 : i32, i32
  }
  func.func @transform_6(%arg0: i32) -> (i32, i32) {
    %c0_i32 = arith.constant 0 : i32
    %c0_i32_0 = arith.constant 0 : i32
    %c0_i32_1 = arith.constant 0 : i32
    return %c0_i32, %c0_i32_0 : i32, i32
  }
  func.func @transform_7(%arg0: i32) -> (i32, i32) {
    %c0_i32 = arith.constant 0 : i32
    %c0_i32_0 = arith.constant 0 : i32
    %c0_i32_1 = arith.constant 0 : i32
    return %c0_i32, %c0_i32_0 : i32, i32
  }
  func.func @transform_8(%arg0: i32) -> (i32, i32) {
    %c0_i32 = arith.constant 0 : i32
    %c0_i32_0 = arith.constant 0 : i32
    %c0_i32_1 = arith.constant 0 : i32
    return %c0_i32, %c0_i32_0 : i32, i32
  }
  func.func @transform_9(%arg0: i32) -> (i32, i32) {
    %c0_i32 = arith.constant 0 : i32
    %c0_i32_0 = arith.constant 0 : i32
    %c0_i32_1 = arith.constant 0 : i32
    return %c0_i32, %c0_i32_0 : i32, i32
  }
}

module attributes {stable_mosaic.version = 11 : i64} {
  func.func @_mlp_block_kernel(%arg0: i32, %arg1: memref<16x256xbf16, #tpu.memory_space<vmem>>, %arg2: memref<256x256xbf16, #tpu.memory_space<vmem>>, %arg3: memref<256x256xbf16, #tpu.memory_space<vmem>>, %arg4: memref<256x256xbf16, #tpu.memory_space<vmem>>, %arg5: memref<1x256xf32, #tpu.memory_space<vmem>>, %arg6: memref<16x256xbf16, #tpu.memory_space<vmem>>, %arg7: memref<16x256xf32, #tpu.memory_space<vmem>>) attributes {dimension_semantics = [#tpu.dimension_semantics<arbitrary>], iteration_bounds = array<i64: 2>, scalar_prefetch = 0 : i64, scratch_operands = 1 : i64, tpu.core_type = #tpu.core_type<tc>, window_params = [{pipeline_mode = #tpu.pipeline_mode<synchronous>, transform_indices = @transform_0, window_bounds = array<i64: 16, 256>}, {transform_indices = @transform_1, window_bounds = array<i64: 256, 256>}, {transform_indices = @transform_2, window_bounds = array<i64: 256, 256>}, {transform_indices = @transform_3, window_bounds = array<i64: 256, 256>}, {pipeline_mode = #tpu.pipeline_mode<synchronous>, transform_indices = @transform_4, window_bounds = array<i64: 1, 256>}, {pipeline_mode = #tpu.pipeline_mode<synchronous>, transform_indices = @transform_5, window_bounds = array<i64: 16, 256>}]} {
    %c0_i32 = arith.constant 0 : i32
    %0 = arith.cmpi eq, %arg0, %c0_i32 : i32
    %1 = arith.extui %0 : i1 to i32
    %c0_i32_0 = arith.constant 0 : i32
    %2 = arith.cmpi ne, %1, %c0_i32_0 : i32
    scf.if %2 {
      %cst_16 = arith.constant 0.000000e+00 : f32
      %24 = vector.broadcast %cst_16 : f32 to vector<16x256xf32>
      %c0_17 = arith.constant 0 : index
      %c0_18 = arith.constant 0 : index
      %25 = vector.load %arg7[%c0_17, %c0_18] : memref<16x256xf32, #tpu.memory_space<vmem>>, vector<16x256xf32>
      tpu.vector_store %arg7[%c0_17, %c0_18], %24 {strides = array<i32>} : memref<16x256xf32, #tpu.memory_space<vmem>>, vector<16x256xf32>,
    } else {
    }
    %c0 = arith.constant 0 : index
    %c0_1 = arith.constant 0 : index
    %3 = vector.load %arg1[%c0, %c0_1] : memref<16x256xbf16, #tpu.memory_space<vmem>>, vector<16x256xbf16>
    %c0_2 = arith.constant 0 : index
    %c0_3 = arith.constant 0 : index
    %4 = vector.load %arg2[%c0_2, %c0_3] : memref<256x256xbf16, #tpu.memory_space<vmem>>, vector<256x256xbf16>
    %cst = arith.constant dense<0.000000e+00> : vector<16x256xf32>
    %5 = tpu.matmul %3, %4, %cst {dimension_numbers = #tpu.dot_dimension_numbers<[1], [0], [0], [1], [0, 0, 1, 1], [], []>} : vector<16x256xbf16>, vector<256x256xbf16>, vector<16x256xf32> -> vector<16x256xf32>
    %c0_4 = arith.constant 0 : index
    %c0_5 = arith.constant 0 : index
    %6 = vector.load %arg3[%c0_4, %c0_5] : memref<256x256xbf16, #tpu.memory_space<vmem>>, vector<256x256xbf16>
    %cst_6 = arith.constant dense<0.000000e+00> : vector<16x256xf32>
    %7 = tpu.matmul %3, %6, %cst_6 {dimension_numbers = #tpu.dot_dimension_numbers<[1], [0], [0], [1], [0, 0, 1, 1], [], []>} : vector<16x256xbf16>, vector<256x256xbf16>, vector<16x256xf32> -> vector<16x256xf32>
    %8 = arith.negf %5 : vector<16x256xf32>
    %9 = math.exp %8 : vector<16x256xf32>
    %cst_7 = arith.constant 1.000000e+00 : f32
    %10 = vector.broadcast %cst_7 : f32 to vector<16x256xf32>
    %11 = arith.addf %10, %9 : vector<16x256xf32>
    %12 = arith.divf %10, %11 : vector<16x256xf32>
    %13 = arith.mulf %5, %12 : vector<16x256xf32>
    %14 = arith.mulf %13, %7 : vector<16x256xf32>
    %c0_8 = arith.constant 0 : index
    %c0_9 = arith.constant 0 : index
    %15 = vector.load %arg7[%c0_8, %c0_9] : memref<16x256xf32, #tpu.memory_space<vmem>>, vector<16x256xf32>
    %16 = arith.truncf %14 : vector<16x256xf32> to vector<16x256xbf16>
    %c0_10 = arith.constant 0 : index
    %c0_11 = arith.constant 0 : index
    %17 = vector.load %arg4[%c0_10, %c0_11] : memref<256x256xbf16, #tpu.memory_space<vmem>>, vector<256x256xbf16>
    %cst_12 = arith.constant dense<0.000000e+00> : vector<16x256xf32>
    %18 = tpu.matmul %16, %17, %cst_12 {dimension_numbers = #tpu.dot_dimension_numbers<[1], [0], [0], [1], [0, 0, 1, 1], [], []>} : vector<16x256xbf16>, vector<256x256xbf16>, vector<16x256xf32> -> vector<16x256xf32>
    %19 = arith.addf %15, %18 : vector<16x256xf32>
    %c0_13 = arith.constant 0 : index
    %c0_14 = arith.constant 0 : index
    %20 = vector.load %arg7[%c0_13, %c0_14] : memref<16x256xf32, #tpu.memory_space<vmem>>, vector<16x256xf32>
    tpu.vector_store %arg7[%c0_13, %c0_14], %19 {strides = array<i32>} : memref<16x256xf32, #tpu.memory_space<vmem>>, vector<16x256xf32>,
    %c1_i32 = arith.constant 1 : i32
    %21 = arith.cmpi eq, %arg0, %c1_i32 : i32
    %22 = arith.extui %21 : i1 to i32
    %c0_i32_15 = arith.constant 0 : i32
    %23 = arith.cmpi ne, %22, %c0_i32_15 : i32
    scf.if %23 {
      %c0_16 = arith.constant 0 : index
      %c0_17 = arith.constant 0 : index
      %24 = vector.load %arg7[%c0_16, %c0_17] : memref<16x256xf32, #tpu.memory_space<vmem>>, vector<16x256xf32>
      %c0_18 = arith.constant 0 : index
      %c0_19 = arith.constant 0 : index
      %25 = vector.load %arg5[%c0_18, %c0_19] : memref<1x256xf32, #tpu.memory_space<vmem>>, vector<1x256xf32>
      %26 = arith.mulf %24, %24 : vector<16x256xf32>
      %cst_20 = arith.constant dense<0.000000e+00> : vector<16xf32>
      %27 = vector.multi_reduction <add>, %26, %cst_20 [1] : vector<16x256xf32> to vector<16xf32>
      %28 = vector.shape_cast %27 : vector<16xf32> to vector<16x1xf32>
      %cst_21 = arith.constant 2.560000e+02 : f32
      %29 = vector.broadcast %cst_21 : f32 to vector<16x1xf32>
      %30 = arith.divf %28, %29 : vector<16x1xf32>
      %cst_22 = arith.constant 9.99999974E-6 : f32
      %31 = vector.broadcast %cst_22 : f32 to vector<16x1xf32>
      %32 = arith.addf %30, %31 : vector<16x1xf32>
      %33 = math.rsqrt %32 : vector<16x1xf32>
      %34 = vector.broadcast %33 : vector<16x1xf32> to vector<16x256xf32>
      %35 = arith.mulf %24, %34 : vector<16x256xf32>
      %36 = vector.broadcast %25 : vector<1x256xf32> to vector<16x256xf32>
      %37 = arith.mulf %35, %36 : vector<16x256xf32>
      %38 = arith.extf %3 : vector<16x256xbf16> to vector<16x256xf32>
      %39 = arith.addf %37, %38 : vector<16x256xf32>
      %40 = arith.truncf %39 : vector<16x256xf32> to vector<16x256xbf16>
      %c0_23 = arith.constant 0 : index
      %c0_24 = arith.constant 0 : index
      %41 = vector.load %arg6[%c0_23, %c0_24] : memref<16x256xbf16, #tpu.memory_space<vmem>>, vector<16x256xbf16>
      tpu.vector_store %arg6[%c0_23, %c0_24], %40 {strides = array<i32>} : memref<16x256xbf16, #tpu.memory_space<vmem>>, vector<16x256xbf16>,
    } else {
    }
    return
  }
  func.func @transform_0(%arg0: i32) -> (i32, i32) {
    %c0_i32 = arith.constant 0 : i32
    %c0_i32_0 = arith.constant 0 : i32
    %c0_i32_1 = arith.constant 0 : i32
    return %c0_i32, %c0_i32_0 : i32, i32
  }
  func.func @transform_1(%arg0: i32) -> (i32, i32) {
    %c0_i32 = arith.constant 0 : i32
    %c0_i32_0 = arith.constant 0 : i32
    return %c0_i32, %arg0 : i32, i32
  }
  func.func @transform_2(%arg0: i32) -> (i32, i32) {
    %c0_i32 = arith.constant 0 : i32
    %c0_i32_0 = arith.constant 0 : i32
    return %c0_i32, %arg0 : i32, i32
  }
  func.func @transform_3(%arg0: i32) -> (i32, i32) {
    %c0_i32 = arith.constant 0 : i32
    %c0_i32_0 = arith.constant 0 : i32
    return %arg0, %c0_i32 : i32, i32
  }
  func.func @transform_4(%arg0: i32) -> (i32, i32) {
    %c0_i32 = arith.constant 0 : i32
    %c0_i32_0 = arith.constant 0 : i32
    %c0_i32_1 = arith.constant 0 : i32
    return %c0_i32, %c0_i32_0 : i32, i32
  }
  func.func @transform_5(%arg0: i32) -> (i32, i32) {
    %c0_i32 = arith.constant 0 : i32
    %c0_i32_0 = arith.constant 0 : i32
    %c0_i32_1 = arith.constant 0 : i32
    return %c0_i32, %c0_i32_0 : i32, i32
  }
}

module attributes {stable_mosaic.version = 11 : i64} {
  func.func @_mlp_block_kernel(%arg0: i32, %arg1: memref<16x256xbf16, #tpu.memory_space<vmem>>, %arg2: memref<256x256xbf16, #tpu.memory_space<vmem>>, %arg3: memref<256x256xbf16, #tpu.memory_space<vmem>>, %arg4: memref<256x256xbf16, #tpu.memory_space<vmem>>, %arg5: memref<1x256xf32, #tpu.memory_space<vmem>>, %arg6: memref<16x256xbf16, #tpu.memory_space<vmem>>, %arg7: memref<16x256xf32, #tpu.memory_space<vmem>>) attributes {dimension_semantics = [#tpu.dimension_semantics<arbitrary>], iteration_bounds = array<i64: 2>, scalar_prefetch = 0 : i64, scratch_operands = 1 : i64, tpu.core_type = #tpu.core_type<tc>, window_params = [{pipeline_mode = #tpu.pipeline_mode<synchronous>, transform_indices = @transform_0, window_bounds = array<i64: 16, 256>}, {transform_indices = @transform_1, window_bounds = array<i64: 256, 256>}, {transform_indices = @transform_2, window_bounds = array<i64: 256, 256>}, {transform_indices = @transform_3, window_bounds = array<i64: 256, 256>}, {pipeline_mode = #tpu.pipeline_mode<synchronous>, transform_indices = @transform_4, window_bounds = array<i64: 1, 256>}, {pipeline_mode = #tpu.pipeline_mode<synchronous>, transform_indices = @transform_5, window_bounds = array<i64: 16, 256>}]} {
    %c0_i32 = arith.constant 0 : i32
    %0 = arith.cmpi eq, %arg0, %c0_i32 : i32
    %1 = arith.extui %0 : i1 to i32
    %c0_i32_0 = arith.constant 0 : i32
    %2 = arith.cmpi ne, %1, %c0_i32_0 : i32
    scf.if %2 {
      %cst_16 = arith.constant 0.000000e+00 : f32
      %24 = vector.broadcast %cst_16 : f32 to vector<16x256xf32>
      %c0_17 = arith.constant 0 : index
      %c0_18 = arith.constant 0 : index
      %25 = vector.load %arg7[%c0_17, %c0_18] : memref<16x256xf32, #tpu.memory_space<vmem>>, vector<16x256xf32>
      tpu.vector_store %arg7[%c0_17, %c0_18], %24 {strides = array<i32>} : memref<16x256xf32, #tpu.memory_space<vmem>>, vector<16x256xf32>,
    } else {
    }
    %c0 = arith.constant 0 : index
    %c0_1 = arith.constant 0 : index
    %3 = vector.load %arg1[%c0, %c0_1] : memref<16x256xbf16, #tpu.memory_space<vmem>>, vector<16x256xbf16>
    %c0_2 = arith.constant 0 : index
    %c0_3 = arith.constant 0 : index
    %4 = vector.load %arg2[%c0_2, %c0_3] : memref<256x256xbf16, #tpu.memory_space<vmem>>, vector<256x256xbf16>
    %cst = arith.constant dense<0.000000e+00> : vector<16x256xf32>
    %5 = tpu.matmul %3, %4, %cst {dimension_numbers = #tpu.dot_dimension_numbers<[1], [0], [0], [1], [0, 0, 1, 1], [], []>} : vector<16x256xbf16>, vector<256x256xbf16>, vector<16x256xf32> -> vector<16x256xf32>
    %c0_4 = arith.constant 0 : index
    %c0_5 = arith.constant 0 : index
    %6 = vector.load %arg3[%c0_4, %c0_5] : memref<256x256xbf16, #tpu.memory_space<vmem>>, vector<256x256xbf16>
    %cst_6 = arith.constant dense<0.000000e+00> : vector<16x256xf32>
    %7 = tpu.matmul %3, %6, %cst_6 {dimension_numbers = #tpu.dot_dimension_numbers<[1], [0], [0], [1], [0, 0, 1, 1], [], []>} : vector<16x256xbf16>, vector<256x256xbf16>, vector<16x256xf32> -> vector<16x256xf32>
    %8 = arith.negf %5 : vector<16x256xf32>
    %9 = math.exp %8 : vector<16x256xf32>
    %cst_7 = arith.constant 1.000000e+00 : f32
    %10 = vector.broadcast %cst_7 : f32 to vector<16x256xf32>
    %11 = arith.addf %10, %9 : vector<16x256xf32>
    %12 = arith.divf %10, %11 : vector<16x256xf32>
    %13 = arith.mulf %5, %12 : vector<16x256xf32>
    %14 = arith.mulf %13, %7 : vector<16x256xf32>
    %c0_8 = arith.constant 0 : index
    %c0_9 = arith.constant 0 : index
    %15 = vector.load %arg7[%c0_8, %c0_9] : memref<16x256xf32, #tpu.memory_space<vmem>>, vector<16x256xf32>
    %16 = arith.truncf %14 : vector<16x256xf32> to vector<16x256xbf16>
    %c0_10 = arith.constant 0 : index
    %c0_11 = arith.constant 0 : index
    %17 = vector.load %arg4[%c0_10, %c0_11] : memref<256x256xbf16, #tpu.memory_space<vmem>>, vector<256x256xbf16>
    %cst_12 = arith.constant dense<0.000000e+00> : vector<16x256xf32>
    %18 = tpu.matmul %16, %17, %cst_12 {dimension_numbers = #tpu.dot_dimension_numbers<[1], [0], [0], [1], [0, 0, 1, 1], [], []>} : vector<16x256xbf16>, vector<256x256xbf16>, vector<16x256xf32> -> vector<16x256xf32>
    %19 = arith.addf %15, %18 : vector<16x256xf32>
    %c0_13 = arith.constant 0 : index
    %c0_14 = arith.constant 0 : index
    %20 = vector.load %arg7[%c0_13, %c0_14] : memref<16x256xf32, #tpu.memory_space<vmem>>, vector<16x256xf32>
    tpu.vector_store %arg7[%c0_13, %c0_14], %19 {strides = array<i32>} : memref<16x256xf32, #tpu.memory_space<vmem>>, vector<16x256xf32>,
    %c1_i32 = arith.constant 1 : i32
    %21 = arith.cmpi eq, %arg0, %c1_i32 : i32
    %22 = arith.extui %21 : i1 to i32
    %c0_i32_15 = arith.constant 0 : i32
    %23 = arith.cmpi ne, %22, %c0_i32_15 : i32
    scf.if %23 {
      %c0_16 = arith.constant 0 : index
      %c0_17 = arith.constant 0 : index
      %24 = vector.load %arg7[%c0_16, %c0_17] : memref<16x256xf32, #tpu.memory_space<vmem>>, vector<16x256xf32>
      %c0_18 = arith.constant 0 : index
      %c0_19 = arith.constant 0 : index
      %25 = vector.load %arg5[%c0_18, %c0_19] : memref<1x256xf32, #tpu.memory_space<vmem>>, vector<1x256xf32>
      %26 = arith.mulf %24, %24 : vector<16x256xf32>
      %cst_20 = arith.constant dense<0.000000e+00> : vector<16xf32>
      %27 = vector.multi_reduction <add>, %26, %cst_20 [1] : vector<16x256xf32> to vector<16xf32>
      %28 = vector.shape_cast %27 : vector<16xf32> to vector<16x1xf32>
      %cst_21 = arith.constant 2.560000e+02 : f32
      %29 = vector.broadcast %cst_21 : f32 to vector<16x1xf32>
      %30 = arith.divf %28, %29 : vector<16x1xf32>
      %cst_22 = arith.constant 9.99999974E-6 : f32
      %31 = vector.broadcast %cst_22 : f32 to vector<16x1xf32>
      %32 = arith.addf %30, %31 : vector<16x1xf32>
      %33 = math.rsqrt %32 : vector<16x1xf32>
      %34 = vector.broadcast %33 : vector<16x1xf32> to vector<16x256xf32>
      %35 = arith.mulf %24, %34 : vector<16x256xf32>
      %36 = vector.broadcast %25 : vector<1x256xf32> to vector<16x256xf32>
      %37 = arith.mulf %35, %36 : vector<16x256xf32>
      %38 = arith.extf %3 : vector<16x256xbf16> to vector<16x256xf32>
      %39 = arith.addf %37, %38 : vector<16x256xf32>
      %40 = arith.truncf %39 : vector<16x256xf32> to vector<16x256xbf16>
      %c0_23 = arith.constant 0 : index
      %c0_24 = arith.constant 0 : index
      %41 = vector.load %arg6[%c0_23, %c0_24] : memref<16x256xbf16, #tpu.memory_space<vmem>>, vector<16x256xbf16>
      tpu.vector_store %arg6[%c0_23, %c0_24], %40 {strides = array<i32>} : memref<16x256xbf16, #tpu.memory_space<vmem>>, vector<16x256xbf16>,
    } else {
    }
    return
  }
  func.func @transform_0(%arg0: i32) -> (i32, i32) {
    %c0_i32 = arith.constant 0 : i32
    %c0_i32_0 = arith.constant 0 : i32
    %c0_i32_1 = arith.constant 0 : i32
    return %c0_i32, %c0_i32_0 : i32, i32
  }
  func.func @transform_1(%arg0: i32) -> (i32, i32) {
    %c0_i32 = arith.constant 0 : i32
    %c0_i32_0 = arith.constant 0 : i32
    return %c0_i32, %arg0 : i32, i32
  }
  func.func @transform_2(%arg0: i32) -> (i32, i32) {
    %c0_i32 = arith.constant 0 : i32
    %c0_i32_0 = arith.constant 0 : i32
    return %c0_i32, %arg0 : i32, i32
  }
  func.func @transform_3(%arg0: i32) -> (i32, i32) {
    %c0_i32 = arith.constant 0 : i32
    %c0_i32_0 = arith.constant 0 : i32
    return %arg0, %c0_i32 : i32, i32
  }
  func.func @transform_4(%arg0: i32) -> (i32, i32) {
    %c0_i32 = arith.constant 0 : i32
    %c0_i32_0 = arith.constant 0 : i32
    %c0_i32_1 = arith.constant 0 : i32
    return %c0_i32, %c0_i32_0 : i32, i32
  }
  func.func @transform_5(%arg0: i32) -> (i32, i32) {
    %c0_i32 = arith.constant 0 : i32
    %c0_i32_0 = arith.constant 0 : i32
    %c0_i32_1 = arith.constant 0 : i32
    return %c0_i32, %c0_i32_0 : i32, i32
  }
}

module attributes {stable_mosaic.version = 11 : i64} {
  func.func @_lmhead_kernel(%arg0: i32, %arg1: memref<16x256xbf16, #tpu.memory_space<vmem>>, %arg2: memref<256x256xbf16, #tpu.memory_space<vmem>>, %arg3: memref<16x256xf32, #tpu.memory_space<vmem>>) attributes {dimension_semantics = [#tpu.dimension_semantics<parallel>], iteration_bounds = array<i64: 2>, scalar_prefetch = 0 : i64, scratch_operands = 0 : i64, tpu.core_type = #tpu.core_type<tc>, window_params = [{pipeline_mode = #tpu.pipeline_mode<synchronous>, transform_indices = @transform_0, window_bounds = array<i64: 16, 256>}, {transform_indices = @transform_1, window_bounds = array<i64: 256, 256>}, {transform_indices = @transform_2, window_bounds = array<i64: 16, 256>}]} {
    %c0 = arith.constant 0 : index
    %c0_0 = arith.constant 0 : index
    %0 = vector.load %arg1[%c0, %c0_0] : memref<16x256xbf16, #tpu.memory_space<vmem>>, vector<16x256xbf16>
    %c0_1 = arith.constant 0 : index
    %c0_2 = arith.constant 0 : index
    %1 = vector.load %arg2[%c0_1, %c0_2] : memref<256x256xbf16, #tpu.memory_space<vmem>>, vector<256x256xbf16>
    %cst = arith.constant dense<0.000000e+00> : vector<16x256xf32>
    %2 = tpu.matmul %0, %1, %cst {dimension_numbers = #tpu.dot_dimension_numbers<[1], [0], [0], [1], [0, 0, 1, 1], [], []>} : vector<16x256xbf16>, vector<256x256xbf16>, vector<16x256xf32> -> vector<16x256xf32>
    %c0_3 = arith.constant 0 : index
    %c0_4 = arith.constant 0 : index
    %3 = vector.load %arg3[%c0_3, %c0_4] : memref<16x256xf32, #tpu.memory_space<vmem>>, vector<16x256xf32>
    tpu.vector_store %arg3[%c0_3, %c0_4], %2 {strides = array<i32>} : memref<16x256xf32, #tpu.memory_space<vmem>>, vector<16x256xf32>,
    return
  }
  func.func @transform_0(%arg0: i32) -> (i32, i32) {
    %c0_i32 = arith.constant 0 : i32
    %c0_i32_0 = arith.constant 0 : i32
    %c0_i32_1 = arith.constant 0 : i32
    return %c0_i32, %c0_i32_0 : i32, i32
  }
  func.func @transform_1(%arg0: i32) -> (i32, i32) {
    %c0_i32 = arith.constant 0 : i32
    %c0_i32_0 = arith.constant 0 : i32
    return %c0_i32, %arg0 : i32, i32
  }
  func.func @transform_2(%arg0: i32) -> (i32, i32) {
    %c0_i32 = arith.constant 0 : i32
    %c0_i32_0 = arith.constant 0 : i32
    return %c0_i32, %arg0 : i32, i32
  }
}

module attributes {stable_mosaic.version = 11 : i64} {
  func.func @_final_norm_kernel(%arg0: i32, %arg1: memref<16x256xbf16, #tpu.memory_space<vmem>>, %arg2: memref<1x256xf32, #tpu.memory_space<vmem>>, %arg3: memref<16x256xbf16, #tpu.memory_space<vmem>>) attributes {dimension_semantics = [#tpu.dimension_semantics<arbitrary>], iteration_bounds = array<i64: 1>, scalar_prefetch = 0 : i64, scratch_operands = 0 : i64, tpu.core_type = #tpu.core_type<tc>, window_params = [{pipeline_mode = #tpu.pipeline_mode<synchronous>, transform_indices = @transform_0, window_bounds = array<i64: 16, 256>}, {pipeline_mode = #tpu.pipeline_mode<synchronous>, transform_indices = @transform_1, window_bounds = array<i64: 1, 256>}, {pipeline_mode = #tpu.pipeline_mode<synchronous>, transform_indices = @transform_2, window_bounds = array<i64: 16, 256>}]} {
    %c0 = arith.constant 0 : index
    %c0_0 = arith.constant 0 : index
    %0 = vector.load %arg1[%c0, %c0_0] : memref<16x256xbf16, #tpu.memory_space<vmem>>, vector<16x256xbf16>
    %1 = arith.extf %0 : vector<16x256xbf16> to vector<16x256xf32>
    %c0_1 = arith.constant 0 : index
    %c0_2 = arith.constant 0 : index
    %2 = vector.load %arg2[%c0_1, %c0_2] : memref<1x256xf32, #tpu.memory_space<vmem>>, vector<1x256xf32>
    %3 = arith.mulf %1, %1 : vector<16x256xf32>
    %cst = arith.constant dense<0.000000e+00> : vector<16xf32>
    %4 = vector.multi_reduction <add>, %3, %cst [1] : vector<16x256xf32> to vector<16xf32>
    %5 = vector.shape_cast %4 : vector<16xf32> to vector<16x1xf32>
    %cst_3 = arith.constant 2.560000e+02 : f32
    %6 = vector.broadcast %cst_3 : f32 to vector<16x1xf32>
    %7 = arith.divf %5, %6 : vector<16x1xf32>
    %cst_4 = arith.constant 9.99999974E-6 : f32
    %8 = vector.broadcast %cst_4 : f32 to vector<16x1xf32>
    %9 = arith.addf %7, %8 : vector<16x1xf32>
    %10 = math.rsqrt %9 : vector<16x1xf32>
    %11 = vector.broadcast %10 : vector<16x1xf32> to vector<16x256xf32>
    %12 = arith.mulf %1, %11 : vector<16x256xf32>
    %13 = vector.broadcast %2 : vector<1x256xf32> to vector<16x256xf32>
    %14 = arith.mulf %12, %13 : vector<16x256xf32>
    %15 = arith.truncf %14 : vector<16x256xf32> to vector<16x256xbf16>
    %c0_5 = arith.constant 0 : index
    %c0_6 = arith.constant 0 : index
    %16 = vector.load %arg3[%c0_5, %c0_6] : memref<16x256xbf16, #tpu.memory_space<vmem>>, vector<16x256xbf16>
    tpu.vector_store %arg3[%c0_5, %c0_6], %15 {strides = array<i32>} : memref<16x256xbf16, #tpu.memory_space<vmem>>, vector<16x256xbf16>,
    return
  }
  func.func @transform_0(%arg0: i32) -> (i32, i32) {
    %c0_i32 = arith.constant 0 : i32
    %c0_i32_0 = arith.constant 0 : i32
    %c0_i32_1 = arith.constant 0 : i32
    return %c0_i32, %c0_i32_0 : i32, i32
  }
  func.func @transform_1(%arg0: i32) -> (i32, i32) {
    %c0_i32 = arith.constant 0 : i32
    %c0_i32_0 = arith.constant 0 : i32
    %c0_i32_1 = arith.constant 0 : i32
    return %c0_i32, %c0_i32_0 : i32, i32
  }
  func.func @transform_2(%arg0: i32) -> (i32, i32) {
    %c0_i32 = arith.constant 0 : i32
    %c0_i32_0 = arith.constant 0 : i32
    %c0_i32_1 = arith.constant 0 : i32
    return %c0_i32, %c0_i32_0 : i32, i32
  }
}

</mosaic_0001>

<llo_original>
// kernel: le.8
$region0: #{le.8}
  %s0 = inlined_call_operand.vmem [shape: s32[2,8], index: 0, kind: input, shape index: {}]
  %s1 = inlined_call_operand.vmem [shape: s32[16], index: 1, kind: output, shape index: {}]
  $region1: #{le.8} parent=0
    #allocation0 [shape = 'u8[4096]{0}', space=vmem, size = 0x1000, scoped, tag = 'scoped mem for output reshape']
    #allocation1 [shape = 'u8[4096]{0}', space=vmem, size = 0x1000, scoped, tag = 'scoped mem for input reshape']
    %s3 = sshllo.u32 0, 2
    %v4 = vld [vmem:[%s0] sm:%s3]
    %5 = vst [vmem:[#allocation1] sm:%s3] %v4
    %v6 = vld [vmem:[#allocation1] sm:$0x1]
    %vm7 = vcmask 64512
    %8 = vst.msk [vmem:[#allocation0] sm:$0x1] %vm7, %v6
    %s9 = scalar_lea.vmem [#allocation1], 1
    %v10 = vld [vmem:[%s9] sm:$0x1]
    %11 = vrot.lane.b32.xlu0 %v10, 8
    %v12 = vpop.permute.xlu0 %11
    %vm13 = vcmask 130112
    %14 = vst.msk [vmem:[#allocation0] sm:$0x1] %vm13, %v12
    %s16 = sshllo.u32 0, 1
    %v18 = vld [vmem:[#allocation0] sm:%s16]
    %s19 = sshllo.u32 0, 1
    %20 = vst [vmem:[%s1] sm:%s19] %v18

// kernel: tile.29
$region0: #{tile.29}
  #allocation0 [shape = 's32[1]{0}', space=sflag, size = 0x4, scoped, tag = 'scoped memory for tile.29']
  %s0 = inlined_call_operand.vmem [shape: s32[8], index: 0, kind: input, shape index: {}]
  %s1 = inlined_call_operand.vmem [shape: s32[2,8], index: 1, kind: output, shape index: {}]
  // Predicated region
  $region2: #{tile.29} parent=0 // pred_check
    _
  $region3: #{tile.29} parent=0 // pred_check_branch
    %3 = sbr.rel (0) target = $region5
  $region4: #{tile.29} parent=0 // pred_region
    _
  $region5: #{tile.29} parent=0 // pred_fallthru
    _
  %v4 = vld [vmem:[%s0] ss:$0 sm:$0xff]
  %5 = vst [vmem:[%s1] sm:$0x3] %v4

// kernel: olmo2_forward.7
$region0: #{olmo2_forward.7}
  #allocation0 [shape = 'u32[]', space=smem, size = 0x4, offset = 0x4, fixed_abs, tag = 'smem constant byte address 0x4 - core index']
  #allocation1 [shape = 'u32[144,128]{1,0:T(1,128)}', space=vmem, size = 0x12000, scoped, tag = 'internal scratch']
  #allocation2 [shape = 'f32[16,256]{1,0:T(8,128)}', space=vmem, size = 0x4000, scoped, tag = 'scratch operand']
  %s0 = inlined_call_operand.vmem [shape: bf16[16,256], index: 0, kind: input, shape index: {}]
  %s1 = inlined_call_operand.vmem [shape: bf16[256,512], index: 1, kind: input, shape index: {}]
  %s2 = inlined_call_operand.vmem [shape: bf16[256,512], index: 2, kind: input, shape index: {}]
  %s3 = inlined_call_operand.hbm [shape: bf16[512,256], index: 3, kind: input, shape index: {}]
  %s4 = inlined_call_operand.vmem [shape: f32[1,256], index: 4, kind: input, shape index: {}]
  %s5 = inlined_call_operand.vmem [shape: bf16[16,256], index: 5, kind: output, shape index: {}]
  %s6 = sld [smem:[#allocation0]]
  $region141: #{olmo2_forward.7} parent=0
    _
  %s8 = ssub.s32 1, %s6
  %s9 = scalar_select 0, %s8, %s6
  $region1: #{olmo2_forward.7} parent=0
    #allocation3 [shape = 'u8[262144]{0}', space=vmem, size = 0x40000, scoped, tag = 'input window, operand 1']
    #allocation4 [shape = 'u8[262144]{0}', space=vmem, size = 0x40000, scoped, tag = 'input window, operand 2']
    #allocation5 [shape = 'u8[262144]{0}', space=vmem, size = 0x40000, scoped, tag = 'input window, operand 3']
    #allocation6 [shape = 's32[2]{0}', space=sflag, size = 0x8, scoped, tag = 'scoped memory for olmo2_forward.7']
    %10 = vsyncpa [#allocation6], 0
    %s11 = scalar_lea.sflag [#allocation6], 1
    %12 = vsyncpa %s11, 0
    loop: start=0, step=1, limit=4
    $region2: #{olmo2_forward.7} parent=1 // loop_pre_header
      _
    $region3: #{olmo2_forward.7} parent=1 // loop_header
      %s14 = sphi 0, %s18
      %p15 = scmp.ge.s32.totalorder %s14, 4
      %s22 = sphi 0, %s22
      %s24 = sphi 0, %s22
      %s25 = sphi 0, %s24
      %s39 = sphi 0, %s25
      %s45 = sphi 0, %s47
      %s48 = sphi 0, %s45
      %s49 = sphi 0, %s48
      %s65 = sphi 0, %s49
      %s71 = sphi 0, %s73
      %s74 = sphi 0, %s71
      %s75 = sphi 0, %s74
      %s91 = sphi 0, %s75
      %s97 = sphi 0, %s99
      %s100 = sphi 0, %s97
      %s101 = sphi 0, %s100
      %s117 = sphi 0, %s101
      %s121 = sphi 0, %s121
      %s123 = sphi 0, %s121
      %s124 = sphi 0, %s123
      %s138 = sphi 0, %s124
      %s142 = sphi 0, %s142
      %s144 = sphi 0, %s142
      %s145 = sphi 0, %s144
      %s159 = sphi 0, %s145
    $region4: #{olmo2_forward.7} parent=1 // loop_header_branch
      %17 = sbr.rel (%p15) target = $region8
    $region5: #{olmo2_forward.7} parent=1 // loop_body
      %s19 = ssub.s32 %s14, 1
      %s20 = ssub.s32 %s14, 2
      %s21 = sadd.s32 %s14, 1
      %s23 = sadd.s32 %s22, 1
      %p26 = scmp.eq.s32.totalorder %s14, 1
      %p27 = scmp.ne.s32.totalorder %s22, %s24
      %p28 = scmp.eq.s32.totalorder %s14, 0
      %p29 = por %p27, %p28
      %p30 = scmp.ne.s32.totalorder %s22, %s24
      %p31 = scmp.eq.s32.totalorder %s19, 1
      %p32 = por %p30, %p31
      %p33 = scmp.ne.s32.totalorder %s24, %s25
      %p34 = scmp.eq.s32.totalorder %s19, 0
      %p35 = por %p33, %p34
      %p36 = scmp.ne.s32.totalorder %s24, %s25
      %p37 = scmp.eq.s32.totalorder %s20, 1
      %p38 = por %p36, %p37
      %p40 = scmp.ne.s32.totalorder %s25, %s39
      %p41 = scmp.eq.s32.totalorder %s20, 0
      %p42 = por %p40, %p41
      %s43 = ssub.s32 %s14, %s21
      %p44 = scmp.eq.s32.totalorder %s43, 0
      %s46 = sadd.s32 %s45, 1
      %s47 = scalar_select %p44, %s45, %s46
      %p50 = pneg %p44
      %p51 = scmp.eq.s32.totalorder %s14, 1
      %p52 = por %p50, %p51
      %p53 = scmp.ne.s32.totalorder %s45, %s48
      %p54 = scmp.eq.s32.totalorder %s14, 0
      %p55 = por %p53, %p54
      %p56 = scmp.ne.s32.totalorder %s45, %s48
      %p57 = scmp.eq.s32.totalorder %s19, 1
      %p58 = por %p56, %p57
      %p59 = scmp.ne.s32.totalorder %s48, %s49
      %p60 = scmp.eq.s32.totalorder %s19, 0
      %p61 = por %p59, %p60
      %p62 = scmp.ne.s32.totalorder %s48, %s49
      %p63 = scmp.eq.s32.totalorder %s20, 1
      %p64 = por %p62, %p63
      %p66 = scmp.ne.s32.totalorder %s49, %s65
      %p67 = scmp.eq.s32.totalorder %s20, 0
      %p68 = por %p66, %p67
      %s69 = ssub.s32 %s14, %s21
      %p70 = scmp.eq.s32.totalorder %s69, 0
      %s72 = sadd.s32 %s71, 1
      %s73 = scalar_select %p70, %s71, %s72
      %p76 = pneg %p70
      %p77 = scmp.eq.s32.totalorder %s14, 1
      %p78 = por %p76, %p77
      %p79 = scmp.ne.s32.totalorder %s71, %s74
      %p80 = scmp.eq.s32.totalorder %s14, 0
      %p81 = por %p79, %p80
      %p82 = scmp.ne.s32.totalorder %s71, %s74
      %p83 = scmp.eq.s32.totalorder %s19, 1
      %p84 = por %p82, %p83
      %p85 = scmp.ne.s32.totalorder %s74, %s75
      %p86 = scmp.eq.s32.totalorder %s19, 0
      %p87 = por %p85, %p86
      %p88 = scmp.ne.s32.totalorder %s74, %s75
      %p89 = scmp.eq.s32.totalorder %s20, 1
      %p90 = por %p88, %p89
      %p92 = scmp.ne.s32.totalorder %s75, %s91
      %p93 = scmp.eq.s32.totalorder %s20, 0
      %p94 = por %p92, %p93
      %s95 = ssub.s32 %s14, %s21
      %p96 = scmp.eq.s32.totalorder %s95, 0
      %s98 = sadd.s32 %s97, 1
      %s99 = scalar_select %p96, %s97, %s98
      %p102 = pneg %p96
      %p103 = scmp.eq.s32.totalorder %s14, 1
      %p104 = por %p102, %p103
      %p105 = scmp.ne.s32.totalorder %s97, %s100
      %p106 = scmp.eq.s32.totalorder %s14, 0
      %p107 = por %p105, %p106
      %p108 = scmp.ne.s32.totalorder %s97, %s100
      %p109 = scmp.eq.s32.totalorder %s19, 1
      %p110 = por %p108, %p109
      %p111 = scmp.ne.s32.totalorder %s100, %s101
      %p112 = scmp.eq.s32.totalorder %s19, 0
      %p113 = por %p111, %p112
      %p114 = scmp.ne.s32.totalorder %s100, %s101
      %p115 = scmp.eq.s32.totalorder %s20, 1
      %p116 = por %p114, %p115
      %p118 = scmp.ne.s32.totalorder %s101, %s117
      %p119 = scmp.eq.s32.totalorder %s20, 0
      %p120 = por %p118, %p119
      %s122 = sadd.s32 %s121, 1
      %p125 = scmp.eq.s32.totalorder %s14, 1
      %p126 = scmp.ne.s32.totalorder %s121, %s123
      %p127 = scmp.eq.s32.totalorder %s14, 0
      %p128 = por %p126, %p127
      %p129 = scmp.ne.s32.totalorder %s121, %s123
      %p130 = scmp.eq.s32.totalorder %s19, 1
      %p131 = por %p129, %p130
      %p132 = scmp.ne.s32.totalorder %s123, %s124
      %p133 = scmp.eq.s32.totalorder %s19, 0
      %p134 = por %p132, %p133
      %p135 = scmp.ne.s32.totalorder %s123, %s124
      %p136 = scmp.eq.s32.totalorder %s20, 1
      %p137 = por %p135, %p136
      %p139 = scmp.ne.s32.totalorder %s124, %s138
      %p140 = scmp.eq.s32.totalorder %s20, 0
      %p141 = por %p139, %p140
      %s143 = sadd.s32 %s142, 1
      %p146 = scmp.eq.s32.totalorder %s14, 1
      %p147 = scmp.ne.s32.totalorder %s142, %s144
      %p148 = scmp.eq.s32.totalorder %s14, 0
      %p149 = por %p147, %p148
      %p150 = scmp.ne.s32.totalorder %s142, %s144
      %p151 = scmp.eq.s32.totalorder %s19, 1
      %p152 = por %p150, %p151
      %p153 = scmp.ne.s32.totalorder %s144, %s145
      %p154 = scmp.eq.s32.totalorder %s19, 0
      %p155 = por %p153, %p154
      %p156 = scmp.ne.s32.totalorder %s144, %s145
      %p157 = scmp.eq.s32.totalorder %s20, 1
      %p158 = por %p156, %p157
      %p160 = scmp.ne.s32.totalorder %s145, %s159
      %p161 = scmp.eq.s32.totalorder %s20, 0
      %p162 = por %p160, %p161
      %p163 = scmp.le.s32.totalorder 1, %s14
      %p164 = scmp.lt.s32.totalorder %s14, 3
      %p165 = pnand %p163, %p164
      %p166 = pneg %p165
      // Predicated region
      $region9: #{olmo2_forward.7} parent=5 // pred_check
        _
      $region10: #{olmo2_forward.7} parent=5 // pred_check_branch
        %168 = sbr.rel (%p165) target = $region12
      $region11: #{olmo2_forward.7} parent=5 // pred_region
        %s169 = ssub.s32 %s14, 1
        // Predicated region
        $region13: #{olmo2_forward.7} parent=11 // pred_check
          %p170 = pneg %p35
        $region14: #{olmo2_forward.7} parent=11 // pred_check_branch
          %172 = sbr.rel (%p170) target = $region16
        $region15: #{olmo2_forward.7} parent=11 // pred_region
          _
        $region16: #{olmo2_forward.7} parent=11 // pred_fallthru
          _
        // Predicated region
        $region17: #{olmo2_forward.7} parent=11 // pred_check
          %p173 = pneg %p134
        $region18: #{olmo2_forward.7} parent=11 // pred_check_branch
          %175 = sbr.rel (%p173) target = $region20
        $region19: #{olmo2_forward.7} parent=11 // pred_region
          _
        $region20: #{olmo2_forward.7} parent=11 // pred_fallthru
          _
      $region12: #{olmo2_forward.7} parent=5 // pred_fallthru
        _
      %p176 = scmp.lt.s32.totalorder %s14, 2
      // Predicated region
      $region21: #{olmo2_forward.7} parent=5 // pred_check
        %p177 = pneg %p176
      $region22: #{olmo2_forward.7} parent=5 // pred_check_branch
        %179 = sbr.rel (%p177) target = $region24
      $region23: #{olmo2_forward.7} parent=5 // pred_region
        // Predicated region
        $region25: #{olmo2_forward.7} parent=23 // pred_check
          %p180 = pneg %p55
        $region26: #{olmo2_forward.7} parent=23 // pred_check_branch
          %182 = sbr.rel (%p180) target = $region28
        $region27: #{olmo2_forward.7} parent=23 // pred_region
          %s183 = sand.u32 %s45, 1
          %s184 = sand.u32 %s45, 1
          %s185 = smul.addr %s184, 256
          %s186 = scalar_lea.vmem [#allocation3], %s185
          %s187 = smul.u32 2, %s14
          %s188 = smul.addr %s187, 4
          %s189 = scalar_lea.vmem %s1, %s188
          // Predicated region
          $region29: #{olmo2_forward.7} parent=27 // pred_check
            _
          $region30: #{olmo2_forward.7} parent=27 // pred_check_branch
            %191 = sbr.rel (0) target = $region32
          $region31: #{olmo2_forward.7} parent=27 // pred_region
            // Predicated region
            $region33: #{olmo2_forward.7} parent=31 // pred_check
              _
            $region34: #{olmo2_forward.7} parent=31 // pred_check_branch
              %193 = sbr.rel (0) target = $region36
            $region35: #{olmo2_forward.7} parent=31 // pred_region
              // Predicated region
              $region48: #{olmo2_forward.7} parent=35 // pred_check
                _
              $region49: #{olmo2_forward.7} parent=35 // pred_check_branch
                %270 = sbr.rel (0) target = $region51
              $region50: #{olmo2_forward.7} parent=35 // pred_region
                loop: start=0, step=1, limit=1
                $region52: #{olmo2_forward.7} parent=50 // loop_pre_header
                  _
                $region53: #{olmo2_forward.7} parent=50 // loop_header
                  %s272 = sphi 0, %s276
                  %p273 = scmp.ge.s32.totalorder %s272, 1
                  %s277 = sphi %s189, %s189
                  %s278 = sphi %s186, %s186
                $region54: #{olmo2_forward.7} parent=50 // loop_header_branch
                  %275 = sbr.rel (%p273) target = $region58
                $region55: #{olmo2_forward.7} parent=50 // loop_body
                  %v279 = vld [vmem:[%s277] sm:$0xff]
                  %280 = vst [vmem:[%s278] sm:$0xff] %v279
                  %v281 = vld [vmem:[%s277 + $0x10] sm:$0xff]
                  %282 = vst [vmem:[%s278 + $0x8] sm:$0xff] %v281
                  %v283 = vld [vmem:[%s277 + $0x20] sm:$0xff]
                  %284 = vst [vmem:[%s278 + $0x10] sm:$0xff] %v283
                  %v285 = vld [vmem:[%s277 + $0x30] sm:$0xff]
                  %286 = vst [vmem:[%s278 + $0x18] sm:$0xff] %v285
                  %v287 = vld [vmem:[%s277 + $0x40] sm:$0xff]
                  %288 = vst [vmem:[%s278 + $0x20] sm:$0xff] %v287
                  %v289 = vld [vmem:[%s277 + $0x50] sm:$0xff]
                  %290 = vst [vmem:[%s278 + $0x28] sm:$0xff] %v289
                  %v291 = vld [vmem:[%s277 + $0x60] sm:$0xff]
                  %292 = vst [vmem:[%s278 + $0x30] sm:$0xff] %v291
                  %v293 = vld [vmem:[%s277 + $0x70] sm:$0xff]
                  %294 = vst [vmem:[%s278 + $0x38] sm:$0xff] %v293
                  %v295 = vld [vmem:[%s277 + $0x80] sm:$0xff]
                  %296 = vst [vmem:[%s278 + $0x40] sm:$0xff] %v295
                  %v297 = vld [vmem:[%s277 + $0x90] sm:$0xff]
                  %298 = vst [vmem:[%s278 + $0x48] sm:$0xff] %v297
                  %v299 = vld [vmem:[%s277 + $0xa0] sm:$0xff]
                  %300 = vst [vmem:[%s278 + $0x50] sm:$0xff] %v299
                  %v301 = vld [vmem:[%s277 + $0xb0] sm:$0xff]
                  %302 = vst [vmem:[%s278 + $0x58] sm:$0xff] %v301
                  %v303 = vld [vmem:[%s277 + $0xc0] sm:$0xff]
                  %304 = vst [vmem:[%s278 + $0x60] sm:$0xff] %v303
                  %v305 = vld [vmem:[%s277 + $0xd0] sm:$0xff]
                  %306 = vst [vmem:[%s278 + $0x68] sm:$0xff] %v305
                  %v307 = vld [vmem:[%s277 + $0xe0] sm:$0xff]
                  %308 = vst [vmem:[%s278 + $0x70] sm:$0xff] %v307
                  %v309 = vld [vmem:[%s277 + $0xf0] sm:$0xff]
                  %310 = vst [vmem:[%s278 + $0x78] sm:$0xff] %v309
                  %v311 = vld [vmem:[%s277 + $0x100] sm:$0xff]
                  %312 = vst [vmem:[%s278 + $0x80] sm:$0xff] %v311
                  %v313 = vld [vmem:[%s277 + $0x110] sm:$0xff]
                  %314 = vst [vmem:[%s278 + $0x88] sm:$0xff] %v313
                  %v315 = vld [vmem:[%s277 + $0x120] sm:$0xff]
                  %316 = vst [vmem:[%s278 + $0x90] sm:$0xff] %v315
                  %v317 = vld [vmem:[%s277 + $0x130] sm:$0xff]
                  %318 = vst [vmem:[%s278 + $0x98] sm:$0xff] %v317
                  %v319 = vld [vmem:[%s277 + $0x140] sm:$0xff]
                  %320 = vst [vmem:[%s278 + $0xa0] sm:$0xff] %v319
                  %v321 = vld [vmem:[%s277 + $0x150] sm:$0xff]
                  %322 = vst [vmem:[%s278 + $0xa8] sm:$0xff] %v321
                  %v323 = vld [vmem:[%s277 + $0x160] sm:$0xff]
                  %324 = vst [vmem:[%s278 + $0xb0] sm:$0xff] %v323
                  %v325 = vld [vmem:[%s277 + $0x170] sm:$0xff]
                  %326 = vst [vmem:[%s278 + $0xb8] sm:$0xff] %v325
                  %v327 = vld [vmem:[%s277 + $0x180] sm:$0xff]
                  %328 = vst [vmem:[%s278 + $0xc0] sm:$0xff] %v327
                  %v329 = vld [vmem:[%s277 + $0x190] sm:$0xff]
                  %330 = vst [vmem:[%s278 + $0xc8] sm:$0xff] %v329
                  %v331 = vld [vmem:[%s277 + $0x1a0] sm:$0xff]
                  %332 = vst [vmem:[%s278 + $0xd0] sm:$0xff] %v331
                  %v333 = vld [vmem:[%s277 + $0x1b0] sm:$0xff]
                  %334 = vst [vmem:[%s278 + $0xd8] sm:$0xff] %v333
                  %v335 = vld [vmem:[%s277 + $0x1c0] sm:$0xff]
                  %336 = vst [vmem:[%s278 + $0xe0] sm:$0xff] %v335
                  %v337 = vld [vmem:[%s277 + $0x1d0] sm:$0xff]
                  %338 = vst [vmem:[%s278 + $0xe8] sm:$0xff] %v337
                  %v339 = vld [vmem:[%s277 + $0x1e0] sm:$0xff]
                  %340 = vst [vmem:[%s278 + $0xf0] sm:$0xff] %v339
                  %v341 = vld [vmem:[%s277 + $0x1f0] sm:$0xff]
                  %342 = vst [vmem:[%s278 + $0xf8] sm:$0xff] %v341
                $region56: #{olmo2_forward.7} parent=50 // loop_footer
                  %s276 = sadd.s32 1, %s272
                $region57: #{olmo2_forward.7} parent=50 // loop_footer_branch
                  %271 = sbr.rel target = $region53
                $region58: #{olmo2_forward.7} parent=50 // loop_exit
                  _
              $region51: #{olmo2_forward.7} parent=35 // pred_fallthru
                _
              // Predicated region
              $region59: #{olmo2_forward.7} parent=35 // pred_check
                _
              $region60: #{olmo2_forward.7} parent=35 // pred_check_branch
                %344 = sbr.rel target = $region62
              $region61: #{olmo2_forward.7} parent=35 // pred_region
                _
              $region62: #{olmo2_forward.7} parent=35 // pred_fallthru
                _
            $region36: #{olmo2_forward.7} parent=31 // pred_fallthru
              _
            // Predicated region
            $region37: #{olmo2_forward.7} parent=31 // pred_check
              _
            $region38: #{olmo2_forward.7} parent=31 // pred_check_branch
              %195 = sbr.rel target = $region40
            $region39: #{olmo2_forward.7} parent=31 // pred_region
              loop: start=0, step=1, limit=1
              $region41: #{olmo2_forward.7} parent=39 // loop_pre_header
                _
              $region42: #{olmo2_forward.7} parent=39 // loop_header
                %s198 = sphi 0, %s202
                %p199 = scmp.ge.s32.totalorder %s198, 1
                %s203 = sphi %s189, %s189
                %s204 = sphi %s186, %s186
              $region43: #{olmo2_forward.7} parent=39 // loop_header_branch
                %201 = sbr.rel (%p199) target = $region47
              $region44: #{olmo2_forward.7} parent=39 // loop_body
                %v205 = vld [vmem:[%s203] sm:$0xff]
                %206 = vst [vmem:[%s204] sm:$0xff] %v205
                %v207 = vld [vmem:[%s203 + $0x10] sm:$0xff]
                %208 = vst [vmem:[%s204 + $0x8] sm:$0xff] %v207
                %v209 = vld [vmem:[%s203 + $0x20] sm:$0xff]
                %210 = vst [vmem:[%s204 + $0x10] sm:$0xff] %v209
                %v211 = vld [vmem:[%s203 + $0x30] sm:$0xff]
                %212 = vst [vmem:[%s204 + $0x18] sm:$0xff] %v211
                %v213 = vld [vmem:[%s203 + $0x40] sm:$0xff]
                %214 = vst [vmem:[%s204 + $0x20] sm:$0xff] %v213
                %v215 = vld [vmem:[%s203 + $0x50] sm:$0xff]
                %216 = vst [vmem:[%s204 + $0x28] sm:$0xff] %v215
                %v217 = vld [vmem:[%s203 + $0x60] sm:$0xff]
                %218 = vst [vmem:[%s204 + $0x30] sm:$0xff] %v217
                %v219 = vld [vmem:[%s203 + $0x70] sm:$0xff]
                %220 = vst [vmem:[%s204 + $0x38] sm:$0xff] %v219
                %v221 = vld [vmem:[%s203 + $0x80] sm:$0xff]
                %222 = vst [vmem:[%s204 + $0x40] sm:$0xff] %v221
                %v223 = vld [vmem:[%s203 + $0x90] sm:$0xff]
                %224 = vst [vmem:[%s204 + $0x48] sm:$0xff] %v223
                %v225 = vld [vmem:[%s203 + $0xa0] sm:$0xff]
                %226 = vst [vmem:[%s204 + $0x50] sm:$0xff] %v225
                %v227 = vld [vmem:[%s203 + $0xb0] sm:$0xff]
                %228 = vst [vmem:[%s204 + $0x58] sm:$0xff] %v227
                %v229 = vld [vmem:[%s203 + $0xc0] sm:$0xff]
                %230 = vst [vmem:[%s204 + $0x60] sm:$0xff] %v229
                %v231 = vld [vmem:[%s203 + $0xd0] sm:$0xff]
                %232 = vst [vmem:[%s204 + $0x68] sm:$0xff] %v231
                %v233 = vld [vmem:[%s203 + $0xe0] sm:$0xff]
                %234 = vst [vmem:[%s204 + $0x70] sm:$0xff] %v233
                %v235 = vld [vmem:[%s203 + $0xf0] sm:$0xff]
                %236 = vst [vmem:[%s204 + $0x78] sm:$0xff] %v235
                %v237 = vld [vmem:[%s203 + $0x100] sm:$0xff]
                %238 = vst [vmem:[%s204 + $0x80] sm:$0xff] %v237
                %v239 = vld [vmem:[%s203 + $0x110] sm:$0xff]
                %240 = vst [vmem:[%s204 + $0x88] sm:$0xff] %v239
                %v241 = vld [vmem:[%s203 + $0x120] sm:$0xff]
                %242 = vst [vmem:[%s204 + $0x90] sm:$0xff] %v241
                %v243 = vld [vmem:[%s203 + $0x130] sm:$0xff]
                %244 = vst [vmem:[%s204 + $0x98] sm:$0xff] %v243
                %v245 = vld [vmem:[%s203 + $0x140] sm:$0xff]
                %246 = vst [vmem:[%s204 + $0xa0] sm:$0xff] %v245
                %v247 = vld [vmem:[%s203 + $0x150] sm:$0xff]
                %248 = vst [vmem:[%s204 + $0xa8] sm:$0xff] %v247
                %v249 = vld [vmem:[%s203 + $0x160] sm:$0xff]
                %250 = vst [vmem:[%s204 + $0xb0] sm:$0xff] %v249
                %v251 = vld [vmem:[%s203 + $0x170] sm:$0xff]
                %252 = vst [vmem:[%s204 + $0xb8] sm:$0xff] %v251
                %v253 = vld [vmem:[%s203 + $0x180] sm:$0xff]
                %254 = vst [vmem:[%s204 + $0xc0] sm:$0xff] %v253
                %v255 = vld [vmem:[%s203 + $0x190] sm:$0xff]
                %256 = vst [vmem:[%s204 + $0xc8] sm:$0xff] %v255
                %v257 = vld [vmem:[%s203 + $0x1a0] sm:$0xff]
                %258 = vst [vmem:[%s204 + $0xd0] sm:$0xff] %v257
                %v259 = vld [vmem:[%s203 + $0x1b0] sm:$0xff]
                %260 = vst [vmem:[%s204 + $0xd8] sm:$0xff] %v259
                %v261 = vld [vmem:[%s203 + $0x1c0] sm:$0xff]
                %262 = vst [vmem:[%s204 + $0xe0] sm:$0xff] %v261
                %v263 = vld [vmem:[%s203 + $0x1d0] sm:$0xff]
                %264 = vst [vmem:[%s204 + $0xe8] sm:$0xff] %v263
                %v265 = vld [vmem:[%s203 + $0x1e0] sm:$0xff]
                %266 = vst [vmem:[%s204 + $0xf0] sm:$0xff] %v265
                %v267 = vld [vmem:[%s203 + $0x1f0] sm:$0xff]
                %268 = vst [vmem:[%s204 + $0xf8] sm:$0xff] %v267
              $region45: #{olmo2_forward.7} parent=39 // loop_footer
                %s202 = sadd.s32 1, %s198
              $region46: #{olmo2_forward.7} parent=39 // loop_footer_branch
                %197 = sbr.rel target = $region42
              $region47: #{olmo2_forward.7} parent=39 // loop_exit
                _
            $region40: #{olmo2_forward.7} parent=31 // pred_fallthru
              _
          $region32: #{olmo2_forward.7} parent=27 // pred_fallthru
            _
          %345 = vnop
        $region28: #{olmo2_forward.7} parent=23 // pred_fallthru
          _
        // Predicated region
        $region63: #{olmo2_forward.7} parent=23 // pred_check
          %p346 = pneg %p81
        $region64: #{olmo2_forward.7} parent=23 // pred_check_branch
          %348 = sbr.rel (%p346) target = $region66
        $region65: #{olmo2_forward.7} parent=23 // pred_region
          %s349 = sand.u32 %s71, 1
          %s350 = sand.u32 %s71, 1
          %s351 = smul.addr %s350, 256
          %s352 = scalar_lea.vmem [#allocation4], %s351
          %s353 = smul.u32 2, %s14
          %s354 = smul.addr %s353, 4
          %s355 = scalar_lea.vmem %s2, %s354
          // Predicated region
          $region67: #{olmo2_forward.7} parent=65 // pred_check
            _
          $region68: #{olmo2_forward.7} parent=65 // pred_check_branch
            %357 = sbr.rel (0) target = $region70
          $region69: #{olmo2_forward.7} parent=65 // pred_region
            // Predicated region
            $region71: #{olmo2_forward.7} parent=69 // pred_check
              _
            $region72: #{olmo2_forward.7} parent=69 // pred_check_branch
              %359 = sbr.rel (0) target = $region74
            $region73: #{olmo2_forward.7} parent=69 // pred_region
              // Predicated region
              $region86: #{olmo2_forward.7} parent=73 // pred_check
                _
              $region87: #{olmo2_forward.7} parent=73 // pred_check_branch
                %436 = sbr.rel (0) target = $region89
              $region88: #{olmo2_forward.7} parent=73 // pred_region
                loop: start=0, step=1, limit=1
                $region90: #{olmo2_forward.7} parent=88 // loop_pre_header
                  _
                $region91: #{olmo2_forward.7} parent=88 // loop_header
                  %s438 = sphi 0, %s442
                  %p439 = scmp.ge.s32.totalorder %s438, 1
                  %s443 = sphi %s355, %s355
                  %s444 = sphi %s352, %s352
                $region92: #{olmo2_forward.7} parent=88 // loop_header_branch
                  %441 = sbr.rel (%p439) target = $region96
                $region93: #{olmo2_forward.7} parent=88 // loop_body
                  %v445 = vld [vmem:[%s443] sm:$0xff]
                  %446 = vst [vmem:[%s444] sm:$0xff] %v445
                  %v447 = vld [vmem:[%s443 + $0x10] sm:$0xff]
                  %448 = vst [vmem:[%s444 + $0x8] sm:$0xff] %v447
                  %v449 = vld [vmem:[%s443 + $0x20] sm:$0xff]
                  %450 = vst [vmem:[%s444 + $0x10] sm:$0xff] %v449
                  %v451 = vld [vmem:[%s443 + $0x30] sm:$0xff]
                  %452 = vst [vmem:[%s444 + $0x18] sm:$0xff] %v451
                  %v453 = vld [vmem:[%s443 + $0x40] sm:$0xff]
                  %454 = vst [vmem:[%s444 + $0x20] sm:$0xff] %v453
                  %v455 = vld [vmem:[%s443 + $0x50] sm:$0xff]
                  %456 = vst [vmem:[%s444 + $0x28] sm:$0xff] %v455
                  %v457 = vld [vmem:[%s443 + $0x60] sm:$0xff]
                  %458 = vst [vmem:[%s444 + $0x30] sm:$0xff] %v457
                  %v459 = vld [vmem:[%s443 + $0x70] sm:$0xff]
                  %460 = vst [vmem:[%s444 + $0x38] sm:$0xff] %v459
                  %v461 = vld [vmem:[%s443 + $0x80] sm:$0xff]
                  %462 = vst [vmem:[%s444 + $0x40] sm:$0xff] %v461
                  %v463 = vld [vmem:[%s443 + $0x90] sm:$0xff]
                  %464 = vst [vmem:[%s444 + $0x48] sm:$0xff] %v463
                  %v465 = vld [vmem:[%s443 + $0xa0] sm:$0xff]
                  %466 = vst [vmem:[%s444 + $0x50] sm:$0xff] %v465
                  %v467 = vld [vmem:[%s443 + $0xb0] sm:$0xff]
                  %468 = vst [vmem:[%s444 + $0x58] sm:$0xff] %v467
                  %v469 = vld [vmem:[%s443 + $0xc0] sm:$0xff]
                  %470 = vst [vmem:[%s444 + $0x60] sm:$0xff] %v469
                  %v471 = vld [vmem:[%s443 + $0xd0] sm:$0xff]
                  %472 = vst [vmem:[%s444 + $0x68] sm:$0xff] %v471
                  %v473 = vld [vmem:[%s443 + $0xe0] sm:$0xff]
                  %474 = vst [vmem:[%s444 + $0x70] sm:$0xff] %v473
                  %v475 = vld [vmem:[%s443 + $0xf0] sm:$0xff]
                  %476 = vst [vmem:[%s444 + $0x78] sm:$0xff] %v475
                  %v477 = vld [vmem:[%s443 + $0x100] sm:$0xff]
                  %478 = vst [vmem:[%s444 + $0x80] sm:$0xff] %v477
                  %v479 = vld [vmem:[%s443 + $0x110] sm:$0xff]
                  %480 = vst [vmem:[%s444 + $0x88] sm:$0xff] %v479
                  %v481 = vld [vmem:[%s443 + $0x120] sm:$0xff]
                  %482 = vst [vmem:[%s444 + $0x90] sm:$0xff] %v481
                  %v483 = vld [vmem:[%s443 + $0x130] sm:$0xff]
                  %484 = vst [vmem:[%s444 + $0x98] sm:$0xff] %v483
                  %v485 = vld [vmem:[%s443 + $0x140] sm:$0xff]
                  %486 = vst [vmem:[%s444 + $0xa0] sm:$0xff] %v485
                  %v487 = vld [vmem:[%s443 + $0x150] sm:$0xff]
                  %488 = vst [vmem:[%s444 + $0xa8] sm:$0xff] %v487
                  %v489 = vld [vmem:[%s443 + $0x160] sm:$0xff]
                  %490 = vst [vmem:[%s444 + $0xb0] sm:$0xff] %v489
                  %v491 = vld [vmem:[%s443 + $0x170] sm:$0xff]
                  %492 = vst [vmem:[%s444 + $0xb8] sm:$0xff] %v491
                  %v493 = vld [vmem:[%s443 + $0x180] sm:$0xff]
                  %494 = vst [vmem:[%s444 + $0xc0] sm:$0xff] %v493
                  %v495 = vld [vmem:[%s443 + $0x190] sm:$0xff]
                  %496 = vst [vmem:[%s444 + $0xc8] sm:$0xff] %v495
                  %v497 = vld [vmem:[%s443 + $0x1a0] sm:$0xff]
                  %498 = vst [vmem:[%s444 + $0xd0] sm:$0xff] %v497
                  %v499 = vld [vmem:[%s443 + $0x1b0] sm:$0xff]
                  %500 = vst [vmem:[%s444 + $0xd8] sm:$0xff] %v499
                  %v501 = vld [vmem:[%s443 + $0x1c0] sm:$0xff]
                  %502 = vst [vmem:[%s444 + $0xe0] sm:$0xff] %v501
                  %v503 = vld [vmem:[%s443 + $0x1d0] sm:$0xff]
                  %504 = vst [vmem:[%s444 + $0xe8] sm:$0xff] %v503
                  %v505 = vld [vmem:[%s443 + $0x1e0] sm:$0xff]
                  %506 = vst [vmem:[%s444 + $0xf0] sm:$0xff] %v505
                  %v507 = vld [vmem:[%s443 + $0x1f0] sm:$0xff]
                  %508 = vst [vmem:[%s444 + $0xf8] sm:$0xff] %v507
                $region94: #{olmo2_forward.7} parent=88 // loop_footer
                  %s442 = sadd.s32 1, %s438
                $region95: #{olmo2_forward.7} parent=88 // loop_footer_branch
                  %437 = sbr.rel target = $region91
                $region96: #{olmo2_forward.7} parent=88 // loop_exit
                  _
              $region89: #{olmo2_forward.7} parent=73 // pred_fallthru
                _
              // Predicated region
              $region97: #{olmo2_forward.7} parent=73 // pred_check
                _
              $region98: #{olmo2_forward.7} parent=73 // pred_check_branch
                %510 = sbr.rel target = $region100
              $region99: #{olmo2_forward.7} parent=73 // pred_region
                _
              $region100: #{olmo2_forward.7} parent=73 // pred_fallthru
                _
            $region74: #{olmo2_forward.7} parent=69 // pred_fallthru
              _
            // Predicated region
            $region75: #{olmo2_forward.7} parent=69 // pred_check
              _
            $region76: #{olmo2_forward.7} parent=69 // pred_check_branch
              %361 = sbr.rel target = $region78
            $region77: #{olmo2_forward.7} parent=69 // pred_region
              loop: start=0, step=1, limit=1
              $region79: #{olmo2_forward.7} parent=77 // loop_pre_header
                _
              $region80: #{olmo2_forward.7} parent=77 // loop_header
                %s364 = sphi 0, %s368
                %p365 = scmp.ge.s32.totalorder %s364, 1
                %s369 = sphi %s355, %s355
                %s370 = sphi %s352, %s352
              $region81: #{olmo2_forward.7} parent=77 // loop_header_branch
                %367 = sbr.rel (%p365) target = $region85
              $region82: #{olmo2_forward.7} parent=77 // loop_body
                %v371 = vld [vmem:[%s369] sm:$0xff]
                %372 = vst [vmem:[%s370] sm:$0xff] %v371
                %v373 = vld [vmem:[%s369 + $0x10] sm:$0xff]
                %374 = vst [vmem:[%s370 + $0x8] sm:$0xff] %v373
                %v375 = vld [vmem:[%s369 + $0x20] sm:$0xff]
                %376 = vst [vmem:[%s370 + $0x10] sm:$0xff] %v375
                %v377 = vld [vmem:[%s369 + $0x30] sm:$0xff]
                %378 = vst [vmem:[%s370 + $0x18] sm:$0xff] %v377
                %v379 = vld [vmem:[%s369 + $0x40] sm:$0xff]
                %380 = vst [vmem:[%s370 + $0x20] sm:$0xff] %v379
                %v381 = vld [vmem:[%s369 + $0x50] sm:$0xff]
                %382 = vst [vmem:[%s370 + $0x28] sm:$0xff] %v381
                %v383 = vld [vmem:[%s369 + $0x60] sm:$0xff]
                %384 = vst [vmem:[%s370 + $0x30] sm:$0xff] %v383
                %v385 = vld [vmem:[%s369 + $0x70] sm:$0xff]
                %386 = vst [vmem:[%s370 + $0x38] sm:$0xff] %v385
                %v387 = vld [vmem:[%s369 + $0x80] sm:$0xff]
                %388 = vst [vmem:[%s370 + $0x40] sm:$0xff] %v387
                %v389 = vld [vmem:[%s369 + $0x90] sm:$0xff]
                %390 = vst [vmem:[%s370 + $0x48] sm:$0xff] %v389
                %v391 = vld [vmem:[%s369 + $0xa0] sm:$0xff]
                %392 = vst [vmem:[%s370 + $0x50] sm:$0xff] %v391
                %v393 = vld [vmem:[%s369 + $0xb0] sm:$0xff]
                %394 = vst [vmem:[%s370 + $0x58] sm:$0xff] %v393
                %v395 = vld [vmem:[%s369 + $0xc0] sm:$0xff]
                %396 = vst [vmem:[%s370 + $0x60] sm:$0xff] %v395
                %v397 = vld [vmem:[%s369 + $0xd0] sm:$0xff]
                %398 = vst [vmem:[%s370 + $0x68] sm:$0xff] %v397
                %v399 = vld [vmem:[%s369 + $0xe0] sm:$0xff]
                %400 = vst [vmem:[%s370 + $0x70] sm:$0xff] %v399
                %v401 = vld [vmem:[%s369 + $0xf0] sm:$0xff]
                %402 = vst [vmem:[%s370 + $0x78] sm:$0xff] %v401
                %v403 = vld [vmem:[%s369 + $0x100] sm:$0xff]
                %404 = vst [vmem:[%s370 + $0x80] sm:$0xff] %v403
                %v405 = vld [vmem:[%s369 + $0x110] sm:$0xff]
                %406 = vst [vmem:[%s370 + $0x88] sm:$0xff] %v405
                %v407 = vld [vmem:[%s369 + $0x120] sm:$0xff]
                %408 = vst [vmem:[%s370 + $0x90] sm:$0xff] %v407
                %v409 = vld [vmem:[%s369 + $0x130] sm:$0xff]
                %410 = vst [vmem:[%s370 + $0x98] sm:$0xff] %v409
                %v411 = vld [vmem:[%s369 + $0x140] sm:$0xff]
                %412 = vst [vmem:[%s370 + $0xa0] sm:$0xff] %v411
                %v413 = vld [vmem:[%s369 + $0x150] sm:$0xff]
                %414 = vst [vmem:[%s370 + $0xa8] sm:$0xff] %v413
                %v415 = vld [vmem:[%s369 + $0x160] sm:$0xff]
                %416 = vst [vmem:[%s370 + $0xb0] sm:$0xff] %v415
                %v417 = vld [vmem:[%s369 + $0x170] sm:$0xff]
                %418 = vst [vmem:[%s370 + $0xb8] sm:$0xff] %v417
                %v419 = vld [vmem:[%s369 + $0x180] sm:$0xff]
                %420 = vst [vmem:[%s370 + $0xc0] sm:$0xff] %v419
                %v421 = vld [vmem:[%s369 + $0x190] sm:$0xff]
                %422 = vst [vmem:[%s370 + $0xc8] sm:$0xff] %v421
                %v423 = vld [vmem:[%s369 + $0x1a0] sm:$0xff]
                %424 = vst [vmem:[%s370 + $0xd0] sm:$0xff] %v423
                %v425 = vld [vmem:[%s369 + $0x1b0] sm:$0xff]
                %426 = vst [vmem:[%s370 + $0xd8] sm:$0xff] %v425
                %v427 = vld [vmem:[%s369 + $0x1c0] sm:$0xff]
                %428 = vst [vmem:[%s370 + $0xe0] sm:$0xff] %v427
                %v429 = vld [vmem:[%s369 + $0x1d0] sm:$0xff]
                %430 = vst [vmem:[%s370 + $0xe8] sm:$0xff] %v429
                %v431 = vld [vmem:[%s369 + $0x1e0] sm:$0xff]
                %432 = vst [vmem:[%s370 + $0xf0] sm:$0xff] %v431
                %v433 = vld [vmem:[%s369 + $0x1f0] sm:$0xff]
                %434 = vst [vmem:[%s370 + $0xf8] sm:$0xff] %v433
              $region83: #{olmo2_forward.7} parent=77 // loop_footer
                %s368 = sadd.s32 1, %s364
              $region84: #{olmo2_forward.7} parent=77 // loop_footer_branch
                %363 = sbr.rel target = $region80
              $region85: #{olmo2_forward.7} parent=77 // loop_exit
                _
            $region78: #{olmo2_forward.7} parent=69 // pred_fallthru
              _
          $region70: #{olmo2_forward.7} parent=65 // pred_fallthru
            _
          %511 = vnop
        $region66: #{olmo2_forward.7} parent=23 // pred_fallthru
          _
        // Predicated region
        $region101: #{olmo2_forward.7} parent=23 // pred_check
          %p512 = pneg %p107
        $region102: #{olmo2_forward.7} parent=23 // pred_check_branch
          %514 = sbr.rel (%p512) target = $region104
        $region103: #{olmo2_forward.7} parent=23 // pred_region
          %s515 = sand.u32 %s97, 1
          %s516 = scalar_lea.sflag [#allocation6], %s515
          %s517 = sand.u32 %s97, 1
          %s518 = smul.addr %s517, 256
          %s519 = scalar_lea.vmem [#allocation5], %s518
          %s520 = smul.u32 32, %s14
          %s522 = ssub.s32 4096, 4096
          %523 = vsyncadd %s516, %s522
          %s524 = smul.addr %s520, 2
          %s525 = smul.addr %s524, 64
          %s526 = scalar_lea.hbm %s3, %s525
          %s527 = sshll.u32 %s519, 4
          %s528 = int_to_ptr.vmem [resolvable:$true] %s527
          %533 = dma.hbm_to_vmem [thread:$0]  %s526, 4096, %s528, %s516, 128, 128, 8
        $region104: #{olmo2_forward.7} parent=23 // pred_fallthru
          _
      $region24: #{olmo2_forward.7} parent=5 // pred_fallthru
        _
      %p534 = scmp.le.s32.totalorder 1, %s14
      %p535 = scmp.lt.s32.totalorder %s14, 3
      %p536 = pnand %p534, %p535
      %p537 = pneg %p536
      // Predicated region
      $region105: #{olmo2_forward.7} parent=5 // pred_check
        _
      $region106: #{olmo2_forward.7} parent=5 // pred_check_branch
        %539 = sbr.rel (%p536) target = $region108
      $region107: #{olmo2_forward.7} parent=5 // pred_region
        %s540 = ssub.s32 %s14, 1
        %s541 = sand.u32 %s48, 1
        %s542 = sand.u32 %s48, 1
        %s543 = smul.addr %s542, 256
        %s544 = scalar_lea.vmem [#allocation3], %s543
        // Predicated region
        $region109: #{olmo2_forward.7} parent=107 // pred_check
          %p545 = pneg %p61
        $region110: #{olmo2_forward.7} parent=107 // pred_check_branch
          %547 = sbr.rel (%p545) target = $region112
        $region111: #{olmo2_forward.7} parent=107 // pred_region
          _
        $region112: #{olmo2_forward.7} parent=107 // pred_fallthru
          _
        %s548 = sand.u32 %s74, 1
        %s549 = sand.u32 %s74, 1
        %s550 = smul.addr %s549, 256
        %s551 = scalar_lea.vmem [#allocation4], %s550
        // Predicated region
        $region113: #{olmo2_forward.7} parent=107 // pred_check
          %p552 = pneg %p87
        $region114: #{olmo2_forward.7} parent=107 // pred_check_branch
          %554 = sbr.rel (%p552) target = $region116
        $region115: #{olmo2_forward.7} parent=107 // pred_region
          _
        $region116: #{olmo2_forward.7} parent=107 // pred_fallthru
          _
        %s555 = sand.u32 %s100, 1
        %s556 = scalar_lea.sflag [#allocation6], %s555
        %s557 = sand.u32 %s100, 1
        %s558 = smul.addr %s557, 256
        %s559 = scalar_lea.vmem [#allocation5], %s558
        // Predicated region
        $region117: #{olmo2_forward.7} parent=107 // pred_check
          %p560 = pneg %p113
        $region118: #{olmo2_forward.7} parent=107 // pred_check_branch
          %562 = sbr.rel (%p560) target = $region120
        $region119: #{olmo2_forward.7} parent=107 // pred_region
          %563 = dma.done %s556, 4096
        $region120: #{olmo2_forward.7} parent=107 // pred_fallthru
          _
        %p564 = pneg %p35
        %p565 = pneg %p32
        %s566 = sand.u32 %s48, 1
        %s567 = sand.u32 %s48, 1
        %s568 = smul.addr %s567, 256
        %s569 = scalar_lea.vmem [#allocation3], %s568
        %p570 = pneg %p61
        %p571 = pneg %p58
        %s572 = sand.u32 %s74, 1
        %s573 = sand.u32 %s74, 1
        %s574 = smul.addr %s573, 256
        %s575 = scalar_lea.vmem [#allocation4], %s574
        %p576 = pneg %p87
        %p577 = pneg %p84
        %s578 = sand.u32 %s100, 1
        %s579 = scalar_lea.sflag [#allocation6], %s578
        %s580 = sand.u32 %s100, 1
        %s581 = smul.addr %s580, 256
        %s582 = scalar_lea.vmem [#allocation5], %s581
        %p583 = pneg %p113
        %p584 = pneg %p110
        %p585 = pneg %p134
        %p586 = pneg %p131
        %p587 = pneg %p155
        %p588 = pneg %p152
        %s589 = smul.u32 2, %s19
        %s590 = smul.u32 2, %s19
        %s591 = smul.u32 32, %s19
        %p592 = scmp.eq.s32.totalorder %s19, 0
        // Predicated region
        $region121: #{olmo2_forward.7} parent=107 // pred_check
          %p593 = pneg %p592
        $region122: #{olmo2_forward.7} parent=107 // pred_check_branch
          %595 = sbr.rel (%p593) target = $region124
        $region123: #{olmo2_forward.7} parent=107 // pred_region
          %596 = vst [vmem:[#allocation2] sm:$0xff] 0.0
          %597 = vst [vmem:[#allocation2 + $0x8] sm:$0xff] 0.0
          %598 = vst [vmem:[#allocation2 + $0x10] sm:$0xff] 0.0
          %599 = vst [vmem:[#allocation2 + $0x18] sm:$0xff] 0.0
        $region124: #{olmo2_forward.7} parent=107 // pred_fallthru
          _
        %v600 = vld [vmem:[%s0] sm:$0xff]
        %v601 = vld [vmem:[%s0 + $0x8] sm:$0xff]
        %v602 = vld [vmem:[%s544] sm:$0xff]
        %v603 = vld [vmem:[%s544 + $0x8] sm:$0xff]
        %v604 = vld [vmem:[%s544 + $0x10] sm:$0xff]
        %v605 = vld [vmem:[%s544 + $0x18] sm:$0xff]
        %v606 = vld [vmem:[%s544 + $0x20] sm:$0xff]
        %v607 = vld [vmem:[%s544 + $0x28] sm:$0xff]
        %v608 = vld [vmem:[%s544 + $0x30] sm:$0xff]
        %v609 = vld [vmem:[%s544 + $0x38] sm:$0xff]
        %v610 = vld [vmem:[%s544 + $0x40] sm:$0xff]
        %v611 = vld [vmem:[%s544 + $0x48] sm:$0xff]
        %v612 = vld [vmem:[%s544 + $0x50] sm:$0xff]
        %v613 = vld [vmem:[%s544 + $0x58] sm:$0xff]
        %v614 = vld [vmem:[%s544 + $0x60] sm:$0xff]
        %v615 = vld [vmem:[%s544 + $0x68] sm:$0xff]
        %v616 = vld [vmem:[%s544 + $0x70] sm:$0xff]
        %v617 = vld [vmem:[%s544 + $0x78] sm:$0xff]
        %v618 = vld [vmem:[%s544 + $0x80] sm:$0xff]
        %v619 = vld [vmem:[%s544 + $0x88] sm:$0xff]
        %v620 = vld [vmem:[%s544 + $0x90] sm:$0xff]
        %v621 = vld [vmem:[%s544 + $0x98] sm:$0xff]
        %v622 = vld [vmem:[%s544 + $0xa0] sm:$0xff]
        %v623 = vld [vmem:[%s544 + $0xa8] sm:$0xff]
        %v624 = vld [vmem:[%s544 + $0xb0] sm:$0xff]
        %v625 = vld [vmem:[%s544 + $0xb8] sm:$0xff]
        %v626 = vld [vmem:[%s544 + $0xc0] sm:$0xff]
        %v627 = vld [vmem:[%s544 + $0xc8] sm:$0xff]
        %v628 = vld [vmem:[%s544 + $0xd0] sm:$0xff]
        %v629 = vld [vmem:[%s544 + $0xd8] sm:$0xff]
        %v630 = vld [vmem:[%s544 + $0xe0] sm:$0xff]
        %v631 = vld [vmem:[%s544 + $0xe8] sm:$0xff]
        %v632 = vld [vmem:[%s544 + $0xf0] sm:$0xff]
        %v633 = vld [vmem:[%s544 + $0xf8] sm:$0xff]
        %v636 = vunpack.c.l.b16 %v600
        %v637 = vunpack.c.h.b16 %v600
        %v638 = vunpack.c.l.b16 %v601
        %v639 = vunpack.c.h.b16 %v601
        %v640 = vpack.c.b16 %v638, %v636
        %v641 = vpack.c.b16 %v639, %v637
        %v676 = vunpack.c.l.b16 %v602
        %v677 = vunpack.c.h.b16 %v602
        %v678 = vunpack.c.l.b16 %v603
        %v679 = vunpack.c.h.b16 %v603
        %v680 = vunpack.c.l.b16 %v604
        %v681 = vunpack.c.h.b16 %v604
        %v682 = vunpack.c.l.b16 %v605
        %v683 = vunpack.c.h.b16 %v605
        %v684 = vunpack.c.l.b16 %v606
        %v685 = vunpack.c.h.b16 %v606
        %v686 = vunpack.c.l.b16 %v607
        %v687 = vunpack.c.h.b16 %v607
        %v688 = vunpack.c.l.b16 %v608
        %v689 = vunpack.c.h.b16 %v608
        %v690 = vunpack.c.l.b16 %v609
        %v691 = vunpack.c.h.b16 %v609
        %v692 = vunpack.c.l.b16 %v610
        %v693 = vunpack.c.h.b16 %v610
        %v694 = vunpack.c.l.b16 %v611
        %v695 = vunpack.c.h.b16 %v611
        %v696 = vunpack.c.l.b16 %v612
        %v697 = vunpack.c.h.b16 %v612
        %v698 = vunpack.c.l.b16 %v613
        %v699 = vunpack.c.h.b16 %v613
        %v700 = vunpack.c.l.b16 %v614
        %v701 = vunpack.c.h.b16 %v614
        %v702 = vunpack.c.l.b16 %v615
        %v703 = vunpack.c.h.b16 %v615
        %v704 = vunpack.c.l.b16 %v616
        %v705 = vunpack.c.h.b16 %v616
        %v706 = vunpack.c.l.b16 %v617
        %v707 = vunpack.c.h.b16 %v617
        %v708 = vunpack.c.l.b16 %v618
        %v709 = vunpack.c.h.b16 %v618
        %v710 = vunpack.c.l.b16 %v619
        %v711 = vunpack.c.h.b16 %v619
        %v712 = vunpack.c.l.b16 %v620
        %v713 = vunpack.c.h.b16 %v620
        %v714 = vunpack.c.l.b16 %v621
        %v715 = vunpack.c.h.b16 %v621
        %v716 = vunpack.c.l.b16 %v622
        %v717 = vunpack.c.h.b16 %v622
        %v718 = vunpack.c.l.b16 %v623
        %v719 = vunpack.c.h.b16 %v623
        %v720 = vunpack.c.l.b16 %v624
        %v721 = vunpack.c.h.b16 %v624
        %v722 = vunpack.c.l.b16 %v625
        %v723 = vunpack.c.h.b16 %v625
        %v724 = vunpack.c.l.b16 %v626
        %v725 = vunpack.c.h.b16 %v626
        %v726 = vunpack.c.l.b16 %v627
        %v727 = vunpack.c.h.b16 %v627
        %v728 = vunpack.c.l.b16 %v628
        %v729 = vunpack.c.h.b16 %v628
        %v730 = vunpack.c.l.b16 %v629
        %v731 = vunpack.c.h.b16 %v629
        %v732 = vunpack.c.l.b16 %v630
        %v733 = vunpack.c.h.b16 %v630
        %v734 = vunpack.c.l.b16 %v631
        %v735 = vunpack.c.h.b16 %v631
        %v736 = vunpack.c.l.b16 %v632
        %v737 = vunpack.c.h.b16 %v632
        %v738 = vunpack.c.l.b16 %v633
        %v739 = vunpack.c.h.b16 %v633
        %v740 = vpack.c.b16 %v678, %v676
        %v741 = vpack.c.b16 %v679, %v677
        %v742 = vpack.c.b16 %v682, %v680
        %v743 = vpack.c.b16 %v683, %v681
        %v744 = vpack.c.b16 %v686, %v684
        %v745 = vpack.c.b16 %v687, %v685
        %v746 = vpack.c.b16 %v690, %v688
        %v747 = vpack.c.b16 %v691, %v689
        %v748 = vpack.c.b16 %v694, %v692
        %v749 = vpack.c.b16 %v695, %v693
        %v750 = vpack.c.b16 %v698, %v696
        %v751 = vpack.c.b16 %v699, %v697
        %v752 = vpack.c.b16 %v702, %v700
        %v753 = vpack.c.b16 %v703, %v701
        %v754 = vpack.c.b16 %v706, %v704
        %v755 = vpack.c.b16 %v707, %v705
        %v756 = vpack.c.b16 %v710, %v708
        %v757 = vpack.c.b16 %v711, %v709
        %v758 = vpack.c.b16 %v714, %v712
        %v759 = vpack.c.b16 %v715, %v713
        %v760 = vpack.c.b16 %v718, %v716
        %v761 = vpack.c.b16 %v719, %v717
        %v762 = vpack.c.b16 %v722, %v720
        %v763 = vpack.c.b16 %v723, %v721
        %v764 = vpack.c.b16 %v726, %v724
        %v765 = vpack.c.b16 %v727, %v725
        %v766 = vpack.c.b16 %v730, %v728
        %v767 = vpack.c.b16 %v731, %v729
        %v768 = vpack.c.b16 %v734, %v732
        %v769 = vpack.c.b16 %v735, %v733
        %v770 = vpack.c.b16 %v738, %v736
        %v771 = vpack.c.b16 %v739, %v737
        %804 = vmatprep.subr.bf16.mxu0 %v741
        %805 = vmatpush1.bf16.msra.mxu0 %v740
        %806 = vmatprep.subr.bf16.mxu0 %v743
        %807 = vmatpush1.bf16.msra.mxu0 %v742
        %808 = vmatprep.subr.bf16.mxu0 %v745
        %809 = vmatpush1.bf16.msra.mxu0 %v744
        %810 = vmatprep.subr.bf16.mxu0 %v747
        %811 = vmatpush1.bf16.msra.mxu0 %v746
        %812 = vmatprep.subr.bf16.mxu0 %v749
        %813 = vmatpush1.bf16.msra.mxu0 %v748
        %814 = vmatprep.subr.bf16.mxu0 %v751
        %815 = vmatpush1.bf16.msra.mxu0 %v750
        %816 = vmatprep.subr.bf16.mxu0 %v753
        %817 = vmatpush1.bf16.msra.mxu0 %v752
        %818 = vmatprep.subr.bf16.mxu0 %v755
        %819 = vmatpush1.bf16.msra.mxu0 %v754
        %820 = vmatprep.subr.bf16.mxu0 %v757
        %821 = vmatpush1.bf16.msra.mxu0 %v756
        %822 = vmatprep.subr.bf16.mxu0 %v759
        %823 = vmatpush1.bf16.msra.mxu0 %v758
        %824 = vmatprep.subr.bf16.mxu0 %v761
        %825 = vmatpush1.bf16.msra.mxu0 %v760
        %826 = vmatprep.subr.bf16.mxu0 %v763
        %827 = vmatpush1.bf16.msra.mxu0 %v762
        %828 = vmatprep.subr.bf16.mxu0 %v765
        %829 = vmatpush1.bf16.msra.mxu0 %v764
        %830 = vmatprep.subr.bf16.mxu0 %v767
        %831 = vmatpush1.bf16.msra.mxu0 %v766
        %832 = vmatprep.subr.bf16.mxu0 %v769
        %833 = vmatpush1.bf16.msra.mxu0 %v768
        %834 = vmatprep.subr.bf16.mxu0 %v771
        %835 = vmatpush1.bf16.msra.mxu0 %v770
        %836 = vmatprep.mubr.bf16.mxu0 %v641
        %837 = vmatmul.mubr.bf16.gmra.mrb[0].mxu0 %v640
        %v838 = vpop.f32.mrb[0].mxu0
        %v839 = vadd.f32 0.0, %v838
        %v840 = vpop.f32.mrb[0].mxu0
        %v841 = vadd.f32 0.0, %v840
        %v842 = vpop.f32.mrb[0].mxu0
        %v843 = vadd.f32 0.0, %v842
        %v844 = vpop.f32.mrb[0].mxu0
        %v845 = vadd.f32 0.0, %v844
        %846 = vdwg.mxu0
        %v847 = vld [vmem:[%s551] sm:$0xff]
        %v848 = vld [vmem:[%s551 + $0x8] sm:$0xff]
        %v849 = vld [vmem:[%s551 + $0x10] sm:$0xff]
        %v850 = vld [vmem:[%s551 + $0x18] sm:$0xff]
        %v851 = vld [vmem:[%s551 + $0x20] sm:$0xff]
        %v852 = vld [vmem:[%s551 + $0x28] sm:$0xff]
        %v853 = vld [vmem:[%s551 + $0x30] sm:$0xff]
        %v854 = vld [vmem:[%s551 + $0x38] sm:$0xff]
        %v855 = vld [vmem:[%s551 + $0x40] sm:$0xff]
        %v856 = vld [vmem:[%s551 + $0x48] sm:$0xff]
        %v857 = vld [vmem:[%s551 + $0x50] sm:$0xff]
        %v858 = vld [vmem:[%s551 + $0x58] sm:$0xff]
        %v859 = vld [vmem:[%s551 + $0x60] sm:$0xff]
        %v860 = vld [vmem:[%s551 + $0x68] sm:$0xff]
        %v861 = vld [vmem:[%s551 + $0x70] sm:$0xff]
        %v862 = vld [vmem:[%s551 + $0x78] sm:$0xff]
        %v863 = vld [vmem:[%s551 + $0x80] sm:$0xff]
        %v864 = vld [vmem:[%s551 + $0x88] sm:$0xff]
        %v865 = vld [vmem:[%s551 + $0x90] sm:$0xff]
        %v866 = vld [vmem:[%s551 + $0x98] sm:$0xff]
        %v867 = vld [vmem:[%s551 + $0xa0] sm:$0xff]
        %v868 = vld [vmem:[%s551 + $0xa8] sm:$0xff]
        %v869 = vld [vmem:[%s551 + $0xb0] sm:$0xff]
        %v870 = vld [vmem:[%s551 + $0xb8] sm:$0xff]
        %v871 = vld [vmem:[%s551 + $0xc0] sm:$0xff]
        %v872 = vld [vmem:[%s551 + $0xc8] sm:$0xff]
        %v873 = vld [vmem:[%s551 + $0xd0] sm:$0xff]
        %v874 = vld [vmem:[%s551 + $0xd8] sm:$0xff]
        %v875 = vld [vmem:[%s551 + $0xe0] sm:$0xff]
        %v876 = vld [vmem:[%s551 + $0xe8] sm:$0xff]
        %v877 = vld [vmem:[%s551 + $0xf0] sm:$0xff]
        %v878 = vld [vmem:[%s551 + $0xf8] sm:$0xff]
        %v911 = vunpack.c.l.b16 %v847
        %v912 = vunpack.c.h.b16 %v847
        %v913 = vunpack.c.l.b16 %v848
        %v914 = vunpack.c.h.b16 %v848
        %v915 = vunpack.c.l.b16 %v849
        %v916 = vunpack.c.h.b16 %v849
        %v917 = vunpack.c.l.b16 %v850
        %v918 = vunpack.c.h.b16 %v850
        %v919 = vunpack.c.l.b16 %v851
        %v920 = vunpack.c.h.b16 %v851
        %v921 = vunpack.c.l.b16 %v852
        %v922 = vunpack.c.h.b16 %v852
        %v923 = vunpack.c.l.b16 %v853
        %v924 = vunpack.c.h.b16 %v853
        %v925 = vunpack.c.l.b16 %v854
        %v926 = vunpack.c.h.b16 %v854
        %v927 = vunpack.c.l.b16 %v855
        %v928 = vunpack.c.h.b16 %v855
        %v929 = vunpack.c.l.b16 %v856
        %v930 = vunpack.c.h.b16 %v856
        %v931 = vunpack.c.l.b16 %v857
        %v932 = vunpack.c.h.b16 %v857
        %v933 = vunpack.c.l.b16 %v858
        %v934 = vunpack.c.h.b16 %v858
        %v935 = vunpack.c.l.b16 %v859
        %v936 = vunpack.c.h.b16 %v859
        %v937 = vunpack.c.l.b16 %v860
        %v938 = vunpack.c.h.b16 %v860
        %v939 = vunpack.c.l.b16 %v861
        %v940 = vunpack.c.h.b16 %v861
        %v941 = vunpack.c.l.b16 %v862
        %v942 = vunpack.c.h.b16 %v862
        %v943 = vunpack.c.l.b16 %v863
        %v944 = vunpack.c.h.b16 %v863
        %v945 = vunpack.c.l.b16 %v864
        %v946 = vunpack.c.h.b16 %v864
        %v947 = vunpack.c.l.b16 %v865
        %v948 = vunpack.c.h.b16 %v865
        %v949 = vunpack.c.l.b16 %v866
        %v950 = vunpack.c.h.b16 %v866
        %v951 = vunpack.c.l.b16 %v867
        %v952 = vunpack.c.h.b16 %v867
        %v953 = vunpack.c.l.b16 %v868
        %v954 = vunpack.c.h.b16 %v868
        %v955 = vunpack.c.l.b16 %v869
        %v956 = vunpack.c.h.b16 %v869
        %v957 = vunpack.c.l.b16 %v870
        %v958 = vunpack.c.h.b16 %v870
        %v959 = vunpack.c.l.b16 %v871
        %v960 = vunpack.c.h.b16 %v871
        %v961 = vunpack.c.l.b16 %v872
        %v962 = vunpack.c.h.b16 %v872
        %v963 = vunpack.c.l.b16 %v873
        %v964 = vunpack.c.h.b16 %v873
        %v965 = vunpack.c.l.b16 %v874
        %v966 = vunpack.c.h.b16 %v874
        %v967 = vunpack.c.l.b16 %v875
        %v968 = vunpack.c.h.b16 %v875
        %v969 = vunpack.c.l.b16 %v876
        %v970 = vunpack.c.h.b16 %v876
        %v971 = vunpack.c.l.b16 %v877
        %v972 = vunpack.c.h.b16 %v877
        %v973 = vunpack.c.l.b16 %v878
        %v974 = vunpack.c.h.b16 %v878
        %v975 = vpack.c.b16 %v913, %v911
        %v976 = vpack.c.b16 %v914, %v912
        %v977 = vpack.c.b16 %v917, %v915
        %v978 = vpack.c.b16 %v918, %v916
        %v979 = vpack.c.b16 %v921, %v919
        %v980 = vpack.c.b16 %v922, %v920
        %v981 = vpack.c.b16 %v925, %v923
        %v982 = vpack.c.b16 %v926, %v924
        %v983 = vpack.c.b16 %v929, %v927
        %v984 = vpack.c.b16 %v930, %v928
        %v985 = vpack.c.b16 %v933, %v931
        %v986 = vpack.c.b16 %v934, %v932
        %v987 = vpack.c.b16 %v937, %v935
        %v988 = vpack.c.b16 %v938, %v936
        %v989 = vpack.c.b16 %v941, %v939
        %v990 = vpack.c.b16 %v942, %v940
        %v991 = vpack.c.b16 %v945, %v943
        %v992 = vpack.c.b16 %v946, %v944
        %v993 = vpack.c.b16 %v949, %v947
        %v994 = vpack.c.b16 %v950, %v948
        %v995 = vpack.c.b16 %v953, %v951
        %v996 = vpack.c.b16 %v954, %v952
        %v997 = vpack.c.b16 %v957, %v955
        %v998 = vpack.c.b16 %v958, %v956
        %v999 = vpack.c.b16 %v961, %v959
        %v1000 = vpack.c.b16 %v962, %v960
        %v1001 = vpack.c.b16 %v965, %v963
        %v1002 = vpack.c.b16 %v966, %v964
        %v1003 = vpack.c.b16 %v969, %v967
        %v1004 = vpack.c.b16 %v970, %v968
        %v1005 = vpack.c.b16 %v973, %v971
        %v1006 = vpack.c.b16 %v974, %v972
        %1039 = vmatprep.subr.bf16.mxu0 %v976
        %1040 = vmatpush1.bf16.msra.mxu0 %v975
        %1041 = vmatprep.subr.bf16.mxu0 %v978
        %1042 = vmatpush1.bf16.msra.mxu0 %v977
        %1043 = vmatprep.subr.bf16.mxu0 %v980
        %1044 = vmatpush1.bf16.msra.mxu0 %v979
        %1045 = vmatprep.subr.bf16.mxu0 %v982
        %1046 = vmatpush1.bf16.msra.mxu0 %v981
        %1047 = vmatprep.subr.bf16.mxu0 %v984
        %1048 = vmatpush1.bf16.msra.mxu0 %v983
        %1049 = vmatprep.subr.bf16.mxu0 %v986
        %1050 = vmatpush1.bf16.msra.mxu0 %v985
        %1051 = vmatprep.subr.bf16.mxu0 %v988
        %1052 = vmatpush1.bf16.msra.mxu0 %v987
        %1053 = vmatprep.subr.bf16.mxu0 %v990
        %1054 = vmatpush1.bf16.msra.mxu0 %v989
        %1055 = vmatprep.subr.bf16.mxu0 %v992
        %1056 = vmatpush1.bf16.msra.mxu0 %v991
        %1057 = vmatprep.subr.bf16.mxu0 %v994
        %1058 = vmatpush1.bf16.msra.mxu0 %v993
        %1059 = vmatprep.subr.bf16.mxu0 %v996
        %1060 = vmatpush1.bf16.msra.mxu0 %v995
        %1061 = vmatprep.subr.bf16.mxu0 %v998
        %1062 = vmatpush1.bf16.msra.mxu0 %v997
        %1063 = vmatprep.subr.bf16.mxu0 %v1000
        %1064 = vmatpush1.bf16.msra.mxu0 %v999
        %1065 = vmatprep.subr.bf16.mxu0 %v1002
        %1066 = vmatpush1.bf16.msra.mxu0 %v1001
        %1067 = vmatprep.subr.bf16.mxu0 %v1004
        %1068 = vmatpush1.bf16.msra.mxu0 %v1003
        %1069 = vmatprep.subr.bf16.mxu0 %v1006
        %1070 = vmatpush1.bf16.msra.mxu0 %v1005
        %1071 = vmatprep.mubr.bf16.mxu0 %v641
        %1072 = vmatmul.mubr.bf16.gmra.mrb[0].mxu0 %v640
        %v1073 = vpop.f32.mrb[0].mxu0
        %v1074 = vadd.f32 0.0, %v1073
        %v1075 = vpop.f32.mrb[0].mxu0
        %v1076 = vadd.f32 0.0, %v1075
        %v1077 = vpop.f32.mrb[0].mxu0
        %v1078 = vadd.f32 0.0, %v1077
        %v1079 = vpop.f32.mrb[0].mxu0
        %v1080 = vadd.f32 0.0, %v1079
        %1081 = vdwg.mxu0
        %v1082 = vxor.u32 %v839, 2147483648
        %v1083 = vxor.u32 %v841, 2147483648
        %v1084 = vxor.u32 %v843, 2147483648
        %v1085 = vxor.u32 %v845, 2147483648
        %v1086 = vmul.f32 %v1082, 1.442695
        %v1087 = vpow.pop %v1086
        %v1088 = vmul.f32 %v1083, 1.442695
        %v1089 = vpow.pop %v1088
        %v1090 = vmul.f32 %v1084, 1.442695
        %v1091 = vpow.pop %v1090
        %v1092 = vmul.f32 %v1085, 1.442695
        %v1093 = vpow.pop %v1092
        %v1094 = vadd.f32 %v1087, 1.0
        %v1095 = vadd.f32 %v1089, 1.0
        %v1096 = vadd.f32 %v1091, 1.0
        %v1097 = vadd.f32 %v1093, 1.0
        %v1098 = vrcp.pop %v1094
        %v1099 = vmul.f32 1.0, %v1098
        %v1100 = vrcp.pop %v1095
        %v1101 = vmul.f32 1.0, %v1100
        %v1102 = vrcp.pop %v1096
        %v1103 = vmul.f32 1.0, %v1102
        %v1104 = vrcp.pop %v1097
        %v1105 = vmul.f32 1.0, %v1104
        %v1106 = vmul.f32 %v839, %v1099
        %v1107 = vmul.f32 %v841, %v1101
        %v1108 = vmul.f32 %v843, %v1103
        %v1109 = vmul.f32 %v845, %v1105
        %v1110 = vmul.f32 %v1106, %v1074
        %v1111 = vmul.f32 %v1107, %v1076
        %v1112 = vmul.f32 %v1108, %v1078
        %v1113 = vmul.f32 %v1109, %v1080
        %v1114 = vld [vmem:[#allocation2] sm:$0xff]
        %v1115 = vld [vmem:[#allocation2 + $0x8] sm:$0xff]
        %v1116 = vld [vmem:[#allocation2 + $0x10] sm:$0xff]
        %v1117 = vld [vmem:[#allocation2 + $0x18] sm:$0xff]
        %v1118 = vpack.c.bf16 %v1112, %v1110
        %v1119 = vpack.c.bf16 %v1113, %v1111
        %v1120 = vld [vmem:[%s559] sm:$0xff]
        %v1121 = vld [vmem:[%s559 + $0x8] sm:$0xff]
        %v1122 = vld [vmem:[%s559 + $0x10] sm:$0xff]
        %v1123 = vld [vmem:[%s559 + $0x18] sm:$0xff]
        %v1124 = vld [vmem:[%s559 + $0x20] sm:$0xff]
        %v1125 = vld [vmem:[%s559 + $0x28] sm:$0xff]
        %v1126 = vld [vmem:[%s559 + $0x30] sm:$0xff]
        %v1127 = vld [vmem:[%s559 + $0x38] sm:$0xff]
        %v1128 = vld [vmem:[%s559 + $0x40] sm:$0xff]
        %v1129 = vld [vmem:[%s559 + $0x48] sm:$0xff]
        %v1130 = vld [vmem:[%s559 + $0x50] sm:$0xff]
        %v1131 = vld [vmem:[%s559 + $0x58] sm:$0xff]
        %v1132 = vld [vmem:[%s559 + $0x60] sm:$0xff]
        %v1133 = vld [vmem:[%s559 + $0x68] sm:$0xff]
        %v1134 = vld [vmem:[%s559 + $0x70] sm:$0xff]
        %v1135 = vld [vmem:[%s559 + $0x78] sm:$0xff]
        %v1136 = vld [vmem:[%s559 + $0x80] sm:$0xff]
        %v1137 = vld [vmem:[%s559 + $0x88] sm:$0xff]
        %v1138 = vld [vmem:[%s559 + $0x90] sm:$0xff]
        %v1139 = vld [vmem:[%s559 + $0x98] sm:$0xff]
        %v1140 = vld [vmem:[%s559 + $0xa0] sm:$0xff]
        %v1141 = vld [vmem:[%s559 + $0xa8] sm:$0xff]
        %v1142 = vld [vmem:[%s559 + $0xb0] sm:$0xff]
        %v1143 = vld [vmem:[%s559 + $0xb8] sm:$0xff]
        %v1144 = vld [vmem:[%s559 + $0xc0] sm:$0xff]
        %v1145 = vld [vmem:[%s559 + $0xc8] sm:$0xff]
        %v1146 = vld [vmem:[%s559 + $0xd0] sm:$0xff]
        %v1147 = vld [vmem:[%s559 + $0xd8] sm:$0xff]
        %v1148 = vld [vmem:[%s559 + $0xe0] sm:$0xff]
        %v1149 = vld [vmem:[%s559 + $0xe8] sm:$0xff]
        %v1150 = vld [vmem:[%s559 + $0xf0] sm:$0xff]
        %v1151 = vld [vmem:[%s559 + $0xf8] sm:$0xff]
        %v1184 = vunpack.c.l.b16 %v1120
        %v1185 = vunpack.c.h.b16 %v1120
        %v1186 = vunpack.c.l.b16 %v1121
        %v1187 = vunpack.c.h.b16 %v1121
        %v1188 = vunpack.c.l.b16 %v1122
        %v1189 = vunpack.c.h.b16 %v1122
        %v1190 = vunpack.c.l.b16 %v1123
        %v1191 = vunpack.c.h.b16 %v1123
        %v1192 = vunpack.c.l.b16 %v1124
        %v1193 = vunpack.c.h.b16 %v1124
        %v1194 = vunpack.c.l.b16 %v1125
        %v1195 = vunpack.c.h.b16 %v1125
        %v1196 = vunpack.c.l.b16 %v1126
        %v1197 = vunpack.c.h.b16 %v1126
        %v1198 = vunpack.c.l.b16 %v1127
        %v1199 = vunpack.c.h.b16 %v1127
        %v1200 = vunpack.c.l.b16 %v1128
        %v1201 = vunpack.c.h.b16 %v1128
        %v1202 = vunpack.c.l.b16 %v1129
        %v1203 = vunpack.c.h.b16 %v1129
        %v1204 = vunpack.c.l.b16 %v1130
        %v1205 = vunpack.c.h.b16 %v1130
        %v1206 = vunpack.c.l.b16 %v1131
        %v1207 = vunpack.c.h.b16 %v1131
        %v1208 = vunpack.c.l.b16 %v1132
        %v1209 = vunpack.c.h.b16 %v1132
        %v1210 = vunpack.c.l.b16 %v1133
        %v1211 = vunpack.c.h.b16 %v1133
        %v1212 = vunpack.c.l.b16 %v1134
        %v1213 = vunpack.c.h.b16 %v1134
        %v1214 = vunpack.c.l.b16 %v1135
        %v1215 = vunpack.c.h.b16 %v1135
        %v1216 = vunpack.c.l.b16 %v1136
        %v1217 = vunpack.c.h.b16 %v1136
        %v1218 = vunpack.c.l.b16 %v1137
        %v1219 = vunpack.c.h.b16 %v1137
        %v1220 = vunpack.c.l.b16 %v1138
        %v1221 = vunpack.c.h.b16 %v1138
        %v1222 = vunpack.c.l.b16 %v1139
        %v1223 = vunpack.c.h.b16 %v1139
        %v1224 = vunpack.c.l.b16 %v1140
        %v1225 = vunpack.c.h.b16 %v1140
        %v1226 = vunpack.c.l.b16 %v1141
        %v1227 = vunpack.c.h.b16 %v1141
        %v1228 = vunpack.c.l.b16 %v1142
        %v1229 = vunpack.c.h.b16 %v1142
        %v1230 = vunpack.c.l.b16 %v1143
        %v1231 = vunpack.c.h.b16 %v1143
        %v1232 = vunpack.c.l.b16 %v1144
        %v1233 = vunpack.c.h.b16 %v1144
        %v1234 = vunpack.c.l.b16 %v1145
        %v1235 = vunpack.c.h.b16 %v1145
        %v1236 = vunpack.c.l.b16 %v1146
        %v1237 = vunpack.c.h.b16 %v1146
        %v1238 = vunpack.c.l.b16 %v1147
        %v1239 = vunpack.c.h.b16 %v1147
        %v1240 = vunpack.c.l.b16 %v1148
        %v1241 = vunpack.c.h.b16 %v1148
        %v1242 = vunpack.c.l.b16 %v1149
        %v1243 = vunpack.c.h.b16 %v1149
        %v1244 = vunpack.c.l.b16 %v1150
        %v1245 = vunpack.c.h.b16 %v1150
        %v1246 = vunpack.c.l.b16 %v1151
        %v1247 = vunpack.c.h.b16 %v1151
        %v1248 = vpack.c.b16 %v1186, %v1184
        %v1249 = vpack.c.b16 %v1187, %v1185
        %v1250 = vpack.c.b16 %v1190, %v1188
        %v1251 = vpack.c.b16 %v1191, %v1189
        %v1252 = vpack.c.b16 %v1194, %v1192
        %v1253 = vpack.c.b16 %v1195, %v1193
        %v1254 = vpack.c.b16 %v1198, %v1196
        %v1255 = vpack.c.b16 %v1199, %v1197
        %v1256 = vpack.c.b16 %v1202, %v1200
        %v1257 = vpack.c.b16 %v1203, %v1201
        %v1258 = vpack.c.b16 %v1206, %v1204
        %v1259 = vpack.c.b16 %v1207, %v1205
        %v1260 = vpack.c.b16 %v1210, %v1208
        %v1261 = vpack.c.b16 %v1211, %v1209
        %v1262 = vpack.c.b16 %v1214, %v1212
        %v1263 = vpack.c.b16 %v1215, %v1213
        %v1264 = vpack.c.b16 %v1218, %v1216
        %v1265 = vpack.c.b16 %v1219, %v1217
        %v1266 = vpack.c.b16 %v1222, %v1220
        %v1267 = vpack.c.b16 %v1223, %v1221
        %v1268 = vpack.c.b16 %v1226, %v1224
        %v1269 = vpack.c.b16 %v1227, %v1225
        %v1270 = vpack.c.b16 %v1230, %v1228
        %v1271 = vpack.c.b16 %v1231, %v1229
        %v1272 = vpack.c.b16 %v1234, %v1232
        %v1273 = vpack.c.b16 %v1235, %v1233
        %v1274 = vpack.c.b16 %v1238, %v1236
        %v1275 = vpack.c.b16 %v1239, %v1237
        %v1276 = vpack.c.b16 %v1242, %v1240
        %v1277 = vpack.c.b16 %v1243, %v1241
        %v1278 = vpack.c.b16 %v1246, %v1244
        %v1279 = vpack.c.b16 %v1247, %v1245
        %1312 = vmatprep.subr.bf16.mxu0 %v1249
        %1313 = vmatpush1.bf16.msra.mxu0 %v1248
        %1314 = vmatprep.subr.bf16.mxu0 %v1251
        %1315 = vmatpush1.bf16.msra.mxu0 %v1250
        %1316 = vmatprep.subr.bf16.mxu0 %v1253
        %1317 = vmatpush1.bf16.msra.mxu0 %v1252
        %1318 = vmatprep.subr.bf16.mxu0 %v1255
        %1319 = vmatpush1.bf16.msra.mxu0 %v1254
        %1320 = vmatprep.subr.bf16.mxu0 %v1257
        %1321 = vmatpush1.bf16.msra.mxu0 %v1256
        %1322 = vmatprep.subr.bf16.mxu0 %v1259
        %1323 = vmatpush1.bf16.msra.mxu0 %v1258
        %1324 = vmatprep.subr.bf16.mxu0 %v1261
        %1325 = vmatpush1.bf16.msra.mxu0 %v1260
        %1326 = vmatprep.subr.bf16.mxu0 %v1263
        %1327 = vmatpush1.bf16.msra.mxu0 %v1262
        %1328 = vmatprep.subr.bf16.mxu0 %v1265
        %1329 = vmatpush1.bf16.msra.mxu0 %v1264
        %1330 = vmatprep.subr.bf16.mxu0 %v1267
        %1331 = vmatpush1.bf16.msra.mxu0 %v1266
        %1332 = vmatprep.subr.bf16.mxu0 %v1269
        %1333 = vmatpush1.bf16.msra.mxu0 %v1268
        %1334 = vmatprep.subr.bf16.mxu0 %v1271
        %1335 = vmatpush1.bf16.msra.mxu0 %v1270
        %1336 = vmatprep.subr.bf16.mxu0 %v1273
        %1337 = vmatpush1.bf16.msra.mxu0 %v1272
        %1338 = vmatprep.subr.bf16.mxu0 %v1275
        %1339 = vmatpush1.bf16.msra.mxu0 %v1274
        %1340 = vmatprep.subr.bf16.mxu0 %v1277
        %1341 = vmatpush1.bf16.msra.mxu0 %v1276
        %1342 = vmatprep.subr.bf16.mxu0 %v1279
        %1343 = vmatpush1.bf16.msra.mxu0 %v1278
        %1344 = vmatprep.mubr.bf16.mxu0 %v1119
        %1345 = vmatmul.mubr.bf16.gmra.mrb[0].mxu0 %v1118
        %v1346 = vpop.f32.mrb[0].mxu0
        %v1347 = vadd.f32 0.0, %v1346
        %v1348 = vpop.f32.mrb[0].mxu0
        %v1349 = vadd.f32 0.0, %v1348
        %v1350 = vpop.f32.mrb[0].mxu0
        %v1351 = vadd.f32 0.0, %v1350
        %v1352 = vpop.f32.mrb[0].mxu0
        %v1353 = vadd.f32 0.0, %v1352
        %1354 = vdwg.mxu0
        %v1355 = vadd.f32 %v1114, %v1347
        %v1356 = vadd.f32 %v1115, %v1349
        %v1357 = vadd.f32 %v1116, %v1351
        %v1358 = vadd.f32 %v1117, %v1353
        %1359 = vst [vmem:[#allocation2] sm:$0xff] %v1355
        %1360 = vst [vmem:[#allocation2 + $0x8] sm:$0xff] %v1356
        %1361 = vst [vmem:[#allocation2 + $0x10] sm:$0xff] %v1357
        %1362 = vst [vmem:[#allocation2 + $0x18] sm:$0xff] %v1358
        %p1363 = scmp.eq.s32.totalorder %s19, 1
        // Predicated region
        $region125: #{olmo2_forward.7} parent=107 // pred_check
          %p1364 = pneg %p1363
        $region126: #{olmo2_forward.7} parent=107 // pred_check_branch
          %1366 = sbr.rel (%p1364) target = $region128
        $region127: #{olmo2_forward.7} parent=107 // pred_region
          %v1367 = vld [vmem:[#allocation2] sm:$0xff]
          %v1368 = vld [vmem:[#allocation2 + $0x8] sm:$0xff]
          %v1369 = vld [vmem:[#allocation2 + $0x10] sm:$0xff]
          %v1370 = vld [vmem:[#allocation2 + $0x18] sm:$0xff]
          %v1371 = vld [vmem:[%s4] sm:$0x3]
          %v1372 = vmul.f32 %v1367, %v1367
          %v1373 = vmul.f32 %v1368, %v1368
          %v1374 = vmul.f32 %v1369, %v1369
          %v1375 = vmul.f32 %v1370, %v1370
          %v1376 = vadd.f32 %v1372, %v1373
          %1377 = vadd.xlane.f32.xlu0 %v1376
          %v1378 = vpop.xlane.xlu0 %1377
          %v1379 = vadd.f32 %v1374, %v1375
          %1380 = vadd.xlane.f32.xlu0 %v1379
          %v1381 = vpop.xlane.xlu0 %1380
          %v1382 = vrcp.pop 256.0
          %v1383 = vmul.f32 %v1378, %v1382
          %v1384 = vmul.f32 %v1381, %v1382
          %v1385 = vadd.f32 %v1383, 1e-05
          %v1386 = vadd.f32 %v1384, 1e-05
          %v1387 = vrsqrt.pop %v1385
          %v1388 = vrsqrt.pop %v1386
          %v1389 = vmul.f32 %v1367, %v1387
          %v1390 = vmul.f32 %v1368, %v1387
          %v1391 = vmul.f32 %v1369, %v1388
          %v1392 = vmul.f32 %v1370, %v1388
          %v1394 = vlaneseq
          %v1395 = vshrl.u32 %v1394, 7
          %v1396 = vsub.s32 0, %v1395
          %v1397 = vrot.slane %v1371, %v1396
          %v1398 = vlaneseq
          %v1399 = vshrl.u32 %v1398, 7
          %v1400 = vsub.s32 1, %v1399
          %v1401 = vrot.slane %v1371, %v1400
          %v1404 = vmul.f32 %v1389, %v1397
          %v1405 = vmul.f32 %v1390, %v1401
          %v1406 = vmul.f32 %v1391, %v1397
          %v1407 = vmul.f32 %v1392, %v1401
          %v1408 = vunpack.c.l.bf16 %v600
          %v1409 = vunpack.c.h.bf16 %v600
          %v1410 = vunpack.c.l.bf16 %v601
          %v1411 = vunpack.c.h.bf16 %v601
          %v1412 = vadd.f32 %v1404, %v1408
          %v1413 = vadd.f32 %v1405, %v1409
          %v1414 = vadd.f32 %v1406, %v1410
          %v1415 = vadd.f32 %v1407, %v1411
          %v1416 = vpack.c.bf16 %v1414, %v1412
          %v1417 = vpack.c.bf16 %v1415, %v1413
          %v1420 = vunpack.c.l.b16 %v1416
          %v1421 = vunpack.c.l.b16 %v1417
          %v1422 = vunpack.c.h.b16 %v1416
          %v1423 = vunpack.c.h.b16 %v1417
          %v1424 = vpack.c.b16 %v1421, %v1420
          %v1425 = vpack.c.b16 %v1423, %v1422
          %1428 = vst [vmem:[%s5] sm:$0xff] %v1424
          %1429 = vst [vmem:[%s5 + $0x8] sm:$0xff] %v1425
        $region128: #{olmo2_forward.7} parent=107 // pred_fallthru
          _
        // Predicated region
        $region129: #{olmo2_forward.7} parent=107 // pred_check
          %p1430 = pneg %p152
        $region130: #{olmo2_forward.7} parent=107 // pred_check_branch
          %1432 = sbr.rel (%p1430) target = $region132
        $region131: #{olmo2_forward.7} parent=107 // pred_region
          _
        $region132: #{olmo2_forward.7} parent=107 // pred_fallthru
          _
        // Predicated region
        $region133: #{olmo2_forward.7} parent=107 // pred_check
          %p1433 = pneg %p152
        $region134: #{olmo2_forward.7} parent=107 // pred_check_branch
          %1435 = sbr.rel (%p1433) target = $region136
        $region135: #{olmo2_forward.7} parent=107 // pred_region
          _
        $region136: #{olmo2_forward.7} parent=107 // pred_fallthru
          _
      $region108: #{olmo2_forward.7} parent=5 // pred_fallthru
        _
      %p1436 = scmp.le.s32.totalorder 2, %s14
      // Predicated region
      $region137: #{olmo2_forward.7} parent=5 // pred_check
        %p1437 = pneg %p1436
      $region138: #{olmo2_forward.7} parent=5 // pred_check_branch
        %1439 = sbr.rel (%p1437) target = $region140
      $region139: #{olmo2_forward.7} parent=5 // pred_region
        %s1440 = ssub.s32 %s14, 2
      $region140: #{olmo2_forward.7} parent=5 // pred_fallthru
        _
    $region6: #{olmo2_forward.7} parent=1 // loop_footer
      %s18 = sadd.s32 1, %s14
    $region7: #{olmo2_forward.7} parent=1 // loop_footer_branch
      %13 = sbr.rel target = $region3
    $region8: #{olmo2_forward.7} parent=1 // loop_exit
      _
    %1441 = vsyncpa [#allocation6], 1
    %s1442 = scalar_lea.sflag [#allocation6], 1
    %1443 = vsyncpa %s1442, 1

// kernel: olmo2_forward.9
$region0: #{olmo2_forward.9}
  #allocation0 [shape = 'u32[]', space=smem, size = 0x4, offset = 0x4, fixed_abs, tag = 'smem constant byte address 0x4 - core index']
  #allocation1 [shape = 'u32[144,128]{1,0:T(1,128)}', space=vmem, size = 0x12000, scoped, tag = 'internal scratch']
  #allocation2 [shape = 'f32[16,256]{1,0:T(8,128)}', space=vmem, size = 0x4000, scoped, tag = 'scratch operand']
  %s0 = inlined_call_operand.vmem [shape: bf16[16,256], index: 0, kind: input, shape index: {}]
  %s1 = inlined_call_operand.vmem [shape: bf16[256,512], index: 1, kind: input, shape index: {}]
  %s2 = inlined_call_operand.vmem [shape: bf16[256,512], index: 2, kind: input, shape index: {}]
  %s3 = inlined_call_operand.vmem [shape: bf16[512,256], index: 3, kind: input, shape index: {}]
  %s4 = inlined_call_operand.vmem [shape: f32[1,256], index: 4, kind: input, shape index: {}]
  %s5 = inlined_call_operand.vmem [shape: bf16[16,256], index: 5, kind: output, shape index: {}]
  %s6 = sld [smem:[#allocation0]]
  $region137: #{olmo2_forward.9} parent=0
    _
  %s8 = ssub.s32 1, %s6
  %s9 = scalar_select 0, %s8, %s6
  $region1: #{olmo2_forward.9} parent=0
    #allocation3 [shape = 'u8[262144]{0}', space=vmem, size = 0x40000, scoped, tag = 'input window, operand 1']
    #allocation4 [shape = 'u8[262144]{0}', space=vmem, size = 0x40000, scoped, tag = 'input window, operand 2']
    loop: start=0, step=1, limit=4
    $region2: #{olmo2_forward.9} parent=1 // loop_pre_header
      _
    $region3: #{olmo2_forward.9} parent=1 // loop_header
      %s11 = sphi 0, %s15
      %p12 = scmp.ge.s32.totalorder %s11, 4
      %s19 = sphi 0, %s19
      %s21 = sphi 0, %s19
      %s22 = sphi 0, %s21
      %s36 = sphi 0, %s22
      %s42 = sphi 0, %s44
      %s45 = sphi 0, %s42
      %s46 = sphi 0, %s45
      %s62 = sphi 0, %s46
      %s68 = sphi 0, %s70
      %s71 = sphi 0, %s68
      %s72 = sphi 0, %s71
      %s88 = sphi 0, %s72
      %s94 = sphi 0, %s96
      %s97 = sphi 0, %s94
      %s98 = sphi 0, %s97
      %s114 = sphi 0, %s98
      %s118 = sphi 0, %s118
      %s120 = sphi 0, %s118
      %s121 = sphi 0, %s120
      %s135 = sphi 0, %s121
      %s139 = sphi 0, %s139
      %s141 = sphi 0, %s139
      %s142 = sphi 0, %s141
      %s156 = sphi 0, %s142
    $region4: #{olmo2_forward.9} parent=1 // loop_header_branch
      %14 = sbr.rel (%p12) target = $region8
    $region5: #{olmo2_forward.9} parent=1 // loop_body
      %s16 = ssub.s32 %s11, 1
      %s17 = ssub.s32 %s11, 2
      %s18 = sadd.s32 %s11, 1
      %s20 = sadd.s32 %s19, 1
      %p23 = scmp.eq.s32.totalorder %s11, 1
      %p24 = scmp.ne.s32.totalorder %s19, %s21
      %p25 = scmp.eq.s32.totalorder %s11, 0
      %p26 = por %p24, %p25
      %p27 = scmp.ne.s32.totalorder %s19, %s21
      %p28 = scmp.eq.s32.totalorder %s16, 1
      %p29 = por %p27, %p28
      %p30 = scmp.ne.s32.totalorder %s21, %s22
      %p31 = scmp.eq.s32.totalorder %s16, 0
      %p32 = por %p30, %p31
      %p33 = scmp.ne.s32.totalorder %s21, %s22
      %p34 = scmp.eq.s32.totalorder %s17, 1
      %p35 = por %p33, %p34
      %p37 = scmp.ne.s32.totalorder %s22, %s36
      %p38 = scmp.eq.s32.totalorder %s17, 0
      %p39 = por %p37, %p38
      %s40 = ssub.s32 %s11, %s18
      %p41 = scmp.eq.s32.totalorder %s40, 0
      %s43 = sadd.s32 %s42, 1
      %s44 = scalar_select %p41, %s42, %s43
      %p47 = pneg %p41
      %p48 = scmp.eq.s32.totalorder %s11, 1
      %p49 = por %p47, %p48
      %p50 = scmp.ne.s32.totalorder %s42, %s45
      %p51 = scmp.eq.s32.totalorder %s11, 0
      %p52 = por %p50, %p51
      %p53 = scmp.ne.s32.totalorder %s42, %s45
      %p54 = scmp.eq.s32.totalorder %s16, 1
      %p55 = por %p53, %p54
      %p56 = scmp.ne.s32.totalorder %s45, %s46
      %p57 = scmp.eq.s32.totalorder %s16, 0
      %p58 = por %p56, %p57
      %p59 = scmp.ne.s32.totalorder %s45, %s46
      %p60 = scmp.eq.s32.totalorder %s17, 1
      %p61 = por %p59, %p60
      %p63 = scmp.ne.s32.totalorder %s46, %s62
      %p64 = scmp.eq.s32.totalorder %s17, 0
      %p65 = por %p63, %p64
      %s66 = ssub.s32 %s11, %s18
      %p67 = scmp.eq.s32.totalorder %s66, 0
      %s69 = sadd.s32 %s68, 1
      %s70 = scalar_select %p67, %s68, %s69
      %p73 = pneg %p67
      %p74 = scmp.eq.s32.totalorder %s11, 1
      %p75 = por %p73, %p74
      %p76 = scmp.ne.s32.totalorder %s68, %s71
      %p77 = scmp.eq.s32.totalorder %s11, 0
      %p78 = por %p76, %p77
      %p79 = scmp.ne.s32.totalorder %s68, %s71
      %p80 = scmp.eq.s32.totalorder %s16, 1
      %p81 = por %p79, %p80
      %p82 = scmp.ne.s32.totalorder %s71, %s72
      %p83 = scmp.eq.s32.totalorder %s16, 0
      %p84 = por %p82, %p83
      %p85 = scmp.ne.s32.totalorder %s71, %s72
      %p86 = scmp.eq.s32.totalorder %s17, 1
      %p87 = por %p85, %p86
      %p89 = scmp.ne.s32.totalorder %s72, %s88
      %p90 = scmp.eq.s32.totalorder %s17, 0
      %p91 = por %p89, %p90
      %s92 = ssub.s32 %s11, %s18
      %p93 = scmp.eq.s32.totalorder %s92, 0
      %s95 = sadd.s32 %s94, 1
      %s96 = scalar_select %p93, %s94, %s95
      %p99 = pneg %p93
      %p100 = scmp.eq.s32.totalorder %s11, 1
      %p101 = por %p99, %p100
      %p102 = scmp.ne.s32.totalorder %s94, %s97
      %p103 = scmp.eq.s32.totalorder %s11, 0
      %p104 = por %p102, %p103
      %p105 = scmp.ne.s32.totalorder %s94, %s97
      %p106 = scmp.eq.s32.totalorder %s16, 1
      %p107 = por %p105, %p106
      %p108 = scmp.ne.s32.totalorder %s97, %s98
      %p109 = scmp.eq.s32.totalorder %s16, 0
      %p110 = por %p108, %p109
      %p111 = scmp.ne.s32.totalorder %s97, %s98
      %p112 = scmp.eq.s32.totalorder %s17, 1
      %p113 = por %p111, %p112
      %p115 = scmp.ne.s32.totalorder %s98, %s114
      %p116 = scmp.eq.s32.totalorder %s17, 0
      %p117 = por %p115, %p116
      %s119 = sadd.s32 %s118, 1
      %p122 = scmp.eq.s32.totalorder %s11, 1
      %p123 = scmp.ne.s32.totalorder %s118, %s120
      %p124 = scmp.eq.s32.totalorder %s11, 0
      %p125 = por %p123, %p124
      %p126 = scmp.ne.s32.totalorder %s118, %s120
      %p127 = scmp.eq.s32.totalorder %s16, 1
      %p128 = por %p126, %p127
      %p129 = scmp.ne.s32.totalorder %s120, %s121
      %p130 = scmp.eq.s32.totalorder %s16, 0
      %p131 = por %p129, %p130
      %p132 = scmp.ne.s32.totalorder %s120, %s121
      %p133 = scmp.eq.s32.totalorder %s17, 1
      %p134 = por %p132, %p133
      %p136 = scmp.ne.s32.totalorder %s121, %s135
      %p137 = scmp.eq.s32.totalorder %s17, 0
      %p138 = por %p136, %p137
      %s140 = sadd.s32 %s139, 1
      %p143 = scmp.eq.s32.totalorder %s11, 1
      %p144 = scmp.ne.s32.totalorder %s139, %s141
      %p145 = scmp.eq.s32.totalorder %s11, 0
      %p146 = por %p144, %p145
      %p147 = scmp.ne.s32.totalorder %s139, %s141
      %p148 = scmp.eq.s32.totalorder %s16, 1
      %p149 = por %p147, %p148
      %p150 = scmp.ne.s32.totalorder %s141, %s142
      %p151 = scmp.eq.s32.totalorder %s16, 0
      %p152 = por %p150, %p151
      %p153 = scmp.ne.s32.totalorder %s141, %s142
      %p154 = scmp.eq.s32.totalorder %s17, 1
      %p155 = por %p153, %p154
      %p157 = scmp.ne.s32.totalorder %s142, %s156
      %p158 = scmp.eq.s32.totalorder %s17, 0
      %p159 = por %p157, %p158
      %p160 = scmp.le.s32.totalorder 1, %s11
      %p161 = scmp.lt.s32.totalorder %s11, 3
      %p162 = pnand %p160, %p161
      %p163 = pneg %p162
      // Predicated region
      $region9: #{olmo2_forward.9} parent=5 // pred_check
        _
      $region10: #{olmo2_forward.9} parent=5 // pred_check_branch
        %165 = sbr.rel (%p162) target = $region12
      $region11: #{olmo2_forward.9} parent=5 // pred_region
        %s166 = ssub.s32 %s11, 1
        // Predicated region
        $region13: #{olmo2_forward.9} parent=11 // pred_check
          %p167 = pneg %p32
        $region14: #{olmo2_forward.9} parent=11 // pred_check_branch
          %169 = sbr.rel (%p167) target = $region16
        $region15: #{olmo2_forward.9} parent=11 // pred_region
          _
        $region16: #{olmo2_forward.9} parent=11 // pred_fallthru
          _
        // Predicated region
        $region17: #{olmo2_forward.9} parent=11 // pred_check
          %p170 = pneg %p131
        $region18: #{olmo2_forward.9} parent=11 // pred_check_branch
          %172 = sbr.rel (%p170) target = $region20
        $region19: #{olmo2_forward.9} parent=11 // pred_region
          _
        $region20: #{olmo2_forward.9} parent=11 // pred_fallthru
          _
      $region12: #{olmo2_forward.9} parent=5 // pred_fallthru
        _
      %p173 = scmp.lt.s32.totalorder %s11, 2
      // Predicated region
      $region21: #{olmo2_forward.9} parent=5 // pred_check
        %p174 = pneg %p173
      $region22: #{olmo2_forward.9} parent=5 // pred_check_branch
        %176 = sbr.rel (%p174) target = $region24
      $region23: #{olmo2_forward.9} parent=5 // pred_region
        // Predicated region
        $region25: #{olmo2_forward.9} parent=23 // pred_check
          %p177 = pneg %p52
        $region26: #{olmo2_forward.9} parent=23 // pred_check_branch
          %179 = sbr.rel (%p177) target = $region28
        $region27: #{olmo2_forward.9} parent=23 // pred_region
          %s180 = sand.u32 %s42, 1
          %s181 = sand.u32 %s42, 1
          %s182 = smul.addr %s181, 256
          %s183 = scalar_lea.vmem [#allocation3], %s182
          %s184 = smul.u32 2, %s11
          %s185 = smul.addr %s184, 4
          %s186 = scalar_lea.vmem %s1, %s185
          // Predicated region
          $region29: #{olmo2_forward.9} parent=27 // pred_check
            _
          $region30: #{olmo2_forward.9} parent=27 // pred_check_branch
            %188 = sbr.rel (0) target = $region32
          $region31: #{olmo2_forward.9} parent=27 // pred_region
            // Predicated region
            $region33: #{olmo2_forward.9} parent=31 // pred_check
              _
            $region34: #{olmo2_forward.9} parent=31 // pred_check_branch
              %190 = sbr.rel (0) target = $region36
            $region35: #{olmo2_forward.9} parent=31 // pred_region
              // Predicated region
              $region48: #{olmo2_forward.9} parent=35 // pred_check
                _
              $region49: #{olmo2_forward.9} parent=35 // pred_check_branch
                %267 = sbr.rel (0) target = $region51
              $region50: #{olmo2_forward.9} parent=35 // pred_region
                loop: start=0, step=1, limit=1
                $region52: #{olmo2_forward.9} parent=50 // loop_pre_header
                  _
                $region53: #{olmo2_forward.9} parent=50 // loop_header
                  %s269 = sphi 0, %s273
                  %p270 = scmp.ge.s32.totalorder %s269, 1
                  %s274 = sphi %s186, %s186
                  %s275 = sphi %s183, %s183
                $region54: #{olmo2_forward.9} parent=50 // loop_header_branch
                  %272 = sbr.rel (%p270) target = $region58
                $region55: #{olmo2_forward.9} parent=50 // loop_body
                  %v276 = vld [vmem:[%s274] sm:$0xff]
                  %277 = vst [vmem:[%s275] sm:$0xff] %v276
                  %v278 = vld [vmem:[%s274 + $0x10] sm:$0xff]
                  %279 = vst [vmem:[%s275 + $0x8] sm:$0xff] %v278
                  %v280 = vld [vmem:[%s274 + $0x20] sm:$0xff]
                  %281 = vst [vmem:[%s275 + $0x10] sm:$0xff] %v280
                  %v282 = vld [vmem:[%s274 + $0x30] sm:$0xff]
                  %283 = vst [vmem:[%s275 + $0x18] sm:$0xff] %v282
                  %v284 = vld [vmem:[%s274 + $0x40] sm:$0xff]
                  %285 = vst [vmem:[%s275 + $0x20] sm:$0xff] %v284
                  %v286 = vld [vmem:[%s274 + $0x50] sm:$0xff]
                  %287 = vst [vmem:[%s275 + $0x28] sm:$0xff] %v286
                  %v288 = vld [vmem:[%s274 + $0x60] sm:$0xff]
                  %289 = vst [vmem:[%s275 + $0x30] sm:$0xff] %v288
                  %v290 = vld [vmem:[%s274 + $0x70] sm:$0xff]
                  %291 = vst [vmem:[%s275 + $0x38] sm:$0xff] %v290
                  %v292 = vld [vmem:[%s274 + $0x80] sm:$0xff]
                  %293 = vst [vmem:[%s275 + $0x40] sm:$0xff] %v292
                  %v294 = vld [vmem:[%s274 + $0x90] sm:$0xff]
                  %295 = vst [vmem:[%s275 + $0x48] sm:$0xff] %v294
                  %v296 = vld [vmem:[%s274 + $0xa0] sm:$0xff]
                  %297 = vst [vmem:[%s275 + $0x50] sm:$0xff] %v296
                  %v298 = vld [vmem:[%s274 + $0xb0] sm:$0xff]
                  %299 = vst [vmem:[%s275 + $0x58] sm:$0xff] %v298
                  %v300 = vld [vmem:[%s274 + $0xc0] sm:$0xff]
                  %301 = vst [vmem:[%s275 + $0x60] sm:$0xff] %v300
                  %v302 = vld [vmem:[%s274 + $0xd0] sm:$0xff]
                  %303 = vst [vmem:[%s275 + $0x68] sm:$0xff] %v302
                  %v304 = vld [vmem:[%s274 + $0xe0] sm:$0xff]
                  %305 = vst [vmem:[%s275 + $0x70] sm:$0xff] %v304
                  %v306 = vld [vmem:[%s274 + $0xf0] sm:$0xff]
                  %307 = vst [vmem:[%s275 + $0x78] sm:$0xff] %v306
                  %v308 = vld [vmem:[%s274 + $0x100] sm:$0xff]
                  %309 = vst [vmem:[%s275 + $0x80] sm:$0xff] %v308
                  %v310 = vld [vmem:[%s274 + $0x110] sm:$0xff]
                  %311 = vst [vmem:[%s275 + $0x88] sm:$0xff] %v310
                  %v312 = vld [vmem:[%s274 + $0x120] sm:$0xff]
                  %313 = vst [vmem:[%s275 + $0x90] sm:$0xff] %v312
                  %v314 = vld [vmem:[%s274 + $0x130] sm:$0xff]
                  %315 = vst [vmem:[%s275 + $0x98] sm:$0xff] %v314
                  %v316 = vld [vmem:[%s274 + $0x140] sm:$0xff]
                  %317 = vst [vmem:[%s275 + $0xa0] sm:$0xff] %v316
                  %v318 = vld [vmem:[%s274 + $0x150] sm:$0xff]
                  %319 = vst [vmem:[%s275 + $0xa8] sm:$0xff] %v318
                  %v320 = vld [vmem:[%s274 + $0x160] sm:$0xff]
                  %321 = vst [vmem:[%s275 + $0xb0] sm:$0xff] %v320
                  %v322 = vld [vmem:[%s274 + $0x170] sm:$0xff]
                  %323 = vst [vmem:[%s275 + $0xb8] sm:$0xff] %v322
                  %v324 = vld [vmem:[%s274 + $0x180] sm:$0xff]
                  %325 = vst [vmem:[%s275 + $0xc0] sm:$0xff] %v324
                  %v326 = vld [vmem:[%s274 + $0x190] sm:$0xff]
                  %327 = vst [vmem:[%s275 + $0xc8] sm:$0xff] %v326
                  %v328 = vld [vmem:[%s274 + $0x1a0] sm:$0xff]
                  %329 = vst [vmem:[%s275 + $0xd0] sm:$0xff] %v328
                  %v330 = vld [vmem:[%s274 + $0x1b0] sm:$0xff]
                  %331 = vst [vmem:[%s275 + $0xd8] sm:$0xff] %v330
                  %v332 = vld [vmem:[%s274 + $0x1c0] sm:$0xff]
                  %333 = vst [vmem:[%s275 + $0xe0] sm:$0xff] %v332
                  %v334 = vld [vmem:[%s274 + $0x1d0] sm:$0xff]
                  %335 = vst [vmem:[%s275 + $0xe8] sm:$0xff] %v334
                  %v336 = vld [vmem:[%s274 + $0x1e0] sm:$0xff]
                  %337 = vst [vmem:[%s275 + $0xf0] sm:$0xff] %v336
                  %v338 = vld [vmem:[%s274 + $0x1f0] sm:$0xff]
                  %339 = vst [vmem:[%s275 + $0xf8] sm:$0xff] %v338
                $region56: #{olmo2_forward.9} parent=50 // loop_footer
                  %s273 = sadd.s32 1, %s269
                $region57: #{olmo2_forward.9} parent=50 // loop_footer_branch
                  %268 = sbr.rel target = $region53
                $region58: #{olmo2_forward.9} parent=50 // loop_exit
                  _
              $region51: #{olmo2_forward.9} parent=35 // pred_fallthru
                _
              // Predicated region
              $region59: #{olmo2_forward.9} parent=35 // pred_check
                _
              $region60: #{olmo2_forward.9} parent=35 // pred_check_branch
                %341 = sbr.rel target = $region62
              $region61: #{olmo2_forward.9} parent=35 // pred_region
                _
              $region62: #{olmo2_forward.9} parent=35 // pred_fallthru
                _
            $region36: #{olmo2_forward.9} parent=31 // pred_fallthru
              _
            // Predicated region
            $region37: #{olmo2_forward.9} parent=31 // pred_check
              _
            $region38: #{olmo2_forward.9} parent=31 // pred_check_branch
              %192 = sbr.rel target = $region40
            $region39: #{olmo2_forward.9} parent=31 // pred_region
              loop: start=0, step=1, limit=1
              $region41: #{olmo2_forward.9} parent=39 // loop_pre_header
                _
              $region42: #{olmo2_forward.9} parent=39 // loop_header
                %s195 = sphi 0, %s199
                %p196 = scmp.ge.s32.totalorder %s195, 1
                %s200 = sphi %s186, %s186
                %s201 = sphi %s183, %s183
              $region43: #{olmo2_forward.9} parent=39 // loop_header_branch
                %198 = sbr.rel (%p196) target = $region47
              $region44: #{olmo2_forward.9} parent=39 // loop_body
                %v202 = vld [vmem:[%s200] sm:$0xff]
                %203 = vst [vmem:[%s201] sm:$0xff] %v202
                %v204 = vld [vmem:[%s200 + $0x10] sm:$0xff]
                %205 = vst [vmem:[%s201 + $0x8] sm:$0xff] %v204
                %v206 = vld [vmem:[%s200 + $0x20] sm:$0xff]
                %207 = vst [vmem:[%s201 + $0x10] sm:$0xff] %v206
                %v208 = vld [vmem:[%s200 + $0x30] sm:$0xff]
                %209 = vst [vmem:[%s201 + $0x18] sm:$0xff] %v208
                %v210 = vld [vmem:[%s200 + $0x40] sm:$0xff]
                %211 = vst [vmem:[%s201 + $0x20] sm:$0xff] %v210
                %v212 = vld [vmem:[%s200 + $0x50] sm:$0xff]
                %213 = vst [vmem:[%s201 + $0x28] sm:$0xff] %v212
                %v214 = vld [vmem:[%s200 + $0x60] sm:$0xff]
                %215 = vst [vmem:[%s201 + $0x30] sm:$0xff] %v214
                %v216 = vld [vmem:[%s200 + $0x70] sm:$0xff]
                %217 = vst [vmem:[%s201 + $0x38] sm:$0xff] %v216
                %v218 = vld [vmem:[%s200 + $0x80] sm:$0xff]
                %219 = vst [vmem:[%s201 + $0x40] sm:$0xff] %v218
                %v220 = vld [vmem:[%s200 + $0x90] sm:$0xff]
                %221 = vst [vmem:[%s201 + $0x48] sm:$0xff] %v220
                %v222 = vld [vmem:[%s200 + $0xa0] sm:$0xff]
                %223 = vst [vmem:[%s201 + $0x50] sm:$0xff] %v222
                %v224 = vld [vmem:[%s200 + $0xb0] sm:$0xff]
                %225 = vst [vmem:[%s201 + $0x58] sm:$0xff] %v224
                %v226 = vld [vmem:[%s200 + $0xc0] sm:$0xff]
                %227 = vst [vmem:[%s201 + $0x60] sm:$0xff] %v226
                %v228 = vld [vmem:[%s200 + $0xd0] sm:$0xff]
                %229 = vst [vmem:[%s201 + $0x68] sm:$0xff] %v228
                %v230 = vld [vmem:[%s200 + $0xe0] sm:$0xff]
                %231 = vst [vmem:[%s201 + $0x70] sm:$0xff] %v230
                %v232 = vld [vmem:[%s200 + $0xf0] sm:$0xff]
                %233 = vst [vmem:[%s201 + $0x78] sm:$0xff] %v232
                %v234 = vld [vmem:[%s200 + $0x100] sm:$0xff]
                %235 = vst [vmem:[%s201 + $0x80] sm:$0xff] %v234
                %v236 = vld [vmem:[%s200 + $0x110] sm:$0xff]
                %237 = vst [vmem:[%s201 + $0x88] sm:$0xff] %v236
                %v238 = vld [vmem:[%s200 + $0x120] sm:$0xff]
                %239 = vst [vmem:[%s201 + $0x90] sm:$0xff] %v238
                %v240 = vld [vmem:[%s200 + $0x130] sm:$0xff]
                %241 = vst [vmem:[%s201 + $0x98] sm:$0xff] %v240
                %v242 = vld [vmem:[%s200 + $0x140] sm:$0xff]
                %243 = vst [vmem:[%s201 + $0xa0] sm:$0xff] %v242
                %v244 = vld [vmem:[%s200 + $0x150] sm:$0xff]
                %245 = vst [vmem:[%s201 + $0xa8] sm:$0xff] %v244
                %v246 = vld [vmem:[%s200 + $0x160] sm:$0xff]
                %247 = vst [vmem:[%s201 + $0xb0] sm:$0xff] %v246
                %v248 = vld [vmem:[%s200 + $0x170] sm:$0xff]
                %249 = vst [vmem:[%s201 + $0xb8] sm:$0xff] %v248
                %v250 = vld [vmem:[%s200 + $0x180] sm:$0xff]
                %251 = vst [vmem:[%s201 + $0xc0] sm:$0xff] %v250
                %v252 = vld [vmem:[%s200 + $0x190] sm:$0xff]
                %253 = vst [vmem:[%s201 + $0xc8] sm:$0xff] %v252
                %v254 = vld [vmem:[%s200 + $0x1a0] sm:$0xff]
                %255 = vst [vmem:[%s201 + $0xd0] sm:$0xff] %v254
                %v256 = vld [vmem:[%s200 + $0x1b0] sm:$0xff]
                %257 = vst [vmem:[%s201 + $0xd8] sm:$0xff] %v256
                %v258 = vld [vmem:[%s200 + $0x1c0] sm:$0xff]
                %259 = vst [vmem:[%s201 + $0xe0] sm:$0xff] %v258
                %v260 = vld [vmem:[%s200 + $0x1d0] sm:$0xff]
                %261 = vst [vmem:[%s201 + $0xe8] sm:$0xff] %v260
                %v262 = vld [vmem:[%s200 + $0x1e0] sm:$0xff]
                %263 = vst [vmem:[%s201 + $0xf0] sm:$0xff] %v262
                %v264 = vld [vmem:[%s200 + $0x1f0] sm:$0xff]
                %265 = vst [vmem:[%s201 + $0xf8] sm:$0xff] %v264
              $region45: #{olmo2_forward.9} parent=39 // loop_footer
                %s199 = sadd.s32 1, %s195
              $region46: #{olmo2_forward.9} parent=39 // loop_footer_branch
                %194 = sbr.rel target = $region42
              $region47: #{olmo2_forward.9} parent=39 // loop_exit
                _
            $region40: #{olmo2_forward.9} parent=31 // pred_fallthru
              _
          $region32: #{olmo2_forward.9} parent=27 // pred_fallthru
            _
          %342 = vnop
        $region28: #{olmo2_forward.9} parent=23 // pred_fallthru
          _
        // Predicated region
        $region63: #{olmo2_forward.9} parent=23 // pred_check
          %p343 = pneg %p78
        $region64: #{olmo2_forward.9} parent=23 // pred_check_branch
          %345 = sbr.rel (%p343) target = $region66
        $region65: #{olmo2_forward.9} parent=23 // pred_region
          %s346 = sand.u32 %s68, 1
          %s347 = sand.u32 %s68, 1
          %s348 = smul.addr %s347, 256
          %s349 = scalar_lea.vmem [#allocation4], %s348
          %s350 = smul.u32 2, %s11
          %s351 = smul.addr %s350, 4
          %s352 = scalar_lea.vmem %s2, %s351
          // Predicated region
          $region67: #{olmo2_forward.9} parent=65 // pred_check
            _
          $region68: #{olmo2_forward.9} parent=65 // pred_check_branch
            %354 = sbr.rel (0) target = $region70
          $region69: #{olmo2_forward.9} parent=65 // pred_region
            // Predicated region
            $region71: #{olmo2_forward.9} parent=69 // pred_check
              _
            $region72: #{olmo2_forward.9} parent=69 // pred_check_branch
              %356 = sbr.rel (0) target = $region74
            $region73: #{olmo2_forward.9} parent=69 // pred_region
              // Predicated region
              $region86: #{olmo2_forward.9} parent=73 // pred_check
                _
              $region87: #{olmo2_forward.9} parent=73 // pred_check_branch
                %433 = sbr.rel (0) target = $region89
              $region88: #{olmo2_forward.9} parent=73 // pred_region
                loop: start=0, step=1, limit=1
                $region90: #{olmo2_forward.9} parent=88 // loop_pre_header
                  _
                $region91: #{olmo2_forward.9} parent=88 // loop_header
                  %s435 = sphi 0, %s439
                  %p436 = scmp.ge.s32.totalorder %s435, 1
                  %s440 = sphi %s352, %s352
                  %s441 = sphi %s349, %s349
                $region92: #{olmo2_forward.9} parent=88 // loop_header_branch
                  %438 = sbr.rel (%p436) target = $region96
                $region93: #{olmo2_forward.9} parent=88 // loop_body
                  %v442 = vld [vmem:[%s440] sm:$0xff]
                  %443 = vst [vmem:[%s441] sm:$0xff] %v442
                  %v444 = vld [vmem:[%s440 + $0x10] sm:$0xff]
                  %445 = vst [vmem:[%s441 + $0x8] sm:$0xff] %v444
                  %v446 = vld [vmem:[%s440 + $0x20] sm:$0xff]
                  %447 = vst [vmem:[%s441 + $0x10] sm:$0xff] %v446
                  %v448 = vld [vmem:[%s440 + $0x30] sm:$0xff]
                  %449 = vst [vmem:[%s441 + $0x18] sm:$0xff] %v448
                  %v450 = vld [vmem:[%s440 + $0x40] sm:$0xff]
                  %451 = vst [vmem:[%s441 + $0x20] sm:$0xff] %v450
                  %v452 = vld [vmem:[%s440 + $0x50] sm:$0xff]
                  %453 = vst [vmem:[%s441 + $0x28] sm:$0xff] %v452
                  %v454 = vld [vmem:[%s440 + $0x60] sm:$0xff]
                  %455 = vst [vmem:[%s441 + $0x30] sm:$0xff] %v454
                  %v456 = vld [vmem:[%s440 + $0x70] sm:$0xff]
                  %457 = vst [vmem:[%s441 + $0x38] sm:$0xff] %v456
                  %v458 = vld [vmem:[%s440 + $0x80] sm:$0xff]
                  %459 = vst [vmem:[%s441 + $0x40] sm:$0xff] %v458
                  %v460 = vld [vmem:[%s440 + $0x90] sm:$0xff]
                  %461 = vst [vmem:[%s441 + $0x48] sm:$0xff] %v460
                  %v462 = vld [vmem:[%s440 + $0xa0] sm:$0xff]
                  %463 = vst [vmem:[%s441 + $0x50] sm:$0xff] %v462
                  %v464 = vld [vmem:[%s440 + $0xb0] sm:$0xff]
                  %465 = vst [vmem:[%s441 + $0x58] sm:$0xff] %v464
                  %v466 = vld [vmem:[%s440 + $0xc0] sm:$0xff]
                  %467 = vst [vmem:[%s441 + $0x60] sm:$0xff] %v466
                  %v468 = vld [vmem:[%s440 + $0xd0] sm:$0xff]
                  %469 = vst [vmem:[%s441 + $0x68] sm:$0xff] %v468
                  %v470 = vld [vmem:[%s440 + $0xe0] sm:$0xff]
                  %471 = vst [vmem:[%s441 + $0x70] sm:$0xff] %v470
                  %v472 = vld [vmem:[%s440 + $0xf0] sm:$0xff]
                  %473 = vst [vmem:[%s441 + $0x78] sm:$0xff] %v472
                  %v474 = vld [vmem:[%s440 + $0x100] sm:$0xff]
                  %475 = vst [vmem:[%s441 + $0x80] sm:$0xff] %v474
                  %v476 = vld [vmem:[%s440 + $0x110] sm:$0xff]
                  %477 = vst [vmem:[%s441 + $0x88] sm:$0xff] %v476
                  %v478 = vld [vmem:[%s440 + $0x120] sm:$0xff]
                  %479 = vst [vmem:[%s441 + $0x90] sm:$0xff] %v478
                  %v480 = vld [vmem:[%s440 + $0x130] sm:$0xff]
                  %481 = vst [vmem:[%s441 + $0x98] sm:$0xff] %v480
                  %v482 = vld [vmem:[%s440 + $0x140] sm:$0xff]
                  %483 = vst [vmem:[%s441 + $0xa0] sm:$0xff] %v482
                  %v484 = vld [vmem:[%s440 + $0x150] sm:$0xff]
                  %485 = vst [vmem:[%s441 + $0xa8] sm:$0xff] %v484
                  %v486 = vld [vmem:[%s440 + $0x160] sm:$0xff]
                  %487 = vst [vmem:[%s441 + $0xb0] sm:$0xff] %v486
                  %v488 = vld [vmem:[%s440 + $0x170] sm:$0xff]
                  %489 = vst [vmem:[%s441 + $0xb8] sm:$0xff] %v488
                  %v490 = vld [vmem:[%s440 + $0x180] sm:$0xff]
                  %491 = vst [vmem:[%s441 + $0xc0] sm:$0xff] %v490
                  %v492 = vld [vmem:[%s440 + $0x190] sm:$0xff]
                  %493 = vst [vmem:[%s441 + $0xc8] sm:$0xff] %v492
                  %v494 = vld [vmem:[%s440 + $0x1a0] sm:$0xff]
                  %495 = vst [vmem:[%s441 + $0xd0] sm:$0xff] %v494
                  %v496 = vld [vmem:[%s440 + $0x1b0] sm:$0xff]
                  %497 = vst [vmem:[%s441 + $0xd8] sm:$0xff] %v496
                  %v498 = vld [vmem:[%s440 + $0x1c0] sm:$0xff]
                  %499 = vst [vmem:[%s441 + $0xe0] sm:$0xff] %v498
                  %v500 = vld [vmem:[%s440 + $0x1d0] sm:$0xff]
                  %501 = vst [vmem:[%s441 + $0xe8] sm:$0xff] %v500
                  %v502 = vld [vmem:[%s440 + $0x1e0] sm:$0xff]
                  %503 = vst [vmem:[%s441 + $0xf0] sm:$0xff] %v502
                  %v504 = vld [vmem:[%s440 + $0x1f0] sm:$0xff]
                  %505 = vst [vmem:[%s441 + $0xf8] sm:$0xff] %v504
                $region94: #{olmo2_forward.9} parent=88 // loop_footer
                  %s439 = sadd.s32 1, %s435
                $region95: #{olmo2_forward.9} parent=88 // loop_footer_branch
                  %434 = sbr.rel target = $region91
                $region96: #{olmo2_forward.9} parent=88 // loop_exit
                  _
              $region89: #{olmo2_forward.9} parent=73 // pred_fallthru
                _
              // Predicated region
              $region97: #{olmo2_forward.9} parent=73 // pred_check
                _
              $region98: #{olmo2_forward.9} parent=73 // pred_check_branch
                %507 = sbr.rel target = $region100
              $region99: #{olmo2_forward.9} parent=73 // pred_region
                _
              $region100: #{olmo2_forward.9} parent=73 // pred_fallthru
                _
            $region74: #{olmo2_forward.9} parent=69 // pred_fallthru
              _
            // Predicated region
            $region75: #{olmo2_forward.9} parent=69 // pred_check
              _
            $region76: #{olmo2_forward.9} parent=69 // pred_check_branch
              %358 = sbr.rel target = $region78
            $region77: #{olmo2_forward.9} parent=69 // pred_region
              loop: start=0, step=1, limit=1
              $region79: #{olmo2_forward.9} parent=77 // loop_pre_header
                _
              $region80: #{olmo2_forward.9} parent=77 // loop_header
                %s361 = sphi 0, %s365
                %p362 = scmp.ge.s32.totalorder %s361, 1
                %s366 = sphi %s352, %s352
                %s367 = sphi %s349, %s349
              $region81: #{olmo2_forward.9} parent=77 // loop_header_branch
                %364 = sbr.rel (%p362) target = $region85
              $region82: #{olmo2_forward.9} parent=77 // loop_body
                %v368 = vld [vmem:[%s366] sm:$0xff]
                %369 = vst [vmem:[%s367] sm:$0xff] %v368
                %v370 = vld [vmem:[%s366 + $0x10] sm:$0xff]
                %371 = vst [vmem:[%s367 + $0x8] sm:$0xff] %v370
                %v372 = vld [vmem:[%s366 + $0x20] sm:$0xff]
                %373 = vst [vmem:[%s367 + $0x10] sm:$0xff] %v372
                %v374 = vld [vmem:[%s366 + $0x30] sm:$0xff]
                %375 = vst [vmem:[%s367 + $0x18] sm:$0xff] %v374
                %v376 = vld [vmem:[%s366 + $0x40] sm:$0xff]
                %377 = vst [vmem:[%s367 + $0x20] sm:$0xff] %v376
                %v378 = vld [vmem:[%s366 + $0x50] sm:$0xff]
                %379 = vst [vmem:[%s367 + $0x28] sm:$0xff] %v378
                %v380 = vld [vmem:[%s366 + $0x60] sm:$0xff]
                %381 = vst [vmem:[%s367 + $0x30] sm:$0xff] %v380
                %v382 = vld [vmem:[%s366 + $0x70] sm:$0xff]
                %383 = vst [vmem:[%s367 + $0x38] sm:$0xff] %v382
                %v384 = vld [vmem:[%s366 + $0x80] sm:$0xff]
                %385 = vst [vmem:[%s367 + $0x40] sm:$0xff] %v384
                %v386 = vld [vmem:[%s366 + $0x90] sm:$0xff]
                %387 = vst [vmem:[%s367 + $0x48] sm:$0xff] %v386
                %v388 = vld [vmem:[%s366 + $0xa0] sm:$0xff]
                %389 = vst [vmem:[%s367 + $0x50] sm:$0xff] %v388
                %v390 = vld [vmem:[%s366 + $0xb0] sm:$0xff]
                %391 = vst [vmem:[%s367 + $0x58] sm:$0xff] %v390
                %v392 = vld [vmem:[%s366 + $0xc0] sm:$0xff]
                %393 = vst [vmem:[%s367 + $0x60] sm:$0xff] %v392
                %v394 = vld [vmem:[%s366 + $0xd0] sm:$0xff]
                %395 = vst [vmem:[%s367 + $0x68] sm:$0xff] %v394
                %v396 = vld [vmem:[%s366 + $0xe0] sm:$0xff]
                %397 = vst [vmem:[%s367 + $0x70] sm:$0xff] %v396
                %v398 = vld [vmem:[%s366 + $0xf0] sm:$0xff]
                %399 = vst [vmem:[%s367 + $0x78] sm:$0xff] %v398
                %v400 = vld [vmem:[%s366 + $0x100] sm:$0xff]
                %401 = vst [vmem:[%s367 + $0x80] sm:$0xff] %v400
                %v402 = vld [vmem:[%s366 + $0x110] sm:$0xff]
                %403 = vst [vmem:[%s367 + $0x88] sm:$0xff] %v402
                %v404 = vld [vmem:[%s366 + $0x120] sm:$0xff]
                %405 = vst [vmem:[%s367 + $0x90] sm:$0xff] %v404
                %v406 = vld [vmem:[%s366 + $0x130] sm:$0xff]
                %407 = vst [vmem:[%s367 + $0x98] sm:$0xff] %v406
                %v408 = vld [vmem:[%s366 + $0x140] sm:$0xff]
                %409 = vst [vmem:[%s367 + $0xa0] sm:$0xff] %v408
                %v410 = vld [vmem:[%s366 + $0x150] sm:$0xff]
                %411 = vst [vmem:[%s367 + $0xa8] sm:$0xff] %v410
                %v412 = vld [vmem:[%s366 + $0x160] sm:$0xff]
                %413 = vst [vmem:[%s367 + $0xb0] sm:$0xff] %v412
                %v414 = vld [vmem:[%s366 + $0x170] sm:$0xff]
                %415 = vst [vmem:[%s367 + $0xb8] sm:$0xff] %v414
                %v416 = vld [vmem:[%s366 + $0x180] sm:$0xff]
                %417 = vst [vmem:[%s367 + $0xc0] sm:$0xff] %v416
                %v418 = vld [vmem:[%s366 + $0x190] sm:$0xff]
                %419 = vst [vmem:[%s367 + $0xc8] sm:$0xff] %v418
                %v420 = vld [vmem:[%s366 + $0x1a0] sm:$0xff]
                %421 = vst [vmem:[%s367 + $0xd0] sm:$0xff] %v420
                %v422 = vld [vmem:[%s366 + $0x1b0] sm:$0xff]
                %423 = vst [vmem:[%s367 + $0xd8] sm:$0xff] %v422
                %v424 = vld [vmem:[%s366 + $0x1c0] sm:$0xff]
                %425 = vst [vmem:[%s367 + $0xe0] sm:$0xff] %v424
                %v426 = vld [vmem:[%s366 + $0x1d0] sm:$0xff]
                %427 = vst [vmem:[%s367 + $0xe8] sm:$0xff] %v426
                %v428 = vld [vmem:[%s366 + $0x1e0] sm:$0xff]
                %429 = vst [vmem:[%s367 + $0xf0] sm:$0xff] %v428
                %v430 = vld [vmem:[%s366 + $0x1f0] sm:$0xff]
                %431 = vst [vmem:[%s367 + $0xf8] sm:$0xff] %v430
              $region83: #{olmo2_forward.9} parent=77 // loop_footer
                %s365 = sadd.s32 1, %s361
              $region84: #{olmo2_forward.9} parent=77 // loop_footer_branch
                %360 = sbr.rel target = $region80
              $region85: #{olmo2_forward.9} parent=77 // loop_exit
                _
            $region78: #{olmo2_forward.9} parent=69 // pred_fallthru
              _
          $region70: #{olmo2_forward.9} parent=65 // pred_fallthru
            _
          %508 = vnop
        $region66: #{olmo2_forward.9} parent=23 // pred_fallthru
          _
        // Predicated region
        $region101: #{olmo2_forward.9} parent=23 // pred_check
          %p509 = pneg %p104
        $region102: #{olmo2_forward.9} parent=23 // pred_check_branch
          %511 = sbr.rel (%p509) target = $region104
        $region103: #{olmo2_forward.9} parent=23 // pred_region
          %s512 = smul.u32 32, %s11
          %p513 = scmp.lt.s32.totalorder %s512, 63
          %s514 = scalar_select %p513, %s512, 63
          %s515 = smul.addr %s514, 2
          %s516 = smul.addr %s515, 4
          %s517 = scalar_lea.vmem %s3, %s516
          %s518 = smul.u32 32, %s11
        $region104: #{olmo2_forward.9} parent=23 // pred_fallthru
          _
      $region24: #{olmo2_forward.9} parent=5 // pred_fallthru
        _
      %p519 = scmp.le.s32.totalorder 1, %s11
      %p520 = scmp.lt.s32.totalorder %s11, 3
      %p521 = pnand %p519, %p520
      %p522 = pneg %p521
      // Predicated region
      $region105: #{olmo2_forward.9} parent=5 // pred_check
        _
      $region106: #{olmo2_forward.9} parent=5 // pred_check_branch
        %524 = sbr.rel (%p521) target = $region108
      $region107: #{olmo2_forward.9} parent=5 // pred_region
        %s525 = ssub.s32 %s11, 1
        %s526 = sand.u32 %s45, 1
        %s527 = sand.u32 %s45, 1
        %s528 = smul.addr %s527, 256
        %s529 = scalar_lea.vmem [#allocation3], %s528
        // Predicated region
        $region109: #{olmo2_forward.9} parent=107 // pred_check
          %p530 = pneg %p58
        $region110: #{olmo2_forward.9} parent=107 // pred_check_branch
          %532 = sbr.rel (%p530) target = $region112
        $region111: #{olmo2_forward.9} parent=107 // pred_region
          _
        $region112: #{olmo2_forward.9} parent=107 // pred_fallthru
          _
        %s533 = sand.u32 %s71, 1
        %s534 = sand.u32 %s71, 1
        %s535 = smul.addr %s534, 256
        %s536 = scalar_lea.vmem [#allocation4], %s535
        // Predicated region
        $region113: #{olmo2_forward.9} parent=107 // pred_check
          %p537 = pneg %p84
        $region114: #{olmo2_forward.9} parent=107 // pred_check_branch
          %539 = sbr.rel (%p537) target = $region116
        $region115: #{olmo2_forward.9} parent=107 // pred_region
          _
        $region116: #{olmo2_forward.9} parent=107 // pred_fallthru
          _
        %p540 = pneg %p32
        %p541 = pneg %p29
        %s542 = sand.u32 %s45, 1
        %s543 = sand.u32 %s45, 1
        %s544 = smul.addr %s543, 256
        %s545 = scalar_lea.vmem [#allocation3], %s544
        %p546 = pneg %p58
        %p547 = pneg %p55
        %s548 = sand.u32 %s71, 1
        %s549 = sand.u32 %s71, 1
        %s550 = smul.addr %s549, 256
        %s551 = scalar_lea.vmem [#allocation4], %s550
        %p552 = pneg %p84
        %p553 = pneg %p81
        %s554 = smul.u32 32, %s16
        %p555 = scmp.lt.s32.totalorder %s554, 63
        %s556 = scalar_select %p555, %s554, 63
        %s557 = smul.addr %s556, 2
        %s558 = smul.addr %s557, 4
        %s559 = scalar_lea.vmem %s3, %s558
        %p560 = pneg %p110
        %p561 = pneg %p107
        %p562 = pneg %p131
        %p563 = pneg %p128
        %p564 = pneg %p152
        %p565 = pneg %p149
        %s566 = smul.u32 2, %s16
        %s567 = smul.u32 2, %s16
        %s568 = smul.u32 32, %s16
        %p569 = scmp.lt.s32.totalorder %s568, 63
        %s570 = scalar_select %p569, %s568, 63
        %s571 = smul.addr %s570, 2
        %s572 = smul.addr %s571, 4
        %s573 = scalar_lea.vmem %s3, %s572
        %s574 = smul.u32 32, %s16
        %p575 = scmp.eq.s32.totalorder %s16, 0
        // Predicated region
        $region117: #{olmo2_forward.9} parent=107 // pred_check
          %p576 = pneg %p575
        $region118: #{olmo2_forward.9} parent=107 // pred_check_branch
          %578 = sbr.rel (%p576) target = $region120
        $region119: #{olmo2_forward.9} parent=107 // pred_region
          %579 = vst [vmem:[#allocation2] sm:$0xff] 0.0
          %580 = vst [vmem:[#allocation2 + $0x8] sm:$0xff] 0.0
          %581 = vst [vmem:[#allocation2 + $0x10] sm:$0xff] 0.0
          %582 = vst [vmem:[#allocation2 + $0x18] sm:$0xff] 0.0
        $region120: #{olmo2_forward.9} parent=107 // pred_fallthru
          _
        %v583 = vld [vmem:[%s0] sm:$0xff]
        %v584 = vld [vmem:[%s0 + $0x8] sm:$0xff]
        %v585 = vld [vmem:[%s529] sm:$0xff]
        %v586 = vld [vmem:[%s529 + $0x8] sm:$0xff]
        %v587 = vld [vmem:[%s529 + $0x10] sm:$0xff]
        %v588 = vld [vmem:[%s529 + $0x18] sm:$0xff]
        %v589 = vld [vmem:[%s529 + $0x20] sm:$0xff]
        %v590 = vld [vmem:[%s529 + $0x28] sm:$0xff]
        %v591 = vld [vmem:[%s529 + $0x30] sm:$0xff]
        %v592 = vld [vmem:[%s529 + $0x38] sm:$0xff]
        %v593 = vld [vmem:[%s529 + $0x40] sm:$0xff]
        %v594 = vld [vmem:[%s529 + $0x48] sm:$0xff]
        %v595 = vld [vmem:[%s529 + $0x50] sm:$0xff]
        %v596 = vld [vmem:[%s529 + $0x58] sm:$0xff]
        %v597 = vld [vmem:[%s529 + $0x60] sm:$0xff]
        %v598 = vld [vmem:[%s529 + $0x68] sm:$0xff]
        %v599 = vld [vmem:[%s529 + $0x70] sm:$0xff]
        %v600 = vld [vmem:[%s529 + $0x78] sm:$0xff]
        %v601 = vld [vmem:[%s529 + $0x80] sm:$0xff]
        %v602 = vld [vmem:[%s529 + $0x88] sm:$0xff]
        %v603 = vld [vmem:[%s529 + $0x90] sm:$0xff]
        %v604 = vld [vmem:[%s529 + $0x98] sm:$0xff]
        %v605 = vld [vmem:[%s529 + $0xa0] sm:$0xff]
        %v606 = vld [vmem:[%s529 + $0xa8] sm:$0xff]
        %v607 = vld [vmem:[%s529 + $0xb0] sm:$0xff]
        %v608 = vld [vmem:[%s529 + $0xb8] sm:$0xff]
        %v609 = vld [vmem:[%s529 + $0xc0] sm:$0xff]
        %v610 = vld [vmem:[%s529 + $0xc8] sm:$0xff]
        %v611 = vld [vmem:[%s529 + $0xd0] sm:$0xff]
        %v612 = vld [vmem:[%s529 + $0xd8] sm:$0xff]
        %v613 = vld [vmem:[%s529 + $0xe0] sm:$0xff]
        %v614 = vld [vmem:[%s529 + $0xe8] sm:$0xff]
        %v615 = vld [vmem:[%s529 + $0xf0] sm:$0xff]
        %v616 = vld [vmem:[%s529 + $0xf8] sm:$0xff]
        %v619 = vunpack.c.l.b16 %v583
        %v620 = vunpack.c.h.b16 %v583
        %v621 = vunpack.c.l.b16 %v584
        %v622 = vunpack.c.h.b16 %v584
        %v623 = vpack.c.b16 %v621, %v619
        %v624 = vpack.c.b16 %v622, %v620
        %v659 = vunpack.c.l.b16 %v585
        %v660 = vunpack.c.h.b16 %v585
        %v661 = vunpack.c.l.b16 %v586
        %v662 = vunpack.c.h.b16 %v586
        %v663 = vunpack.c.l.b16 %v587
        %v664 = vunpack.c.h.b16 %v587
        %v665 = vunpack.c.l.b16 %v588
        %v666 = vunpack.c.h.b16 %v588
        %v667 = vunpack.c.l.b16 %v589
        %v668 = vunpack.c.h.b16 %v589
        %v669 = vunpack.c.l.b16 %v590
        %v670 = vunpack.c.h.b16 %v590
        %v671 = vunpack.c.l.b16 %v591
        %v672 = vunpack.c.h.b16 %v591
        %v673 = vunpack.c.l.b16 %v592
        %v674 = vunpack.c.h.b16 %v592
        %v675 = vunpack.c.l.b16 %v593
        %v676 = vunpack.c.h.b16 %v593
        %v677 = vunpack.c.l.b16 %v594
        %v678 = vunpack.c.h.b16 %v594
        %v679 = vunpack.c.l.b16 %v595
        %v680 = vunpack.c.h.b16 %v595
        %v681 = vunpack.c.l.b16 %v596
        %v682 = vunpack.c.h.b16 %v596
        %v683 = vunpack.c.l.b16 %v597
        %v684 = vunpack.c.h.b16 %v597
        %v685 = vunpack.c.l.b16 %v598
        %v686 = vunpack.c.h.b16 %v598
        %v687 = vunpack.c.l.b16 %v599
        %v688 = vunpack.c.h.b16 %v599
        %v689 = vunpack.c.l.b16 %v600
        %v690 = vunpack.c.h.b16 %v600
        %v691 = vunpack.c.l.b16 %v601
        %v692 = vunpack.c.h.b16 %v601
        %v693 = vunpack.c.l.b16 %v602
        %v694 = vunpack.c.h.b16 %v602
        %v695 = vunpack.c.l.b16 %v603
        %v696 = vunpack.c.h.b16 %v603
        %v697 = vunpack.c.l.b16 %v604
        %v698 = vunpack.c.h.b16 %v604
        %v699 = vunpack.c.l.b16 %v605
        %v700 = vunpack.c.h.b16 %v605
        %v701 = vunpack.c.l.b16 %v606
        %v702 = vunpack.c.h.b16 %v606
        %v703 = vunpack.c.l.b16 %v607
        %v704 = vunpack.c.h.b16 %v607
        %v705 = vunpack.c.l.b16 %v608
        %v706 = vunpack.c.h.b16 %v608
        %v707 = vunpack.c.l.b16 %v609
        %v708 = vunpack.c.h.b16 %v609
        %v709 = vunpack.c.l.b16 %v610
        %v710 = vunpack.c.h.b16 %v610
        %v711 = vunpack.c.l.b16 %v611
        %v712 = vunpack.c.h.b16 %v611
        %v713 = vunpack.c.l.b16 %v612
        %v714 = vunpack.c.h.b16 %v612
        %v715 = vunpack.c.l.b16 %v613
        %v716 = vunpack.c.h.b16 %v613
        %v717 = vunpack.c.l.b16 %v614
        %v718 = vunpack.c.h.b16 %v614
        %v719 = vunpack.c.l.b16 %v615
        %v720 = vunpack.c.h.b16 %v615
        %v721 = vunpack.c.l.b16 %v616
        %v722 = vunpack.c.h.b16 %v616
        %v723 = vpack.c.b16 %v661, %v659
        %v724 = vpack.c.b16 %v662, %v660
        %v725 = vpack.c.b16 %v665, %v663
        %v726 = vpack.c.b16 %v666, %v664
        %v727 = vpack.c.b16 %v669, %v667
        %v728 = vpack.c.b16 %v670, %v668
        %v729 = vpack.c.b16 %v673, %v671
        %v730 = vpack.c.b16 %v674, %v672
        %v731 = vpack.c.b16 %v677, %v675
        %v732 = vpack.c.b16 %v678, %v676
        %v733 = vpack.c.b16 %v681, %v679
        %v734 = vpack.c.b16 %v682, %v680
        %v735 = vpack.c.b16 %v685, %v683
        %v736 = vpack.c.b16 %v686, %v684
        %v737 = vpack.c.b16 %v689, %v687
        %v738 = vpack.c.b16 %v690, %v688
        %v739 = vpack.c.b16 %v693, %v691
        %v740 = vpack.c.b16 %v694, %v692
        %v741 = vpack.c.b16 %v697, %v695
        %v742 = vpack.c.b16 %v698, %v696
        %v743 = vpack.c.b16 %v701, %v699
        %v744 = vpack.c.b16 %v702, %v700
        %v745 = vpack.c.b16 %v705, %v703
        %v746 = vpack.c.b16 %v706, %v704
        %v747 = vpack.c.b16 %v709, %v707
        %v748 = vpack.c.b16 %v710, %v708
        %v749 = vpack.c.b16 %v713, %v711
        %v750 = vpack.c.b16 %v714, %v712
        %v751 = vpack.c.b16 %v717, %v715
        %v752 = vpack.c.b16 %v718, %v716
        %v753 = vpack.c.b16 %v721, %v719
        %v754 = vpack.c.b16 %v722, %v720
        %787 = vmatprep.subr.bf16.mxu0 %v724
        %788 = vmatpush1.bf16.msra.mxu0 %v723
        %789 = vmatprep.subr.bf16.mxu0 %v726
        %790 = vmatpush1.bf16.msra.mxu0 %v725
        %791 = vmatprep.subr.bf16.mxu0 %v728
        %792 = vmatpush1.bf16.msra.mxu0 %v727
        %793 = vmatprep.subr.bf16.mxu0 %v730
        %794 = vmatpush1.bf16.msra.mxu0 %v729
        %795 = vmatprep.subr.bf16.mxu0 %v732
        %796 = vmatpush1.bf16.msra.mxu0 %v731
        %797 = vmatprep.subr.bf16.mxu0 %v734
        %798 = vmatpush1.bf16.msra.mxu0 %v733
        %799 = vmatprep.subr.bf16.mxu0 %v736
        %800 = vmatpush1.bf16.msra.mxu0 %v735
        %801 = vmatprep.subr.bf16.mxu0 %v738
        %802 = vmatpush1.bf16.msra.mxu0 %v737
        %803 = vmatprep.subr.bf16.mxu0 %v740
        %804 = vmatpush1.bf16.msra.mxu0 %v739
        %805 = vmatprep.subr.bf16.mxu0 %v742
        %806 = vmatpush1.bf16.msra.mxu0 %v741
        %807 = vmatprep.subr.bf16.mxu0 %v744
        %808 = vmatpush1.bf16.msra.mxu0 %v743
        %809 = vmatprep.subr.bf16.mxu0 %v746
        %810 = vmatpush1.bf16.msra.mxu0 %v745
        %811 = vmatprep.subr.bf16.mxu0 %v748
        %812 = vmatpush1.bf16.msra.mxu0 %v747
        %813 = vmatprep.subr.bf16.mxu0 %v750
        %814 = vmatpush1.bf16.msra.mxu0 %v749
        %815 = vmatprep.subr.bf16.mxu0 %v752
        %816 = vmatpush1.bf16.msra.mxu0 %v751
        %817 = vmatprep.subr.bf16.mxu0 %v754
        %818 = vmatpush1.bf16.msra.mxu0 %v753
        %819 = vmatprep.mubr.bf16.mxu0 %v624
        %820 = vmatmul.mubr.bf16.gmra.mrb[0].mxu0 %v623
        %v821 = vpop.f32.mrb[0].mxu0
        %v822 = vadd.f32 0.0, %v821
        %v823 = vpop.f32.mrb[0].mxu0
        %v824 = vadd.f32 0.0, %v823
        %v825 = vpop.f32.mrb[0].mxu0
        %v826 = vadd.f32 0.0, %v825
        %v827 = vpop.f32.mrb[0].mxu0
        %v828 = vadd.f32 0.0, %v827
        %829 = vdwg.mxu0
        %v830 = vld [vmem:[%s536] sm:$0xff]
        %v831 = vld [vmem:[%s536 + $0x8] sm:$0xff]
        %v832 = vld [vmem:[%s536 + $0x10] sm:$0xff]
        %v833 = vld [vmem:[%s536 + $0x18] sm:$0xff]
        %v834 = vld [vmem:[%s536 + $0x20] sm:$0xff]
        %v835 = vld [vmem:[%s536 + $0x28] sm:$0xff]
        %v836 = vld [vmem:[%s536 + $0x30] sm:$0xff]
        %v837 = vld [vmem:[%s536 + $0x38] sm:$0xff]
        %v838 = vld [vmem:[%s536 + $0x40] sm:$0xff]
        %v839 = vld [vmem:[%s536 + $0x48] sm:$0xff]
        %v840 = vld [vmem:[%s536 + $0x50] sm:$0xff]
        %v841 = vld [vmem:[%s536 + $0x58] sm:$0xff]
        %v842 = vld [vmem:[%s536 + $0x60] sm:$0xff]
        %v843 = vld [vmem:[%s536 + $0x68] sm:$0xff]
        %v844 = vld [vmem:[%s536 + $0x70] sm:$0xff]
        %v845 = vld [vmem:[%s536 + $0x78] sm:$0xff]
        %v846 = vld [vmem:[%s536 + $0x80] sm:$0xff]
        %v847 = vld [vmem:[%s536 + $0x88] sm:$0xff]
        %v848 = vld [vmem:[%s536 + $0x90] sm:$0xff]
        %v849 = vld [vmem:[%s536 + $0x98] sm:$0xff]
        %v850 = vld [vmem:[%s536 + $0xa0] sm:$0xff]
        %v851 = vld [vmem:[%s536 + $0xa8] sm:$0xff]
        %v852 = vld [vmem:[%s536 + $0xb0] sm:$0xff]
        %v853 = vld [vmem:[%s536 + $0xb8] sm:$0xff]
        %v854 = vld [vmem:[%s536 + $0xc0] sm:$0xff]
        %v855 = vld [vmem:[%s536 + $0xc8] sm:$0xff]
        %v856 = vld [vmem:[%s536 + $0xd0] sm:$0xff]
        %v857 = vld [vmem:[%s536 + $0xd8] sm:$0xff]
        %v858 = vld [vmem:[%s536 + $0xe0] sm:$0xff]
        %v859 = vld [vmem:[%s536 + $0xe8] sm:$0xff]
        %v860 = vld [vmem:[%s536 + $0xf0] sm:$0xff]
        %v861 = vld [vmem:[%s536 + $0xf8] sm:$0xff]
        %v894 = vunpack.c.l.b16 %v830
        %v895 = vunpack.c.h.b16 %v830
        %v896 = vunpack.c.l.b16 %v831
        %v897 = vunpack.c.h.b16 %v831
        %v898 = vunpack.c.l.b16 %v832
        %v899 = vunpack.c.h.b16 %v832
        %v900 = vunpack.c.l.b16 %v833
        %v901 = vunpack.c.h.b16 %v833
        %v902 = vunpack.c.l.b16 %v834
        %v903 = vunpack.c.h.b16 %v834
        %v904 = vunpack.c.l.b16 %v835
        %v905 = vunpack.c.h.b16 %v835
        %v906 = vunpack.c.l.b16 %v836
        %v907 = vunpack.c.h.b16 %v836
        %v908 = vunpack.c.l.b16 %v837
        %v909 = vunpack.c.h.b16 %v837
        %v910 = vunpack.c.l.b16 %v838
        %v911 = vunpack.c.h.b16 %v838
        %v912 = vunpack.c.l.b16 %v839
        %v913 = vunpack.c.h.b16 %v839
        %v914 = vunpack.c.l.b16 %v840
        %v915 = vunpack.c.h.b16 %v840
        %v916 = vunpack.c.l.b16 %v841
        %v917 = vunpack.c.h.b16 %v841
        %v918 = vunpack.c.l.b16 %v842
        %v919 = vunpack.c.h.b16 %v842
        %v920 = vunpack.c.l.b16 %v843
        %v921 = vunpack.c.h.b16 %v843
        %v922 = vunpack.c.l.b16 %v844
        %v923 = vunpack.c.h.b16 %v844
        %v924 = vunpack.c.l.b16 %v845
        %v925 = vunpack.c.h.b16 %v845
        %v926 = vunpack.c.l.b16 %v846
        %v927 = vunpack.c.h.b16 %v846
        %v928 = vunpack.c.l.b16 %v847
        %v929 = vunpack.c.h.b16 %v847
        %v930 = vunpack.c.l.b16 %v848
        %v931 = vunpack.c.h.b16 %v848
        %v932 = vunpack.c.l.b16 %v849
        %v933 = vunpack.c.h.b16 %v849
        %v934 = vunpack.c.l.b16 %v850
        %v935 = vunpack.c.h.b16 %v850
        %v936 = vunpack.c.l.b16 %v851
        %v937 = vunpack.c.h.b16 %v851
        %v938 = vunpack.c.l.b16 %v852
        %v939 = vunpack.c.h.b16 %v852
        %v940 = vunpack.c.l.b16 %v853
        %v941 = vunpack.c.h.b16 %v853
        %v942 = vunpack.c.l.b16 %v854
        %v943 = vunpack.c.h.b16 %v854
        %v944 = vunpack.c.l.b16 %v855
        %v945 = vunpack.c.h.b16 %v855
        %v946 = vunpack.c.l.b16 %v856
        %v947 = vunpack.c.h.b16 %v856
        %v948 = vunpack.c.l.b16 %v857
        %v949 = vunpack.c.h.b16 %v857
        %v950 = vunpack.c.l.b16 %v858
        %v951 = vunpack.c.h.b16 %v858
        %v952 = vunpack.c.l.b16 %v859
        %v953 = vunpack.c.h.b16 %v859
        %v954 = vunpack.c.l.b16 %v860
        %v955 = vunpack.c.h.b16 %v860
        %v956 = vunpack.c.l.b16 %v861
        %v957 = vunpack.c.h.b16 %v861
        %v958 = vpack.c.b16 %v896, %v894
        %v959 = vpack.c.b16 %v897, %v895
        %v960 = vpack.c.b16 %v900, %v898
        %v961 = vpack.c.b16 %v901, %v899
        %v962 = vpack.c.b16 %v904, %v902
        %v963 = vpack.c.b16 %v905, %v903
        %v964 = vpack.c.b16 %v908, %v906
        %v965 = vpack.c.b16 %v909, %v907
        %v966 = vpack.c.b16 %v912, %v910
        %v967 = vpack.c.b16 %v913, %v911
        %v968 = vpack.c.b16 %v916, %v914
        %v969 = vpack.c.b16 %v917, %v915
        %v970 = vpack.c.b16 %v920, %v918
        %v971 = vpack.c.b16 %v921, %v919
        %v972 = vpack.c.b16 %v924, %v922
        %v973 = vpack.c.b16 %v925, %v923
        %v974 = vpack.c.b16 %v928, %v926
        %v975 = vpack.c.b16 %v929, %v927
        %v976 = vpack.c.b16 %v932, %v930
        %v977 = vpack.c.b16 %v933, %v931
        %v978 = vpack.c.b16 %v936, %v934
        %v979 = vpack.c.b16 %v937, %v935
        %v980 = vpack.c.b16 %v940, %v938
        %v981 = vpack.c.b16 %v941, %v939
        %v982 = vpack.c.b16 %v944, %v942
        %v983 = vpack.c.b16 %v945, %v943
        %v984 = vpack.c.b16 %v948, %v946
        %v985 = vpack.c.b16 %v949, %v947
        %v986 = vpack.c.b16 %v952, %v950
        %v987 = vpack.c.b16 %v953, %v951
        %v988 = vpack.c.b16 %v956, %v954
        %v989 = vpack.c.b16 %v957, %v955
        %1022 = vmatprep.subr.bf16.mxu0 %v959
        %1023 = vmatpush1.bf16.msra.mxu0 %v958
        %1024 = vmatprep.subr.bf16.mxu0 %v961
        %1025 = vmatpush1.bf16.msra.mxu0 %v960
        %1026 = vmatprep.subr.bf16.mxu0 %v963
        %1027 = vmatpush1.bf16.msra.mxu0 %v962
        %1028 = vmatprep.subr.bf16.mxu0 %v965
        %1029 = vmatpush1.bf16.msra.mxu0 %v964
        %1030 = vmatprep.subr.bf16.mxu0 %v967
        %1031 = vmatpush1.bf16.msra.mxu0 %v966
        %1032 = vmatprep.subr.bf16.mxu0 %v969
        %1033 = vmatpush1.bf16.msra.mxu0 %v968
        %1034 = vmatprep.subr.bf16.mxu0 %v971
        %1035 = vmatpush1.bf16.msra.mxu0 %v970
        %1036 = vmatprep.subr.bf16.mxu0 %v973
        %1037 = vmatpush1.bf16.msra.mxu0 %v972
        %1038 = vmatprep.subr.bf16.mxu0 %v975
        %1039 = vmatpush1.bf16.msra.mxu0 %v974
        %1040 = vmatprep.subr.bf16.mxu0 %v977
        %1041 = vmatpush1.bf16.msra.mxu0 %v976
        %1042 = vmatprep.subr.bf16.mxu0 %v979
        %1043 = vmatpush1.bf16.msra.mxu0 %v978
        %1044 = vmatprep.subr.bf16.mxu0 %v981
        %1045 = vmatpush1.bf16.msra.mxu0 %v980
        %1046 = vmatprep.subr.bf16.mxu0 %v983
        %1047 = vmatpush1.bf16.msra.mxu0 %v982
        %1048 = vmatprep.subr.bf16.mxu0 %v985
        %1049 = vmatpush1.bf16.msra.mxu0 %v984
        %1050 = vmatprep.subr.bf16.mxu0 %v987
        %1051 = vmatpush1.bf16.msra.mxu0 %v986
        %1052 = vmatprep.subr.bf16.mxu0 %v989
        %1053 = vmatpush1.bf16.msra.mxu0 %v988
        %1054 = vmatprep.mubr.bf16.mxu0 %v624
        %1055 = vmatmul.mubr.bf16.gmra.mrb[0].mxu0 %v623
        %v1056 = vpop.f32.mrb[0].mxu0
        %v1057 = vadd.f32 0.0, %v1056
        %v1058 = vpop.f32.mrb[0].mxu0
        %v1059 = vadd.f32 0.0, %v1058
        %v1060 = vpop.f32.mrb[0].mxu0
        %v1061 = vadd.f32 0.0, %v1060
        %v1062 = vpop.f32.mrb[0].mxu0
        %v1063 = vadd.f32 0.0, %v1062
        %1064 = vdwg.mxu0
        %v1065 = vxor.u32 %v822, 2147483648
        %v1066 = vxor.u32 %v824, 2147483648
        %v1067 = vxor.u32 %v826, 2147483648
        %v1068 = vxor.u32 %v828, 2147483648
        %v1069 = vmul.f32 %v1065, 1.442695
        %v1070 = vpow.pop %v1069
        %v1071 = vmul.f32 %v1066, 1.442695
        %v1072 = vpow.pop %v1071
        %v1073 = vmul.f32 %v1067, 1.442695
        %v1074 = vpow.pop %v1073
        %v1075 = vmul.f32 %v1068, 1.442695
        %v1076 = vpow.pop %v1075
        %v1077 = vadd.f32 %v1070, 1.0
        %v1078 = vadd.f32 %v1072, 1.0
        %v1079 = vadd.f32 %v1074, 1.0
        %v1080 = vadd.f32 %v1076, 1.0
        %v1081 = vrcp.pop %v1077
        %v1082 = vmul.f32 1.0, %v1081
        %v1083 = vrcp.pop %v1078
        %v1084 = vmul.f32 1.0, %v1083
        %v1085 = vrcp.pop %v1079
        %v1086 = vmul.f32 1.0, %v1085
        %v1087 = vrcp.pop %v1080
        %v1088 = vmul.f32 1.0, %v1087
        %v1089 = vmul.f32 %v822, %v1082
        %v1090 = vmul.f32 %v824, %v1084
        %v1091 = vmul.f32 %v826, %v1086
        %v1092 = vmul.f32 %v828, %v1088
        %v1093 = vmul.f32 %v1089, %v1057
        %v1094 = vmul.f32 %v1090, %v1059
        %v1095 = vmul.f32 %v1091, %v1061
        %v1096 = vmul.f32 %v1092, %v1063
        %v1097 = vld [vmem:[#allocation2] sm:$0xff]
        %v1098 = vld [vmem:[#allocation2 + $0x8] sm:$0xff]
        %v1099 = vld [vmem:[#allocation2 + $0x10] sm:$0xff]
        %v1100 = vld [vmem:[#allocation2 + $0x18] sm:$0xff]
        %v1101 = vpack.c.bf16 %v1095, %v1093
        %v1102 = vpack.c.bf16 %v1096, %v1094
        %v1103 = vld [vmem:[%s573] sm:$0xff]
        %v1104 = vld [vmem:[%s573 + $0x8] sm:$0xff]
        %v1105 = vld [vmem:[%s573 + $0x10] sm:$0xff]
        %v1106 = vld [vmem:[%s573 + $0x18] sm:$0xff]
        %v1107 = vld [vmem:[%s573 + $0x20] sm:$0xff]
        %v1108 = vld [vmem:[%s573 + $0x28] sm:$0xff]
        %v1109 = vld [vmem:[%s573 + $0x30] sm:$0xff]
        %v1110 = vld [vmem:[%s573 + $0x38] sm:$0xff]
        %v1111 = vld [vmem:[%s573 + $0x40] sm:$0xff]
        %v1112 = vld [vmem:[%s573 + $0x48] sm:$0xff]
        %v1113 = vld [vmem:[%s573 + $0x50] sm:$0xff]
        %v1114 = vld [vmem:[%s573 + $0x58] sm:$0xff]
        %v1115 = vld [vmem:[%s573 + $0x60] sm:$0xff]
        %v1116 = vld [vmem:[%s573 + $0x68] sm:$0xff]
        %v1117 = vld [vmem:[%s573 + $0x70] sm:$0xff]
        %v1118 = vld [vmem:[%s573 + $0x78] sm:$0xff]
        %v1119 = vld [vmem:[%s573 + $0x80] sm:$0xff]
        %v1120 = vld [vmem:[%s573 + $0x88] sm:$0xff]
        %v1121 = vld [vmem:[%s573 + $0x90] sm:$0xff]
        %v1122 = vld [vmem:[%s573 + $0x98] sm:$0xff]
        %v1123 = vld [vmem:[%s573 + $0xa0] sm:$0xff]
        %v1124 = vld [vmem:[%s573 + $0xa8] sm:$0xff]
        %v1125 = vld [vmem:[%s573 + $0xb0] sm:$0xff]
        %v1126 = vld [vmem:[%s573 + $0xb8] sm:$0xff]
        %v1127 = vld [vmem:[%s573 + $0xc0] sm:$0xff]
        %v1128 = vld [vmem:[%s573 + $0xc8] sm:$0xff]
        %v1129 = vld [vmem:[%s573 + $0xd0] sm:$0xff]
        %v1130 = vld [vmem:[%s573 + $0xd8] sm:$0xff]
        %v1131 = vld [vmem:[%s573 + $0xe0] sm:$0xff]
        %v1132 = vld [vmem:[%s573 + $0xe8] sm:$0xff]
        %v1133 = vld [vmem:[%s573 + $0xf0] sm:$0xff]
        %v1134 = vld [vmem:[%s573 + $0xf8] sm:$0xff]
        %v1167 = vunpack.c.l.b16 %v1103
        %v1168 = vunpack.c.h.b16 %v1103
        %v1169 = vunpack.c.l.b16 %v1104
        %v1170 = vunpack.c.h.b16 %v1104
        %v1171 = vunpack.c.l.b16 %v1105
        %v1172 = vunpack.c.h.b16 %v1105
        %v1173 = vunpack.c.l.b16 %v1106
        %v1174 = vunpack.c.h.b16 %v1106
        %v1175 = vunpack.c.l.b16 %v1107
        %v1176 = vunpack.c.h.b16 %v1107
        %v1177 = vunpack.c.l.b16 %v1108
        %v1178 = vunpack.c.h.b16 %v1108
        %v1179 = vunpack.c.l.b16 %v1109
        %v1180 = vunpack.c.h.b16 %v1109
        %v1181 = vunpack.c.l.b16 %v1110
        %v1182 = vunpack.c.h.b16 %v1110
        %v1183 = vunpack.c.l.b16 %v1111
        %v1184 = vunpack.c.h.b16 %v1111
        %v1185 = vunpack.c.l.b16 %v1112
        %v1186 = vunpack.c.h.b16 %v1112
        %v1187 = vunpack.c.l.b16 %v1113
        %v1188 = vunpack.c.h.b16 %v1113
        %v1189 = vunpack.c.l.b16 %v1114
        %v1190 = vunpack.c.h.b16 %v1114
        %v1191 = vunpack.c.l.b16 %v1115
        %v1192 = vunpack.c.h.b16 %v1115
        %v1193 = vunpack.c.l.b16 %v1116
        %v1194 = vunpack.c.h.b16 %v1116
        %v1195 = vunpack.c.l.b16 %v1117
        %v1196 = vunpack.c.h.b16 %v1117
        %v1197 = vunpack.c.l.b16 %v1118
        %v1198 = vunpack.c.h.b16 %v1118
        %v1199 = vunpack.c.l.b16 %v1119
        %v1200 = vunpack.c.h.b16 %v1119
        %v1201 = vunpack.c.l.b16 %v1120
        %v1202 = vunpack.c.h.b16 %v1120
        %v1203 = vunpack.c.l.b16 %v1121
        %v1204 = vunpack.c.h.b16 %v1121
        %v1205 = vunpack.c.l.b16 %v1122
        %v1206 = vunpack.c.h.b16 %v1122
        %v1207 = vunpack.c.l.b16 %v1123
        %v1208 = vunpack.c.h.b16 %v1123
        %v1209 = vunpack.c.l.b16 %v1124
        %v1210 = vunpack.c.h.b16 %v1124
        %v1211 = vunpack.c.l.b16 %v1125
        %v1212 = vunpack.c.h.b16 %v1125
        %v1213 = vunpack.c.l.b16 %v1126
        %v1214 = vunpack.c.h.b16 %v1126
        %v1215 = vunpack.c.l.b16 %v1127
        %v1216 = vunpack.c.h.b16 %v1127
        %v1217 = vunpack.c.l.b16 %v1128
        %v1218 = vunpack.c.h.b16 %v1128
        %v1219 = vunpack.c.l.b16 %v1129
        %v1220 = vunpack.c.h.b16 %v1129
        %v1221 = vunpack.c.l.b16 %v1130
        %v1222 = vunpack.c.h.b16 %v1130
        %v1223 = vunpack.c.l.b16 %v1131
        %v1224 = vunpack.c.h.b16 %v1131
        %v1225 = vunpack.c.l.b16 %v1132
        %v1226 = vunpack.c.h.b16 %v1132
        %v1227 = vunpack.c.l.b16 %v1133
        %v1228 = vunpack.c.h.b16 %v1133
        %v1229 = vunpack.c.l.b16 %v1134
        %v1230 = vunpack.c.h.b16 %v1134
        %v1231 = vpack.c.b16 %v1169, %v1167
        %v1232 = vpack.c.b16 %v1170, %v1168
        %v1233 = vpack.c.b16 %v1173, %v1171
        %v1234 = vpack.c.b16 %v1174, %v1172
        %v1235 = vpack.c.b16 %v1177, %v1175
        %v1236 = vpack.c.b16 %v1178, %v1176
        %v1237 = vpack.c.b16 %v1181, %v1179
        %v1238 = vpack.c.b16 %v1182, %v1180
        %v1239 = vpack.c.b16 %v1185, %v1183
        %v1240 = vpack.c.b16 %v1186, %v1184
        %v1241 = vpack.c.b16 %v1189, %v1187
        %v1242 = vpack.c.b16 %v1190, %v1188
        %v1243 = vpack.c.b16 %v1193, %v1191
        %v1244 = vpack.c.b16 %v1194, %v1192
        %v1245 = vpack.c.b16 %v1197, %v1195
        %v1246 = vpack.c.b16 %v1198, %v1196
        %v1247 = vpack.c.b16 %v1201, %v1199
        %v1248 = vpack.c.b16 %v1202, %v1200
        %v1249 = vpack.c.b16 %v1205, %v1203
        %v1250 = vpack.c.b16 %v1206, %v1204
        %v1251 = vpack.c.b16 %v1209, %v1207
        %v1252 = vpack.c.b16 %v1210, %v1208
        %v1253 = vpack.c.b16 %v1213, %v1211
        %v1254 = vpack.c.b16 %v1214, %v1212
        %v1255 = vpack.c.b16 %v1217, %v1215
        %v1256 = vpack.c.b16 %v1218, %v1216
        %v1257 = vpack.c.b16 %v1221, %v1219
        %v1258 = vpack.c.b16 %v1222, %v1220
        %v1259 = vpack.c.b16 %v1225, %v1223
        %v1260 = vpack.c.b16 %v1226, %v1224
        %v1261 = vpack.c.b16 %v1229, %v1227
        %v1262 = vpack.c.b16 %v1230, %v1228
        %1295 = vmatprep.subr.bf16.mxu0 %v1232
        %1296 = vmatpush1.bf16.msra.mxu0 %v1231
        %1297 = vmatprep.subr.bf16.mxu0 %v1234
        %1298 = vmatpush1.bf16.msra.mxu0 %v1233
        %1299 = vmatprep.subr.bf16.mxu0 %v1236
        %1300 = vmatpush1.bf16.msra.mxu0 %v1235
        %1301 = vmatprep.subr.bf16.mxu0 %v1238
        %1302 = vmatpush1.bf16.msra.mxu0 %v1237
        %1303 = vmatprep.subr.bf16.mxu0 %v1240
        %1304 = vmatpush1.bf16.msra.mxu0 %v1239
        %1305 = vmatprep.subr.bf16.mxu0 %v1242
        %1306 = vmatpush1.bf16.msra.mxu0 %v1241
        %1307 = vmatprep.subr.bf16.mxu0 %v1244
        %1308 = vmatpush1.bf16.msra.mxu0 %v1243
        %1309 = vmatprep.subr.bf16.mxu0 %v1246
        %1310 = vmatpush1.bf16.msra.mxu0 %v1245
        %1311 = vmatprep.subr.bf16.mxu0 %v1248
        %1312 = vmatpush1.bf16.msra.mxu0 %v1247
        %1313 = vmatprep.subr.bf16.mxu0 %v1250
        %1314 = vmatpush1.bf16.msra.mxu0 %v1249
        %1315 = vmatprep.subr.bf16.mxu0 %v1252
        %1316 = vmatpush1.bf16.msra.mxu0 %v1251
        %1317 = vmatprep.subr.bf16.mxu0 %v1254
        %1318 = vmatpush1.bf16.msra.mxu0 %v1253
        %1319 = vmatprep.subr.bf16.mxu0 %v1256
        %1320 = vmatpush1.bf16.msra.mxu0 %v1255
        %1321 = vmatprep.subr.bf16.mxu0 %v1258
        %1322 = vmatpush1.bf16.msra.mxu0 %v1257
        %1323 = vmatprep.subr.bf16.mxu0 %v1260
        %1324 = vmatpush1.bf16.msra.mxu0 %v1259
        %1325 = vmatprep.subr.bf16.mxu0 %v1262
        %1326 = vmatpush1.bf16.msra.mxu0 %v1261
        %1327 = vmatprep.mubr.bf16.mxu0 %v1102
        %1328 = vmatmul.mubr.bf16.gmra.mrb[0].mxu0 %v1101
        %v1329 = vpop.f32.mrb[0].mxu0
        %v1330 = vadd.f32 0.0, %v1329
        %v1331 = vpop.f32.mrb[0].mxu0
        %v1332 = vadd.f32 0.0, %v1331
        %v1333 = vpop.f32.mrb[0].mxu0
        %v1334 = vadd.f32 0.0, %v1333
        %v1335 = vpop.f32.mrb[0].mxu0
        %v1336 = vadd.f32 0.0, %v1335
        %1337 = vdwg.mxu0
        %v1338 = vadd.f32 %v1097, %v1330
        %v1339 = vadd.f32 %v1098, %v1332
        %v1340 = vadd.f32 %v1099, %v1334
        %v1341 = vadd.f32 %v1100, %v1336
        %1342 = vst [vmem:[#allocation2] sm:$0xff] %v1338
        %1343 = vst [vmem:[#allocation2 + $0x8] sm:$0xff] %v1339
        %1344 = vst [vmem:[#allocation2 + $0x10] sm:$0xff] %v1340
        %1345 = vst [vmem:[#allocation2 + $0x18] sm:$0xff] %v1341
        %p1346 = scmp.eq.s32.totalorder %s16, 1
        // Predicated region
        $region121: #{olmo2_forward.9} parent=107 // pred_check
          %p1347 = pneg %p1346
        $region122: #{olmo2_forward.9} parent=107 // pred_check_branch
          %1349 = sbr.rel (%p1347) target = $region124
        $region123: #{olmo2_forward.9} parent=107 // pred_region
          %v1350 = vld [vmem:[#allocation2] sm:$0xff]
          %v1351 = vld [vmem:[#allocation2 + $0x8] sm:$0xff]
          %v1352 = vld [vmem:[#allocation2 + $0x10] sm:$0xff]
          %v1353 = vld [vmem:[#allocation2 + $0x18] sm:$0xff]
          %v1354 = vld [vmem:[%s4] sm:$0x3]
          %v1355 = vmul.f32 %v1350, %v1350
          %v1356 = vmul.f32 %v1351, %v1351
          %v1357 = vmul.f32 %v1352, %v1352
          %v1358 = vmul.f32 %v1353, %v1353
          %v1359 = vadd.f32 %v1355, %v1356
          %1360 = vadd.xlane.f32.xlu0 %v1359
          %v1361 = vpop.xlane.xlu0 %1360
          %v1362 = vadd.f32 %v1357, %v1358
          %1363 = vadd.xlane.f32.xlu0 %v1362
          %v1364 = vpop.xlane.xlu0 %1363
          %v1365 = vrcp.pop 256.0
          %v1366 = vmul.f32 %v1361, %v1365
          %v1367 = vmul.f32 %v1364, %v1365
          %v1368 = vadd.f32 %v1366, 1e-05
          %v1369 = vadd.f32 %v1367, 1e-05
          %v1370 = vrsqrt.pop %v1368
          %v1371 = vrsqrt.pop %v1369
          %v1372 = vmul.f32 %v1350, %v1370
          %v1373 = vmul.f32 %v1351, %v1370
          %v1374 = vmul.f32 %v1352, %v1371
          %v1375 = vmul.f32 %v1353, %v1371
          %v1377 = vlaneseq
          %v1378 = vshrl.u32 %v1377, 7
          %v1379 = vsub.s32 0, %v1378
          %v1380 = vrot.slane %v1354, %v1379
          %v1381 = vlaneseq
          %v1382 = vshrl.u32 %v1381, 7
          %v1383 = vsub.s32 1, %v1382
          %v1384 = vrot.slane %v1354, %v1383
          %v1387 = vmul.f32 %v1372, %v1380
          %v1388 = vmul.f32 %v1373, %v1384
          %v1389 = vmul.f32 %v1374, %v1380
          %v1390 = vmul.f32 %v1375, %v1384
          %v1391 = vunpack.c.l.bf16 %v583
          %v1392 = vunpack.c.h.bf16 %v583
          %v1393 = vunpack.c.l.bf16 %v584
          %v1394 = vunpack.c.h.bf16 %v584
          %v1395 = vadd.f32 %v1387, %v1391
          %v1396 = vadd.f32 %v1388, %v1392
          %v1397 = vadd.f32 %v1389, %v1393
          %v1398 = vadd.f32 %v1390, %v1394
          %v1399 = vpack.c.bf16 %v1397, %v1395
          %v1400 = vpack.c.bf16 %v1398, %v1396
          %v1403 = vunpack.c.l.b16 %v1399
          %v1404 = vunpack.c.l.b16 %v1400
          %v1405 = vunpack.c.h.b16 %v1399
          %v1406 = vunpack.c.h.b16 %v1400
          %v1407 = vpack.c.b16 %v1404, %v1403
          %v1408 = vpack.c.b16 %v1406, %v1405
          %1411 = vst [vmem:[%s5] sm:$0xff] %v1407
          %1412 = vst [vmem:[%s5 + $0x8] sm:$0xff] %v1408
        $region124: #{olmo2_forward.9} parent=107 // pred_fallthru
          _
        // Predicated region
        $region125: #{olmo2_forward.9} parent=107 // pred_check
          %p1413 = pneg %p149
        $region126: #{olmo2_forward.9} parent=107 // pred_check_branch
          %1415 = sbr.rel (%p1413) target = $region128
        $region127: #{olmo2_forward.9} parent=107 // pred_region
          _
        $region128: #{olmo2_forward.9} parent=107 // pred_fallthru
          _
        // Predicated region
        $region129: #{olmo2_forward.9} parent=107 // pred_check
          %p1416 = pneg %p149
        $region130: #{olmo2_forward.9} parent=107 // pred_check_branch
          %1418 = sbr.rel (%p1416) target = $region132
        $region131: #{olmo2_forward.9} parent=107 // pred_region
          _
        $region132: #{olmo2_forward.9} parent=107 // pred_fallthru
          _
      $region108: #{olmo2_forward.9} parent=5 // pred_fallthru
        _
      %p1419 = scmp.le.s32.totalorder 2, %s11
      // Predicated region
      $region133: #{olmo2_forward.9} parent=5 // pred_check
        %p1420 = pneg %p1419
      $region134: #{olmo2_forward.9} parent=5 // pred_check_branch
        %1422 = sbr.rel (%p1420) target = $region136
      $region135: #{olmo2_forward.9} parent=5 // pred_region
        %s1423 = ssub.s32 %s11, 2
      $region136: #{olmo2_forward.9} parent=5 // pred_fallthru
        _
    $region6: #{olmo2_forward.9} parent=1 // loop_footer
      %s15 = sadd.s32 1, %s11
    $region7: #{olmo2_forward.9} parent=1 // loop_footer_branch
      %10 = sbr.rel target = $region3
    $region8: #{olmo2_forward.9} parent=1 // loop_exit
      _

// kernel: olmo2_forward.8
$region0: #{olmo2_forward.8}
  #allocation0 [shape = 'u32[]', space=smem, size = 0x4, offset = 0x4, fixed_abs, tag = 'smem constant byte address 0x4 - core index']
  #allocation1 [shape = 'u32[144,128]{1,0:T(1,128)}', space=vmem, size = 0x12000, scoped, tag = 'internal scratch']
  %s0 = inlined_call_operand.vmem [shape: bf16[16,256], index: 0, kind: input, shape index: {}]
  %s1 = inlined_call_operand.vmem [shape: bf16[256,768], index: 1, kind: input, shape index: {}]
  %s2 = inlined_call_operand.vmem [shape: f32[1,256], index: 2, kind: input, shape index: {}]
  %s3 = inlined_call_operand.vmem [shape: f32[1,256], index: 3, kind: input, shape index: {}]
  %s4 = inlined_call_operand.vmem [shape: f32[16,128], index: 4, kind: input, shape index: {}]
  %s5 = inlined_call_operand.vmem [shape: f32[16,128], index: 5, kind: input, shape index: {}]
  %s6 = inlined_call_operand.vmem [shape: f32[16,16], index: 6, kind: input, shape index: {}]
  %s7 = inlined_call_operand.vmem [shape: bf16[256,256], index: 7, kind: input, shape index: {}]
  %s8 = inlined_call_operand.vmem [shape: f32[1,256], index: 8, kind: input, shape index: {}]
  %s9 = inlined_call_operand.vmem [shape: bf16[16,256], index: 9, kind: output, shape index: {}]
  %s10 = sld [smem:[#allocation0]]
  $region46: #{olmo2_forward.8} parent=0
    _
  %s12 = ssub.s32 1, %s10
  %s13 = scalar_select 0, %s12, %s10
  // Predicated region
  $region2: #{olmo2_forward.8} parent=0 // pred_check
    _
  $region3: #{olmo2_forward.8} parent=0 // pred_check_branch
    %15 = sbr.rel (0) target = $region5
  $region4: #{olmo2_forward.8} parent=0 // pred_region
    _
  $region5: #{olmo2_forward.8} parent=0 // pred_fallthru
    _
  // Predicated region
  $region6: #{olmo2_forward.8} parent=0 // pred_check
    _
  $region7: #{olmo2_forward.8} parent=0 // pred_check_branch
    %17 = sbr.rel (0) target = $region9
  $region8: #{olmo2_forward.8} parent=0 // pred_region
    _
  $region9: #{olmo2_forward.8} parent=0 // pred_fallthru
    _
  // Predicated region
  $region10: #{olmo2_forward.8} parent=0 // pred_check
    _
  $region11: #{olmo2_forward.8} parent=0 // pred_check_branch
    %19 = sbr.rel (0) target = $region13
  $region12: #{olmo2_forward.8} parent=0 // pred_region
    _
  $region13: #{olmo2_forward.8} parent=0 // pred_fallthru
    _
  // Predicated region
  $region14: #{olmo2_forward.8} parent=0 // pred_check
    _
  $region15: #{olmo2_forward.8} parent=0 // pred_check_branch
    %21 = sbr.rel (0) target = $region17
  $region16: #{olmo2_forward.8} parent=0 // pred_region
    _
  $region17: #{olmo2_forward.8} parent=0 // pred_fallthru
    _
  // Predicated region
  $region18: #{olmo2_forward.8} parent=0 // pred_check
    _
  $region19: #{olmo2_forward.8} parent=0 // pred_check_branch
    %23 = sbr.rel (0) target = $region21
  $region20: #{olmo2_forward.8} parent=0 // pred_region
    _
  $region21: #{olmo2_forward.8} parent=0 // pred_fallthru
    _
  // Predicated region
  $region22: #{olmo2_forward.8} parent=0 // pred_check
    _
  $region23: #{olmo2_forward.8} parent=0 // pred_check_branch
    %25 = sbr.rel (0) target = $region25
  $region24: #{olmo2_forward.8} parent=0 // pred_region
    _
  $region25: #{olmo2_forward.8} parent=0 // pred_fallthru
    _
  // Predicated region
  $region26: #{olmo2_forward.8} parent=0 // pred_check
    _
  $region27: #{olmo2_forward.8} parent=0 // pred_check_branch
    %27 = sbr.rel (0) target = $region29
  $region28: #{olmo2_forward.8} parent=0 // pred_region
    _
  $region29: #{olmo2_forward.8} parent=0 // pred_fallthru
    _
  // Predicated region
  $region30: #{olmo2_forward.8} parent=0 // pred_check
    _
  $region31: #{olmo2_forward.8} parent=0 // pred_check_branch
    %29 = sbr.rel (0) target = $region33
  $region32: #{olmo2_forward.8} parent=0 // pred_region
    _
  $region33: #{olmo2_forward.8} parent=0 // pred_fallthru
    _
  // Predicated region
  $region34: #{olmo2_forward.8} parent=0 // pred_check
    _
  $region35: #{olmo2_forward.8} parent=0 // pred_check_branch
    %31 = sbr.rel (0) target = $region37
  $region36: #{olmo2_forward.8} parent=0 // pred_region
    _
  $region37: #{olmo2_forward.8} parent=0 // pred_fallthru
    _
  %v33 = vld [vmem:[%s0] sm:$0xff]
  %v34 = vld [vmem:[%s0 + $0x8] sm:$0xff]
  %v35 = vunpack.c.l.bf16 %v33
  %v36 = vunpack.c.h.bf16 %v33
  %v37 = vunpack.c.l.bf16 %v34
  %v38 = vunpack.c.h.bf16 %v34
  %v39 = vld [vmem:[%s1] sm:$0xff]
  %v40 = vld [vmem:[%s1 + $0x8] sm:$0xff]
  %v41 = vld [vmem:[%s1 + $0x10] sm:$0xff]
  %v42 = vld [vmem:[%s1 + $0x18] sm:$0xff]
  %v43 = vld [vmem:[%s1 + $0x20] sm:$0xff]
  %v44 = vld [vmem:[%s1 + $0x28] sm:$0xff]
  %v45 = vld [vmem:[%s1 + $0x30] sm:$0xff]
  %v46 = vld [vmem:[%s1 + $0x38] sm:$0xff]
  %v47 = vld [vmem:[%s1 + $0x40] sm:$0xff]
  %v48 = vld [vmem:[%s1 + $0x48] sm:$0xff]
  %v49 = vld [vmem:[%s1 + $0x50] sm:$0xff]
  %v50 = vld [vmem:[%s1 + $0x58] sm:$0xff]
  %v51 = vld [vmem:[%s1 + $0x60] sm:$0xff]
  %v52 = vld [vmem:[%s1 + $0x68] sm:$0xff]
  %v53 = vld [vmem:[%s1 + $0x70] sm:$0xff]
  %v54 = vld [vmem:[%s1 + $0x78] sm:$0xff]
  %v55 = vld [vmem:[%s1 + $0x80] sm:$0xff]
  %v56 = vld [vmem:[%s1 + $0x88] sm:$0xff]
  %v57 = vld [vmem:[%s1 + $0x90] sm:$0xff]
  %v58 = vld [vmem:[%s1 + $0x98] sm:$0xff]
  %v59 = vld [vmem:[%s1 + $0xa0] sm:$0xff]
  %v60 = vld [vmem:[%s1 + $0xa8] sm:$0xff]
  %v61 = vld [vmem:[%s1 + $0xb0] sm:$0xff]
  %v62 = vld [vmem:[%s1 + $0xb8] sm:$0xff]
  %v63 = vld [vmem:[%s1 + $0xc0] sm:$0xff]
  %v64 = vld [vmem:[%s1 + $0xc8] sm:$0xff]
  %v65 = vld [vmem:[%s1 + $0xd0] sm:$0xff]
  %v66 = vld [vmem:[%s1 + $0xd8] sm:$0xff]
  %v67 = vld [vmem:[%s1 + $0xe0] sm:$0xff]
  %v68 = vld [vmem:[%s1 + $0xe8] sm:$0xff]
  %v69 = vld [vmem:[%s1 + $0xf0] sm:$0xff]
  %v70 = vld [vmem:[%s1 + $0xf8] sm:$0xff]
  %v71 = vld [vmem:[%s1 + $0x100] sm:$0xff]
  %v72 = vld [vmem:[%s1 + $0x108] sm:$0xff]
  %v73 = vld [vmem:[%s1 + $0x110] sm:$0xff]
  %v74 = vld [vmem:[%s1 + $0x118] sm:$0xff]
  %v75 = vld [vmem:[%s1 + $0x120] sm:$0xff]
  %v76 = vld [vmem:[%s1 + $0x128] sm:$0xff]
  %v77 = vld [vmem:[%s1 + $0x130] sm:$0xff]
  %v78 = vld [vmem:[%s1 + $0x138] sm:$0xff]
  %v79 = vld [vmem:[%s1 + $0x140] sm:$0xff]
  %v80 = vld [vmem:[%s1 + $0x148] sm:$0xff]
  %v81 = vld [vmem:[%s1 + $0x150] sm:$0xff]
  %v82 = vld [vmem:[%s1 + $0x158] sm:$0xff]
  %v83 = vld [vmem:[%s1 + $0x160] sm:$0xff]
  %v84 = vld [vmem:[%s1 + $0x168] sm:$0xff]
  %v85 = vld [vmem:[%s1 + $0x170] sm:$0xff]
  %v86 = vld [vmem:[%s1 + $0x178] sm:$0xff]
  %v87 = vld [vmem:[%s1 + $0x180] sm:$0xff]
  %v88 = vld [vmem:[%s1 + $0x188] sm:$0xff]
  %v89 = vld [vmem:[%s1 + $0x190] sm:$0xff]
  %v90 = vld [vmem:[%s1 + $0x198] sm:$0xff]
  %v91 = vld [vmem:[%s1 + $0x1a0] sm:$0xff]
  %v92 = vld [vmem:[%s1 + $0x1a8] sm:$0xff]
  %v93 = vld [vmem:[%s1 + $0x1b0] sm:$0xff]
  %v94 = vld [vmem:[%s1 + $0x1b8] sm:$0xff]
  %v95 = vld [vmem:[%s1 + $0x1c0] sm:$0xff]
  %v96 = vld [vmem:[%s1 + $0x1c8] sm:$0xff]
  %v97 = vld [vmem:[%s1 + $0x1d0] sm:$0xff]
  %v98 = vld [vmem:[%s1 + $0x1d8] sm:$0xff]
  %v99 = vld [vmem:[%s1 + $0x1e0] sm:$0xff]
  %v100 = vld [vmem:[%s1 + $0x1e8] sm:$0xff]
  %v101 = vld [vmem:[%s1 + $0x1f0] sm:$0xff]
  %v102 = vld [vmem:[%s1 + $0x1f8] sm:$0xff]
  %v103 = vld [vmem:[%s1 + $0x200] sm:$0xff]
  %v104 = vld [vmem:[%s1 + $0x208] sm:$0xff]
  %v105 = vld [vmem:[%s1 + $0x210] sm:$0xff]
  %v106 = vld [vmem:[%s1 + $0x218] sm:$0xff]
  %v107 = vld [vmem:[%s1 + $0x220] sm:$0xff]
  %v108 = vld [vmem:[%s1 + $0x228] sm:$0xff]
  %v109 = vld [vmem:[%s1 + $0x230] sm:$0xff]
  %v110 = vld [vmem:[%s1 + $0x238] sm:$0xff]
  %v111 = vld [vmem:[%s1 + $0x240] sm:$0xff]
  %v112 = vld [vmem:[%s1 + $0x248] sm:$0xff]
  %v113 = vld [vmem:[%s1 + $0x250] sm:$0xff]
  %v114 = vld [vmem:[%s1 + $0x258] sm:$0xff]
  %v115 = vld [vmem:[%s1 + $0x260] sm:$0xff]
  %v116 = vld [vmem:[%s1 + $0x268] sm:$0xff]
  %v117 = vld [vmem:[%s1 + $0x270] sm:$0xff]
  %v118 = vld [vmem:[%s1 + $0x278] sm:$0xff]
  %v119 = vld [vmem:[%s1 + $0x280] sm:$0xff]
  %v120 = vld [vmem:[%s1 + $0x288] sm:$0xff]
  %v121 = vld [vmem:[%s1 + $0x290] sm:$0xff]
  %v122 = vld [vmem:[%s1 + $0x298] sm:$0xff]
  %v123 = vld [vmem:[%s1 + $0x2a0] sm:$0xff]
  %v124 = vld [vmem:[%s1 + $0x2a8] sm:$0xff]
  %v125 = vld [vmem:[%s1 + $0x2b0] sm:$0xff]
  %v126 = vld [vmem:[%s1 + $0x2b8] sm:$0xff]
  %v127 = vld [vmem:[%s1 + $0x2c0] sm:$0xff]
  %v128 = vld [vmem:[%s1 + $0x2c8] sm:$0xff]
  %v129 = vld [vmem:[%s1 + $0x2d0] sm:$0xff]
  %v130 = vld [vmem:[%s1 + $0x2d8] sm:$0xff]
  %v131 = vld [vmem:[%s1 + $0x2e0] sm:$0xff]
  %v132 = vld [vmem:[%s1 + $0x2e8] sm:$0xff]
  %v133 = vld [vmem:[%s1 + $0x2f0] sm:$0xff]
  %v134 = vld [vmem:[%s1 + $0x2f8] sm:$0xff]
  %v137 = vunpack.c.l.b16 %v33
  %v138 = vunpack.c.h.b16 %v33
  %v139 = vunpack.c.l.b16 %v34
  %v140 = vunpack.c.h.b16 %v34
  %v141 = vpack.c.b16 %v139, %v137
  %v142 = vpack.c.b16 %v140, %v138
  %v241 = vunpack.c.l.b16 %v39
  %v242 = vunpack.c.h.b16 %v39
  %v243 = vunpack.c.l.b16 %v40
  %v244 = vunpack.c.h.b16 %v40
  %v245 = vunpack.c.l.b16 %v41
  %v246 = vunpack.c.h.b16 %v41
  %v247 = vunpack.c.l.b16 %v42
  %v248 = vunpack.c.h.b16 %v42
  %v249 = vunpack.c.l.b16 %v43
  %v250 = vunpack.c.h.b16 %v43
  %v251 = vunpack.c.l.b16 %v44
  %v252 = vunpack.c.h.b16 %v44
  %v253 = vunpack.c.l.b16 %v45
  %v254 = vunpack.c.h.b16 %v45
  %v255 = vunpack.c.l.b16 %v46
  %v256 = vunpack.c.h.b16 %v46
  %v257 = vunpack.c.l.b16 %v47
  %v258 = vunpack.c.h.b16 %v47
  %v259 = vunpack.c.l.b16 %v48
  %v260 = vunpack.c.h.b16 %v48
  %v261 = vunpack.c.l.b16 %v49
  %v262 = vunpack.c.h.b16 %v49
  %v263 = vunpack.c.l.b16 %v50
  %v264 = vunpack.c.h.b16 %v50
  %v265 = vunpack.c.l.b16 %v51
  %v266 = vunpack.c.h.b16 %v51
  %v267 = vunpack.c.l.b16 %v52
  %v268 = vunpack.c.h.b16 %v52
  %v269 = vunpack.c.l.b16 %v53
  %v270 = vunpack.c.h.b16 %v53
  %v271 = vunpack.c.l.b16 %v54
  %v272 = vunpack.c.h.b16 %v54
  %v273 = vunpack.c.l.b16 %v55
  %v274 = vunpack.c.h.b16 %v55
  %v275 = vunpack.c.l.b16 %v56
  %v276 = vunpack.c.h.b16 %v56
  %v277 = vunpack.c.l.b16 %v57
  %v278 = vunpack.c.h.b16 %v57
  %v279 = vunpack.c.l.b16 %v58
  %v280 = vunpack.c.h.b16 %v58
  %v281 = vunpack.c.l.b16 %v59
  %v282 = vunpack.c.h.b16 %v59
  %v283 = vunpack.c.l.b16 %v60
  %v284 = vunpack.c.h.b16 %v60
  %v285 = vunpack.c.l.b16 %v61
  %v286 = vunpack.c.h.b16 %v61
  %v287 = vunpack.c.l.b16 %v62
  %v288 = vunpack.c.h.b16 %v62
  %v289 = vunpack.c.l.b16 %v63
  %v290 = vunpack.c.h.b16 %v63
  %v291 = vunpack.c.l.b16 %v64
  %v292 = vunpack.c.h.b16 %v64
  %v293 = vunpack.c.l.b16 %v65
  %v294 = vunpack.c.h.b16 %v65
  %v295 = vunpack.c.l.b16 %v66
  %v296 = vunpack.c.h.b16 %v66
  %v297 = vunpack.c.l.b16 %v67
  %v298 = vunpack.c.h.b16 %v67
  %v299 = vunpack.c.l.b16 %v68
  %v300 = vunpack.c.h.b16 %v68
  %v301 = vunpack.c.l.b16 %v69
  %v302 = vunpack.c.h.b16 %v69
  %v303 = vunpack.c.l.b16 %v70
  %v304 = vunpack.c.h.b16 %v70
  %v305 = vunpack.c.l.b16 %v71
  %v306 = vunpack.c.h.b16 %v71
  %v307 = vunpack.c.l.b16 %v72
  %v308 = vunpack.c.h.b16 %v72
  %v309 = vunpack.c.l.b16 %v73
  %v310 = vunpack.c.h.b16 %v73
  %v311 = vunpack.c.l.b16 %v74
  %v312 = vunpack.c.h.b16 %v74
  %v313 = vunpack.c.l.b16 %v75
  %v314 = vunpack.c.h.b16 %v75
  %v315 = vunpack.c.l.b16 %v76
  %v316 = vunpack.c.h.b16 %v76
  %v317 = vunpack.c.l.b16 %v77
  %v318 = vunpack.c.h.b16 %v77
  %v319 = vunpack.c.l.b16 %v78
  %v320 = vunpack.c.h.b16 %v78
  %v321 = vunpack.c.l.b16 %v79
  %v322 = vunpack.c.h.b16 %v79
  %v323 = vunpack.c.l.b16 %v80
  %v324 = vunpack.c.h.b16 %v80
  %v325 = vunpack.c.l.b16 %v81
  %v326 = vunpack.c.h.b16 %v81
  %v327 = vunpack.c.l.b16 %v82
  %v328 = vunpack.c.h.b16 %v82
  %v329 = vunpack.c.l.b16 %v83
  %v330 = vunpack.c.h.b16 %v83
  %v331 = vunpack.c.l.b16 %v84
  %v332 = vunpack.c.h.b16 %v84
  %v333 = vunpack.c.l.b16 %v85
  %v334 = vunpack.c.h.b16 %v85
  %v335 = vunpack.c.l.b16 %v86
  %v336 = vunpack.c.h.b16 %v86
  %v337 = vunpack.c.l.b16 %v87
  %v338 = vunpack.c.h.b16 %v87
  %v339 = vunpack.c.l.b16 %v88
  %v340 = vunpack.c.h.b16 %v88
  %v341 = vunpack.c.l.b16 %v89
  %v342 = vunpack.c.h.b16 %v89
  %v343 = vunpack.c.l.b16 %v90
  %v344 = vunpack.c.h.b16 %v90
  %v345 = vunpack.c.l.b16 %v91
  %v346 = vunpack.c.h.b16 %v91
  %v347 = vunpack.c.l.b16 %v92
  %v348 = vunpack.c.h.b16 %v92
  %v349 = vunpack.c.l.b16 %v93
  %v350 = vunpack.c.h.b16 %v93
  %v351 = vunpack.c.l.b16 %v94
  %v352 = vunpack.c.h.b16 %v94
  %v353 = vunpack.c.l.b16 %v95
  %v354 = vunpack.c.h.b16 %v95
  %v355 = vunpack.c.l.b16 %v96
  %v356 = vunpack.c.h.b16 %v96
  %v357 = vunpack.c.l.b16 %v97
  %v358 = vunpack.c.h.b16 %v97
  %v359 = vunpack.c.l.b16 %v98
  %v360 = vunpack.c.h.b16 %v98
  %v361 = vunpack.c.l.b16 %v99
  %v362 = vunpack.c.h.b16 %v99
  %v363 = vunpack.c.l.b16 %v100
  %v364 = vunpack.c.h.b16 %v100
  %v365 = vunpack.c.l.b16 %v101
  %v366 = vunpack.c.h.b16 %v101
  %v367 = vunpack.c.l.b16 %v102
  %v368 = vunpack.c.h.b16 %v102
  %v369 = vunpack.c.l.b16 %v103
  %v370 = vunpack.c.h.b16 %v103
  %v371 = vunpack.c.l.b16 %v104
  %v372 = vunpack.c.h.b16 %v104
  %v373 = vunpack.c.l.b16 %v105
  %v374 = vunpack.c.h.b16 %v105
  %v375 = vunpack.c.l.b16 %v106
  %v376 = vunpack.c.h.b16 %v106
  %v377 = vunpack.c.l.b16 %v107
  %v378 = vunpack.c.h.b16 %v107
  %v379 = vunpack.c.l.b16 %v108
  %v380 = vunpack.c.h.b16 %v108
  %v381 = vunpack.c.l.b16 %v109
  %v382 = vunpack.c.h.b16 %v109
  %v383 = vunpack.c.l.b16 %v110
  %v384 = vunpack.c.h.b16 %v110
  %v385 = vunpack.c.l.b16 %v111
  %v386 = vunpack.c.h.b16 %v111
  %v387 = vunpack.c.l.b16 %v112
  %v388 = vunpack.c.h.b16 %v112
  %v389 = vunpack.c.l.b16 %v113
  %v390 = vunpack.c.h.b16 %v113
  %v391 = vunpack.c.l.b16 %v114
  %v392 = vunpack.c.h.b16 %v114
  %v393 = vunpack.c.l.b16 %v115
  %v394 = vunpack.c.h.b16 %v115
  %v395 = vunpack.c.l.b16 %v116
  %v396 = vunpack.c.h.b16 %v116
  %v397 = vunpack.c.l.b16 %v117
  %v398 = vunpack.c.h.b16 %v117
  %v399 = vunpack.c.l.b16 %v118
  %v400 = vunpack.c.h.b16 %v118
  %v401 = vunpack.c.l.b16 %v119
  %v402 = vunpack.c.h.b16 %v119
  %v403 = vunpack.c.l.b16 %v120
  %v404 = vunpack.c.h.b16 %v120
  %v405 = vunpack.c.l.b16 %v121
  %v406 = vunpack.c.h.b16 %v121
  %v407 = vunpack.c.l.b16 %v122
  %v408 = vunpack.c.h.b16 %v122
  %v409 = vunpack.c.l.b16 %v123
  %v410 = vunpack.c.h.b16 %v123
  %v411 = vunpack.c.l.b16 %v124
  %v412 = vunpack.c.h.b16 %v124
  %v413 = vunpack.c.l.b16 %v125
  %v414 = vunpack.c.h.b16 %v125
  %v415 = vunpack.c.l.b16 %v126
  %v416 = vunpack.c.h.b16 %v126
  %v417 = vunpack.c.l.b16 %v127
  %v418 = vunpack.c.h.b16 %v127
  %v419 = vunpack.c.l.b16 %v128
  %v420 = vunpack.c.h.b16 %v128
  %v421 = vunpack.c.l.b16 %v129
  %v422 = vunpack.c.h.b16 %v129
  %v423 = vunpack.c.l.b16 %v130
  %v424 = vunpack.c.h.b16 %v130
  %v425 = vunpack.c.l.b16 %v131
  %v426 = vunpack.c.h.b16 %v131
  %v427 = vunpack.c.l.b16 %v132
  %v428 = vunpack.c.h.b16 %v132
  %v429 = vunpack.c.l.b16 %v133
  %v430 = vunpack.c.h.b16 %v133
  %v431 = vunpack.c.l.b16 %v134
  %v432 = vunpack.c.h.b16 %v134
  %v433 = vpack.c.b16 %v247, %v241
  %v434 = vpack.c.b16 %v248, %v242
  %v435 = vpack.c.b16 %v249, %v243
  %v436 = vpack.c.b16 %v250, %v244
  %v437 = vpack.c.b16 %v251, %v245
  %v438 = vpack.c.b16 %v252, %v246
  %v439 = vpack.c.b16 %v259, %v253
  %v440 = vpack.c.b16 %v260, %v254
  %v441 = vpack.c.b16 %v261, %v255
  %v442 = vpack.c.b16 %v262, %v256
  %v443 = vpack.c.b16 %v263, %v257
  %v444 = vpack.c.b16 %v264, %v258
  %v445 = vpack.c.b16 %v271, %v265
  %v446 = vpack.c.b16 %v272, %v266
  %v447 = vpack.c.b16 %v273, %v267
  %v448 = vpack.c.b16 %v274, %v268
  %v449 = vpack.c.b16 %v275, %v269
  %v450 = vpack.c.b16 %v276, %v270
  %v451 = vpack.c.b16 %v283, %v277
  %v452 = vpack.c.b16 %v284, %v278
  %v453 = vpack.c.b16 %v285, %v279
  %v454 = vpack.c.b16 %v286, %v280
  %v455 = vpack.c.b16 %v287, %v281
  %v456 = vpack.c.b16 %v288, %v282
  %v457 = vpack.c.b16 %v295, %v289
  %v458 = vpack.c.b16 %v296, %v290
  %v459 = vpack.c.b16 %v297, %v291
  %v460 = vpack.c.b16 %v298, %v292
  %v461 = vpack.c.b16 %v299, %v293
  %v462 = vpack.c.b16 %v300, %v294
  %v463 = vpack.c.b16 %v307, %v301
  %v464 = vpack.c.b16 %v308, %v302
  %v465 = vpack.c.b16 %v309, %v303
  %v466 = vpack.c.b16 %v310, %v304
  %v467 = vpack.c.b16 %v311, %v305
  %v468 = vpack.c.b16 %v312, %v306
  %v469 = vpack.c.b16 %v319, %v313
  %v470 = vpack.c.b16 %v320, %v314
  %v471 = vpack.c.b16 %v321, %v315
  %v472 = vpack.c.b16 %v322, %v316
  %v473 = vpack.c.b16 %v323, %v317
  %v474 = vpack.c.b16 %v324, %v318
  %v475 = vpack.c.b16 %v331, %v325
  %v476 = vpack.c.b16 %v332, %v326
  %v477 = vpack.c.b16 %v333, %v327
  %v478 = vpack.c.b16 %v334, %v328
  %v479 = vpack.c.b16 %v335, %v329
  %v480 = vpack.c.b16 %v336, %v330
  %v481 = vpack.c.b16 %v343, %v337
  %v482 = vpack.c.b16 %v344, %v338
  %v483 = vpack.c.b16 %v345, %v339
  %v484 = vpack.c.b16 %v346, %v340
  %v485 = vpack.c.b16 %v347, %v341
  %v486 = vpack.c.b16 %v348, %v342
  %v487 = vpack.c.b16 %v355, %v349
  %v488 = vpack.c.b16 %v356, %v350
  %v489 = vpack.c.b16 %v357, %v351
  %v490 = vpack.c.b16 %v358, %v352
  %v491 = vpack.c.b16 %v359, %v353
  %v492 = vpack.c.b16 %v360, %v354
  %v493 = vpack.c.b16 %v367, %v361
  %v494 = vpack.c.b16 %v368, %v362
  %v495 = vpack.c.b16 %v369, %v363
  %v496 = vpack.c.b16 %v370, %v364
  %v497 = vpack.c.b16 %v371, %v365
  %v498 = vpack.c.b16 %v372, %v366
  %v499 = vpack.c.b16 %v379, %v373
  %v500 = vpack.c.b16 %v380, %v374
  %v501 = vpack.c.b16 %v381, %v375
  %v502 = vpack.c.b16 %v382, %v376
  %v503 = vpack.c.b16 %v383, %v377
  %v504 = vpack.c.b16 %v384, %v378
  %v505 = vpack.c.b16 %v391, %v385
  %v506 = vpack.c.b16 %v392, %v386
  %v507 = vpack.c.b16 %v393, %v387
  %v508 = vpack.c.b16 %v394, %v388
  %v509 = vpack.c.b16 %v395, %v389
  %v510 = vpack.c.b16 %v396, %v390
  %v511 = vpack.c.b16 %v403, %v397
  %v512 = vpack.c.b16 %v404, %v398
  %v513 = vpack.c.b16 %v405, %v399
  %v514 = vpack.c.b16 %v406, %v400
  %v515 = vpack.c.b16 %v407, %v401
  %v516 = vpack.c.b16 %v408, %v402
  %v517 = vpack.c.b16 %v415, %v409
  %v518 = vpack.c.b16 %v416, %v410
  %v519 = vpack.c.b16 %v417, %v411
  %v520 = vpack.c.b16 %v418, %v412
  %v521 = vpack.c.b16 %v419, %v413
  %v522 = vpack.c.b16 %v420, %v414
  %v523 = vpack.c.b16 %v427, %v421
  %v524 = vpack.c.b16 %v428, %v422
  %v525 = vpack.c.b16 %v429, %v423
  %v526 = vpack.c.b16 %v430, %v424
  %v527 = vpack.c.b16 %v431, %v425
  %v528 = vpack.c.b16 %v432, %v426
  %625 = vmatprep.subr.bf16.mxu0 %v434
  %626 = vmatpush1.bf16.msra.mxu0 %v433
  %627 = vmatprep.subr.bf16.mxu0 %v440
  %628 = vmatpush1.bf16.msra.mxu0 %v439
  %629 = vmatprep.subr.bf16.mxu0 %v446
  %630 = vmatpush1.bf16.msra.mxu0 %v445
  %631 = vmatprep.subr.bf16.mxu0 %v452
  %632 = vmatpush1.bf16.msra.mxu0 %v451
  %633 = vmatprep.subr.bf16.mxu0 %v458
  %634 = vmatpush1.bf16.msra.mxu0 %v457
  %635 = vmatprep.subr.bf16.mxu0 %v464
  %636 = vmatpush1.bf16.msra.mxu0 %v463
  %637 = vmatprep.subr.bf16.mxu0 %v470
  %638 = vmatpush1.bf16.msra.mxu0 %v469
  %639 = vmatprep.subr.bf16.mxu0 %v476
  %640 = vmatpush1.bf16.msra.mxu0 %v475
  %641 = vmatprep.subr.bf16.mxu0 %v482
  %642 = vmatpush1.bf16.msra.mxu0 %v481
  %643 = vmatprep.subr.bf16.mxu0 %v488
  %644 = vmatpush1.bf16.msra.mxu0 %v487
  %645 = vmatprep.subr.bf16.mxu0 %v494
  %646 = vmatpush1.bf16.msra.mxu0 %v493
  %647 = vmatprep.subr.bf16.mxu0 %v500
  %648 = vmatpush1.bf16.msra.mxu0 %v499
  %649 = vmatprep.subr.bf16.mxu0 %v506
  %650 = vmatpush1.bf16.msra.mxu0 %v505
  %651 = vmatprep.subr.bf16.mxu0 %v512
  %652 = vmatpush1.bf16.msra.mxu0 %v511
  %653 = vmatprep.subr.bf16.mxu0 %v518
  %654 = vmatpush1.bf16.msra.mxu0 %v517
  %655 = vmatprep.subr.bf16.mxu0 %v524
  %656 = vmatpush1.bf16.msra.mxu0 %v523
  %657 = vmatprep.mubr.bf16.mxu0 %v142
  %658 = vmatmul.mubr.bf16.gmra.mrb[0].mxu0 %v141
  %v659 = vpop.f32.mrb[0].mxu0
  %v660 = vadd.f32 0.0, %v659
  %v661 = vpop.f32.mrb[0].mxu0
  %v662 = vadd.f32 0.0, %v661
  %v663 = vpop.f32.mrb[0].mxu0
  %v664 = vadd.f32 0.0, %v663
  %v665 = vpop.f32.mrb[0].mxu0
  %v666 = vadd.f32 0.0, %v665
  %667 = vdwg.mxu0
  %668 = vmatprep.subr.bf16.mxu0 %v436
  %669 = vmatpush1.bf16.msra.mxu0 %v435
  %670 = vmatprep.subr.bf16.mxu0 %v442
  %671 = vmatpush1.bf16.msra.mxu0 %v441
  %672 = vmatprep.subr.bf16.mxu0 %v448
  %673 = vmatpush1.bf16.msra.mxu0 %v447
  %674 = vmatprep.subr.bf16.mxu0 %v454
  %675 = vmatpush1.bf16.msra.mxu0 %v453
  %676 = vmatprep.subr.bf16.mxu0 %v460
  %677 = vmatpush1.bf16.msra.mxu0 %v459
  %678 = vmatprep.subr.bf16.mxu0 %v466
  %679 = vmatpush1.bf16.msra.mxu0 %v465
  %680 = vmatprep.subr.bf16.mxu0 %v472
  %681 = vmatpush1.bf16.msra.mxu0 %v471
  %682 = vmatprep.subr.bf16.mxu0 %v478
  %683 = vmatpush1.bf16.msra.mxu0 %v477
  %684 = vmatprep.subr.bf16.mxu0 %v484
  %685 = vmatpush1.bf16.msra.mxu0 %v483
  %686 = vmatprep.subr.bf16.mxu0 %v490
  %687 = vmatpush1.bf16.msra.mxu0 %v489
  %688 = vmatprep.subr.bf16.mxu0 %v496
  %689 = vmatpush1.bf16.msra.mxu0 %v495
  %690 = vmatprep.subr.bf16.mxu0 %v502
  %691 = vmatpush1.bf16.msra.mxu0 %v501
  %692 = vmatprep.subr.bf16.mxu0 %v508
  %693 = vmatpush1.bf16.msra.mxu0 %v507
  %694 = vmatprep.subr.bf16.mxu0 %v514
  %695 = vmatpush1.bf16.msra.mxu0 %v513
  %696 = vmatprep.subr.bf16.mxu0 %v520
  %697 = vmatpush1.bf16.msra.mxu0 %v519
  %698 = vmatprep.subr.bf16.mxu0 %v526
  %699 = vmatpush1.bf16.msra.mxu0 %v525
  %700 = vmatprep.mubr.bf16.mxu0 %v142
  %701 = vmatmul.mubr.bf16.gmra.mrb[0].mxu0 %v141
  %v702 = vpop.f32.mrb[0].mxu0
  %v703 = vadd.f32 0.0, %v702
  %v704 = vpop.f32.mrb[0].mxu0
  %v705 = vadd.f32 0.0, %v704
  %v706 = vpop.f32.mrb[0].mxu0
  %v707 = vadd.f32 0.0, %v706
  %v708 = vpop.f32.mrb[0].mxu0
  %v709 = vadd.f32 0.0, %v708
  %710 = vdwg.mxu0
  %711 = vmatprep.subr.bf16.mxu0 %v438
  %712 = vmatpush1.bf16.msra.mxu0 %v437
  %713 = vmatprep.subr.bf16.mxu0 %v444
  %714 = vmatpush1.bf16.msra.mxu0 %v443
  %715 = vmatprep.subr.bf16.mxu0 %v450
  %716 = vmatpush1.bf16.msra.mxu0 %v449
  %717 = vmatprep.subr.bf16.mxu0 %v456
  %718 = vmatpush1.bf16.msra.mxu0 %v455
  %719 = vmatprep.subr.bf16.mxu0 %v462
  %720 = vmatpush1.bf16.msra.mxu0 %v461
  %721 = vmatprep.subr.bf16.mxu0 %v468
  %722 = vmatpush1.bf16.msra.mxu0 %v467
  %723 = vmatprep.subr.bf16.mxu0 %v474
  %724 = vmatpush1.bf16.msra.mxu0 %v473
  %725 = vmatprep.subr.bf16.mxu0 %v480
  %726 = vmatpush1.bf16.msra.mxu0 %v479
  %727 = vmatprep.subr.bf16.mxu0 %v486
  %728 = vmatpush1.bf16.msra.mxu0 %v485
  %729 = vmatprep.subr.bf16.mxu0 %v492
  %730 = vmatpush1.bf16.msra.mxu0 %v491
  %731 = vmatprep.subr.bf16.mxu0 %v498
  %732 = vmatpush1.bf16.msra.mxu0 %v497
  %733 = vmatprep.subr.bf16.mxu0 %v504
  %734 = vmatpush1.bf16.msra.mxu0 %v503
  %735 = vmatprep.subr.bf16.mxu0 %v510
  %736 = vmatpush1.bf16.msra.mxu0 %v509
  %737 = vmatprep.subr.bf16.mxu0 %v516
  %738 = vmatpush1.bf16.msra.mxu0 %v515
  %739 = vmatprep.subr.bf16.mxu0 %v522
  %740 = vmatpush1.bf16.msra.mxu0 %v521
  %741 = vmatprep.subr.bf16.mxu0 %v528
  %742 = vmatpush1.bf16.msra.mxu0 %v527
  %743 = vmatprep.mubr.bf16.mxu0 %v142
  %744 = vmatmul.mubr.bf16.gmra.mrb[0].mxu0 %v141
  %v745 = vpop.f32.mrb[0].mxu0
  %v746 = vadd.f32 0.0, %v745
  %v747 = vpop.f32.mrb[0].mxu0
  %v748 = vadd.f32 0.0, %v747
  %v749 = vpop.f32.mrb[0].mxu0
  %v750 = vadd.f32 0.0, %v749
  %v751 = vpop.f32.mrb[0].mxu0
  %v752 = vadd.f32 0.0, %v751
  %753 = vdwg.mxu0
  %v754 = vld [vmem:[%s2] sm:$0x3]
  %v755 = vmul.f32 %v660, %v660
  %v756 = vmul.f32 %v662, %v662
  %v757 = vmul.f32 %v664, %v664
  %v758 = vmul.f32 %v666, %v666
  %v759 = vadd.f32 %v755, %v756
  %760 = vadd.xlane.f32.xlu0 %v759
  %v761 = vpop.xlane.xlu0 %760
  %v762 = vadd.f32 %v757, %v758
  %763 = vadd.xlane.f32.xlu0 %v762
  %v764 = vpop.xlane.xlu0 %763
  %v765 = vrcp.pop 256.0
  %v766 = vmul.f32 %v761, %v765
  %v767 = vmul.f32 %v764, %v765
  %v768 = vadd.f32 %v766, 1e-05
  %v769 = vadd.f32 %v767, 1e-05
  %v770 = vrsqrt.pop %v768
  %v771 = vrsqrt.pop %v769
  %v772 = vmul.f32 %v660, %v770
  %v773 = vmul.f32 %v662, %v770
  %v774 = vmul.f32 %v664, %v771
  %v775 = vmul.f32 %v666, %v771
  %v777 = vlaneseq
  %v778 = vshrl.u32 %v777, 7
  %v779 = vsub.s32 0, %v778
  %v780 = vrot.slane %v754, %v779
  %v781 = vlaneseq
  %v782 = vshrl.u32 %v781, 7
  %v783 = vsub.s32 1, %v782
  %v784 = vrot.slane %v754, %v783
  %v787 = vmul.f32 %v772, %v780
  %v788 = vmul.f32 %v773, %v784
  %v789 = vmul.f32 %v774, %v780
  %v790 = vmul.f32 %v775, %v784
  %v791 = vld [vmem:[%s3] sm:$0x3]
  %v792 = vmul.f32 %v703, %v703
  %v793 = vmul.f32 %v705, %v705
  %v794 = vmul.f32 %v707, %v707
  %v795 = vmul.f32 %v709, %v709
  %v796 = vadd.f32 %v792, %v793
  %797 = vadd.xlane.f32.xlu0 %v796
  %v798 = vpop.xlane.xlu0 %797
  %v799 = vadd.f32 %v794, %v795
  %800 = vadd.xlane.f32.xlu0 %v799
  %v801 = vpop.xlane.xlu0 %800
  %v802 = vmul.f32 %v798, %v765
  %v803 = vmul.f32 %v801, %v765
  %v804 = vadd.f32 %v802, 1e-05
  %v805 = vadd.f32 %v803, 1e-05
  %v806 = vrsqrt.pop %v804
  %v807 = vrsqrt.pop %v805
  %v808 = vmul.f32 %v703, %v806
  %v809 = vmul.f32 %v705, %v806
  %v810 = vmul.f32 %v707, %v807
  %v811 = vmul.f32 %v709, %v807
  %v813 = vlaneseq
  %v814 = vshrl.u32 %v813, 7
  %v815 = vsub.s32 0, %v814
  %v816 = vrot.slane %v791, %v815
  %v817 = vlaneseq
  %v818 = vshrl.u32 %v817, 7
  %v819 = vsub.s32 1, %v818
  %v820 = vrot.slane %v791, %v819
  %v823 = vmul.f32 %v808, %v816
  %v824 = vmul.f32 %v809, %v820
  %v825 = vmul.f32 %v810, %v816
  %v826 = vmul.f32 %v811, %v820
  %v827 = vld [vmem:[%s4] sm:$0xff]
  %v828 = vld [vmem:[%s4 + $0x8] sm:$0xff]
  %v829 = vld [vmem:[%s5] sm:$0xff]
  %v830 = vld [vmem:[%s5 + $0x8] sm:$0xff]
  %v831 = vld [vmem:[%s6] sm:$0xff]
  %v832 = vld [vmem:[%s6 + $0x8] sm:$0xff]
  %v833 = vmul.f32 %v787, %v827
  %v834 = vmul.f32 %v789, %v828
  %835 = vrot.lane.b32.xlu0 %v787, 64
  %v836 = vpop.permute.xlu0 %835
  %837 = vrot.lane.b32.xlu0 %v789, 64
  %v838 = vpop.permute.xlu0 %837
  %v839 = vmul.f32 %v836, %v829
  %v840 = vmul.f32 %v838, %v830
  %v841 = vadd.f32 %v833, %v839
  %v842 = vadd.f32 %v834, %v840
  %v843 = vmul.f32 %v823, %v827
  %v844 = vmul.f32 %v825, %v828
  %845 = vrot.lane.b32.xlu0 %v823, 64
  %v846 = vpop.permute.xlu0 %845
  %847 = vrot.lane.b32.xlu0 %v825, 64
  %v848 = vpop.permute.xlu0 %847
  %v849 = vmul.f32 %v846, %v829
  %v850 = vmul.f32 %v848, %v830
  %v851 = vadd.f32 %v843, %v849
  %v852 = vadd.f32 %v844, %v850
  %v853 = vmul.f32 %v841, 0.088388346
  %v854 = vmul.f32 %v842, 0.088388346
  %855 = vmatprep.subr.mxu0 0.0
  %856 = vmatpush1.xpose.msra.mxu0 %v851
  %857 = vmatprep.subr.mxu0 0.0
  %858 = vmatpush1.xpose.msra.mxu0 %v852
  %859 = vmatprep.subr.mxu0 0.0
  %860 = vmatpush1.xpose.msra.mxu0 0.0
  %861 = vmatprep.subr.mxu0 0.0
  %862 = vmatpush1.xpose.msra.mxu0 0.0
  %863 = vmatprep.subr.mxu0 0.0
  %864 = vmatpush1.xpose.msra.mxu0 0.0
  %865 = vmatprep.subr.mxu0 0.0
  %866 = vmatpush1.xpose.msra.mxu0 0.0
  %867 = vmatprep.subr.mxu0 0.0
  %868 = vmatpush1.xpose.msra.mxu0 0.0
  %869 = vmatprep.subr.mxu0 0.0
  %870 = vmatpush1.xpose.msra.mxu0 0.0
  %871 = vmatprep.subr.mxu0 0.0
  %872 = vmatpush1.xpose.msra.mxu0 0.0
  %873 = vmatprep.subr.mxu0 0.0
  %874 = vmatpush1.xpose.msra.mxu0 0.0
  %875 = vmatprep.subr.mxu0 0.0
  %876 = vmatpush1.xpose.msra.mxu0 0.0
  %877 = vmatprep.subr.mxu0 0.0
  %878 = vmatpush1.xpose.msra.mxu0 0.0
  %879 = vmatprep.subr.mxu0 0.0
  %880 = vmatpush1.xpose.msra.mxu0 0.0
  %881 = vmatprep.subr.mxu0 0.0
  %882 = vmatpush1.xpose.msra.mxu0 0.0
  %883 = vmatprep.subr.mxu0 0.0
  %884 = vmatpush1.xpose.msra.mxu0 0.0
  %885 = vmatprep.subr.mxu0 0.0
  %886 = vmatpush1.xpose.msra.mxu0 0.0
  %887 = vmatprep.subr.mxu0 0.0
  %888 = vmatpush1.xpose.msra.mxu0 0.0
  %889 = vmatprep.subr.mxu0 0.0
  %890 = vmatpush1.xpose.msra.mxu0 0.0
  %891 = vmatprep.subr.mxu0 0.0
  %892 = vmatpush1.xpose.msra.mxu0 0.0
  %893 = vmatprep.subr.mxu0 0.0
  %894 = vmatpush1.xpose.msra.mxu0 0.0
  %895 = vmatprep.subr.mxu0 0.0
  %896 = vmatpush1.xpose.msra.mxu0 0.0
  %897 = vmatprep.subr.mxu0 0.0
  %898 = vmatpush1.xpose.msra.mxu0 0.0
  %899 = vmatprep.subr.mxu0 0.0
  %900 = vmatpush1.xpose.msra.mxu0 0.0
  %901 = vmatprep.subr.mxu0 0.0
  %902 = vmatpush1.xpose.msra.mxu0 0.0
  %903 = vmatprep.subr.mxu0 0.0
  %904 = vmatpush1.xpose.msra.mxu0 0.0
  %905 = vmatprep.subr.mxu0 0.0
  %906 = vmatpush1.xpose.msra.mxu0 0.0
  %907 = vmatprep.subr.mxu0 0.0
  %908 = vmatpush1.xpose.msra.mxu0 0.0
  %909 = vmatprep.subr.mxu0 0.0
  %910 = vmatpush1.xpose.msra.mxu0 0.0
  %911 = vmatprep.subr.mxu0 0.0
  %912 = vmatpush1.xpose.msra.mxu0 0.0
  %913 = vmatprep.subr.mxu0 0.0
  %914 = vmatpush1.xpose.msra.mxu0 0.0
  %915 = vmatprep.subr.mxu0 0.0
  %916 = vmatpush1.xpose.msra.mxu0 0.0
  %917 = vmatprep.subr.mxu0 0.0
  %918 = vmatpush1.xpose.msra.mxu0 0.0
  %919 = vmatprep.mubr.f32.mxu0 0.0
  %920 = vmatmul.mubr.f32.gmra.mrb[0].mxu0 %v853
  %v921 = vpop.f32.mrb[0].mxu0
  %v922 = vadd.f32 %v831, %v921
  %v923 = vpop.f32.mrb[0].mxu0
  %924 = vmatprep.mubr.f32.mxu0 0.0
  %925 = vmatmul.mubr.f32.gmra.mrb[0].mxu0 %v854
  %v926 = vpop.f32.mrb[0].mxu0
  %v927 = vadd.f32 %v832, %v926
  %v928 = vpop.f32.mrb[0].mxu0
  %929 = vdwg.mxu0
  %vm930 = vcmask 130048
  %v931 = vsel %vm930, %v922, -inf
  %932 = vmax.xlane.f32.xlu0 %v931
  %v933 = vpop.xlane.xlu0 %932
  %v934 = vsel %vm930, %v927, -inf
  %935 = vmax.xlane.f32.xlu0 %v934
  %v936 = vpop.xlane.xlu0 %935
  %v937 = vsub.f32 %v922, %v933
  %v938 = vsub.f32 %v927, %v936
  %v939 = vmul.f32 %v937, 1.442695
  %v940 = vpow.pop %v939
  %v941 = vmul.f32 %v938, 1.442695
  %v942 = vpow.pop %v941
  %v943 = vsel %vm930, %v940, 0.0
  %944 = vadd.xlane.f32.xlu0 %v943
  %v945 = vpop.xlane.xlu0 %944
  %v946 = vsel %vm930, %v942, 0.0
  %947 = vadd.xlane.f32.xlu0 %v946
  %v948 = vpop.xlane.xlu0 %947
  %v950 = vsel %vm930, %v940, 0
  %v953 = vsel %vm930, %v942, 0
  %955 = vmatprep.subr.mxu0 0.0
  %956 = vmatpush1.msra.mxu0 %v746
  %957 = vmatprep.subr.mxu0 0.0
  %958 = vmatpush1.msra.mxu0 %v750
  %959 = vmatprep.subr.mxu0 0.0
  %960 = vmatpush1.msra.mxu0 0.0
  %961 = vmatprep.subr.mxu0 0.0
  %962 = vmatpush1.msra.mxu0 0.0
  %963 = vmatprep.subr.mxu0 0.0
  %964 = vmatpush1.msra.mxu0 0.0
  %965 = vmatprep.subr.mxu0 0.0
  %966 = vmatpush1.msra.mxu0 0.0
  %967 = vmatprep.subr.mxu0 0.0
  %968 = vmatpush1.msra.mxu0 0.0
  %969 = vmatprep.subr.mxu0 0.0
  %970 = vmatpush1.msra.mxu0 0.0
  %971 = vmatprep.subr.mxu0 0.0
  %972 = vmatpush1.msra.mxu0 0.0
  %973 = vmatprep.subr.mxu0 0.0
  %974 = vmatpush1.msra.mxu0 0.0
  %975 = vmatprep.subr.mxu0 0.0
  %976 = vmatpush1.msra.mxu0 0.0
  %977 = vmatprep.subr.mxu0 0.0
  %978 = vmatpush1.msra.mxu0 0.0
  %979 = vmatprep.subr.mxu0 0.0
  %980 = vmatpush1.msra.mxu0 0.0
  %981 = vmatprep.subr.mxu0 0.0
  %982 = vmatpush1.msra.mxu0 0.0
  %983 = vmatprep.subr.mxu0 0.0
  %984 = vmatpush1.msra.mxu0 0.0
  %985 = vmatprep.subr.mxu0 0.0
  %986 = vmatpush1.msra.mxu0 0.0
  %987 = vmatprep.subr.mxu0 0.0
  %988 = vmatpush1.msra.mxu0 0.0
  %989 = vmatprep.subr.mxu0 0.0
  %990 = vmatpush1.msra.mxu0 0.0
  %991 = vmatprep.subr.mxu0 0.0
  %992 = vmatpush1.msra.mxu0 0.0
  %993 = vmatprep.subr.mxu0 0.0
  %994 = vmatpush1.msra.mxu0 0.0
  %995 = vmatprep.subr.mxu0 0.0
  %996 = vmatpush1.msra.mxu0 0.0
  %997 = vmatprep.subr.mxu0 0.0
  %998 = vmatpush1.msra.mxu0 0.0
  %999 = vmatprep.subr.mxu0 0.0
  %1000 = vmatpush1.msra.mxu0 0.0
  %1001 = vmatprep.subr.mxu0 0.0
  %1002 = vmatpush1.msra.mxu0 0.0
  %1003 = vmatprep.subr.mxu0 0.0
  %1004 = vmatpush1.msra.mxu0 0.0
  %1005 = vmatprep.subr.mxu0 0.0
  %1006 = vmatpush1.msra.mxu0 0.0
  %1007 = vmatprep.subr.mxu0 0.0
  %1008 = vmatpush1.msra.mxu0 0.0
  %1009 = vmatprep.subr.mxu0 0.0
  %1010 = vmatpush1.msra.mxu0 0.0
  %1011 = vmatprep.subr.mxu0 0.0
  %1012 = vmatpush1.msra.mxu0 0.0
  %1013 = vmatprep.subr.mxu0 0.0
  %1014 = vmatpush1.msra.mxu0 0.0
  %1015 = vmatprep.subr.mxu0 0.0
  %1016 = vmatpush1.msra.mxu0 0.0
  %1017 = vmatprep.subr.mxu0 0.0
  %1018 = vmatpush1.msra.mxu0 0.0
  %1019 = vmatprep.mubr.f32.mxu0 0.0
  %1020 = vmatmul.mubr.f32.gmra.mrb[0].mxu0 %v950
  %v1021 = vpop.f32.mrb[0].mxu0
  %v1022 = vadd.f32 0.0, %v1021
  %v1023 = vpop.f32.mrb[0].mxu0
  %1024 = vmatprep.mubr.f32.mxu0 0.0
  %1025 = vmatmul.mubr.f32.gmra.mrb[0].mxu0 %v953
  %v1026 = vpop.f32.mrb[0].mxu0
  %v1027 = vadd.f32 0.0, %v1026
  %v1028 = vpop.f32.mrb[0].mxu0
  %1029 = vdwg.mxu0
  %v1030 = vrcp.pop %v945
  %v1031 = vmul.f32 %v1022, %v1030
  %v1032 = vrcp.pop %v948
  %v1033 = vmul.f32 %v1027, %v1032
  %v1034 = vpack.c.bf16 %v1033, %v1031
  %v1035 = vld [vmem:[%s7] sm:$0xff]
  %v1036 = vld [vmem:[%s7 + $0x8] sm:$0xff]
  %v1037 = vld [vmem:[%s7 + $0x10] sm:$0xff]
  %v1038 = vld [vmem:[%s7 + $0x18] sm:$0xff]
  %v1039 = vld [vmem:[%s7 + $0x20] sm:$0xff]
  %v1040 = vld [vmem:[%s7 + $0x28] sm:$0xff]
  %v1041 = vld [vmem:[%s7 + $0x30] sm:$0xff]
  %v1042 = vld [vmem:[%s7 + $0x38] sm:$0xff]
  %v1043 = vld [vmem:[%s7 + $0x40] sm:$0xff]
  %v1044 = vld [vmem:[%s7 + $0x48] sm:$0xff]
  %v1045 = vld [vmem:[%s7 + $0x50] sm:$0xff]
  %v1046 = vld [vmem:[%s7 + $0x58] sm:$0xff]
  %v1047 = vld [vmem:[%s7 + $0x60] sm:$0xff]
  %v1048 = vld [vmem:[%s7 + $0x68] sm:$0xff]
  %v1049 = vld [vmem:[%s7 + $0x70] sm:$0xff]
  %v1050 = vld [vmem:[%s7 + $0x78] sm:$0xff]
  %v1051 = vmul.f32 %v788, %v827
  %v1052 = vmul.f32 %v790, %v828
  %1053 = vrot.lane.b32.xlu0 %v788, 64
  %v1054 = vpop.permute.xlu0 %1053
  %1055 = vrot.lane.b32.xlu0 %v790, 64
  %v1056 = vpop.permute.xlu0 %1055
  %v1057 = vmul.f32 %v1054, %v829
  %v1058 = vmul.f32 %v1056, %v830
  %v1059 = vadd.f32 %v1051, %v1057
  %v1060 = vadd.f32 %v1052, %v1058
  %v1061 = vmul.f32 %v824, %v827
  %v1062 = vmul.f32 %v826, %v828
  %1063 = vrot.lane.b32.xlu0 %v824, 64
  %v1064 = vpop.permute.xlu0 %1063
  %1065 = vrot.lane.b32.xlu0 %v826, 64
  %v1066 = vpop.permute.xlu0 %1065
  %v1067 = vmul.f32 %v1064, %v829
  %v1068 = vmul.f32 %v1066, %v830
  %v1069 = vadd.f32 %v1061, %v1067
  %v1070 = vadd.f32 %v1062, %v1068
  %v1071 = vmul.f32 %v1059, 0.088388346
  %v1072 = vmul.f32 %v1060, 0.088388346
  %1073 = vmatprep.subr.mxu0 0.0
  %1074 = vmatpush1.xpose.msra.mxu0 %v1069
  %1075 = vmatprep.subr.mxu0 0.0
  %1076 = vmatpush1.xpose.msra.mxu0 %v1070
  %1077 = vmatprep.subr.mxu0 0.0
  %1078 = vmatpush1.xpose.msra.mxu0 0.0
  %1079 = vmatprep.subr.mxu0 0.0
  %1080 = vmatpush1.xpose.msra.mxu0 0.0
  %1081 = vmatprep.subr.mxu0 0.0
  %1082 = vmatpush1.xpose.msra.mxu0 0.0
  %1083 = vmatprep.subr.mxu0 0.0
  %1084 = vmatpush1.xpose.msra.mxu0 0.0
  %1085 = vmatprep.subr.mxu0 0.0
  %1086 = vmatpush1.xpose.msra.mxu0 0.0
  %1087 = vmatprep.subr.mxu0 0.0
  %1088 = vmatpush1.xpose.msra.mxu0 0.0
  %1089 = vmatprep.subr.mxu0 0.0
  %1090 = vmatpush1.xpose.msra.mxu0 0.0
  %1091 = vmatprep.subr.mxu0 0.0
  %1092 = vmatpush1.xpose.msra.mxu0 0.0
  %1093 = vmatprep.subr.mxu0 0.0
  %1094 = vmatpush1.xpose.msra.mxu0 0.0
  %1095 = vmatprep.subr.mxu0 0.0
  %1096 = vmatpush1.xpose.msra.mxu0 0.0
  %1097 = vmatprep.subr.mxu0 0.0
  %1098 = vmatpush1.xpose.msra.mxu0 0.0
  %1099 = vmatprep.subr.mxu0 0.0
  %1100 = vmatpush1.xpose.msra.mxu0 0.0
  %1101 = vmatprep.subr.mxu0 0.0
  %1102 = vmatpush1.xpose.msra.mxu0 0.0
  %1103 = vmatprep.subr.mxu0 0.0
  %1104 = vmatpush1.xpose.msra.mxu0 0.0
  %1105 = vmatprep.subr.mxu0 0.0
  %1106 = vmatpush1.xpose.msra.mxu0 0.0
  %1107 = vmatprep.subr.mxu0 0.0
  %1108 = vmatpush1.xpose.msra.mxu0 0.0
  %1109 = vmatprep.subr.mxu0 0.0
  %1110 = vmatpush1.xpose.msra.mxu0 0.0
  %1111 = vmatprep.subr.mxu0 0.0
  %1112 = vmatpush1.xpose.msra.mxu0 0.0
  %1113 = vmatprep.subr.mxu0 0.0
  %1114 = vmatpush1.xpose.msra.mxu0 0.0
  %1115 = vmatprep.subr.mxu0 0.0
  %1116 = vmatpush1.xpose.msra.mxu0 0.0
  %1117 = vmatprep.subr.mxu0 0.0
  %1118 = vmatpush1.xpose.msra.mxu0 0.0
  %1119 = vmatprep.subr.mxu0 0.0
  %1120 = vmatpush1.xpose.msra.mxu0 0.0
  %1121 = vmatprep.subr.mxu0 0.0
  %1122 = vmatpush1.xpose.msra.mxu0 0.0
  %1123 = vmatprep.subr.mxu0 0.0
  %1124 = vmatpush1.xpose.msra.mxu0 0.0
  %1125 = vmatprep.subr.mxu0 0.0
  %1126 = vmatpush1.xpose.msra.mxu0 0.0
  %1127 = vmatprep.subr.mxu0 0.0
  %1128 = vmatpush1.xpose.msra.mxu0 0.0
  %1129 = vmatprep.subr.mxu0 0.0
  %1130 = vmatpush1.xpose.msra.mxu0 0.0
  %1131 = vmatprep.subr.mxu0 0.0
  %1132 = vmatpush1.xpose.msra.mxu0 0.0
  %1133 = vmatprep.subr.mxu0 0.0
  %1134 = vmatpush1.xpose.msra.mxu0 0.0
  %1135 = vmatprep.subr.mxu0 0.0
  %1136 = vmatpush1.xpose.msra.mxu0 0.0
  %1137 = vmatprep.mubr.f32.mxu0 0.0
  %1138 = vmatmul.mubr.f32.gmra.mrb[0].mxu0 %v1071
  %v1139 = vpop.f32.mrb[0].mxu0
  %v1140 = vadd.f32 %v831, %v1139
  %v1141 = vpop.f32.mrb[0].mxu0
  %1142 = vmatprep.mubr.f32.mxu0 0.0
  %1143 = vmatmul.mubr.f32.gmra.mrb[0].mxu0 %v1072
  %v1144 = vpop.f32.mrb[0].mxu0
  %v1145 = vadd.f32 %v832, %v1144
  %v1146 = vpop.f32.mrb[0].mxu0
  %1147 = vdwg.mxu0
  %v1148 = vsel %vm930, %v1140, -inf
  %1149 = vmax.xlane.f32.xlu0 %v1148
  %v1150 = vpop.xlane.xlu0 %1149
  %v1151 = vsel %vm930, %v1145, -inf
  %1152 = vmax.xlane.f32.xlu0 %v1151
  %v1153 = vpop.xlane.xlu0 %1152
  %v1154 = vsub.f32 %v1140, %v1150
  %v1155 = vsub.f32 %v1145, %v1153
  %v1156 = vmul.f32 %v1154, 1.442695
  %v1157 = vpow.pop %v1156
  %v1158 = vmul.f32 %v1155, 1.442695
  %v1159 = vpow.pop %v1158
  %v1160 = vsel %vm930, %v1157, 0.0
  %1161 = vadd.xlane.f32.xlu0 %v1160
  %v1162 = vpop.xlane.xlu0 %1161
  %v1163 = vsel %vm930, %v1159, 0.0
  %1164 = vadd.xlane.f32.xlu0 %v1163
  %v1165 = vpop.xlane.xlu0 %1164
  %v1167 = vsel %vm930, %v1157, 0
  %v1170 = vsel %vm930, %v1159, 0
  %1172 = vmatprep.subr.mxu0 0.0
  %1173 = vmatpush1.msra.mxu0 %v748
  %1174 = vmatprep.subr.mxu0 0.0
  %1175 = vmatpush1.msra.mxu0 %v752
  %1176 = vmatprep.subr.mxu0 0.0
  %1177 = vmatpush1.msra.mxu0 0.0
  %1178 = vmatprep.subr.mxu0 0.0
  %1179 = vmatpush1.msra.mxu0 0.0
  %1180 = vmatprep.subr.mxu0 0.0
  %1181 = vmatpush1.msra.mxu0 0.0
  %1182 = vmatprep.subr.mxu0 0.0
  %1183 = vmatpush1.msra.mxu0 0.0
  %1184 = vmatprep.subr.mxu0 0.0
  %1185 = vmatpush1.msra.mxu0 0.0
  %1186 = vmatprep.subr.mxu0 0.0
  %1187 = vmatpush1.msra.mxu0 0.0
  %1188 = vmatprep.subr.mxu0 0.0
  %1189 = vmatpush1.msra.mxu0 0.0
  %1190 = vmatprep.subr.mxu0 0.0
  %1191 = vmatpush1.msra.mxu0 0.0
  %1192 = vmatprep.subr.mxu0 0.0
  %1193 = vmatpush1.msra.mxu0 0.0
  %1194 = vmatprep.subr.mxu0 0.0
  %1195 = vmatpush1.msra.mxu0 0.0
  %1196 = vmatprep.subr.mxu0 0.0
  %1197 = vmatpush1.msra.mxu0 0.0
  %1198 = vmatprep.subr.mxu0 0.0
  %1199 = vmatpush1.msra.mxu0 0.0
  %1200 = vmatprep.subr.mxu0 0.0
  %1201 = vmatpush1.msra.mxu0 0.0
  %1202 = vmatprep.subr.mxu0 0.0
  %1203 = vmatpush1.msra.mxu0 0.0
  %1204 = vmatprep.subr.mxu0 0.0
  %1205 = vmatpush1.msra.mxu0 0.0
  %1206 = vmatprep.subr.mxu0 0.0
  %1207 = vmatpush1.msra.mxu0 0.0
  %1208 = vmatprep.subr.mxu0 0.0
  %1209 = vmatpush1.msra.mxu0 0.0
  %1210 = vmatprep.subr.mxu0 0.0
  %1211 = vmatpush1.msra.mxu0 0.0
  %1212 = vmatprep.subr.mxu0 0.0
  %1213 = vmatpush1.msra.mxu0 0.0
  %1214 = vmatprep.subr.mxu0 0.0
  %1215 = vmatpush1.msra.mxu0 0.0
  %1216 = vmatprep.subr.mxu0 0.0
  %1217 = vmatpush1.msra.mxu0 0.0
  %1218 = vmatprep.subr.mxu0 0.0
  %1219 = vmatpush1.msra.mxu0 0.0
  %1220 = vmatprep.subr.mxu0 0.0
  %1221 = vmatpush1.msra.mxu0 0.0
  %1222 = vmatprep.subr.mxu0 0.0
  %1223 = vmatpush1.msra.mxu0 0.0
  %1224 = vmatprep.subr.mxu0 0.0
  %1225 = vmatpush1.msra.mxu0 0.0
  %1226 = vmatprep.subr.mxu0 0.0
  %1227 = vmatpush1.msra.mxu0 0.0
  %1228 = vmatprep.subr.mxu0 0.0
  %1229 = vmatpush1.msra.mxu0 0.0
  %1230 = vmatprep.subr.mxu0 0.0
  %1231 = vmatpush1.msra.mxu0 0.0
  %1232 = vmatprep.subr.mxu0 0.0
  %1233 = vmatpush1.msra.mxu0 0.0
  %1234 = vmatprep.subr.mxu0 0.0
  %1235 = vmatpush1.msra.mxu0 0.0
  %1236 = vmatprep.mubr.f32.mxu0 0.0
  %1237 = vmatmul.mubr.f32.gmra.mrb[0].mxu0 %v1167
  %v1238 = vpop.f32.mrb[0].mxu0
  %v1239 = vadd.f32 0.0, %v1238
  %v1240 = vpop.f32.mrb[0].mxu0
  %1241 = vmatprep.mubr.f32.mxu0 0.0
  %1242 = vmatmul.mubr.f32.gmra.mrb[0].mxu0 %v1170
  %v1243 = vpop.f32.mrb[0].mxu0
  %v1244 = vadd.f32 0.0, %v1243
  %v1245 = vpop.f32.mrb[0].mxu0
  %1246 = vdwg.mxu0
  %v1247 = vrcp.pop %v1162
  %v1248 = vmul.f32 %v1239, %v1247
  %v1249 = vrcp.pop %v1165
  %v1250 = vmul.f32 %v1244, %v1249
  %v1251 = vpack.c.bf16 %v1250, %v1248
  %v1252 = vld [vmem:[%s7 + $0x80] sm:$0xff]
  %v1253 = vld [vmem:[%s7 + $0x88] sm:$0xff]
  %v1254 = vld [vmem:[%s7 + $0x90] sm:$0xff]
  %v1255 = vld [vmem:[%s7 + $0x98] sm:$0xff]
  %v1256 = vld [vmem:[%s7 + $0xa0] sm:$0xff]
  %v1257 = vld [vmem:[%s7 + $0xa8] sm:$0xff]
  %v1258 = vld [vmem:[%s7 + $0xb0] sm:$0xff]
  %v1259 = vld [vmem:[%s7 + $0xb8] sm:$0xff]
  %v1260 = vld [vmem:[%s7 + $0xc0] sm:$0xff]
  %v1261 = vld [vmem:[%s7 + $0xc8] sm:$0xff]
  %v1262 = vld [vmem:[%s7 + $0xd0] sm:$0xff]
  %v1263 = vld [vmem:[%s7 + $0xd8] sm:$0xff]
  %v1264 = vld [vmem:[%s7 + $0xe0] sm:$0xff]
  %v1265 = vld [vmem:[%s7 + $0xe8] sm:$0xff]
  %v1266 = vld [vmem:[%s7 + $0xf0] sm:$0xff]
  %v1267 = vld [vmem:[%s7 + $0xf8] sm:$0xff]
  %v1284 = vunpack.c.l.b16 %v1252
  %v1285 = vunpack.c.h.b16 %v1252
  %v1286 = vunpack.c.l.b16 %v1253
  %v1287 = vunpack.c.h.b16 %v1253
  %v1288 = vunpack.c.l.b16 %v1254
  %v1289 = vunpack.c.h.b16 %v1254
  %v1290 = vunpack.c.l.b16 %v1255
  %v1291 = vunpack.c.h.b16 %v1255
  %v1292 = vunpack.c.l.b16 %v1256
  %v1293 = vunpack.c.h.b16 %v1256
  %v1294 = vunpack.c.l.b16 %v1257
  %v1295 = vunpack.c.h.b16 %v1257
  %v1296 = vunpack.c.l.b16 %v1258
  %v1297 = vunpack.c.h.b16 %v1258
  %v1298 = vunpack.c.l.b16 %v1259
  %v1299 = vunpack.c.h.b16 %v1259
  %v1300 = vunpack.c.l.b16 %v1260
  %v1301 = vunpack.c.h.b16 %v1260
  %v1302 = vunpack.c.l.b16 %v1261
  %v1303 = vunpack.c.h.b16 %v1261
  %v1304 = vunpack.c.l.b16 %v1262
  %v1305 = vunpack.c.h.b16 %v1262
  %v1306 = vunpack.c.l.b16 %v1263
  %v1307 = vunpack.c.h.b16 %v1263
  %v1308 = vunpack.c.l.b16 %v1264
  %v1309 = vunpack.c.h.b16 %v1264
  %v1310 = vunpack.c.l.b16 %v1265
  %v1311 = vunpack.c.h.b16 %v1265
  %v1312 = vunpack.c.l.b16 %v1266
  %v1313 = vunpack.c.h.b16 %v1266
  %v1314 = vunpack.c.l.b16 %v1267
  %v1315 = vunpack.c.h.b16 %v1267
  %v1316 = vpack.c.b16 %v1286, %v1284
  %v1317 = vpack.c.b16 %v1287, %v1285
  %v1318 = vpack.c.b16 %v1290, %v1288
  %v1319 = vpack.c.b16 %v1291, %v1289
  %v1320 = vpack.c.b16 %v1294, %v1292
  %v1321 = vpack.c.b16 %v1295, %v1293
  %v1322 = vpack.c.b16 %v1298, %v1296
  %v1323 = vpack.c.b16 %v1299, %v1297
  %v1324 = vpack.c.b16 %v1302, %v1300
  %v1325 = vpack.c.b16 %v1303, %v1301
  %v1326 = vpack.c.b16 %v1306, %v1304
  %v1327 = vpack.c.b16 %v1307, %v1305
  %v1328 = vpack.c.b16 %v1310, %v1308
  %v1329 = vpack.c.b16 %v1311, %v1309
  %v1330 = vpack.c.b16 %v1314, %v1312
  %v1331 = vpack.c.b16 %v1315, %v1313
  %1348 = vmatprep.subr.bf16.mxu0 %v1317
  %1349 = vmatpush1.bf16.msra.mxu0 %v1316
  %1350 = vmatprep.subr.bf16.mxu0 %v1319
  %1351 = vmatpush1.bf16.msra.mxu0 %v1318
  %1352 = vmatprep.subr.bf16.mxu0 %v1321
  %1353 = vmatpush1.bf16.msra.mxu0 %v1320
  %1354 = vmatprep.subr.bf16.mxu0 %v1323
  %1355 = vmatpush1.bf16.msra.mxu0 %v1322
  %1356 = vmatprep.subr.bf16.mxu0 %v1325
  %1357 = vmatpush1.bf16.msra.mxu0 %v1324
  %1358 = vmatprep.subr.bf16.mxu0 %v1327
  %1359 = vmatpush1.bf16.msra.mxu0 %v1326
  %1360 = vmatprep.subr.bf16.mxu0 %v1329
  %1361 = vmatpush1.bf16.msra.mxu0 %v1328
  %1362 = vmatprep.subr.bf16.mxu0 %v1331
  %1363 = vmatpush1.bf16.msra.mxu0 %v1330
  %1364 = vmatprep.subr.bf16.mxu0 0
  %1365 = vmatpush1.bf16.msra.mxu0 0
  %1366 = vmatprep.subr.bf16.mxu0 0
  %1367 = vmatpush1.bf16.msra.mxu0 0
  %1368 = vmatprep.subr.bf16.mxu0 0
  %1369 = vmatpush1.bf16.msra.mxu0 0
  %1370 = vmatprep.subr.bf16.mxu0 0
  %1371 = vmatpush1.bf16.msra.mxu0 0
  %1372 = vmatprep.subr.bf16.mxu0 0
  %1373 = vmatpush1.bf16.msra.mxu0 0
  %1374 = vmatprep.subr.bf16.mxu0 0
  %1375 = vmatpush1.bf16.msra.mxu0 0
  %1376 = vmatprep.subr.bf16.mxu0 0
  %1377 = vmatpush1.bf16.msra.mxu0 0
  %1378 = vmatprep.subr.bf16.mxu0 0
  %1379 = vmatpush1.bf16.msra.mxu0 0
  %1380 = vmatprep.mubr.bf16.mxu0 0
  %1381 = vmatmul.mubr.bf16.gmra.mrb[0].mxu0 %v1251
  %v1382 = vpop.f32.mrb[0].mxu0
  %v1383 = vadd.f32 0.0, %v1382
  %v1384 = vpop.f32.mrb[0].mxu0
  %v1385 = vadd.f32 0.0, %v1384
  %v1386 = vpop.f32.mrb[0].mxu0
  %v1387 = vadd.f32 0.0, %v1386
  %v1388 = vpop.f32.mrb[0].mxu0
  %v1389 = vadd.f32 0.0, %v1388
  %1390 = vdwg.mxu0
  %v1407 = vunpack.c.l.b16 %v1035
  %v1408 = vunpack.c.h.b16 %v1035
  %v1409 = vunpack.c.l.b16 %v1036
  %v1410 = vunpack.c.h.b16 %v1036
  %v1411 = vunpack.c.l.b16 %v1037
  %v1412 = vunpack.c.h.b16 %v1037
  %v1413 = vunpack.c.l.b16 %v1038
  %v1414 = vunpack.c.h.b16 %v1038
  %v1415 = vunpack.c.l.b16 %v1039
  %v1416 = vunpack.c.h.b16 %v1039
  %v1417 = vunpack.c.l.b16 %v1040
  %v1418 = vunpack.c.h.b16 %v1040
  %v1419 = vunpack.c.l.b16 %v1041
  %v1420 = vunpack.c.h.b16 %v1041
  %v1421 = vunpack.c.l.b16 %v1042
  %v1422 = vunpack.c.h.b16 %v1042
  %v1423 = vunpack.c.l.b16 %v1043
  %v1424 = vunpack.c.h.b16 %v1043
  %v1425 = vunpack.c.l.b16 %v1044
  %v1426 = vunpack.c.h.b16 %v1044
  %v1427 = vunpack.c.l.b16 %v1045
  %v1428 = vunpack.c.h.b16 %v1045
  %v1429 = vunpack.c.l.b16 %v1046
  %v1430 = vunpack.c.h.b16 %v1046
  %v1431 = vunpack.c.l.b16 %v1047
  %v1432 = vunpack.c.h.b16 %v1047
  %v1433 = vunpack.c.l.b16 %v1048
  %v1434 = vunpack.c.h.b16 %v1048
  %v1435 = vunpack.c.l.b16 %v1049
  %v1436 = vunpack.c.h.b16 %v1049
  %v1437 = vunpack.c.l.b16 %v1050
  %v1438 = vunpack.c.h.b16 %v1050
  %v1439 = vpack.c.b16 %v1409, %v1407
  %v1440 = vpack.c.b16 %v1410, %v1408
  %v1441 = vpack.c.b16 %v1413, %v1411
  %v1442 = vpack.c.b16 %v1414, %v1412
  %v1443 = vpack.c.b16 %v1417, %v1415
  %v1444 = vpack.c.b16 %v1418, %v1416
  %v1445 = vpack.c.b16 %v1421, %v1419
  %v1446 = vpack.c.b16 %v1422, %v1420
  %v1447 = vpack.c.b16 %v1425, %v1423
  %v1448 = vpack.c.b16 %v1426, %v1424
  %v1449 = vpack.c.b16 %v1429, %v1427
  %v1450 = vpack.c.b16 %v1430, %v1428
  %v1451 = vpack.c.b16 %v1433, %v1431
  %v1452 = vpack.c.b16 %v1434, %v1432
  %v1453 = vpack.c.b16 %v1437, %v1435
  %v1454 = vpack.c.b16 %v1438, %v1436
  %1471 = vmatprep.subr.bf16.mxu0 %v1440
  %1472 = vmatpush1.bf16.msra.mxu0 %v1439
  %1473 = vmatprep.subr.bf16.mxu0 %v1442
  %1474 = vmatpush1.bf16.msra.mxu0 %v1441
  %1475 = vmatprep.subr.bf16.mxu0 %v1444
  %1476 = vmatpush1.bf16.msra.mxu0 %v1443
  %1477 = vmatprep.subr.bf16.mxu0 %v1446
  %1478 = vmatpush1.bf16.msra.mxu0 %v1445
  %1479 = vmatprep.subr.bf16.mxu0 %v1448
  %1480 = vmatpush1.bf16.msra.mxu0 %v1447
  %1481 = vmatprep.subr.bf16.mxu0 %v1450
  %1482 = vmatpush1.bf16.msra.mxu0 %v1449
  %1483 = vmatprep.subr.bf16.mxu0 %v1452
  %1484 = vmatpush1.bf16.msra.mxu0 %v1451
  %1485 = vmatprep.subr.bf16.mxu0 %v1454
  %1486 = vmatpush1.bf16.msra.mxu0 %v1453
  %1487 = vmatprep.subr.bf16.mxu0 0
  %1488 = vmatpush1.bf16.msra.mxu0 0
  %1489 = vmatprep.subr.bf16.mxu0 0
  %1490 = vmatpush1.bf16.msra.mxu0 0
  %1491 = vmatprep.subr.bf16.mxu0 0
  %1492 = vmatpush1.bf16.msra.mxu0 0
  %1493 = vmatprep.subr.bf16.mxu0 0
  %1494 = vmatpush1.bf16.msra.mxu0 0
  %1495 = vmatprep.subr.bf16.mxu0 0
  %1496 = vmatpush1.bf16.msra.mxu0 0
  %1497 = vmatprep.subr.bf16.mxu0 0
  %1498 = vmatpush1.bf16.msra.mxu0 0
  %1499 = vmatprep.subr.bf16.mxu0 0
  %1500 = vmatpush1.bf16.msra.mxu0 0
  %1501 = vmatprep.subr.bf16.mxu0 0
  %1502 = vmatpush1.bf16.msra.mxu0 0
  %1503 = vmatprep.mubr.bf16.mxu0 0
  %1504 = vmatmul.mubr.bf16.gmra.mrb[0].mxu0 %v1034
  %v1505 = vpop.f32.mrb[0].mxu0
  %v1506 = vadd.f32 %v1383, %v1505
  %v1507 = vpop.f32.mrb[0].mxu0
  %v1508 = vadd.f32 %v1385, %v1507
  %v1509 = vpop.f32.mrb[0].mxu0
  %v1510 = vadd.f32 %v1387, %v1509
  %v1511 = vpop.f32.mrb[0].mxu0
  %v1512 = vadd.f32 %v1389, %v1511
  %1513 = vdwg.mxu0
  %v1514 = vld [vmem:[%s8] sm:$0x3]
  %v1515 = vmul.f32 %v1506, %v1506
  %v1516 = vmul.f32 %v1508, %v1508
  %v1517 = vmul.f32 %v1510, %v1510
  %v1518 = vmul.f32 %v1512, %v1512
  %v1519 = vadd.f32 %v1515, %v1516
  %1520 = vadd.xlane.f32.xlu0 %v1519
  %v1521 = vpop.xlane.xlu0 %1520
  %v1522 = vadd.f32 %v1517, %v1518
  %1523 = vadd.xlane.f32.xlu0 %v1522
  %v1524 = vpop.xlane.xlu0 %1523
  %v1525 = vmul.f32 %v1521, %v765
  %v1526 = vmul.f32 %v1524, %v765
  %v1527 = vadd.f32 %v1525, 1e-05
  %v1528 = vadd.f32 %v1526, 1e-05
  %v1529 = vrsqrt.pop %v1527
  %v1530 = vrsqrt.pop %v1528
  %v1531 = vmul.f32 %v1506, %v1529
  %v1532 = vmul.f32 %v1508, %v1529
  %v1533 = vmul.f32 %v1510, %v1530
  %v1534 = vmul.f32 %v1512, %v1530
  %v1536 = vlaneseq
  %v1537 = vshrl.u32 %v1536, 7
  %v1538 = vsub.s32 0, %v1537
  %v1539 = vrot.slane %v1514, %v1538
  %v1540 = vlaneseq
  %v1541 = vshrl.u32 %v1540, 7
  %v1542 = vsub.s32 1, %v1541
  %v1543 = vrot.slane %v1514, %v1542
  %v1546 = vmul.f32 %v1531, %v1539
  %v1547 = vmul.f32 %v1532, %v1543
  %v1548 = vmul.f32 %v1533, %v1539
  %v1549 = vmul.f32 %v1534, %v1543
  %v1550 = vadd.f32 %v1546, %v35
  %v1551 = vadd.f32 %v1547, %v36
  %v1552 = vadd.f32 %v1548, %v37
  %v1553 = vadd.f32 %v1549, %v38
  %v1554 = vpack.c.bf16 %v1552, %v1550
  %v1555 = vpack.c.bf16 %v1553, %v1551
  %v1558 = vunpack.c.l.b16 %v1554
  %v1559 = vunpack.c.l.b16 %v1555
  %v1560 = vunpack.c.h.b16 %v1554
  %v1561 = vunpack.c.h.b16 %v1555
  %v1562 = vpack.c.b16 %v1559, %v1558
  %v1563 = vpack.c.b16 %v1561, %v1560
  %1566 = vst [vmem:[%s9] sm:$0xff] %v1562
  %1567 = vst [vmem:[%s9 + $0x8] sm:$0xff] %v1563
  // Predicated region
  $region38: #{olmo2_forward.8} parent=0 // pred_check
    _
  $region39: #{olmo2_forward.8} parent=0 // pred_check_branch
    %1569 = sbr.rel (0) target = $region41
  $region40: #{olmo2_forward.8} parent=0 // pred_region
    _
  $region41: #{olmo2_forward.8} parent=0 // pred_fallthru
    _
  // Predicated region
  $region42: #{olmo2_forward.8} parent=0 // pred_check
    _
  $region43: #{olmo2_forward.8} parent=0 // pred_check_branch
    %1571 = sbr.rel (0) target = $region45
  $region44: #{olmo2_forward.8} parent=0 // pred_region
    _
  $region45: #{olmo2_forward.8} parent=0 // pred_fallthru
    _

// kernel: olmo2_forward.6
$region0: #{olmo2_forward.6}
  #allocation0 [shape = 'u32[]', space=smem, size = 0x4, offset = 0x4, fixed_abs, tag = 'smem constant byte address 0x4 - core index']
  #allocation1 [shape = 'u32[144,128]{1,0:T(1,128)}', space=vmem, size = 0x12000, scoped, tag = 'internal scratch']
  %s0 = inlined_call_operand.vmem [shape: bf16[16,256], index: 0, kind: input, shape index: {}]
  %s1 = inlined_call_operand.hbm [shape: bf16[256,768], index: 1, kind: input, shape index: {}]
  %s2 = inlined_call_operand.vmem [shape: f32[1,256], index: 2, kind: input, shape index: {}]
  %s3 = inlined_call_operand.vmem [shape: f32[1,256], index: 3, kind: input, shape index: {}]
  %s4 = inlined_call_operand.vmem [shape: f32[16,128], index: 4, kind: input, shape index: {}]
  %s5 = inlined_call_operand.vmem [shape: f32[16,128], index: 5, kind: input, shape index: {}]
  %s6 = inlined_call_operand.vmem [shape: f32[16,16], index: 6, kind: input, shape index: {}]
  %s7 = inlined_call_operand.vmem [shape: bf16[256,256], index: 7, kind: input, shape index: {}]
  %s8 = inlined_call_operand.vmem [shape: f32[1,256], index: 8, kind: input, shape index: {}]
  %s9 = inlined_call_operand.vmem [shape: bf16[16,256], index: 9, kind: output, shape index: {}]
  %s10 = sld [smem:[#allocation0]]
  $region50: #{olmo2_forward.6} parent=0
    _
  %s12 = ssub.s32 1, %s10
  %s13 = scalar_select 0, %s12, %s10
  $region1: #{olmo2_forward.6} parent=0
    #allocation2 [shape = 'u8[393216]{0}', space=vmem, size = 0x60000, scoped, tag = 'input window, operand 1, single buffered']
    #allocation3 [shape = 's32[1]{0}', space=sflag, size = 0x4, scoped, tag = 'scoped memory for olmo2_forward.6']
    %14 = vsyncpa [#allocation3], 0
    // Predicated region
    $region2: #{olmo2_forward.6} parent=1 // pred_check
      _
    $region3: #{olmo2_forward.6} parent=1 // pred_check_branch
      %16 = sbr.rel (0) target = $region5
    $region4: #{olmo2_forward.6} parent=1 // pred_region
      _
    $region5: #{olmo2_forward.6} parent=1 // pred_fallthru
      _
    // Predicated region
    $region6: #{olmo2_forward.6} parent=1 // pred_check
      _
    $region7: #{olmo2_forward.6} parent=1 // pred_check_branch
      %18 = sbr.rel (0) target = $region9
    $region8: #{olmo2_forward.6} parent=1 // pred_region
      %s20 = ssub.s32 12288, 12288
      %21 = vsyncadd [#allocation3], %s20
      %s22 = sshll.u32 [#allocation2], 4
      %s23 = int_to_ptr.vmem [resolvable:$true] %s22
      %28 = dma.hbm_to_vmem [thread:$0]  %s1, 12288, %s23, [#allocation3], 384, 384, 24
    $region9: #{olmo2_forward.6} parent=1 // pred_fallthru
      _
    // Predicated region
    $region10: #{olmo2_forward.6} parent=1 // pred_check
      _
    $region11: #{olmo2_forward.6} parent=1 // pred_check_branch
      %30 = sbr.rel (0) target = $region13
    $region12: #{olmo2_forward.6} parent=1 // pred_region
      _
    $region13: #{olmo2_forward.6} parent=1 // pred_fallthru
      _
    // Predicated region
    $region14: #{olmo2_forward.6} parent=1 // pred_check
      _
    $region15: #{olmo2_forward.6} parent=1 // pred_check_branch
      %32 = sbr.rel (0) target = $region17
    $region16: #{olmo2_forward.6} parent=1 // pred_region
      _
    $region17: #{olmo2_forward.6} parent=1 // pred_fallthru
      _
    // Predicated region
    $region18: #{olmo2_forward.6} parent=1 // pred_check
      _
    $region19: #{olmo2_forward.6} parent=1 // pred_check_branch
      %34 = sbr.rel (0) target = $region21
    $region20: #{olmo2_forward.6} parent=1 // pred_region
      _
    $region21: #{olmo2_forward.6} parent=1 // pred_fallthru
      _
    // Predicated region
    $region22: #{olmo2_forward.6} parent=1 // pred_check
      _
    $region23: #{olmo2_forward.6} parent=1 // pred_check_branch
      %36 = sbr.rel (0) target = $region25
    $region24: #{olmo2_forward.6} parent=1 // pred_region
      _
    $region25: #{olmo2_forward.6} parent=1 // pred_fallthru
      _
    // Predicated region
    $region26: #{olmo2_forward.6} parent=1 // pred_check
      _
    $region27: #{olmo2_forward.6} parent=1 // pred_check_branch
      %38 = sbr.rel (0) target = $region29
    $region28: #{olmo2_forward.6} parent=1 // pred_region
      _
    $region29: #{olmo2_forward.6} parent=1 // pred_fallthru
      _
    // Predicated region
    $region30: #{olmo2_forward.6} parent=1 // pred_check
      _
    $region31: #{olmo2_forward.6} parent=1 // pred_check_branch
      %40 = sbr.rel (0) target = $region33
    $region32: #{olmo2_forward.6} parent=1 // pred_region
      _
    $region33: #{olmo2_forward.6} parent=1 // pred_fallthru
      _
    // Predicated region
    $region34: #{olmo2_forward.6} parent=1 // pred_check
      _
    $region35: #{olmo2_forward.6} parent=1 // pred_check_branch
      %42 = sbr.rel (0) target = $region37
    $region36: #{olmo2_forward.6} parent=1 // pred_region
      _
    $region37: #{olmo2_forward.6} parent=1 // pred_fallthru
      _
    // Predicated region
    $region38: #{olmo2_forward.6} parent=1 // pred_check
      _
    $region39: #{olmo2_forward.6} parent=1 // pred_check_branch
      %44 = sbr.rel (0) target = $region41
    $region40: #{olmo2_forward.6} parent=1 // pred_region
      %45 = dma.done [#allocation3], 12288
    $region41: #{olmo2_forward.6} parent=1 // pred_fallthru
      _
    %v47 = vld [vmem:[%s0] sm:$0xff]
    %v48 = vld [vmem:[%s0 + $0x8] sm:$0xff]
    %v49 = vunpack.c.l.bf16 %v47
    %v50 = vunpack.c.h.bf16 %v47
    %v51 = vunpack.c.l.bf16 %v48
    %v52 = vunpack.c.h.bf16 %v48
    %v53 = vld [vmem:[#allocation2] sm:$0xff]
    %v54 = vld [vmem:[#allocation2 + $0x8] sm:$0xff]
    %v55 = vld [vmem:[#allocation2 + $0x10] sm:$0xff]
    %v56 = vld [vmem:[#allocation2 + $0x18] sm:$0xff]
    %v57 = vld [vmem:[#allocation2 + $0x20] sm:$0xff]
    %v58 = vld [vmem:[#allocation2 + $0x28] sm:$0xff]
    %v59 = vld [vmem:[#allocation2 + $0x30] sm:$0xff]
    %v60 = vld [vmem:[#allocation2 + $0x38] sm:$0xff]
    %v61 = vld [vmem:[#allocation2 + $0x40] sm:$0xff]
    %v62 = vld [vmem:[#allocation2 + $0x48] sm:$0xff]
    %v63 = vld [vmem:[#allocation2 + $0x50] sm:$0xff]
    %v64 = vld [vmem:[#allocation2 + $0x58] sm:$0xff]
    %v65 = vld [vmem:[#allocation2 + $0x60] sm:$0xff]
    %v66 = vld [vmem:[#allocation2 + $0x68] sm:$0xff]
    %v67 = vld [vmem:[#allocation2 + $0x70] sm:$0xff]
    %v68 = vld [vmem:[#allocation2 + $0x78] sm:$0xff]
    %v69 = vld [vmem:[#allocation2 + $0x80] sm:$0xff]
    %v70 = vld [vmem:[#allocation2 + $0x88] sm:$0xff]
    %v71 = vld [vmem:[#allocation2 + $0x90] sm:$0xff]
    %v72 = vld [vmem:[#allocation2 + $0x98] sm:$0xff]
    %v73 = vld [vmem:[#allocation2 + $0xa0] sm:$0xff]
    %v74 = vld [vmem:[#allocation2 + $0xa8] sm:$0xff]
    %v75 = vld [vmem:[#allocation2 + $0xb0] sm:$0xff]
    %v76 = vld [vmem:[#allocation2 + $0xb8] sm:$0xff]
    %v77 = vld [vmem:[#allocation2 + $0xc0] sm:$0xff]
    %v78 = vld [vmem:[#allocation2 + $0xc8] sm:$0xff]
    %v79 = vld [vmem:[#allocation2 + $0xd0] sm:$0xff]
    %v80 = vld [vmem:[#allocation2 + $0xd8] sm:$0xff]
    %v81 = vld [vmem:[#allocation2 + $0xe0] sm:$0xff]
    %v82 = vld [vmem:[#allocation2 + $0xe8] sm:$0xff]
    %v83 = vld [vmem:[#allocation2 + $0xf0] sm:$0xff]
    %v84 = vld [vmem:[#allocation2 + $0xf8] sm:$0xff]
    %v85 = vld [vmem:[#allocation2 + $0x100] sm:$0xff]
    %v86 = vld [vmem:[#allocation2 + $0x108] sm:$0xff]
    %v87 = vld [vmem:[#allocation2 + $0x110] sm:$0xff]
    %v88 = vld [vmem:[#allocation2 + $0x118] sm:$0xff]
    %v89 = vld [vmem:[#allocation2 + $0x120] sm:$0xff]
    %v90 = vld [vmem:[#allocation2 + $0x128] sm:$0xff]
    %v91 = vld [vmem:[#allocation2 + $0x130] sm:$0xff]
    %v92 = vld [vmem:[#allocation2 + $0x138] sm:$0xff]
    %v93 = vld [vmem:[#allocation2 + $0x140] sm:$0xff]
    %v94 = vld [vmem:[#allocation2 + $0x148] sm:$0xff]
    %v95 = vld [vmem:[#allocation2 + $0x150] sm:$0xff]
    %v96 = vld [vmem:[#allocation2 + $0x158] sm:$0xff]
    %v97 = vld [vmem:[#allocation2 + $0x160] sm:$0xff]
    %v98 = vld [vmem:[#allocation2 + $0x168] sm:$0xff]
    %v99 = vld [vmem:[#allocation2 + $0x170] sm:$0xff]
    %v100 = vld [vmem:[#allocation2 + $0x178] sm:$0xff]
    %v101 = vld [vmem:[#allocation2 + $0x180] sm:$0xff]
    %v102 = vld [vmem:[#allocation2 + $0x188] sm:$0xff]
    %v103 = vld [vmem:[#allocation2 + $0x190] sm:$0xff]
    %v104 = vld [vmem:[#allocation2 + $0x198] sm:$0xff]
    %v105 = vld [vmem:[#allocation2 + $0x1a0] sm:$0xff]
    %v106 = vld [vmem:[#allocation2 + $0x1a8] sm:$0xff]
    %v107 = vld [vmem:[#allocation2 + $0x1b0] sm:$0xff]
    %v108 = vld [vmem:[#allocation2 + $0x1b8] sm:$0xff]
    %v109 = vld [vmem:[#allocation2 + $0x1c0] sm:$0xff]
    %v110 = vld [vmem:[#allocation2 + $0x1c8] sm:$0xff]
    %v111 = vld [vmem:[#allocation2 + $0x1d0] sm:$0xff]
    %v112 = vld [vmem:[#allocation2 + $0x1d8] sm:$0xff]
    %v113 = vld [vmem:[#allocation2 + $0x1e0] sm:$0xff]
    %v114 = vld [vmem:[#allocation2 + $0x1e8] sm:$0xff]
    %v115 = vld [vmem:[#allocation2 + $0x1f0] sm:$0xff]
    %v116 = vld [vmem:[#allocation2 + $0x1f8] sm:$0xff]
    %v117 = vld [vmem:[#allocation2 + $0x200] sm:$0xff]
    %v118 = vld [vmem:[#allocation2 + $0x208] sm:$0xff]
    %v119 = vld [vmem:[#allocation2 + $0x210] sm:$0xff]
    %v120 = vld [vmem:[#allocation2 + $0x218] sm:$0xff]
    %v121 = vld [vmem:[#allocation2 + $0x220] sm:$0xff]
    %v122 = vld [vmem:[#allocation2 + $0x228] sm:$0xff]
    %v123 = vld [vmem:[#allocation2 + $0x230] sm:$0xff]
    %v124 = vld [vmem:[#allocation2 + $0x238] sm:$0xff]
    %v125 = vld [vmem:[#allocation2 + $0x240] sm:$0xff]
    %v126 = vld [vmem:[#allocation2 + $0x248] sm:$0xff]
    %v127 = vld [vmem:[#allocation2 + $0x250] sm:$0xff]
    %v128 = vld [vmem:[#allocation2 + $0x258] sm:$0xff]
    %v129 = vld [vmem:[#allocation2 + $0x260] sm:$0xff]
    %v130 = vld [vmem:[#allocation2 + $0x268] sm:$0xff]
    %v131 = vld [vmem:[#allocation2 + $0x270] sm:$0xff]
    %v132 = vld [vmem:[#allocation2 + $0x278] sm:$0xff]
    %v133 = vld [vmem:[#allocation2 + $0x280] sm:$0xff]
    %v134 = vld [vmem:[#allocation2 + $0x288] sm:$0xff]
    %v135 = vld [vmem:[#allocation2 + $0x290] sm:$0xff]
    %v136 = vld [vmem:[#allocation2 + $0x298] sm:$0xff]
    %v137 = vld [vmem:[#allocation2 + $0x2a0] sm:$0xff]
    %v138 = vld [vmem:[#allocation2 + $0x2a8] sm:$0xff]
    %v139 = vld [vmem:[#allocation2 + $0x2b0] sm:$0xff]
    %v140 = vld [vmem:[#allocation2 + $0x2b8] sm:$0xff]
    %v141 = vld [vmem:[#allocation2 + $0x2c0] sm:$0xff]
    %v142 = vld [vmem:[#allocation2 + $0x2c8] sm:$0xff]
    %v143 = vld [vmem:[#allocation2 + $0x2d0] sm:$0xff]
    %v144 = vld [vmem:[#allocation2 + $0x2d8] sm:$0xff]
    %v145 = vld [vmem:[#allocation2 + $0x2e0] sm:$0xff]
    %v146 = vld [vmem:[#allocation2 + $0x2e8] sm:$0xff]
    %v147 = vld [vmem:[#allocation2 + $0x2f0] sm:$0xff]
    %v148 = vld [vmem:[#allocation2 + $0x2f8] sm:$0xff]
    %v151 = vunpack.c.l.b16 %v47
    %v152 = vunpack.c.h.b16 %v47
    %v153 = vunpack.c.l.b16 %v48
    %v154 = vunpack.c.h.b16 %v48
    %v155 = vpack.c.b16 %v153, %v151
    %v156 = vpack.c.b16 %v154, %v152
    %v255 = vunpack.c.l.b16 %v53
    %v256 = vunpack.c.h.b16 %v53
    %v257 = vunpack.c.l.b16 %v54
    %v258 = vunpack.c.h.b16 %v54
    %v259 = vunpack.c.l.b16 %v55
    %v260 = vunpack.c.h.b16 %v55
    %v261 = vunpack.c.l.b16 %v56
    %v262 = vunpack.c.h.b16 %v56
    %v263 = vunpack.c.l.b16 %v57
    %v264 = vunpack.c.h.b16 %v57
    %v265 = vunpack.c.l.b16 %v58
    %v266 = vunpack.c.h.b16 %v58
    %v267 = vunpack.c.l.b16 %v59
    %v268 = vunpack.c.h.b16 %v59
    %v269 = vunpack.c.l.b16 %v60
    %v270 = vunpack.c.h.b16 %v60
    %v271 = vunpack.c.l.b16 %v61
    %v272 = vunpack.c.h.b16 %v61
    %v273 = vunpack.c.l.b16 %v62
    %v274 = vunpack.c.h.b16 %v62
    %v275 = vunpack.c.l.b16 %v63
    %v276 = vunpack.c.h.b16 %v63
    %v277 = vunpack.c.l.b16 %v64
    %v278 = vunpack.c.h.b16 %v64
    %v279 = vunpack.c.l.b16 %v65
    %v280 = vunpack.c.h.b16 %v65
    %v281 = vunpack.c.l.b16 %v66
    %v282 = vunpack.c.h.b16 %v66
    %v283 = vunpack.c.l.b16 %v67
    %v284 = vunpack.c.h.b16 %v67
    %v285 = vunpack.c.l.b16 %v68
    %v286 = vunpack.c.h.b16 %v68
    %v287 = vunpack.c.l.b16 %v69
    %v288 = vunpack.c.h.b16 %v69
    %v289 = vunpack.c.l.b16 %v70
    %v290 = vunpack.c.h.b16 %v70
    %v291 = vunpack.c.l.b16 %v71
    %v292 = vunpack.c.h.b16 %v71
    %v293 = vunpack.c.l.b16 %v72
    %v294 = vunpack.c.h.b16 %v72
    %v295 = vunpack.c.l.b16 %v73
    %v296 = vunpack.c.h.b16 %v73
    %v297 = vunpack.c.l.b16 %v74
    %v298 = vunpack.c.h.b16 %v74
    %v299 = vunpack.c.l.b16 %v75
    %v300 = vunpack.c.h.b16 %v75
    %v301 = vunpack.c.l.b16 %v76
    %v302 = vunpack.c.h.b16 %v76
    %v303 = vunpack.c.l.b16 %v77
    %v304 = vunpack.c.h.b16 %v77
    %v305 = vunpack.c.l.b16 %v78
    %v306 = vunpack.c.h.b16 %v78
    %v307 = vunpack.c.l.b16 %v79
    %v308 = vunpack.c.h.b16 %v79
    %v309 = vunpack.c.l.b16 %v80
    %v310 = vunpack.c.h.b16 %v80
    %v311 = vunpack.c.l.b16 %v81
    %v312 = vunpack.c.h.b16 %v81
    %v313 = vunpack.c.l.b16 %v82
    %v314 = vunpack.c.h.b16 %v82
    %v315 = vunpack.c.l.b16 %v83
    %v316 = vunpack.c.h.b16 %v83
    %v317 = vunpack.c.l.b16 %v84
    %v318 = vunpack.c.h.b16 %v84
    %v319 = vunpack.c.l.b16 %v85
    %v320 = vunpack.c.h.b16 %v85
    %v321 = vunpack.c.l.b16 %v86
    %v322 = vunpack.c.h.b16 %v86
    %v323 = vunpack.c.l.b16 %v87
    %v324 = vunpack.c.h.b16 %v87
    %v325 = vunpack.c.l.b16 %v88
    %v326 = vunpack.c.h.b16 %v88
    %v327 = vunpack.c.l.b16 %v89
    %v328 = vunpack.c.h.b16 %v89
    %v329 = vunpack.c.l.b16 %v90
    %v330 = vunpack.c.h.b16 %v90
    %v331 = vunpack.c.l.b16 %v91
    %v332 = vunpack.c.h.b16 %v91
    %v333 = vunpack.c.l.b16 %v92
    %v334 = vunpack.c.h.b16 %v92
    %v335 = vunpack.c.l.b16 %v93
    %v336 = vunpack.c.h.b16 %v93
    %v337 = vunpack.c.l.b16 %v94
    %v338 = vunpack.c.h.b16 %v94
    %v339 = vunpack.c.l.b16 %v95
    %v340 = vunpack.c.h.b16 %v95
    %v341 = vunpack.c.l.b16 %v96
    %v342 = vunpack.c.h.b16 %v96
    %v343 = vunpack.c.l.b16 %v97
    %v344 = vunpack.c.h.b16 %v97
    %v345 = vunpack.c.l.b16 %v98
    %v346 = vunpack.c.h.b16 %v98
    %v347 = vunpack.c.l.b16 %v99
    %v348 = vunpack.c.h.b16 %v99
    %v349 = vunpack.c.l.b16 %v100
    %v350 = vunpack.c.h.b16 %v100
    %v351 = vunpack.c.l.b16 %v101
    %v352 = vunpack.c.h.b16 %v101
    %v353 = vunpack.c.l.b16 %v102
    %v354 = vunpack.c.h.b16 %v102
    %v355 = vunpack.c.l.b16 %v103
    %v356 = vunpack.c.h.b16 %v103
    %v357 = vunpack.c.l.b16 %v104
    %v358 = vunpack.c.h.b16 %v104
    %v359 = vunpack.c.l.b16 %v105
    %v360 = vunpack.c.h.b16 %v105
    %v361 = vunpack.c.l.b16 %v106
    %v362 = vunpack.c.h.b16 %v106
    %v363 = vunpack.c.l.b16 %v107
    %v364 = vunpack.c.h.b16 %v107
    %v365 = vunpack.c.l.b16 %v108
    %v366 = vunpack.c.h.b16 %v108
    %v367 = vunpack.c.l.b16 %v109
    %v368 = vunpack.c.h.b16 %v109
    %v369 = vunpack.c.l.b16 %v110
    %v370 = vunpack.c.h.b16 %v110
    %v371 = vunpack.c.l.b16 %v111
    %v372 = vunpack.c.h.b16 %v111
    %v373 = vunpack.c.l.b16 %v112
    %v374 = vunpack.c.h.b16 %v112
    %v375 = vunpack.c.l.b16 %v113
    %v376 = vunpack.c.h.b16 %v113
    %v377 = vunpack.c.l.b16 %v114
    %v378 = vunpack.c.h.b16 %v114
    %v379 = vunpack.c.l.b16 %v115
    %v380 = vunpack.c.h.b16 %v115
    %v381 = vunpack.c.l.b16 %v116
    %v382 = vunpack.c.h.b16 %v116
    %v383 = vunpack.c.l.b16 %v117
    %v384 = vunpack.c.h.b16 %v117
    %v385 = vunpack.c.l.b16 %v118
    %v386 = vunpack.c.h.b16 %v118
    %v387 = vunpack.c.l.b16 %v119
    %v388 = vunpack.c.h.b16 %v119
    %v389 = vunpack.c.l.b16 %v120
    %v390 = vunpack.c.h.b16 %v120
    %v391 = vunpack.c.l.b16 %v121
    %v392 = vunpack.c.h.b16 %v121
    %v393 = vunpack.c.l.b16 %v122
    %v394 = vunpack.c.h.b16 %v122
    %v395 = vunpack.c.l.b16 %v123
    %v396 = vunpack.c.h.b16 %v123
    %v397 = vunpack.c.l.b16 %v124
    %v398 = vunpack.c.h.b16 %v124
    %v399 = vunpack.c.l.b16 %v125
    %v400 = vunpack.c.h.b16 %v125
    %v401 = vunpack.c.l.b16 %v126
    %v402 = vunpack.c.h.b16 %v126
    %v403 = vunpack.c.l.b16 %v127
    %v404 = vunpack.c.h.b16 %v127
    %v405 = vunpack.c.l.b16 %v128
    %v406 = vunpack.c.h.b16 %v128
    %v407 = vunpack.c.l.b16 %v129
    %v408 = vunpack.c.h.b16 %v129
    %v409 = vunpack.c.l.b16 %v130
    %v410 = vunpack.c.h.b16 %v130
    %v411 = vunpack.c.l.b16 %v131
    %v412 = vunpack.c.h.b16 %v131
    %v413 = vunpack.c.l.b16 %v132
    %v414 = vunpack.c.h.b16 %v132
    %v415 = vunpack.c.l.b16 %v133
    %v416 = vunpack.c.h.b16 %v133
    %v417 = vunpack.c.l.b16 %v134
    %v418 = vunpack.c.h.b16 %v134
    %v419 = vunpack.c.l.b16 %v135
    %v420 = vunpack.c.h.b16 %v135
    %v421 = vunpack.c.l.b16 %v136
    %v422 = vunpack.c.h.b16 %v136
    %v423 = vunpack.c.l.b16 %v137
    %v424 = vunpack.c.h.b16 %v137
    %v425 = vunpack.c.l.b16 %v138
    %v426 = vunpack.c.h.b16 %v138
    %v427 = vunpack.c.l.b16 %v139
    %v428 = vunpack.c.h.b16 %v139
    %v429 = vunpack.c.l.b16 %v140
    %v430 = vunpack.c.h.b16 %v140
    %v431 = vunpack.c.l.b16 %v141
    %v432 = vunpack.c.h.b16 %v141
    %v433 = vunpack.c.l.b16 %v142
    %v434 = vunpack.c.h.b16 %v142
    %v435 = vunpack.c.l.b16 %v143
    %v436 = vunpack.c.h.b16 %v143
    %v437 = vunpack.c.l.b16 %v144
    %v438 = vunpack.c.h.b16 %v144
    %v439 = vunpack.c.l.b16 %v145
    %v440 = vunpack.c.h.b16 %v145
    %v441 = vunpack.c.l.b16 %v146
    %v442 = vunpack.c.h.b16 %v146
    %v443 = vunpack.c.l.b16 %v147
    %v444 = vunpack.c.h.b16 %v147
    %v445 = vunpack.c.l.b16 %v148
    %v446 = vunpack.c.h.b16 %v148
    %v447 = vpack.c.b16 %v261, %v255
    %v448 = vpack.c.b16 %v262, %v256
    %v449 = vpack.c.b16 %v263, %v257
    %v450 = vpack.c.b16 %v264, %v258
    %v451 = vpack.c.b16 %v265, %v259
    %v452 = vpack.c.b16 %v266, %v260
    %v453 = vpack.c.b16 %v273, %v267
    %v454 = vpack.c.b16 %v274, %v268
    %v455 = vpack.c.b16 %v275, %v269
    %v456 = vpack.c.b16 %v276, %v270
    %v457 = vpack.c.b16 %v277, %v271
    %v458 = vpack.c.b16 %v278, %v272
    %v459 = vpack.c.b16 %v285, %v279
    %v460 = vpack.c.b16 %v286, %v280
    %v461 = vpack.c.b16 %v287, %v281
    %v462 = vpack.c.b16 %v288, %v282
    %v463 = vpack.c.b16 %v289, %v283
    %v464 = vpack.c.b16 %v290, %v284
    %v465 = vpack.c.b16 %v297, %v291
    %v466 = vpack.c.b16 %v298, %v292
    %v467 = vpack.c.b16 %v299, %v293
    %v468 = vpack.c.b16 %v300, %v294
    %v469 = vpack.c.b16 %v301, %v295
    %v470 = vpack.c.b16 %v302, %v296
    %v471 = vpack.c.b16 %v309, %v303
    %v472 = vpack.c.b16 %v310, %v304
    %v473 = vpack.c.b16 %v311, %v305
    %v474 = vpack.c.b16 %v312, %v306
    %v475 = vpack.c.b16 %v313, %v307
    %v476 = vpack.c.b16 %v314, %v308
    %v477 = vpack.c.b16 %v321, %v315
    %v478 = vpack.c.b16 %v322, %v316
    %v479 = vpack.c.b16 %v323, %v317
    %v480 = vpack.c.b16 %v324, %v318
    %v481 = vpack.c.b16 %v325, %v319
    %v482 = vpack.c.b16 %v326, %v320
    %v483 = vpack.c.b16 %v333, %v327
    %v484 = vpack.c.b16 %v334, %v328
    %v485 = vpack.c.b16 %v335, %v329
    %v486 = vpack.c.b16 %v336, %v330
    %v487 = vpack.c.b16 %v337, %v331
    %v488 = vpack.c.b16 %v338, %v332
    %v489 = vpack.c.b16 %v345, %v339
    %v490 = vpack.c.b16 %v346, %v340
    %v491 = vpack.c.b16 %v347, %v341
    %v492 = vpack.c.b16 %v348, %v342
    %v493 = vpack.c.b16 %v349, %v343
    %v494 = vpack.c.b16 %v350, %v344
    %v495 = vpack.c.b16 %v357, %v351
    %v496 = vpack.c.b16 %v358, %v352
    %v497 = vpack.c.b16 %v359, %v353
    %v498 = vpack.c.b16 %v360, %v354
    %v499 = vpack.c.b16 %v361, %v355
    %v500 = vpack.c.b16 %v362, %v356
    %v501 = vpack.c.b16 %v369, %v363
    %v502 = vpack.c.b16 %v370, %v364
    %v503 = vpack.c.b16 %v371, %v365
    %v504 = vpack.c.b16 %v372, %v366
    %v505 = vpack.c.b16 %v373, %v367
    %v506 = vpack.c.b16 %v374, %v368
    %v507 = vpack.c.b16 %v381, %v375
    %v508 = vpack.c.b16 %v382, %v376
    %v509 = vpack.c.b16 %v383, %v377
    %v510 = vpack.c.b16 %v384, %v378
    %v511 = vpack.c.b16 %v385, %v379
    %v512 = vpack.c.b16 %v386, %v380
    %v513 = vpack.c.b16 %v393, %v387
    %v514 = vpack.c.b16 %v394, %v388
    %v515 = vpack.c.b16 %v395, %v389
    %v516 = vpack.c.b16 %v396, %v390
    %v517 = vpack.c.b16 %v397, %v391
    %v518 = vpack.c.b16 %v398, %v392
    %v519 = vpack.c.b16 %v405, %v399
    %v520 = vpack.c.b16 %v406, %v400
    %v521 = vpack.c.b16 %v407, %v401
    %v522 = vpack.c.b16 %v408, %v402
    %v523 = vpack.c.b16 %v409, %v403
    %v524 = vpack.c.b16 %v410, %v404
    %v525 = vpack.c.b16 %v417, %v411
    %v526 = vpack.c.b16 %v418, %v412
    %v527 = vpack.c.b16 %v419, %v413
    %v528 = vpack.c.b16 %v420, %v414
    %v529 = vpack.c.b16 %v421, %v415
    %v530 = vpack.c.b16 %v422, %v416
    %v531 = vpack.c.b16 %v429, %v423
    %v532 = vpack.c.b16 %v430, %v424
    %v533 = vpack.c.b16 %v431, %v425
    %v534 = vpack.c.b16 %v432, %v426
    %v535 = vpack.c.b16 %v433, %v427
    %v536 = vpack.c.b16 %v434, %v428
    %v537 = vpack.c.b16 %v441, %v435
    %v538 = vpack.c.b16 %v442, %v436
    %v539 = vpack.c.b16 %v443, %v437
    %v540 = vpack.c.b16 %v444, %v438
    %v541 = vpack.c.b16 %v445, %v439
    %v542 = vpack.c.b16 %v446, %v440
    %639 = vmatprep.subr.bf16.mxu0 %v448
    %640 = vmatpush1.bf16.msra.mxu0 %v447
    %641 = vmatprep.subr.bf16.mxu0 %v454
    %642 = vmatpush1.bf16.msra.mxu0 %v453
    %643 = vmatprep.subr.bf16.mxu0 %v460
    %644 = vmatpush1.bf16.msra.mxu0 %v459
    %645 = vmatprep.subr.bf16.mxu0 %v466
    %646 = vmatpush1.bf16.msra.mxu0 %v465
    %647 = vmatprep.subr.bf16.mxu0 %v472
    %648 = vmatpush1.bf16.msra.mxu0 %v471
    %649 = vmatprep.subr.bf16.mxu0 %v478
    %650 = vmatpush1.bf16.msra.mxu0 %v477
    %651 = vmatprep.subr.bf16.mxu0 %v484
    %652 = vmatpush1.bf16.msra.mxu0 %v483
    %653 = vmatprep.subr.bf16.mxu0 %v490
    %654 = vmatpush1.bf16.msra.mxu0 %v489
    %655 = vmatprep.subr.bf16.mxu0 %v496
    %656 = vmatpush1.bf16.msra.mxu0 %v495
    %657 = vmatprep.subr.bf16.mxu0 %v502
    %658 = vmatpush1.bf16.msra.mxu0 %v501
    %659 = vmatprep.subr.bf16.mxu0 %v508
    %660 = vmatpush1.bf16.msra.mxu0 %v507
    %661 = vmatprep.subr.bf16.mxu0 %v514
    %662 = vmatpush1.bf16.msra.mxu0 %v513
    %663 = vmatprep.subr.bf16.mxu0 %v520
    %664 = vmatpush1.bf16.msra.mxu0 %v519
    %665 = vmatprep.subr.bf16.mxu0 %v526
    %666 = vmatpush1.bf16.msra.mxu0 %v525
    %667 = vmatprep.subr.bf16.mxu0 %v532
    %668 = vmatpush1.bf16.msra.mxu0 %v531
    %669 = vmatprep.subr.bf16.mxu0 %v538
    %670 = vmatpush1.bf16.msra.mxu0 %v537
    %671 = vmatprep.mubr.bf16.mxu0 %v156
    %672 = vmatmul.mubr.bf16.gmra.mrb[0].mxu0 %v155
    %v673 = vpop.f32.mrb[0].mxu0
    %v674 = vadd.f32 0.0, %v673
    %v675 = vpop.f32.mrb[0].mxu0
    %v676 = vadd.f32 0.0, %v675
    %v677 = vpop.f32.mrb[0].mxu0
    %v678 = vadd.f32 0.0, %v677
    %v679 = vpop.f32.mrb[0].mxu0
    %v680 = vadd.f32 0.0, %v679
    %681 = vdwg.mxu0
    %682 = vmatprep.subr.bf16.mxu0 %v450
    %683 = vmatpush1.bf16.msra.mxu0 %v449
    %684 = vmatprep.subr.bf16.mxu0 %v456
    %685 = vmatpush1.bf16.msra.mxu0 %v455
    %686 = vmatprep.subr.bf16.mxu0 %v462
    %687 = vmatpush1.bf16.msra.mxu0 %v461
    %688 = vmatprep.subr.bf16.mxu0 %v468
    %689 = vmatpush1.bf16.msra.mxu0 %v467
    %690 = vmatprep.subr.bf16.mxu0 %v474
    %691 = vmatpush1.bf16.msra.mxu0 %v473
    %692 = vmatprep.subr.bf16.mxu0 %v480
    %693 = vmatpush1.bf16.msra.mxu0 %v479
    %694 = vmatprep.subr.bf16.mxu0 %v486
    %695 = vmatpush1.bf16.msra.mxu0 %v485
    %696 = vmatprep.subr.bf16.mxu0 %v492
    %697 = vmatpush1.bf16.msra.mxu0 %v491
    %698 = vmatprep.subr.bf16.mxu0 %v498
    %699 = vmatpush1.bf16.msra.mxu0 %v497
    %700 = vmatprep.subr.bf16.mxu0 %v504
    %701 = vmatpush1.bf16.msra.mxu0 %v503
    %702 = vmatprep.subr.bf16.mxu0 %v510
    %703 = vmatpush1.bf16.msra.mxu0 %v509
    %704 = vmatprep.subr.bf16.mxu0 %v516
    %705 = vmatpush1.bf16.msra.mxu0 %v515
    %706 = vmatprep.subr.bf16.mxu0 %v522
    %707 = vmatpush1.bf16.msra.mxu0 %v521
    %708 = vmatprep.subr.bf16.mxu0 %v528
    %709 = vmatpush1.bf16.msra.mxu0 %v527
    %710 = vmatprep.subr.bf16.mxu0 %v534
    %711 = vmatpush1.bf16.msra.mxu0 %v533
    %712 = vmatprep.subr.bf16.mxu0 %v540
    %713 = vmatpush1.bf16.msra.mxu0 %v539
    %714 = vmatprep.mubr.bf16.mxu0 %v156
    %715 = vmatmul.mubr.bf16.gmra.mrb[0].mxu0 %v155
    %v716 = vpop.f32.mrb[0].mxu0
    %v717 = vadd.f32 0.0, %v716
    %v718 = vpop.f32.mrb[0].mxu0
    %v719 = vadd.f32 0.0, %v718
    %v720 = vpop.f32.mrb[0].mxu0
    %v721 = vadd.f32 0.0, %v720
    %v722 = vpop.f32.mrb[0].mxu0
    %v723 = vadd.f32 0.0, %v722
    %724 = vdwg.mxu0
    %725 = vmatprep.subr.bf16.mxu0 %v452
    %726 = vmatpush1.bf16.msra.mxu0 %v451
    %727 = vmatprep.subr.bf16.mxu0 %v458
    %728 = vmatpush1.bf16.msra.mxu0 %v457
    %729 = vmatprep.subr.bf16.mxu0 %v464
    %730 = vmatpush1.bf16.msra.mxu0 %v463
    %731 = vmatprep.subr.bf16.mxu0 %v470
    %732 = vmatpush1.bf16.msra.mxu0 %v469
    %733 = vmatprep.subr.bf16.mxu0 %v476
    %734 = vmatpush1.bf16.msra.mxu0 %v475
    %735 = vmatprep.subr.bf16.mxu0 %v482
    %736 = vmatpush1.bf16.msra.mxu0 %v481
    %737 = vmatprep.subr.bf16.mxu0 %v488
    %738 = vmatpush1.bf16.msra.mxu0 %v487
    %739 = vmatprep.subr.bf16.mxu0 %v494
    %740 = vmatpush1.bf16.msra.mxu0 %v493
    %741 = vmatprep.subr.bf16.mxu0 %v500
    %742 = vmatpush1.bf16.msra.mxu0 %v499
    %743 = vmatprep.subr.bf16.mxu0 %v506
    %744 = vmatpush1.bf16.msra.mxu0 %v505
    %745 = vmatprep.subr.bf16.mxu0 %v512
    %746 = vmatpush1.bf16.msra.mxu0 %v511
    %747 = vmatprep.subr.bf16.mxu0 %v518
    %748 = vmatpush1.bf16.msra.mxu0 %v517
    %749 = vmatprep.subr.bf16.mxu0 %v524
    %750 = vmatpush1.bf16.msra.mxu0 %v523
    %751 = vmatprep.subr.bf16.mxu0 %v530
    %752 = vmatpush1.bf16.msra.mxu0 %v529
    %753 = vmatprep.subr.bf16.mxu0 %v536
    %754 = vmatpush1.bf16.msra.mxu0 %v535
    %755 = vmatprep.subr.bf16.mxu0 %v542
    %756 = vmatpush1.bf16.msra.mxu0 %v541
    %757 = vmatprep.mubr.bf16.mxu0 %v156
    %758 = vmatmul.mubr.bf16.gmra.mrb[0].mxu0 %v155
    %v759 = vpop.f32.mrb[0].mxu0
    %v760 = vadd.f32 0.0, %v759
    %v761 = vpop.f32.mrb[0].mxu0
    %v762 = vadd.f32 0.0, %v761
    %v763 = vpop.f32.mrb[0].mxu0
    %v764 = vadd.f32 0.0, %v763
    %v765 = vpop.f32.mrb[0].mxu0
    %v766 = vadd.f32 0.0, %v765
    %767 = vdwg.mxu0
    %v768 = vld [vmem:[%s2] sm:$0x3]
    %v769 = vmul.f32 %v674, %v674
    %v770 = vmul.f32 %v676, %v676
    %v771 = vmul.f32 %v678, %v678
    %v772 = vmul.f32 %v680, %v680
    %v773 = vadd.f32 %v769, %v770
    %774 = vadd.xlane.f32.xlu0 %v773
    %v775 = vpop.xlane.xlu0 %774
    %v776 = vadd.f32 %v771, %v772
    %777 = vadd.xlane.f32.xlu0 %v776
    %v778 = vpop.xlane.xlu0 %777
    %v779 = vrcp.pop 256.0
    %v780 = vmul.f32 %v775, %v779
    %v781 = vmul.f32 %v778, %v779
    %v782 = vadd.f32 %v780, 1e-05
    %v783 = vadd.f32 %v781, 1e-05
    %v784 = vrsqrt.pop %v782
    %v785 = vrsqrt.pop %v783
    %v786 = vmul.f32 %v674, %v784
    %v787 = vmul.f32 %v676, %v784
    %v788 = vmul.f32 %v678, %v785
    %v789 = vmul.f32 %v680, %v785
    %v791 = vlaneseq
    %v792 = vshrl.u32 %v791, 7
    %v793 = vsub.s32 0, %v792
    %v794 = vrot.slane %v768, %v793
    %v795 = vlaneseq
    %v796 = vshrl.u32 %v795, 7
    %v797 = vsub.s32 1, %v796
    %v798 = vrot.slane %v768, %v797
    %v801 = vmul.f32 %v786, %v794
    %v802 = vmul.f32 %v787, %v798
    %v803 = vmul.f32 %v788, %v794
    %v804 = vmul.f32 %v789, %v798
    %v805 = vld [vmem:[%s3] sm:$0x3]
    %v806 = vmul.f32 %v717, %v717
    %v807 = vmul.f32 %v719, %v719
    %v808 = vmul.f32 %v721, %v721
    %v809 = vmul.f32 %v723, %v723
    %v810 = vadd.f32 %v806, %v807
    %811 = vadd.xlane.f32.xlu0 %v810
    %v812 = vpop.xlane.xlu0 %811
    %v813 = vadd.f32 %v808, %v809
    %814 = vadd.xlane.f32.xlu0 %v813
    %v815 = vpop.xlane.xlu0 %814
    %v816 = vmul.f32 %v812, %v779
    %v817 = vmul.f32 %v815, %v779
    %v818 = vadd.f32 %v816, 1e-05
    %v819 = vadd.f32 %v817, 1e-05
    %v820 = vrsqrt.pop %v818
    %v821 = vrsqrt.pop %v819
    %v822 = vmul.f32 %v717, %v820
    %v823 = vmul.f32 %v719, %v820
    %v824 = vmul.f32 %v721, %v821
    %v825 = vmul.f32 %v723, %v821
    %v827 = vlaneseq
    %v828 = vshrl.u32 %v827, 7
    %v829 = vsub.s32 0, %v828
    %v830 = vrot.slane %v805, %v829
    %v831 = vlaneseq
    %v832 = vshrl.u32 %v831, 7
    %v833 = vsub.s32 1, %v832
    %v834 = vrot.slane %v805, %v833
    %v837 = vmul.f32 %v822, %v830
    %v838 = vmul.f32 %v823, %v834
    %v839 = vmul.f32 %v824, %v830
    %v840 = vmul.f32 %v825, %v834
    %v841 = vld [vmem:[%s4] sm:$0xff]
    %v842 = vld [vmem:[%s4 + $0x8] sm:$0xff]
    %v843 = vld [vmem:[%s5] sm:$0xff]
    %v844 = vld [vmem:[%s5 + $0x8] sm:$0xff]
    %v845 = vld [vmem:[%s6] sm:$0xff]
    %v846 = vld [vmem:[%s6 + $0x8] sm:$0xff]
    %v847 = vmul.f32 %v801, %v841
    %v848 = vmul.f32 %v803, %v842
    %849 = vrot.lane.b32.xlu0 %v801, 64
    %v850 = vpop.permute.xlu0 %849
    %851 = vrot.lane.b32.xlu0 %v803, 64
    %v852 = vpop.permute.xlu0 %851
    %v853 = vmul.f32 %v850, %v843
    %v854 = vmul.f32 %v852, %v844
    %v855 = vadd.f32 %v847, %v853
    %v856 = vadd.f32 %v848, %v854
    %v857 = vmul.f32 %v837, %v841
    %v858 = vmul.f32 %v839, %v842
    %859 = vrot.lane.b32.xlu0 %v837, 64
    %v860 = vpop.permute.xlu0 %859
    %861 = vrot.lane.b32.xlu0 %v839, 64
    %v862 = vpop.permute.xlu0 %861
    %v863 = vmul.f32 %v860, %v843
    %v864 = vmul.f32 %v862, %v844
    %v865 = vadd.f32 %v857, %v863
    %v866 = vadd.f32 %v858, %v864
    %v867 = vmul.f32 %v855, 0.088388346
    %v868 = vmul.f32 %v856, 0.088388346
    %869 = vmatprep.subr.mxu0 0.0
    %870 = vmatpush1.xpose.msra.mxu0 %v865
    %871 = vmatprep.subr.mxu0 0.0
    %872 = vmatpush1.xpose.msra.mxu0 %v866
    %873 = vmatprep.subr.mxu0 0.0
    %874 = vmatpush1.xpose.msra.mxu0 0.0
    %875 = vmatprep.subr.mxu0 0.0
    %876 = vmatpush1.xpose.msra.mxu0 0.0
    %877 = vmatprep.subr.mxu0 0.0
    %878 = vmatpush1.xpose.msra.mxu0 0.0
    %879 = vmatprep.subr.mxu0 0.0
    %880 = vmatpush1.xpose.msra.mxu0 0.0
    %881 = vmatprep.subr.mxu0 0.0
    %882 = vmatpush1.xpose.msra.mxu0 0.0
    %883 = vmatprep.subr.mxu0 0.0
    %884 = vmatpush1.xpose.msra.mxu0 0.0
    %885 = vmatprep.subr.mxu0 0.0
    %886 = vmatpush1.xpose.msra.mxu0 0.0
    %887 = vmatprep.subr.mxu0 0.0
    %888 = vmatpush1.xpose.msra.mxu0 0.0
    %889 = vmatprep.subr.mxu0 0.0
    %890 = vmatpush1.xpose.msra.mxu0 0.0
    %891 = vmatprep.subr.mxu0 0.0
    %892 = vmatpush1.xpose.msra.mxu0 0.0
    %893 = vmatprep.subr.mxu0 0.0
    %894 = vmatpush1.xpose.msra.mxu0 0.0
    %895 = vmatprep.subr.mxu0 0.0
    %896 = vmatpush1.xpose.msra.mxu0 0.0
    %897 = vmatprep.subr.mxu0 0.0
    %898 = vmatpush1.xpose.msra.mxu0 0.0
    %899 = vmatprep.subr.mxu0 0.0
    %900 = vmatpush1.xpose.msra.mxu0 0.0
    %901 = vmatprep.subr.mxu0 0.0
    %902 = vmatpush1.xpose.msra.mxu0 0.0
    %903 = vmatprep.subr.mxu0 0.0
    %904 = vmatpush1.xpose.msra.mxu0 0.0
    %905 = vmatprep.subr.mxu0 0.0
    %906 = vmatpush1.xpose.msra.mxu0 0.0
    %907 = vmatprep.subr.mxu0 0.0
    %908 = vmatpush1.xpose.msra.mxu0 0.0
    %909 = vmatprep.subr.mxu0 0.0
    %910 = vmatpush1.xpose.msra.mxu0 0.0
    %911 = vmatprep.subr.mxu0 0.0
    %912 = vmatpush1.xpose.msra.mxu0 0.0
    %913 = vmatprep.subr.mxu0 0.0
    %914 = vmatpush1.xpose.msra.mxu0 0.0
    %915 = vmatprep.subr.mxu0 0.0
    %916 = vmatpush1.xpose.msra.mxu0 0.0
    %917 = vmatprep.subr.mxu0 0.0
    %918 = vmatpush1.xpose.msra.mxu0 0.0
    %919 = vmatprep.subr.mxu0 0.0
    %920 = vmatpush1.xpose.msra.mxu0 0.0
    %921 = vmatprep.subr.mxu0 0.0
    %922 = vmatpush1.xpose.msra.mxu0 0.0
    %923 = vmatprep.subr.mxu0 0.0
    %924 = vmatpush1.xpose.msra.mxu0 0.0
    %925 = vmatprep.subr.mxu0 0.0
    %926 = vmatpush1.xpose.msra.mxu0 0.0
    %927 = vmatprep.subr.mxu0 0.0
    %928 = vmatpush1.xpose.msra.mxu0 0.0
    %929 = vmatprep.subr.mxu0 0.0
    %930 = vmatpush1.xpose.msra.mxu0 0.0
    %931 = vmatprep.subr.mxu0 0.0
    %932 = vmatpush1.xpose.msra.mxu0 0.0
    %933 = vmatprep.mubr.f32.mxu0 0.0
    %934 = vmatmul.mubr.f32.gmra.mrb[0].mxu0 %v867
    %v935 = vpop.f32.mrb[0].mxu0
    %v936 = vadd.f32 %v845, %v935
    %v937 = vpop.f32.mrb[0].mxu0
    %938 = vmatprep.mubr.f32.mxu0 0.0
    %939 = vmatmul.mubr.f32.gmra.mrb[0].mxu0 %v868
    %v940 = vpop.f32.mrb[0].mxu0
    %v941 = vadd.f32 %v846, %v940
    %v942 = vpop.f32.mrb[0].mxu0
    %943 = vdwg.mxu0
    %vm944 = vcmask 130048
    %v945 = vsel %vm944, %v936, -inf
    %946 = vmax.xlane.f32.xlu0 %v945
    %v947 = vpop.xlane.xlu0 %946
    %v948 = vsel %vm944, %v941, -inf
    %949 = vmax.xlane.f32.xlu0 %v948
    %v950 = vpop.xlane.xlu0 %949
    %v951 = vsub.f32 %v936, %v947
    %v952 = vsub.f32 %v941, %v950
    %v953 = vmul.f32 %v951, 1.442695
    %v954 = vpow.pop %v953
    %v955 = vmul.f32 %v952, 1.442695
    %v956 = vpow.pop %v955
    %v957 = vsel %vm944, %v954, 0.0
    %958 = vadd.xlane.f32.xlu0 %v957
    %v959 = vpop.xlane.xlu0 %958
    %v960 = vsel %vm944, %v956, 0.0
    %961 = vadd.xlane.f32.xlu0 %v960
    %v962 = vpop.xlane.xlu0 %961
    %v964 = vsel %vm944, %v954, 0
    %v967 = vsel %vm944, %v956, 0
    %969 = vmatprep.subr.mxu0 0.0
    %970 = vmatpush1.msra.mxu0 %v760
    %971 = vmatprep.subr.mxu0 0.0
    %972 = vmatpush1.msra.mxu0 %v764
    %973 = vmatprep.subr.mxu0 0.0
    %974 = vmatpush1.msra.mxu0 0.0
    %975 = vmatprep.subr.mxu0 0.0
    %976 = vmatpush1.msra.mxu0 0.0
    %977 = vmatprep.subr.mxu0 0.0
    %978 = vmatpush1.msra.mxu0 0.0
    %979 = vmatprep.subr.mxu0 0.0
    %980 = vmatpush1.msra.mxu0 0.0
    %981 = vmatprep.subr.mxu0 0.0
    %982 = vmatpush1.msra.mxu0 0.0
    %983 = vmatprep.subr.mxu0 0.0
    %984 = vmatpush1.msra.mxu0 0.0
    %985 = vmatprep.subr.mxu0 0.0
    %986 = vmatpush1.msra.mxu0 0.0
    %987 = vmatprep.subr.mxu0 0.0
    %988 = vmatpush1.msra.mxu0 0.0
    %989 = vmatprep.subr.mxu0 0.0
    %990 = vmatpush1.msra.mxu0 0.0
    %991 = vmatprep.subr.mxu0 0.0
    %992 = vmatpush1.msra.mxu0 0.0
    %993 = vmatprep.subr.mxu0 0.0
    %994 = vmatpush1.msra.mxu0 0.0
    %995 = vmatprep.subr.mxu0 0.0
    %996 = vmatpush1.msra.mxu0 0.0
    %997 = vmatprep.subr.mxu0 0.0
    %998 = vmatpush1.msra.mxu0 0.0
    %999 = vmatprep.subr.mxu0 0.0
    %1000 = vmatpush1.msra.mxu0 0.0
    %1001 = vmatprep.subr.mxu0 0.0
    %1002 = vmatpush1.msra.mxu0 0.0
    %1003 = vmatprep.subr.mxu0 0.0
    %1004 = vmatpush1.msra.mxu0 0.0
    %1005 = vmatprep.subr.mxu0 0.0
    %1006 = vmatpush1.msra.mxu0 0.0
    %1007 = vmatprep.subr.mxu0 0.0
    %1008 = vmatpush1.msra.mxu0 0.0
    %1009 = vmatprep.subr.mxu0 0.0
    %1010 = vmatpush1.msra.mxu0 0.0
    %1011 = vmatprep.subr.mxu0 0.0
    %1012 = vmatpush1.msra.mxu0 0.0
    %1013 = vmatprep.subr.mxu0 0.0
    %1014 = vmatpush1.msra.mxu0 0.0
    %1015 = vmatprep.subr.mxu0 0.0
    %1016 = vmatpush1.msra.mxu0 0.0
    %1017 = vmatprep.subr.mxu0 0.0
    %1018 = vmatpush1.msra.mxu0 0.0
    %1019 = vmatprep.subr.mxu0 0.0
    %1020 = vmatpush1.msra.mxu0 0.0
    %1021 = vmatprep.subr.mxu0 0.0
    %1022 = vmatpush1.msra.mxu0 0.0
    %1023 = vmatprep.subr.mxu0 0.0
    %1024 = vmatpush1.msra.mxu0 0.0
    %1025 = vmatprep.subr.mxu0 0.0
    %1026 = vmatpush1.msra.mxu0 0.0
    %1027 = vmatprep.subr.mxu0 0.0
    %1028 = vmatpush1.msra.mxu0 0.0
    %1029 = vmatprep.subr.mxu0 0.0
    %1030 = vmatpush1.msra.mxu0 0.0
    %1031 = vmatprep.subr.mxu0 0.0
    %1032 = vmatpush1.msra.mxu0 0.0
    %1033 = vmatprep.mubr.f32.mxu0 0.0
    %1034 = vmatmul.mubr.f32.gmra.mrb[0].mxu0 %v964
    %v1035 = vpop.f32.mrb[0].mxu0
    %v1036 = vadd.f32 0.0, %v1035
    %v1037 = vpop.f32.mrb[0].mxu0
    %1038 = vmatprep.mubr.f32.mxu0 0.0
    %1039 = vmatmul.mubr.f32.gmra.mrb[0].mxu0 %v967
    %v1040 = vpop.f32.mrb[0].mxu0
    %v1041 = vadd.f32 0.0, %v1040
    %v1042 = vpop.f32.mrb[0].mxu0
    %1043 = vdwg.mxu0
    %v1044 = vrcp.pop %v959
    %v1045 = vmul.f32 %v1036, %v1044
    %v1046 = vrcp.pop %v962
    %v1047 = vmul.f32 %v1041, %v1046
    %v1048 = vpack.c.bf16 %v1047, %v1045
    %v1049 = vld [vmem:[%s7] sm:$0xff]
    %v1050 = vld [vmem:[%s7 + $0x8] sm:$0xff]
    %v1051 = vld [vmem:[%s7 + $0x10] sm:$0xff]
    %v1052 = vld [vmem:[%s7 + $0x18] sm:$0xff]
    %v1053 = vld [vmem:[%s7 + $0x20] sm:$0xff]
    %v1054 = vld [vmem:[%s7 + $0x28] sm:$0xff]
    %v1055 = vld [vmem:[%s7 + $0x30] sm:$0xff]
    %v1056 = vld [vmem:[%s7 + $0x38] sm:$0xff]
    %v1057 = vld [vmem:[%s7 + $0x40] sm:$0xff]
    %v1058 = vld [vmem:[%s7 + $0x48] sm:$0xff]
    %v1059 = vld [vmem:[%s7 + $0x50] sm:$0xff]
    %v1060 = vld [vmem:[%s7 + $0x58] sm:$0xff]
    %v1061 = vld [vmem:[%s7 + $0x60] sm:$0xff]
    %v1062 = vld [vmem:[%s7 + $0x68] sm:$0xff]
    %v1063 = vld [vmem:[%s7 + $0x70] sm:$0xff]
    %v1064 = vld [vmem:[%s7 + $0x78] sm:$0xff]
    %v1065 = vmul.f32 %v802, %v841
    %v1066 = vmul.f32 %v804, %v842
    %1067 = vrot.lane.b32.xlu0 %v802, 64
    %v1068 = vpop.permute.xlu0 %1067
    %1069 = vrot.lane.b32.xlu0 %v804, 64
    %v1070 = vpop.permute.xlu0 %1069
    %v1071 = vmul.f32 %v1068, %v843
    %v1072 = vmul.f32 %v1070, %v844
    %v1073 = vadd.f32 %v1065, %v1071
    %v1074 = vadd.f32 %v1066, %v1072
    %v1075 = vmul.f32 %v838, %v841
    %v1076 = vmul.f32 %v840, %v842
    %1077 = vrot.lane.b32.xlu0 %v838, 64
    %v1078 = vpop.permute.xlu0 %1077
    %1079 = vrot.lane.b32.xlu0 %v840, 64
    %v1080 = vpop.permute.xlu0 %1079
    %v1081 = vmul.f32 %v1078, %v843
    %v1082 = vmul.f32 %v1080, %v844
    %v1083 = vadd.f32 %v1075, %v1081
    %v1084 = vadd.f32 %v1076, %v1082
    %v1085 = vmul.f32 %v1073, 0.088388346
    %v1086 = vmul.f32 %v1074, 0.088388346
    %1087 = vmatprep.subr.mxu0 0.0
    %1088 = vmatpush1.xpose.msra.mxu0 %v1083
    %1089 = vmatprep.subr.mxu0 0.0
    %1090 = vmatpush1.xpose.msra.mxu0 %v1084
    %1091 = vmatprep.subr.mxu0 0.0
    %1092 = vmatpush1.xpose.msra.mxu0 0.0
    %1093 = vmatprep.subr.mxu0 0.0
    %1094 = vmatpush1.xpose.msra.mxu0 0.0
    %1095 = vmatprep.subr.mxu0 0.0
    %1096 = vmatpush1.xpose.msra.mxu0 0.0
    %1097 = vmatprep.subr.mxu0 0.0
    %1098 = vmatpush1.xpose.msra.mxu0 0.0
    %1099 = vmatprep.subr.mxu0 0.0
    %1100 = vmatpush1.xpose.msra.mxu0 0.0
    %1101 = vmatprep.subr.mxu0 0.0
    %1102 = vmatpush1.xpose.msra.mxu0 0.0
    %1103 = vmatprep.subr.mxu0 0.0
    %1104 = vmatpush1.xpose.msra.mxu0 0.0
    %1105 = vmatprep.subr.mxu0 0.0
    %1106 = vmatpush1.xpose.msra.mxu0 0.0
    %1107 = vmatprep.subr.mxu0 0.0
    %1108 = vmatpush1.xpose.msra.mxu0 0.0
    %1109 = vmatprep.subr.mxu0 0.0
    %1110 = vmatpush1.xpose.msra.mxu0 0.0
    %1111 = vmatprep.subr.mxu0 0.0
    %1112 = vmatpush1.xpose.msra.mxu0 0.0
    %1113 = vmatprep.subr.mxu0 0.0
    %1114 = vmatpush1.xpose.msra.mxu0 0.0
    %1115 = vmatprep.subr.mxu0 0.0
    %1116 = vmatpush1.xpose.msra.mxu0 0.0
    %1117 = vmatprep.subr.mxu0 0.0
    %1118 = vmatpush1.xpose.msra.mxu0 0.0
    %1119 = vmatprep.subr.mxu0 0.0
    %1120 = vmatpush1.xpose.msra.mxu0 0.0
    %1121 = vmatprep.subr.mxu0 0.0
    %1122 = vmatpush1.xpose.msra.mxu0 0.0
    %1123 = vmatprep.subr.mxu0 0.0
    %1124 = vmatpush1.xpose.msra.mxu0 0.0
    %1125 = vmatprep.subr.mxu0 0.0
    %1126 = vmatpush1.xpose.msra.mxu0 0.0
    %1127 = vmatprep.subr.mxu0 0.0
    %1128 = vmatpush1.xpose.msra.mxu0 0.0
    %1129 = vmatprep.subr.mxu0 0.0
    %1130 = vmatpush1.xpose.msra.mxu0 0.0
    %1131 = vmatprep.subr.mxu0 0.0
    %1132 = vmatpush1.xpose.msra.mxu0 0.0
    %1133 = vmatprep.subr.mxu0 0.0
    %1134 = vmatpush1.xpose.msra.mxu0 0.0
    %1135 = vmatprep.subr.mxu0 0.0
    %1136 = vmatpush1.xpose.msra.mxu0 0.0
    %1137 = vmatprep.subr.mxu0 0.0
    %1138 = vmatpush1.xpose.msra.mxu0 0.0
    %1139 = vmatprep.subr.mxu0 0.0
    %1140 = vmatpush1.xpose.msra.mxu0 0.0
    %1141 = vmatprep.subr.mxu0 0.0
    %1142 = vmatpush1.xpose.msra.mxu0 0.0
    %1143 = vmatprep.subr.mxu0 0.0
    %1144 = vmatpush1.xpose.msra.mxu0 0.0
    %1145 = vmatprep.subr.mxu0 0.0
    %1146 = vmatpush1.xpose.msra.mxu0 0.0
    %1147 = vmatprep.subr.mxu0 0.0
    %1148 = vmatpush1.xpose.msra.mxu0 0.0
    %1149 = vmatprep.subr.mxu0 0.0
    %1150 = vmatpush1.xpose.msra.mxu0 0.0
    %1151 = vmatprep.mubr.f32.mxu0 0.0
    %1152 = vmatmul.mubr.f32.gmra.mrb[0].mxu0 %v1085
    %v1153 = vpop.f32.mrb[0].mxu0
    %v1154 = vadd.f32 %v845, %v1153
    %v1155 = vpop.f32.mrb[0].mxu0
    %1156 = vmatprep.mubr.f32.mxu0 0.0
    %1157 = vmatmul.mubr.f32.gmra.mrb[0].mxu0 %v1086
    %v1158 = vpop.f32.mrb[0].mxu0
    %v1159 = vadd.f32 %v846, %v1158
    %v1160 = vpop.f32.mrb[0].mxu0
    %1161 = vdwg.mxu0
    %v1162 = vsel %vm944, %v1154, -inf
    %1163 = vmax.xlane.f32.xlu0 %v1162
    %v1164 = vpop.xlane.xlu0 %1163
    %v1165 = vsel %vm944, %v1159, -inf
    %1166 = vmax.xlane.f32.xlu0 %v1165
    %v1167 = vpop.xlane.xlu0 %1166
    %v1168 = vsub.f32 %v1154, %v1164
    %v1169 = vsub.f32 %v1159, %v1167
    %v1170 = vmul.f32 %v1168, 1.442695
    %v1171 = vpow.pop %v1170
    %v1172 = vmul.f32 %v1169, 1.442695
    %v1173 = vpow.pop %v1172
    %v1174 = vsel %vm944, %v1171, 0.0
    %1175 = vadd.xlane.f32.xlu0 %v1174
    %v1176 = vpop.xlane.xlu0 %1175
    %v1177 = vsel %vm944, %v1173, 0.0
    %1178 = vadd.xlane.f32.xlu0 %v1177
    %v1179 = vpop.xlane.xlu0 %1178
    %v1181 = vsel %vm944, %v1171, 0
    %v1184 = vsel %vm944, %v1173, 0
    %1186 = vmatprep.subr.mxu0 0.0
    %1187 = vmatpush1.msra.mxu0 %v762
    %1188 = vmatprep.subr.mxu0 0.0
    %1189 = vmatpush1.msra.mxu0 %v766
    %1190 = vmatprep.subr.mxu0 0.0
    %1191 = vmatpush1.msra.mxu0 0.0
    %1192 = vmatprep.subr.mxu0 0.0
    %1193 = vmatpush1.msra.mxu0 0.0
    %1194 = vmatprep.subr.mxu0 0.0
    %1195 = vmatpush1.msra.mxu0 0.0
    %1196 = vmatprep.subr.mxu0 0.0
    %1197 = vmatpush1.msra.mxu0 0.0
    %1198 = vmatprep.subr.mxu0 0.0
    %1199 = vmatpush1.msra.mxu0 0.0
    %1200 = vmatprep.subr.mxu0 0.0
    %1201 = vmatpush1.msra.mxu0 0.0
    %1202 = vmatprep.subr.mxu0 0.0
    %1203 = vmatpush1.msra.mxu0 0.0
    %1204 = vmatprep.subr.mxu0 0.0
    %1205 = vmatpush1.msra.mxu0 0.0
    %1206 = vmatprep.subr.mxu0 0.0
    %1207 = vmatpush1.msra.mxu0 0.0
    %1208 = vmatprep.subr.mxu0 0.0
    %1209 = vmatpush1.msra.mxu0 0.0
    %1210 = vmatprep.subr.mxu0 0.0
    %1211 = vmatpush1.msra.mxu0 0.0
    %1212 = vmatprep.subr.mxu0 0.0
    %1213 = vmatpush1.msra.mxu0 0.0
    %1214 = vmatprep.subr.mxu0 0.0
    %1215 = vmatpush1.msra.mxu0 0.0
    %1216 = vmatprep.subr.mxu0 0.0
    %1217 = vmatpush1.msra.mxu0 0.0
    %1218 = vmatprep.subr.mxu0 0.0
    %1219 = vmatpush1.msra.mxu0 0.0
    %1220 = vmatprep.subr.mxu0 0.0
    %1221 = vmatpush1.msra.mxu0 0.0
    %1222 = vmatprep.subr.mxu0 0.0
    %1223 = vmatpush1.msra.mxu0 0.0
    %1224 = vmatprep.subr.mxu0 0.0
    %1225 = vmatpush1.msra.mxu0 0.0
    %1226 = vmatprep.subr.mxu0 0.0
    %1227 = vmatpush1.msra.mxu0 0.0
    %1228 = vmatprep.subr.mxu0 0.0
    %1229 = vmatpush1.msra.mxu0 0.0
    %1230 = vmatprep.subr.mxu0 0.0
    %1231 = vmatpush1.msra.mxu0 0.0
    %1232 = vmatprep.subr.mxu0 0.0
    %1233 = vmatpush1.msra.mxu0 0.0
    %1234 = vmatprep.subr.mxu0 0.0
    %1235 = vmatpush1.msra.mxu0 0.0
    %1236 = vmatprep.subr.mxu0 0.0
    %1237 = vmatpush1.msra.mxu0 0.0
    %1238 = vmatprep.subr.mxu0 0.0
    %1239 = vmatpush1.msra.mxu0 0.0
    %1240 = vmatprep.subr.mxu0 0.0
    %1241 = vmatpush1.msra.mxu0 0.0
    %1242 = vmatprep.subr.mxu0 0.0
    %1243 = vmatpush1.msra.mxu0 0.0
    %1244 = vmatprep.subr.mxu0 0.0
    %1245 = vmatpush1.msra.mxu0 0.0
    %1246 = vmatprep.subr.mxu0 0.0
    %1247 = vmatpush1.msra.mxu0 0.0
    %1248 = vmatprep.subr.mxu0 0.0
    %1249 = vmatpush1.msra.mxu0 0.0
    %1250 = vmatprep.mubr.f32.mxu0 0.0
    %1251 = vmatmul.mubr.f32.gmra.mrb[0].mxu0 %v1181
    %v1252 = vpop.f32.mrb[0].mxu0
    %v1253 = vadd.f32 0.0, %v1252
    %v1254 = vpop.f32.mrb[0].mxu0
    %1255 = vmatprep.mubr.f32.mxu0 0.0
    %1256 = vmatmul.mubr.f32.gmra.mrb[0].mxu0 %v1184
    %v1257 = vpop.f32.mrb[0].mxu0
    %v1258 = vadd.f32 0.0, %v1257
    %v1259 = vpop.f32.mrb[0].mxu0
    %1260 = vdwg.mxu0
    %v1261 = vrcp.pop %v1176
    %v1262 = vmul.f32 %v1253, %v1261
    %v1263 = vrcp.pop %v1179
    %v1264 = vmul.f32 %v1258, %v1263
    %v1265 = vpack.c.bf16 %v1264, %v1262
    %v1266 = vld [vmem:[%s7 + $0x80] sm:$0xff]
    %v1267 = vld [vmem:[%s7 + $0x88] sm:$0xff]
    %v1268 = vld [vmem:[%s7 + $0x90] sm:$0xff]
    %v1269 = vld [vmem:[%s7 + $0x98] sm:$0xff]
    %v1270 = vld [vmem:[%s7 + $0xa0] sm:$0xff]
    %v1271 = vld [vmem:[%s7 + $0xa8] sm:$0xff]
    %v1272 = vld [vmem:[%s7 + $0xb0] sm:$0xff]
    %v1273 = vld [vmem:[%s7 + $0xb8] sm:$0xff]
    %v1274 = vld [vmem:[%s7 + $0xc0] sm:$0xff]
    %v1275 = vld [vmem:[%s7 + $0xc8] sm:$0xff]
    %v1276 = vld [vmem:[%s7 + $0xd0] sm:$0xff]
    %v1277 = vld [vmem:[%s7 + $0xd8] sm:$0xff]
    %v1278 = vld [vmem:[%s7 + $0xe0] sm:$0xff]
    %v1279 = vld [vmem:[%s7 + $0xe8] sm:$0xff]
    %v1280 = vld [vmem:[%s7 + $0xf0] sm:$0xff]
    %v1281 = vld [vmem:[%s7 + $0xf8] sm:$0xff]
    %v1298 = vunpack.c.l.b16 %v1266
    %v1299 = vunpack.c.h.b16 %v1266
    %v1300 = vunpack.c.l.b16 %v1267
    %v1301 = vunpack.c.h.b16 %v1267
    %v1302 = vunpack.c.l.b16 %v1268
    %v1303 = vunpack.c.h.b16 %v1268
    %v1304 = vunpack.c.l.b16 %v1269
    %v1305 = vunpack.c.h.b16 %v1269
    %v1306 = vunpack.c.l.b16 %v1270
    %v1307 = vunpack.c.h.b16 %v1270
    %v1308 = vunpack.c.l.b16 %v1271
    %v1309 = vunpack.c.h.b16 %v1271
    %v1310 = vunpack.c.l.b16 %v1272
    %v1311 = vunpack.c.h.b16 %v1272
    %v1312 = vunpack.c.l.b16 %v1273
    %v1313 = vunpack.c.h.b16 %v1273
    %v1314 = vunpack.c.l.b16 %v1274
    %v1315 = vunpack.c.h.b16 %v1274
    %v1316 = vunpack.c.l.b16 %v1275
    %v1317 = vunpack.c.h.b16 %v1275
    %v1318 = vunpack.c.l.b16 %v1276
    %v1319 = vunpack.c.h.b16 %v1276
    %v1320 = vunpack.c.l.b16 %v1277
    %v1321 = vunpack.c.h.b16 %v1277
    %v1322 = vunpack.c.l.b16 %v1278
    %v1323 = vunpack.c.h.b16 %v1278
    %v1324 = vunpack.c.l.b16 %v1279
    %v1325 = vunpack.c.h.b16 %v1279
    %v1326 = vunpack.c.l.b16 %v1280
    %v1327 = vunpack.c.h.b16 %v1280
    %v1328 = vunpack.c.l.b16 %v1281
    %v1329 = vunpack.c.h.b16 %v1281
    %v1330 = vpack.c.b16 %v1300, %v1298
    %v1331 = vpack.c.b16 %v1301, %v1299
    %v1332 = vpack.c.b16 %v1304, %v1302
    %v1333 = vpack.c.b16 %v1305, %v1303
    %v1334 = vpack.c.b16 %v1308, %v1306
    %v1335 = vpack.c.b16 %v1309, %v1307
    %v1336 = vpack.c.b16 %v1312, %v1310
    %v1337 = vpack.c.b16 %v1313, %v1311
    %v1338 = vpack.c.b16 %v1316, %v1314
    %v1339 = vpack.c.b16 %v1317, %v1315
    %v1340 = vpack.c.b16 %v1320, %v1318
    %v1341 = vpack.c.b16 %v1321, %v1319
    %v1342 = vpack.c.b16 %v1324, %v1322
    %v1343 = vpack.c.b16 %v1325, %v1323
    %v1344 = vpack.c.b16 %v1328, %v1326
    %v1345 = vpack.c.b16 %v1329, %v1327
    %1362 = vmatprep.subr.bf16.mxu0 %v1331
    %1363 = vmatpush1.bf16.msra.mxu0 %v1330
    %1364 = vmatprep.subr.bf16.mxu0 %v1333
    %1365 = vmatpush1.bf16.msra.mxu0 %v1332
    %1366 = vmatprep.subr.bf16.mxu0 %v1335
    %1367 = vmatpush1.bf16.msra.mxu0 %v1334
    %1368 = vmatprep.subr.bf16.mxu0 %v1337
    %1369 = vmatpush1.bf16.msra.mxu0 %v1336
    %1370 = vmatprep.subr.bf16.mxu0 %v1339
    %1371 = vmatpush1.bf16.msra.mxu0 %v1338
    %1372 = vmatprep.subr.bf16.mxu0 %v1341
    %1373 = vmatpush1.bf16.msra.mxu0 %v1340
    %1374 = vmatprep.subr.bf16.mxu0 %v1343
    %1375 = vmatpush1.bf16.msra.mxu0 %v1342
    %1376 = vmatprep.subr.bf16.mxu0 %v1345
    %1377 = vmatpush1.bf16.msra.mxu0 %v1344
    %1378 = vmatprep.subr.bf16.mxu0 0
    %1379 = vmatpush1.bf16.msra.mxu0 0
    %1380 = vmatprep.subr.bf16.mxu0 0
    %1381 = vmatpush1.bf16.msra.mxu0 0
    %1382 = vmatprep.subr.bf16.mxu0 0
    %1383 = vmatpush1.bf16.msra.mxu0 0
    %1384 = vmatprep.subr.bf16.mxu0 0
    %1385 = vmatpush1.bf16.msra.mxu0 0
    %1386 = vmatprep.subr.bf16.mxu0 0
    %1387 = vmatpush1.bf16.msra.mxu0 0
    %1388 = vmatprep.subr.bf16.mxu0 0
    %1389 = vmatpush1.bf16.msra.mxu0 0
    %1390 = vmatprep.subr.bf16.mxu0 0
    %1391 = vmatpush1.bf16.msra.mxu0 0
    %1392 = vmatprep.subr.bf16.mxu0 0
    %1393 = vmatpush1.bf16.msra.mxu0 0
    %1394 = vmatprep.mubr.bf16.mxu0 0
    %1395 = vmatmul.mubr.bf16.gmra.mrb[0].mxu0 %v1265
    %v1396 = vpop.f32.mrb[0].mxu0
    %v1397 = vadd.f32 0.0, %v1396
    %v1398 = vpop.f32.mrb[0].mxu0
    %v1399 = vadd.f32 0.0, %v1398
    %v1400 = vpop.f32.mrb[0].mxu0
    %v1401 = vadd.f32 0.0, %v1400
    %v1402 = vpop.f32.mrb[0].mxu0
    %v1403 = vadd.f32 0.0, %v1402
    %1404 = vdwg.mxu0
    %v1421 = vunpack.c.l.b16 %v1049
    %v1422 = vunpack.c.h.b16 %v1049
    %v1423 = vunpack.c.l.b16 %v1050
    %v1424 = vunpack.c.h.b16 %v1050
    %v1425 = vunpack.c.l.b16 %v1051
    %v1426 = vunpack.c.h.b16 %v1051
    %v1427 = vunpack.c.l.b16 %v1052
    %v1428 = vunpack.c.h.b16 %v1052
    %v1429 = vunpack.c.l.b16 %v1053
    %v1430 = vunpack.c.h.b16 %v1053
    %v1431 = vunpack.c.l.b16 %v1054
    %v1432 = vunpack.c.h.b16 %v1054
    %v1433 = vunpack.c.l.b16 %v1055
    %v1434 = vunpack.c.h.b16 %v1055
    %v1435 = vunpack.c.l.b16 %v1056
    %v1436 = vunpack.c.h.b16 %v1056
    %v1437 = vunpack.c.l.b16 %v1057
    %v1438 = vunpack.c.h.b16 %v1057
    %v1439 = vunpack.c.l.b16 %v1058
    %v1440 = vunpack.c.h.b16 %v1058
    %v1441 = vunpack.c.l.b16 %v1059
    %v1442 = vunpack.c.h.b16 %v1059
    %v1443 = vunpack.c.l.b16 %v1060
    %v1444 = vunpack.c.h.b16 %v1060
    %v1445 = vunpack.c.l.b16 %v1061
    %v1446 = vunpack.c.h.b16 %v1061
    %v1447 = vunpack.c.l.b16 %v1062
    %v1448 = vunpack.c.h.b16 %v1062
    %v1449 = vunpack.c.l.b16 %v1063
    %v1450 = vunpack.c.h.b16 %v1063
    %v1451 = vunpack.c.l.b16 %v1064
    %v1452 = vunpack.c.h.b16 %v1064
    %v1453 = vpack.c.b16 %v1423, %v1421
    %v1454 = vpack.c.b16 %v1424, %v1422
    %v1455 = vpack.c.b16 %v1427, %v1425
    %v1456 = vpack.c.b16 %v1428, %v1426
    %v1457 = vpack.c.b16 %v1431, %v1429
    %v1458 = vpack.c.b16 %v1432, %v1430
    %v1459 = vpack.c.b16 %v1435, %v1433
    %v1460 = vpack.c.b16 %v1436, %v1434
    %v1461 = vpack.c.b16 %v1439, %v1437
    %v1462 = vpack.c.b16 %v1440, %v1438
    %v1463 = vpack.c.b16 %v1443, %v1441
    %v1464 = vpack.c.b16 %v1444, %v1442
    %v1465 = vpack.c.b16 %v1447, %v1445
    %v1466 = vpack.c.b16 %v1448, %v1446
    %v1467 = vpack.c.b16 %v1451, %v1449
    %v1468 = vpack.c.b16 %v1452, %v1450
    %1485 = vmatprep.subr.bf16.mxu0 %v1454
    %1486 = vmatpush1.bf16.msra.mxu0 %v1453
    %1487 = vmatprep.subr.bf16.mxu0 %v1456
    %1488 = vmatpush1.bf16.msra.mxu0 %v1455
    %1489 = vmatprep.subr.bf16.mxu0 %v1458
    %1490 = vmatpush1.bf16.msra.mxu0 %v1457
    %1491 = vmatprep.subr.bf16.mxu0 %v1460
    %1492 = vmatpush1.bf16.msra.mxu0 %v1459
    %1493 = vmatprep.subr.bf16.mxu0 %v1462
    %1494 = vmatpush1.bf16.msra.mxu0 %v1461
    %1495 = vmatprep.subr.bf16.mxu0 %v1464
    %1496 = vmatpush1.bf16.msra.mxu0 %v1463
    %1497 = vmatprep.subr.bf16.mxu0 %v1466
    %1498 = vmatpush1.bf16.msra.mxu0 %v1465
    %1499 = vmatprep.subr.bf16.mxu0 %v1468
    %1500 = vmatpush1.bf16.msra.mxu0 %v1467
    %1501 = vmatprep.subr.bf16.mxu0 0
    %1502 = vmatpush1.bf16.msra.mxu0 0
    %1503 = vmatprep.subr.bf16.mxu0 0
    %1504 = vmatpush1.bf16.msra.mxu0 0
    %1505 = vmatprep.subr.bf16.mxu0 0
    %1506 = vmatpush1.bf16.msra.mxu0 0
    %1507 = vmatprep.subr.bf16.mxu0 0
    %1508 = vmatpush1.bf16.msra.mxu0 0
    %1509 = vmatprep.subr.bf16.mxu0 0
    %1510 = vmatpush1.bf16.msra.mxu0 0
    %1511 = vmatprep.subr.bf16.mxu0 0
    %1512 = vmatpush1.bf16.msra.mxu0 0
    %1513 = vmatprep.subr.bf16.mxu0 0
    %1514 = vmatpush1.bf16.msra.mxu0 0
    %1515 = vmatprep.subr.bf16.mxu0 0
    %1516 = vmatpush1.bf16.msra.mxu0 0
    %1517 = vmatprep.mubr.bf16.mxu0 0
    %1518 = vmatmul.mubr.bf16.gmra.mrb[0].mxu0 %v1048
    %v1519 = vpop.f32.mrb[0].mxu0
    %v1520 = vadd.f32 %v1397, %v1519
    %v1521 = vpop.f32.mrb[0].mxu0
    %v1522 = vadd.f32 %v1399, %v1521
    %v1523 = vpop.f32.mrb[0].mxu0
    %v1524 = vadd.f32 %v1401, %v1523
    %v1525 = vpop.f32.mrb[0].mxu0
    %v1526 = vadd.f32 %v1403, %v1525
    %1527 = vdwg.mxu0
    %v1528 = vld [vmem:[%s8] sm:$0x3]
    %v1529 = vmul.f32 %v1520, %v1520
    %v1530 = vmul.f32 %v1522, %v1522
    %v1531 = vmul.f32 %v1524, %v1524
    %v1532 = vmul.f32 %v1526, %v1526
    %v1533 = vadd.f32 %v1529, %v1530
    %1534 = vadd.xlane.f32.xlu0 %v1533
    %v1535 = vpop.xlane.xlu0 %1534
    %v1536 = vadd.f32 %v1531, %v1532
    %1537 = vadd.xlane.f32.xlu0 %v1536
    %v1538 = vpop.xlane.xlu0 %1537
    %v1539 = vmul.f32 %v1535, %v779
    %v1540 = vmul.f32 %v1538, %v779
    %v1541 = vadd.f32 %v1539, 1e-05
    %v1542 = vadd.f32 %v1540, 1e-05
    %v1543 = vrsqrt.pop %v1541
    %v1544 = vrsqrt.pop %v1542
    %v1545 = vmul.f32 %v1520, %v1543
    %v1546 = vmul.f32 %v1522, %v1543
    %v1547 = vmul.f32 %v1524, %v1544
    %v1548 = vmul.f32 %v1526, %v1544
    %v1550 = vlaneseq
    %v1551 = vshrl.u32 %v1550, 7
    %v1552 = vsub.s32 0, %v1551
    %v1553 = vrot.slane %v1528, %v1552
    %v1554 = vlaneseq
    %v1555 = vshrl.u32 %v1554, 7
    %v1556 = vsub.s32 1, %v1555
    %v1557 = vrot.slane %v1528, %v1556
    %v1560 = vmul.f32 %v1545, %v1553
    %v1561 = vmul.f32 %v1546, %v1557
    %v1562 = vmul.f32 %v1547, %v1553
    %v1563 = vmul.f32 %v1548, %v1557
    %v1564 = vadd.f32 %v1560, %v49
    %v1565 = vadd.f32 %v1561, %v50
    %v1566 = vadd.f32 %v1562, %v51
    %v1567 = vadd.f32 %v1563, %v52
    %v1568 = vpack.c.bf16 %v1566, %v1564
    %v1569 = vpack.c.bf16 %v1567, %v1565
    %v1572 = vunpack.c.l.b16 %v1568
    %v1573 = vunpack.c.l.b16 %v1569
    %v1574 = vunpack.c.h.b16 %v1568
    %v1575 = vunpack.c.h.b16 %v1569
    %v1576 = vpack.c.b16 %v1573, %v1572
    %v1577 = vpack.c.b16 %v1575, %v1574
    %1580 = vst [vmem:[%s9] sm:$0xff] %v1576
    %1581 = vst [vmem:[%s9 + $0x8] sm:$0xff] %v1577
    // Predicated region
    $region42: #{olmo2_forward.6} parent=1 // pred_check
      _
    $region43: #{olmo2_forward.6} parent=1 // pred_check_branch
      %1583 = sbr.rel (0) target = $region45
    $region44: #{olmo2_forward.6} parent=1 // pred_region
      _
    $region45: #{olmo2_forward.6} parent=1 // pred_fallthru
      _
    // Predicated region
    $region46: #{olmo2_forward.6} parent=1 // pred_check
      _
    $region47: #{olmo2_forward.6} parent=1 // pred_check_branch
      %1585 = sbr.rel (0) target = $region49
    $region48: #{olmo2_forward.6} parent=1 // pred_region
      _
    $region49: #{olmo2_forward.6} parent=1 // pred_fallthru
      _
    %1586 = vsyncpa [#allocation3], 1

// kernel: olmo2_forward.10
$region0: #{olmo2_forward.10}
  #allocation0 [shape = 'u32[]', space=smem, size = 0x4, offset = 0x4, fixed_abs, tag = 'smem constant byte address 0x4 - core index']
  #allocation1 [shape = 'u32[144,128]{1,0:T(1,128)}', space=vmem, size = 0x12000, scoped, tag = 'internal scratch']
  %s0 = inlined_call_operand.vmem [shape: bf16[16,256], index: 0, kind: input, shape index: {}]
  %s1 = inlined_call_operand.vmem [shape: f32[1,256], index: 1, kind: input, shape index: {}]
  %s2 = inlined_call_operand.vmem [shape: bf16[16,256], index: 2, kind: output, shape index: {}]
  %s3 = sld [smem:[#allocation0]]
  $region18: #{olmo2_forward.10} parent=0
    _
  %s5 = ssub.s32 1, %s3
  %s6 = scalar_select 0, %s5, %s3
  // Predicated region
  $region2: #{olmo2_forward.10} parent=0 // pred_check
    _
  $region3: #{olmo2_forward.10} parent=0 // pred_check_branch
    %8 = sbr.rel (0) target = $region5
  $region4: #{olmo2_forward.10} parent=0 // pred_region
    _
  $region5: #{olmo2_forward.10} parent=0 // pred_fallthru
    _
  // Predicated region
  $region6: #{olmo2_forward.10} parent=0 // pred_check
    _
  $region7: #{olmo2_forward.10} parent=0 // pred_check_branch
    %10 = sbr.rel (0) target = $region9
  $region8: #{olmo2_forward.10} parent=0 // pred_region
    _
  $region9: #{olmo2_forward.10} parent=0 // pred_fallthru
    _
  %v11 = vld [vmem:[%s0] sm:$0xff]
  %v12 = vld [vmem:[%s0 + $0x8] sm:$0xff]
  %v13 = vunpack.c.l.bf16 %v11
  %v14 = vunpack.c.h.bf16 %v11
  %v15 = vunpack.c.l.bf16 %v12
  %v16 = vunpack.c.h.bf16 %v12
  %v17 = vld [vmem:[%s1] sm:$0x3]
  %v18 = vmul.f32 %v13, %v13
  %v19 = vmul.f32 %v14, %v14
  %v20 = vmul.f32 %v15, %v15
  %v21 = vmul.f32 %v16, %v16
  %v22 = vadd.f32 %v18, %v19
  %23 = vadd.xlane.f32.xlu0 %v22
  %v24 = vpop.xlane.xlu0 %23
  %v25 = vadd.f32 %v20, %v21
  %26 = vadd.xlane.f32.xlu0 %v25
  %v27 = vpop.xlane.xlu0 %26
  %v28 = vrcp.pop 256.0
  %v29 = vmul.f32 %v24, %v28
  %v30 = vmul.f32 %v27, %v28
  %v31 = vadd.f32 %v29, 1e-05
  %v32 = vadd.f32 %v30, 1e-05
  %v33 = vrsqrt.pop %v31
  %v34 = vrsqrt.pop %v32
  %v35 = vmul.f32 %v13, %v33
  %v36 = vmul.f32 %v14, %v33
  %v37 = vmul.f32 %v15, %v34
  %v38 = vmul.f32 %v16, %v34
  %v40 = vlaneseq
  %v41 = vshrl.u32 %v40, 7
  %v42 = vsub.s32 0, %v41
  %v43 = vrot.slane %v17, %v42
  %v44 = vlaneseq
  %v45 = vshrl.u32 %v44, 7
  %v46 = vsub.s32 1, %v45
  %v47 = vrot.slane %v17, %v46
  %v50 = vmul.f32 %v35, %v43
  %v51 = vmul.f32 %v36, %v47
  %v52 = vmul.f32 %v37, %v43
  %v53 = vmul.f32 %v38, %v47
  %v54 = vpack.c.bf16 %v52, %v50
  %v55 = vpack.c.bf16 %v53, %v51
  %v58 = vunpack.c.l.b16 %v54
  %v59 = vunpack.c.l.b16 %v55
  %v60 = vunpack.c.h.b16 %v54
  %v61 = vunpack.c.h.b16 %v55
  %v62 = vpack.c.b16 %v59, %v58
  %v63 = vpack.c.b16 %v61, %v60
  %66 = vst [vmem:[%s2] sm:$0xff] %v62
  %67 = vst [vmem:[%s2 + $0x8] sm:$0xff] %v63
  // Predicated region
  $region10: #{olmo2_forward.10} parent=0 // pred_check
    _
  $region11: #{olmo2_forward.10} parent=0 // pred_check_branch
    %69 = sbr.rel (0) target = $region13
  $region12: #{olmo2_forward.10} parent=0 // pred_region
    _
  $region13: #{olmo2_forward.10} parent=0 // pred_fallthru
    _
  // Predicated region
  $region14: #{olmo2_forward.10} parent=0 // pred_check
    _
  $region15: #{olmo2_forward.10} parent=0 // pred_check_branch
    %71 = sbr.rel (0) target = $region17
  $region16: #{olmo2_forward.10} parent=0 // pred_region
    _
  $region17: #{olmo2_forward.10} parent=0 // pred_fallthru
    _

// kernel: olmo2_forward.11
$region0: #{olmo2_forward.11}
  #allocation0 [shape = 'u32[]', space=smem, size = 0x4, offset = 0x4, fixed_abs, tag = 'smem constant byte address 0x4 - core index']
  #allocation1 [shape = 'u32[144,128]{1,0:T(1,128)}', space=vmem, size = 0x12000, scoped, tag = 'internal scratch']
  %s0 = inlined_call_operand.vmem [shape: bf16[16,256], index: 0, kind: input, shape index: {}]
  %s1 = inlined_call_operand.vmem [shape: bf16[256,512], index: 1, kind: input, shape index: {}]
  %s2 = inlined_call_operand.hbm [shape: f32[16,512], index: 2, kind: output, shape index: {}]
  %s3 = sld [smem:[#allocation0]]
  $region79: #{olmo2_forward.11} parent=0
    _
  %s5 = ssub.s32 1, %s3
  %s6 = scalar_select 0, %s5, %s3
  $region1: #{olmo2_forward.11} parent=0
    #allocation2 [shape = 'u8[262144]{0}', space=vmem, size = 0x40000, scoped, tag = 'input window, operand 1']
    #allocation3 [shape = 'u8[32768]{0}', space=vmem, size = 0x8000, scoped, tag = 'output window, operand 0']
    #allocation4 [shape = 's32[2]{0}', space=sflag, size = 0x8, scoped, tag = 'scoped memory for olmo2_forward.11']
    %7 = vsyncpa [#allocation4], 0
    %s8 = scalar_lea.sflag [#allocation4], 1
    %9 = vsyncpa %s8, 0
    loop: start=0, step=1, limit=4
    $region2: #{olmo2_forward.11} parent=1 // loop_pre_header
      _
    $region3: #{olmo2_forward.11} parent=1 // loop_header
      %s11 = sphi 0, %s15
      %p12 = scmp.ge.s32.totalorder %s11, 4
      %s19 = sphi 0, %s19
      %s21 = sphi 0, %s19
      %s22 = sphi 0, %s21
      %s36 = sphi 0, %s22
      %s42 = sphi 0, %s44
      %s45 = sphi 0, %s42
      %s46 = sphi 0, %s45
      %s62 = sphi 0, %s46
      %s68 = sphi 0, %s70
      %s71 = sphi 0, %s68
      %s72 = sphi 0, %s71
      %s88 = sphi 0, %s72
    $region4: #{olmo2_forward.11} parent=1 // loop_header_branch
      %14 = sbr.rel (%p12) target = $region8
    $region5: #{olmo2_forward.11} parent=1 // loop_body
      %s16 = ssub.s32 %s11, 1
      %s17 = ssub.s32 %s11, 2
      %s18 = sadd.s32 %s11, 1
      %s20 = sadd.s32 %s19, 1
      %p23 = scmp.eq.s32.totalorder %s11, 1
      %p24 = scmp.ne.s32.totalorder %s19, %s21
      %p25 = scmp.eq.s32.totalorder %s11, 0
      %p26 = por %p24, %p25
      %p27 = scmp.ne.s32.totalorder %s19, %s21
      %p28 = scmp.eq.s32.totalorder %s16, 1
      %p29 = por %p27, %p28
      %p30 = scmp.ne.s32.totalorder %s21, %s22
      %p31 = scmp.eq.s32.totalorder %s16, 0
      %p32 = por %p30, %p31
      %p33 = scmp.ne.s32.totalorder %s21, %s22
      %p34 = scmp.eq.s32.totalorder %s17, 1
      %p35 = por %p33, %p34
      %p37 = scmp.ne.s32.totalorder %s22, %s36
      %p38 = scmp.eq.s32.totalorder %s17, 0
      %p39 = por %p37, %p38
      %s40 = ssub.s32 %s11, %s18
      %p41 = scmp.eq.s32.totalorder %s40, 0
      %s43 = sadd.s32 %s42, 1
      %s44 = scalar_select %p41, %s42, %s43
      %p47 = pneg %p41
      %p48 = scmp.eq.s32.totalorder %s11, 1
      %p49 = por %p47, %p48
      %p50 = scmp.ne.s32.totalorder %s42, %s45
      %p51 = scmp.eq.s32.totalorder %s11, 0
      %p52 = por %p50, %p51
      %p53 = scmp.ne.s32.totalorder %s42, %s45
      %p54 = scmp.eq.s32.totalorder %s16, 1
      %p55 = por %p53, %p54
      %p56 = scmp.ne.s32.totalorder %s45, %s46
      %p57 = scmp.eq.s32.totalorder %s16, 0
      %p58 = por %p56, %p57
      %p59 = scmp.ne.s32.totalorder %s45, %s46
      %p60 = scmp.eq.s32.totalorder %s17, 1
      %p61 = por %p59, %p60
      %p63 = scmp.ne.s32.totalorder %s46, %s62
      %p64 = scmp.eq.s32.totalorder %s17, 0
      %p65 = por %p63, %p64
      %s66 = ssub.s32 %s11, %s18
      %p67 = scmp.eq.s32.totalorder %s66, 0
      %s69 = sadd.s32 %s68, 1
      %s70 = scalar_select %p67, %s68, %s69
      %p73 = pneg %p67
      %p74 = scmp.eq.s32.totalorder %s11, 1
      %p75 = por %p73, %p74
      %p76 = scmp.ne.s32.totalorder %s68, %s71
      %p77 = scmp.eq.s32.totalorder %s11, 0
      %p78 = por %p76, %p77
      %p79 = scmp.ne.s32.totalorder %s68, %s71
      %p80 = scmp.eq.s32.totalorder %s16, 1
      %p81 = por %p79, %p80
      %p82 = scmp.ne.s32.totalorder %s71, %s72
      %p83 = scmp.eq.s32.totalorder %s16, 0
      %p84 = por %p82, %p83
      %p85 = scmp.ne.s32.totalorder %s71, %s72
      %p86 = scmp.eq.s32.totalorder %s17, 1
      %p87 = por %p85, %p86
      %p89 = scmp.ne.s32.totalorder %s72, %s88
      %p90 = scmp.eq.s32.totalorder %s17, 0
      %p91 = por %p89, %p90
      %p92 = scmp.le.s32.totalorder 1, %s11
      %p93 = scmp.lt.s32.totalorder %s11, 3
      %p94 = pnand %p92, %p93
      %p95 = pneg %p94
      // Predicated region
      $region9: #{olmo2_forward.11} parent=5 // pred_check
        _
      $region10: #{olmo2_forward.11} parent=5 // pred_check_branch
        %97 = sbr.rel (%p94) target = $region12
      $region11: #{olmo2_forward.11} parent=5 // pred_region
        %s98 = ssub.s32 %s11, 1
        // Predicated region
        $region13: #{olmo2_forward.11} parent=11 // pred_check
          %p99 = pneg %p32
        $region14: #{olmo2_forward.11} parent=11 // pred_check_branch
          %101 = sbr.rel (%p99) target = $region16
        $region15: #{olmo2_forward.11} parent=11 // pred_region
          _
        $region16: #{olmo2_forward.11} parent=11 // pred_fallthru
          _
      $region12: #{olmo2_forward.11} parent=5 // pred_fallthru
        _
      %p102 = scmp.lt.s32.totalorder %s11, 2
      // Predicated region
      $region17: #{olmo2_forward.11} parent=5 // pred_check
        %p103 = pneg %p102
      $region18: #{olmo2_forward.11} parent=5 // pred_check_branch
        %105 = sbr.rel (%p103) target = $region20
      $region19: #{olmo2_forward.11} parent=5 // pred_region
        // Predicated region
        $region21: #{olmo2_forward.11} parent=19 // pred_check
          %p106 = pneg %p52
        $region22: #{olmo2_forward.11} parent=19 // pred_check_branch
          %108 = sbr.rel (%p106) target = $region24
        $region23: #{olmo2_forward.11} parent=19 // pred_region
          %s109 = sand.u32 %s42, 1
          %s110 = sand.u32 %s42, 1
          %s111 = smul.addr %s110, 256
          %s112 = scalar_lea.vmem [#allocation2], %s111
          %s113 = smul.u32 2, %s11
          %s114 = smul.addr %s113, 4
          %s115 = scalar_lea.vmem %s1, %s114
          // Predicated region
          $region25: #{olmo2_forward.11} parent=23 // pred_check
            _
          $region26: #{olmo2_forward.11} parent=23 // pred_check_branch
            %117 = sbr.rel (0) target = $region28
          $region27: #{olmo2_forward.11} parent=23 // pred_region
            // Predicated region
            $region29: #{olmo2_forward.11} parent=27 // pred_check
              _
            $region30: #{olmo2_forward.11} parent=27 // pred_check_branch
              %119 = sbr.rel (0) target = $region32
            $region31: #{olmo2_forward.11} parent=27 // pred_region
              // Predicated region
              $region44: #{olmo2_forward.11} parent=31 // pred_check
                _
              $region45: #{olmo2_forward.11} parent=31 // pred_check_branch
                %196 = sbr.rel (0) target = $region47
              $region46: #{olmo2_forward.11} parent=31 // pred_region
                loop: start=0, step=1, limit=1
                $region48: #{olmo2_forward.11} parent=46 // loop_pre_header
                  _
                $region49: #{olmo2_forward.11} parent=46 // loop_header
                  %s198 = sphi 0, %s202
                  %p199 = scmp.ge.s32.totalorder %s198, 1
                  %s203 = sphi %s115, %s115
                  %s204 = sphi %s112, %s112
                $region50: #{olmo2_forward.11} parent=46 // loop_header_branch
                  %201 = sbr.rel (%p199) target = $region54
                $region51: #{olmo2_forward.11} parent=46 // loop_body
                  %v205 = vld [vmem:[%s203] sm:$0xff]
                  %206 = vst [vmem:[%s204] sm:$0xff] %v205
                  %v207 = vld [vmem:[%s203 + $0x10] sm:$0xff]
                  %208 = vst [vmem:[%s204 + $0x8] sm:$0xff] %v207
                  %v209 = vld [vmem:[%s203 + $0x20] sm:$0xff]
                  %210 = vst [vmem:[%s204 + $0x10] sm:$0xff] %v209
                  %v211 = vld [vmem:[%s203 + $0x30] sm:$0xff]
                  %212 = vst [vmem:[%s204 + $0x18] sm:$0xff] %v211
                  %v213 = vld [vmem:[%s203 + $0x40] sm:$0xff]
                  %214 = vst [vmem:[%s204 + $0x20] sm:$0xff] %v213
                  %v215 = vld [vmem:[%s203 + $0x50] sm:$0xff]
                  %216 = vst [vmem:[%s204 + $0x28] sm:$0xff] %v215
                  %v217 = vld [vmem:[%s203 + $0x60] sm:$0xff]
                  %218 = vst [vmem:[%s204 + $0x30] sm:$0xff] %v217
                  %v219 = vld [vmem:[%s203 + $0x70] sm:$0xff]
                  %220 = vst [vmem:[%s204 + $0x38] sm:$0xff] %v219
                  %v221 = vld [vmem:[%s203 + $0x80] sm:$0xff]
                  %222 = vst [vmem:[%s204 + $0x40] sm:$0xff] %v221
                  %v223 = vld [vmem:[%s203 + $0x90] sm:$0xff]
                  %224 = vst [vmem:[%s204 + $0x48] sm:$0xff] %v223
                  %v225 = vld [vmem:[%s203 + $0xa0] sm:$0xff]
                  %226 = vst [vmem:[%s204 + $0x50] sm:$0xff] %v225
                  %v227 = vld [vmem:[%s203 + $0xb0] sm:$0xff]
                  %228 = vst [vmem:[%s204 + $0x58] sm:$0xff] %v227
                  %v229 = vld [vmem:[%s203 + $0xc0] sm:$0xff]
                  %230 = vst [vmem:[%s204 + $0x60] sm:$0xff] %v229
                  %v231 = vld [vmem:[%s203 + $0xd0] sm:$0xff]
                  %232 = vst [vmem:[%s204 + $0x68] sm:$0xff] %v231
                  %v233 = vld [vmem:[%s203 + $0xe0] sm:$0xff]
                  %234 = vst [vmem:[%s204 + $0x70] sm:$0xff] %v233
                  %v235 = vld [vmem:[%s203 + $0xf0] sm:$0xff]
                  %236 = vst [vmem:[%s204 + $0x78] sm:$0xff] %v235
                  %v237 = vld [vmem:[%s203 + $0x100] sm:$0xff]
                  %238 = vst [vmem:[%s204 + $0x80] sm:$0xff] %v237
                  %v239 = vld [vmem:[%s203 + $0x110] sm:$0xff]
                  %240 = vst [vmem:[%s204 + $0x88] sm:$0xff] %v239
                  %v241 = vld [vmem:[%s203 + $0x120] sm:$0xff]
                  %242 = vst [vmem:[%s204 + $0x90] sm:$0xff] %v241
                  %v243 = vld [vmem:[%s203 + $0x130] sm:$0xff]
                  %244 = vst [vmem:[%s204 + $0x98] sm:$0xff] %v243
                  %v245 = vld [vmem:[%s203 + $0x140] sm:$0xff]
                  %246 = vst [vmem:[%s204 + $0xa0] sm:$0xff] %v245
                  %v247 = vld [vmem:[%s203 + $0x150] sm:$0xff]
                  %248 = vst [vmem:[%s204 + $0xa8] sm:$0xff] %v247
                  %v249 = vld [vmem:[%s203 + $0x160] sm:$0xff]
                  %250 = vst [vmem:[%s204 + $0xb0] sm:$0xff] %v249
                  %v251 = vld [vmem:[%s203 + $0x170] sm:$0xff]
                  %252 = vst [vmem:[%s204 + $0xb8] sm:$0xff] %v251
                  %v253 = vld [vmem:[%s203 + $0x180] sm:$0xff]
                  %254 = vst [vmem:[%s204 + $0xc0] sm:$0xff] %v253
                  %v255 = vld [vmem:[%s203 + $0x190] sm:$0xff]
                  %256 = vst [vmem:[%s204 + $0xc8] sm:$0xff] %v255
                  %v257 = vld [vmem:[%s203 + $0x1a0] sm:$0xff]
                  %258 = vst [vmem:[%s204 + $0xd0] sm:$0xff] %v257
                  %v259 = vld [vmem:[%s203 + $0x1b0] sm:$0xff]
                  %260 = vst [vmem:[%s204 + $0xd8] sm:$0xff] %v259
                  %v261 = vld [vmem:[%s203 + $0x1c0] sm:$0xff]
                  %262 = vst [vmem:[%s204 + $0xe0] sm:$0xff] %v261
                  %v263 = vld [vmem:[%s203 + $0x1d0] sm:$0xff]
                  %264 = vst [vmem:[%s204 + $0xe8] sm:$0xff] %v263
                  %v265 = vld [vmem:[%s203 + $0x1e0] sm:$0xff]
                  %266 = vst [vmem:[%s204 + $0xf0] sm:$0xff] %v265
                  %v267 = vld [vmem:[%s203 + $0x1f0] sm:$0xff]
                  %268 = vst [vmem:[%s204 + $0xf8] sm:$0xff] %v267
                $region52: #{olmo2_forward.11} parent=46 // loop_footer
                  %s202 = sadd.s32 1, %s198
                $region53: #{olmo2_forward.11} parent=46 // loop_footer_branch
                  %197 = sbr.rel target = $region49
                $region54: #{olmo2_forward.11} parent=46 // loop_exit
                  _
              $region47: #{olmo2_forward.11} parent=31 // pred_fallthru
                _
              // Predicated region
              $region55: #{olmo2_forward.11} parent=31 // pred_check
                _
              $region56: #{olmo2_forward.11} parent=31 // pred_check_branch
                %270 = sbr.rel target = $region58
              $region57: #{olmo2_forward.11} parent=31 // pred_region
                _
              $region58: #{olmo2_forward.11} parent=31 // pred_fallthru
                _
            $region32: #{olmo2_forward.11} parent=27 // pred_fallthru
              _
            // Predicated region
            $region33: #{olmo2_forward.11} parent=27 // pred_check
              _
            $region34: #{olmo2_forward.11} parent=27 // pred_check_branch
              %121 = sbr.rel target = $region36
            $region35: #{olmo2_forward.11} parent=27 // pred_region
              loop: start=0, step=1, limit=1
              $region37: #{olmo2_forward.11} parent=35 // loop_pre_header
                _
              $region38: #{olmo2_forward.11} parent=35 // loop_header
                %s124 = sphi 0, %s128
                %p125 = scmp.ge.s32.totalorder %s124, 1
                %s129 = sphi %s115, %s115
                %s130 = sphi %s112, %s112
              $region39: #{olmo2_forward.11} parent=35 // loop_header_branch
                %127 = sbr.rel (%p125) target = $region43
              $region40: #{olmo2_forward.11} parent=35 // loop_body
                %v131 = vld [vmem:[%s129] sm:$0xff]
                %132 = vst [vmem:[%s130] sm:$0xff] %v131
                %v133 = vld [vmem:[%s129 + $0x10] sm:$0xff]
                %134 = vst [vmem:[%s130 + $0x8] sm:$0xff] %v133
                %v135 = vld [vmem:[%s129 + $0x20] sm:$0xff]
                %136 = vst [vmem:[%s130 + $0x10] sm:$0xff] %v135
                %v137 = vld [vmem:[%s129 + $0x30] sm:$0xff]
                %138 = vst [vmem:[%s130 + $0x18] sm:$0xff] %v137
                %v139 = vld [vmem:[%s129 + $0x40] sm:$0xff]
                %140 = vst [vmem:[%s130 + $0x20] sm:$0xff] %v139
                %v141 = vld [vmem:[%s129 + $0x50] sm:$0xff]
                %142 = vst [vmem:[%s130 + $0x28] sm:$0xff] %v141
                %v143 = vld [vmem:[%s129 + $0x60] sm:$0xff]
                %144 = vst [vmem:[%s130 + $0x30] sm:$0xff] %v143
                %v145 = vld [vmem:[%s129 + $0x70] sm:$0xff]
                %146 = vst [vmem:[%s130 + $0x38] sm:$0xff] %v145
                %v147 = vld [vmem:[%s129 + $0x80] sm:$0xff]
                %148 = vst [vmem:[%s130 + $0x40] sm:$0xff] %v147
                %v149 = vld [vmem:[%s129 + $0x90] sm:$0xff]
                %150 = vst [vmem:[%s130 + $0x48] sm:$0xff] %v149
                %v151 = vld [vmem:[%s129 + $0xa0] sm:$0xff]
                %152 = vst [vmem:[%s130 + $0x50] sm:$0xff] %v151
                %v153 = vld [vmem:[%s129 + $0xb0] sm:$0xff]
                %154 = vst [vmem:[%s130 + $0x58] sm:$0xff] %v153
                %v155 = vld [vmem:[%s129 + $0xc0] sm:$0xff]
                %156 = vst [vmem:[%s130 + $0x60] sm:$0xff] %v155
                %v157 = vld [vmem:[%s129 + $0xd0] sm:$0xff]
                %158 = vst [vmem:[%s130 + $0x68] sm:$0xff] %v157
                %v159 = vld [vmem:[%s129 + $0xe0] sm:$0xff]
                %160 = vst [vmem:[%s130 + $0x70] sm:$0xff] %v159
                %v161 = vld [vmem:[%s129 + $0xf0] sm:$0xff]
                %162 = vst [vmem:[%s130 + $0x78] sm:$0xff] %v161
                %v163 = vld [vmem:[%s129 + $0x100] sm:$0xff]
                %164 = vst [vmem:[%s130 + $0x80] sm:$0xff] %v163
                %v165 = vld [vmem:[%s129 + $0x110] sm:$0xff]
                %166 = vst [vmem:[%s130 + $0x88] sm:$0xff] %v165
                %v167 = vld [vmem:[%s129 + $0x120] sm:$0xff]
                %168 = vst [vmem:[%s130 + $0x90] sm:$0xff] %v167
                %v169 = vld [vmem:[%s129 + $0x130] sm:$0xff]
                %170 = vst [vmem:[%s130 + $0x98] sm:$0xff] %v169
                %v171 = vld [vmem:[%s129 + $0x140] sm:$0xff]
                %172 = vst [vmem:[%s130 + $0xa0] sm:$0xff] %v171
                %v173 = vld [vmem:[%s129 + $0x150] sm:$0xff]
                %174 = vst [vmem:[%s130 + $0xa8] sm:$0xff] %v173
                %v175 = vld [vmem:[%s129 + $0x160] sm:$0xff]
                %176 = vst [vmem:[%s130 + $0xb0] sm:$0xff] %v175
                %v177 = vld [vmem:[%s129 + $0x170] sm:$0xff]
                %178 = vst [vmem:[%s130 + $0xb8] sm:$0xff] %v177
                %v179 = vld [vmem:[%s129 + $0x180] sm:$0xff]
                %180 = vst [vmem:[%s130 + $0xc0] sm:$0xff] %v179
                %v181 = vld [vmem:[%s129 + $0x190] sm:$0xff]
                %182 = vst [vmem:[%s130 + $0xc8] sm:$0xff] %v181
                %v183 = vld [vmem:[%s129 + $0x1a0] sm:$0xff]
                %184 = vst [vmem:[%s130 + $0xd0] sm:$0xff] %v183
                %v185 = vld [vmem:[%s129 + $0x1b0] sm:$0xff]
                %186 = vst [vmem:[%s130 + $0xd8] sm:$0xff] %v185
                %v187 = vld [vmem:[%s129 + $0x1c0] sm:$0xff]
                %188 = vst [vmem:[%s130 + $0xe0] sm:$0xff] %v187
                %v189 = vld [vmem:[%s129 + $0x1d0] sm:$0xff]
                %190 = vst [vmem:[%s130 + $0xe8] sm:$0xff] %v189
                %v191 = vld [vmem:[%s129 + $0x1e0] sm:$0xff]
                %192 = vst [vmem:[%s130 + $0xf0] sm:$0xff] %v191
                %v193 = vld [vmem:[%s129 + $0x1f0] sm:$0xff]
                %194 = vst [vmem:[%s130 + $0xf8] sm:$0xff] %v193
              $region41: #{olmo2_forward.11} parent=35 // loop_footer
                %s128 = sadd.s32 1, %s124
              $region42: #{olmo2_forward.11} parent=35 // loop_footer_branch
                %123 = sbr.rel target = $region38
              $region43: #{olmo2_forward.11} parent=35 // loop_exit
                _
            $region36: #{olmo2_forward.11} parent=27 // pred_fallthru
              _
          $region28: #{olmo2_forward.11} parent=23 // pred_fallthru
            _
          %271 = vnop
        $region24: #{olmo2_forward.11} parent=19 // pred_fallthru
          _
      $region20: #{olmo2_forward.11} parent=5 // pred_fallthru
        _
      %p272 = scmp.le.s32.totalorder 1, %s11
      %p273 = scmp.lt.s32.totalorder %s11, 3
      %p274 = pnand %p272, %p273
      %p275 = pneg %p274
      // Predicated region
      $region59: #{olmo2_forward.11} parent=5 // pred_check
        _
      $region60: #{olmo2_forward.11} parent=5 // pred_check_branch
        %277 = sbr.rel (%p274) target = $region62
      $region61: #{olmo2_forward.11} parent=5 // pred_region
        %s278 = ssub.s32 %s11, 1
        %s279 = sand.u32 %s45, 1
        %s280 = sand.u32 %s45, 1
        %s281 = smul.addr %s280, 256
        %s282 = scalar_lea.vmem [#allocation2], %s281
        // Predicated region
        $region63: #{olmo2_forward.11} parent=61 // pred_check
          %p283 = pneg %p58
        $region64: #{olmo2_forward.11} parent=61 // pred_check_branch
          %285 = sbr.rel (%p283) target = $region66
        $region65: #{olmo2_forward.11} parent=61 // pred_region
          _
        $region66: #{olmo2_forward.11} parent=61 // pred_fallthru
          _
        %p286 = pneg %p32
        %p287 = pneg %p29
        %s288 = sand.u32 %s45, 1
        %s289 = sand.u32 %s45, 1
        %s290 = smul.addr %s289, 256
        %s291 = scalar_lea.vmem [#allocation2], %s290
        %p292 = pneg %p58
        %p293 = pneg %p55
        %p294 = pneg %p84
        %p295 = pneg %p81
        %s296 = sand.u32 %s71, 1
        %s297 = scalar_lea.sflag [#allocation4], %s296
        %s298 = sand.u32 %s71, 1
        %s299 = smul.addr %s298, 32
        %s300 = scalar_lea.vmem [#allocation3], %s299
        %s301 = smul.u32 2, %s16
        %s302 = smul.u32 2, %s16
        %v303 = vld [vmem:[%s0] sm:$0xff]
        %v304 = vld [vmem:[%s0 + $0x8] sm:$0xff]
        %v305 = vld [vmem:[%s282] sm:$0xff]
        %v306 = vld [vmem:[%s282 + $0x8] sm:$0xff]
        %v307 = vld [vmem:[%s282 + $0x10] sm:$0xff]
        %v308 = vld [vmem:[%s282 + $0x18] sm:$0xff]
        %v309 = vld [vmem:[%s282 + $0x20] sm:$0xff]
        %v310 = vld [vmem:[%s282 + $0x28] sm:$0xff]
        %v311 = vld [vmem:[%s282 + $0x30] sm:$0xff]
        %v312 = vld [vmem:[%s282 + $0x38] sm:$0xff]
        %v313 = vld [vmem:[%s282 + $0x40] sm:$0xff]
        %v314 = vld [vmem:[%s282 + $0x48] sm:$0xff]
        %v315 = vld [vmem:[%s282 + $0x50] sm:$0xff]
        %v316 = vld [vmem:[%s282 + $0x58] sm:$0xff]
        %v317 = vld [vmem:[%s282 + $0x60] sm:$0xff]
        %v318 = vld [vmem:[%s282 + $0x68] sm:$0xff]
        %v319 = vld [vmem:[%s282 + $0x70] sm:$0xff]
        %v320 = vld [vmem:[%s282 + $0x78] sm:$0xff]
        %v321 = vld [vmem:[%s282 + $0x80] sm:$0xff]
        %v322 = vld [vmem:[%s282 + $0x88] sm:$0xff]
        %v323 = vld [vmem:[%s282 + $0x90] sm:$0xff]
        %v324 = vld [vmem:[%s282 + $0x98] sm:$0xff]
        %v325 = vld [vmem:[%s282 + $0xa0] sm:$0xff]
        %v326 = vld [vmem:[%s282 + $0xa8] sm:$0xff]
        %v327 = vld [vmem:[%s282 + $0xb0] sm:$0xff]
        %v328 = vld [vmem:[%s282 + $0xb8] sm:$0xff]
        %v329 = vld [vmem:[%s282 + $0xc0] sm:$0xff]
        %v330 = vld [vmem:[%s282 + $0xc8] sm:$0xff]
        %v331 = vld [vmem:[%s282 + $0xd0] sm:$0xff]
        %v332 = vld [vmem:[%s282 + $0xd8] sm:$0xff]
        %v333 = vld [vmem:[%s282 + $0xe0] sm:$0xff]
        %v334 = vld [vmem:[%s282 + $0xe8] sm:$0xff]
        %v335 = vld [vmem:[%s282 + $0xf0] sm:$0xff]
        %v336 = vld [vmem:[%s282 + $0xf8] sm:$0xff]
        %v339 = vunpack.c.l.b16 %v303
        %v340 = vunpack.c.h.b16 %v303
        %v341 = vunpack.c.l.b16 %v304
        %v342 = vunpack.c.h.b16 %v304
        %v343 = vpack.c.b16 %v341, %v339
        %v344 = vpack.c.b16 %v342, %v340
        %v379 = vunpack.c.l.b16 %v305
        %v380 = vunpack.c.h.b16 %v305
        %v381 = vunpack.c.l.b16 %v306
        %v382 = vunpack.c.h.b16 %v306
        %v383 = vunpack.c.l.b16 %v307
        %v384 = vunpack.c.h.b16 %v307
        %v385 = vunpack.c.l.b16 %v308
        %v386 = vunpack.c.h.b16 %v308
        %v387 = vunpack.c.l.b16 %v309
        %v388 = vunpack.c.h.b16 %v309
        %v389 = vunpack.c.l.b16 %v310
        %v390 = vunpack.c.h.b16 %v310
        %v391 = vunpack.c.l.b16 %v311
        %v392 = vunpack.c.h.b16 %v311
        %v393 = vunpack.c.l.b16 %v312
        %v394 = vunpack.c.h.b16 %v312
        %v395 = vunpack.c.l.b16 %v313
        %v396 = vunpack.c.h.b16 %v313
        %v397 = vunpack.c.l.b16 %v314
        %v398 = vunpack.c.h.b16 %v314
        %v399 = vunpack.c.l.b16 %v315
        %v400 = vunpack.c.h.b16 %v315
        %v401 = vunpack.c.l.b16 %v316
        %v402 = vunpack.c.h.b16 %v316
        %v403 = vunpack.c.l.b16 %v317
        %v404 = vunpack.c.h.b16 %v317
        %v405 = vunpack.c.l.b16 %v318
        %v406 = vunpack.c.h.b16 %v318
        %v407 = vunpack.c.l.b16 %v319
        %v408 = vunpack.c.h.b16 %v319
        %v409 = vunpack.c.l.b16 %v320
        %v410 = vunpack.c.h.b16 %v320
        %v411 = vunpack.c.l.b16 %v321
        %v412 = vunpack.c.h.b16 %v321
        %v413 = vunpack.c.l.b16 %v322
        %v414 = vunpack.c.h.b16 %v322
        %v415 = vunpack.c.l.b16 %v323
        %v416 = vunpack.c.h.b16 %v323
        %v417 = vunpack.c.l.b16 %v324
        %v418 = vunpack.c.h.b16 %v324
        %v419 = vunpack.c.l.b16 %v325
        %v420 = vunpack.c.h.b16 %v325
        %v421 = vunpack.c.l.b16 %v326
        %v422 = vunpack.c.h.b16 %v326
        %v423 = vunpack.c.l.b16 %v327
        %v424 = vunpack.c.h.b16 %v327
        %v425 = vunpack.c.l.b16 %v328
        %v426 = vunpack.c.h.b16 %v328
        %v427 = vunpack.c.l.b16 %v329
        %v428 = vunpack.c.h.b16 %v329
        %v429 = vunpack.c.l.b16 %v330
        %v430 = vunpack.c.h.b16 %v330
        %v431 = vunpack.c.l.b16 %v331
        %v432 = vunpack.c.h.b16 %v331
        %v433 = vunpack.c.l.b16 %v332
        %v434 = vunpack.c.h.b16 %v332
        %v435 = vunpack.c.l.b16 %v333
        %v436 = vunpack.c.h.b16 %v333
        %v437 = vunpack.c.l.b16 %v334
        %v438 = vunpack.c.h.b16 %v334
        %v439 = vunpack.c.l.b16 %v335
        %v440 = vunpack.c.h.b16 %v335
        %v441 = vunpack.c.l.b16 %v336
        %v442 = vunpack.c.h.b16 %v336
        %v443 = vpack.c.b16 %v381, %v379
        %v444 = vpack.c.b16 %v382, %v380
        %v445 = vpack.c.b16 %v385, %v383
        %v446 = vpack.c.b16 %v386, %v384
        %v447 = vpack.c.b16 %v389, %v387
        %v448 = vpack.c.b16 %v390, %v388
        %v449 = vpack.c.b16 %v393, %v391
        %v450 = vpack.c.b16 %v394, %v392
        %v451 = vpack.c.b16 %v397, %v395
        %v452 = vpack.c.b16 %v398, %v396
        %v453 = vpack.c.b16 %v401, %v399
        %v454 = vpack.c.b16 %v402, %v400
        %v455 = vpack.c.b16 %v405, %v403
        %v456 = vpack.c.b16 %v406, %v404
        %v457 = vpack.c.b16 %v409, %v407
        %v458 = vpack.c.b16 %v410, %v408
        %v459 = vpack.c.b16 %v413, %v411
        %v460 = vpack.c.b16 %v414, %v412
        %v461 = vpack.c.b16 %v417, %v415
        %v462 = vpack.c.b16 %v418, %v416
        %v463 = vpack.c.b16 %v421, %v419
        %v464 = vpack.c.b16 %v422, %v420
        %v465 = vpack.c.b16 %v425, %v423
        %v466 = vpack.c.b16 %v426, %v424
        %v467 = vpack.c.b16 %v429, %v427
        %v468 = vpack.c.b16 %v430, %v428
        %v469 = vpack.c.b16 %v433, %v431
        %v470 = vpack.c.b16 %v434, %v432
        %v471 = vpack.c.b16 %v437, %v435
        %v472 = vpack.c.b16 %v438, %v436
        %v473 = vpack.c.b16 %v441, %v439
        %v474 = vpack.c.b16 %v442, %v440
        %507 = vmatprep.subr.bf16.mxu0 %v444
        %508 = vmatpush1.bf16.msra.mxu0 %v443
        %509 = vmatprep.subr.bf16.mxu0 %v446
        %510 = vmatpush1.bf16.msra.mxu0 %v445
        %511 = vmatprep.subr.bf16.mxu0 %v448
        %512 = vmatpush1.bf16.msra.mxu0 %v447
        %513 = vmatprep.subr.bf16.mxu0 %v450
        %514 = vmatpush1.bf16.msra.mxu0 %v449
        %515 = vmatprep.subr.bf16.mxu0 %v452
        %516 = vmatpush1.bf16.msra.mxu0 %v451
        %517 = vmatprep.subr.bf16.mxu0 %v454
        %518 = vmatpush1.bf16.msra.mxu0 %v453
        %519 = vmatprep.subr.bf16.mxu0 %v456
        %520 = vmatpush1.bf16.msra.mxu0 %v455
        %521 = vmatprep.subr.bf16.mxu0 %v458
        %522 = vmatpush1.bf16.msra.mxu0 %v457
        %523 = vmatprep.subr.bf16.mxu0 %v460
        %524 = vmatpush1.bf16.msra.mxu0 %v459
        %525 = vmatprep.subr.bf16.mxu0 %v462
        %526 = vmatpush1.bf16.msra.mxu0 %v461
        %527 = vmatprep.subr.bf16.mxu0 %v464
        %528 = vmatpush1.bf16.msra.mxu0 %v463
        %529 = vmatprep.subr.bf16.mxu0 %v466
        %530 = vmatpush1.bf16.msra.mxu0 %v465
        %531 = vmatprep.subr.bf16.mxu0 %v468
        %532 = vmatpush1.bf16.msra.mxu0 %v467
        %533 = vmatprep.subr.bf16.mxu0 %v470
        %534 = vmatpush1.bf16.msra.mxu0 %v469
        %535 = vmatprep.subr.bf16.mxu0 %v472
        %536 = vmatpush1.bf16.msra.mxu0 %v471
        %537 = vmatprep.subr.bf16.mxu0 %v474
        %538 = vmatpush1.bf16.msra.mxu0 %v473
        %539 = vmatprep.mubr.bf16.mxu0 %v344
        %540 = vmatmul.mubr.bf16.gmra.mrb[0].mxu0 %v343
        %v541 = vpop.f32.mrb[0].mxu0
        %v542 = vadd.f32 0.0, %v541
        %v543 = vpop.f32.mrb[0].mxu0
        %v544 = vadd.f32 0.0, %v543
        %v545 = vpop.f32.mrb[0].mxu0
        %v546 = vadd.f32 0.0, %v545
        %v547 = vpop.f32.mrb[0].mxu0
        %v548 = vadd.f32 0.0, %v547
        %549 = vdwg.mxu0
        %550 = vst [vmem:[%s300] sm:$0xff] %v542
        %551 = vst [vmem:[%s300 + $0x8] sm:$0xff] %v544
        %552 = vst [vmem:[%s300 + $0x10] sm:$0xff] %v546
        %553 = vst [vmem:[%s300 + $0x18] sm:$0xff] %v548
        %s554 = sand.u32 %s71, 1
        %s555 = scalar_lea.sflag [#allocation4], %s554
        %s556 = sand.u32 %s71, 1
        %s557 = smul.addr %s556, 32
        %s558 = scalar_lea.vmem [#allocation3], %s557
        // Predicated region
        $region67: #{olmo2_forward.11} parent=61 // pred_check
          %p559 = pneg %p81
        $region68: #{olmo2_forward.11} parent=61 // pred_check_branch
          %561 = sbr.rel (%p559) target = $region70
        $region69: #{olmo2_forward.11} parent=61 // pred_region
          %s562 = smul.u32 2, %s16
          %s564 = ssub.s32 512, 512
          %565 = vsyncadd %s555, %s564
          %s566 = smul.addr %s562, 128
          %s567 = scalar_lea.hbm %s2, %s566
          %s568 = sshll.u32 %s558, 4
          %s569 = int_to_ptr.vmem [resolvable:$true] %s568
          %574 = dma.vmem_to_hbm [thread:$0]  %s569, 512, %s567, %s555, 256, 512, 16
        $region70: #{olmo2_forward.11} parent=61 // pred_fallthru
          _
      $region62: #{olmo2_forward.11} parent=5 // pred_fallthru
        _
      %p575 = scmp.le.s32.totalorder 2, %s11
      // Predicated region
      $region71: #{olmo2_forward.11} parent=5 // pred_check
        %p576 = pneg %p575
      $region72: #{olmo2_forward.11} parent=5 // pred_check_branch
        %578 = sbr.rel (%p576) target = $region74
      $region73: #{olmo2_forward.11} parent=5 // pred_region
        %s579 = ssub.s32 %s11, 2
        // Predicated region
        $region75: #{olmo2_forward.11} parent=73 // pred_check
          %p580 = pneg %p87
        $region76: #{olmo2_forward.11} parent=73 // pred_check_branch
          %582 = sbr.rel (%p580) target = $region78
        $region77: #{olmo2_forward.11} parent=73 // pred_region
          %s583 = sand.u32 %s72, 1
          %s584 = scalar_lea.sflag [#allocation4], %s583
          %s585 = sand.u32 %s72, 1
          %s586 = smul.addr %s585, 32
          %s587 = scalar_lea.vmem [#allocation3], %s586
          %588 = dma.done %s584, 512
        $region78: #{olmo2_forward.11} parent=73 // pred_fallthru
          _
      $region74: #{olmo2_forward.11} parent=5 // pred_fallthru
        _
    $region6: #{olmo2_forward.11} parent=1 // loop_footer
      %s15 = sadd.s32 1, %s11
    $region7: #{olmo2_forward.11} parent=1 // loop_footer_branch
      %10 = sbr.rel target = $region3
    $region8: #{olmo2_forward.11} parent=1 // loop_exit
      _
    %589 = vsyncpa [#allocation4], 1
    %s590 = scalar_lea.sflag [#allocation4], 1
    %591 = vsyncpa %s590, 1

</llo_original>
